<compile_context>
chip_gen: v7x
topology: tpu7x:2x2x1
jax: 0.10.0
libtpu: 0.0.40
codegen_flags: <defaults>
</compile_context>

<pallas_src>
import functools

import jax
import jax.numpy as jnp
from jax.experimental import pallas as pl
from jax.experimental.pallas import tpu as pltpu

CLASSES = 809
HIDDEN = 512
VT_IN = 16            # 4 (v) + 12 (t) real input features
VT_PAD = 128          # lane-aligned v/t window width
MAX_BATCH_TILE = 512  # keep <= 512 so tiles fit v7x's 64 MiB VMEM
MEGACORE_MIN_B = 32   # force >= 2 grid steps above this (v7x TC sharding)


def _round_up(n, m):
    return ((n + m - 1) // m) * m


def _cdiv(a, b):
    return -(-a // b)


def _padded_width(classes):
    # single activation slab width: c (classes) + v/t (16), lane-padded
    return _round_up(classes + VT_IN, 128)


# ----------------------------------------------------------------------------
# Kernel: all 6 matmuls + ReLUs + feature-concat in one pallas_call.
# ----------------------------------------------------------------------------
def first_block_kernel(
    x_ref,
    w1c_ref, b1c_ref, w2c_ref, b2c_ref,
    w1vt_ref, b1vt_ref,
    w2v_ref, b2v_ref,
    w2t_ref, b2t_ref,
    out_ref,
):
    x = x_ref[...]                                   # [TB, c_pad] bf16

    # ---- c branch: [TB,896] @ [896,512] -> relu -> @ [512,512] -> relu ----
    h_c = jnp.dot(x, w1c_ref[...], preferred_element_type=jnp.float32)
    h_c = jnp.maximum(h_c + b1c_ref[...], 0.0)
    y_c = jnp.dot(h_c.astype(jnp.bfloat16), w2c_ref[...],
                  preferred_element_type=jnp.float32)
    out_ref[:, 0 * HIDDEN:1 * HIDDEN] = jnp.maximum(
        y_c + b2c_ref[...], 0.0).astype(out_ref.dtype)

    # ---- fused v/t first layer: last 128 lanes of x @ [128,1024] -> relu ----
    # Overlapping c columns in this window hit zero weight rows -> exact.
    vt = x[:, x.shape[1] - VT_PAD:]
    h_vt = jnp.dot(vt, w1vt_ref[...], preferred_element_type=jnp.float32)
    h_vt = jnp.maximum(h_vt + b1vt_ref[...], 0.0).astype(jnp.bfloat16)

    # ---- v second layer ----
    y_v = jnp.dot(h_vt[:, :HIDDEN], w2v_ref[...],
                  preferred_element_type=jnp.float32)
    out_ref[:, 1 * HIDDEN:2 * HIDDEN] = jnp.maximum(
        y_v + b2v_ref[...], 0.0).astype(out_ref.dtype)

    # ---- t second layer ----
    y_t = jnp.dot(h_vt[:, HIDDEN:], w2t_ref[...],
                  preferred_element_type=jnp.float32)
    out_ref[:, 2 * HIDDEN:3 * HIDDEN] = jnp.maximum(
        y_t + b2t_ref[...], 0.0).astype(out_ref.dtype)


# ----------------------------------------------------------------------------
# One-time parameter preparation (padding / fusing / bf16 cast hoisted out of
# the per-call forward).
# ----------------------------------------------------------------------------
def prepare_params(params, classes=CLASSES):
    c_pad = _padded_width(classes)
    off = classes - (c_pad - VT_PAD)        # v/t offset inside last 128 lanes
    assert 0 <= off and off + VT_IN <= VT_PAD, (classes, c_pad, off)

    # fc1_c weight: [classes,512] -> zero-pad input dim to c_pad, cast bf16.
    # Rows classes..c_pad-1 are zero, so the v/t + pad columns of x contribute 0.
    w1c = jnp.zeros((c_pad, HIDDEN), jnp.float32)
    w1c = w1c.at[:classes, :].set(params["w1c"]).astype(jnp.bfloat16)

    # Fused fc1_v / fc1_t weight: [128, 1024] block-structured; real rows sit
    # at the positions where v/t land inside x[:, c_pad-128 : c_pad].
    w1vt = jnp.zeros((VT_PAD, 2 * HIDDEN), jnp.float32)
    w1vt = w1vt.at[off:off + 4, 0:HIDDEN].set(params["w1v"])
    w1vt = w1vt.at[off + 4:off + VT_IN, HIDDEN:2 * HIDDEN].set(params["w1t"])
    w1vt = w1vt.astype(jnp.bfloat16)

    b1vt = jnp.concatenate([params["b1v"], params["b1t"]]).reshape(1, 2 * HIDDEN)

    prepped = {
        "w1c": w1c,
        "b1c": params["b1c"].reshape(1, HIDDEN).astype(jnp.float32),
        "w2c": params["w2c"].astype(jnp.bfloat16),
        "b2c": params["b2c"].reshape(1, HIDDEN).astype(jnp.float32),
        "w1vt": w1vt,
        "b1vt": b1vt.astype(jnp.float32),
        "w2v": params["w2v"].astype(jnp.bfloat16),
        "b2v": params["b2v"].reshape(1, HIDDEN).astype(jnp.float32),
        "w2t": params["w2t"].astype(jnp.bfloat16),
        "b2t": params["b2t"].reshape(1, HIDDEN).astype(jnp.float32),
    }
    return jax.tree_util.tree_map(jax.device_put, prepped)


# ----------------------------------------------------------------------------
# Forward
# ----------------------------------------------------------------------------
def _batch_tiling(batch):
    """Balanced batch tiles: cdiv-based, 16-row aligned, <=512 rows/tile."""
    n_tiles = max(1, _cdiv(batch, MAX_BATCH_TILE))
    if batch >= MEGACORE_MIN_B:
        n_tiles = max(n_tiles, 2)           # let "parallel" use both v7x TCs
    tb = _round_up(_cdiv(batch, n_tiles), 16)
    return tb, tb * n_tiles, n_tiles


@functools.partial(
    jax.jit,
    static_argnames=("classes", "out_dtype", "single_buffer_weights"))
def first_block_forward(x, prepped, classes=CLASSES,
                        out_dtype=jnp.bfloat16, single_buffer_weights=True):
    """x: [B, classes+16] f32 (or pre-padded [B, c_pad] bf16) -> [B, 3*512]."""
    B = x.shape[0]
    c_pad = _padded_width(classes)
    assert x.shape[1] in (classes + VT_IN, c_pad), x.shape

    tb, b_pad, n_tiles = _batch_tiling(B)

    # Single pad+cast of the activations (no-op column pad / cast if the
    # caller already supplies a lane-padded bf16 slab).
    x_p = jnp.pad(x.astype(jnp.bfloat16),
                  ((0, b_pad - B), (0, c_pad - x.shape[1])))

    act_spec = pl.BlockSpec((tb, c_pad), lambda i: (i, 0))
    out_spec = pl.BlockSpec((tb, 3 * HIDDEN), lambda i: (i, 0))

    def const_spec(shape):
        # Block index never changes -> VMEM-resident; single-buffer to avoid
        # keeping two copies of the ~2.6 MiB weight set.
        if single_buffer_weights:
            return pl.BlockSpec(shape, lambda i: (0, 0),
                                pipeline_mode=pl.Buffered(1))
        return pl.BlockSpec(shape, lambda i: (0, 0))

    out_bytes = jnp.dtype(out_dtype).itemsize
    weight_bytes = 2 * (c_pad * HIDDEN + VT_PAD * 2 * HIDDEN
                        + 3 * HIDDEN * HIDDEN) + 4 * (6 * HIDDEN)
    flops = 2 * b_pad * (c_pad * HIDDEN + VT_PAD * 2 * HIDDEN
                         + 3 * HIDDEN * HIDDEN)
    bytes_accessed = (b_pad * c_pad * 2 + weight_bytes
                      + b_pad * 3 * HIDDEN * out_bytes)

    out = pl.pallas_call(
        first_block_kernel,
        out_shape=jax.ShapeDtypeStruct((b_pad, 3 * HIDDEN), out_dtype),
        grid=(n_tiles,),
        in_specs=[
            act_spec,
            const_spec((c_pad, HIDDEN)),            # w1c
            const_spec((1, HIDDEN)),                # b1c
            const_spec((HIDDEN, HIDDEN)),           # w2c
            const_spec((1, HIDDEN)),                # b2c
            const_spec((VT_PAD, 2 * HIDDEN)),       # w1vt (fused v/t)
            const_spec((1, 2 * HIDDEN)),            # b1vt
            const_spec((HIDDEN, HIDDEN)),           # w2v
            const_spec((1, HIDDEN)),                # b2v
            const_spec((HIDDEN, HIDDEN)),           # w2t
            const_spec((1, HIDDEN)),                # b2t
        ],
        out_specs=out_spec,
        compiler_params=pltpu.CompilerParams(
            dimension_semantics=("parallel",),
            vmem_limit_bytes=32 * 1024 * 1024,
        ),
        cost_estimate=pl.CostEstimate(
            flops=flops, transcendentals=0, bytes_accessed=bytes_accessed),
    )(
        x_p,
        prepped["w1c"], prepped["b1c"], prepped["w2c"], prepped["b2c"],
        prepped["w1vt"], prepped["b1vt"],
        prepped["w2v"], prepped["b2v"],
        prepped["w2t"], prepped["b2t"],
    )
    return out[:B]


# ----------------------------------------------------------------------------
# Reference (pure JAX, f32) and init mimicking nn.Linear
# ----------------------------------------------------------------------------
def init_params(key, classes=CLASSES):
    keys = jax.random.split(key, 12)

    def linear(kw, kb, fan_in, fan_out):
        bound = 1.0 / jnp.sqrt(jnp.float32(fan_in))
        w = jax.random.uniform(kw, (fan_in, fan_out), jnp.float32, -bound, bound)
        b = jax.random.uniform(kb, (fan_out,), jnp.float32, -bound, bound)
        return w, b

    p = {}
    p["w1c"], p["b1c"] = linear(keys[0], keys[1], classes, HIDDEN)
    p["w2c"], p["b2c"] = linear(keys[2], keys[3], HIDDEN, HIDDEN)
    p["w1v"], p["b1v"] = linear(keys[4], keys[5], 4, HIDDEN)
    p["w2v"], p["b2v"] = linear(keys[6], keys[7], HIDDEN, HIDDEN)
    p["w1t"], p["b1t"] = linear(keys[8], keys[9], 12, HIDDEN)
    p["w2t"], p["b2t"] = linear(keys[10], keys[11], HIDDEN, HIDDEN)
    return p


def first_block_reference(x, params, classes=CLASSES):
    c = x[:, :classes]
    v = x[:, classes:classes + 4]
    t = x[:, classes + 4:classes + 16]

    def two_layer(a, w1, b1, w2, b2):
        h = jnp.maximum(a @ w1 + b1, 0.0)
        return jnp.maximum(h @ w2 + b2, 0.0)

    c = two_layer(c, params["w1c"], params["b1c"], params["w2c"], params["b2c"])
    v = two_layer(v, params["w1v"], params["b1v"], params["w2v"], params["b2v"])
    t = two_layer(t, params["w1t"], params["b1t"], params["w2t"], params["b2t"])
    return jnp.concatenate([c, v, t], axis=1)


if __name__ == "__main__":
    key = jax.random.PRNGKey(0)
    k_x, k_p = jax.random.split(key)

    params = init_params(k_p, CLASSES)
    prepped = prepare_params(params, CLASSES)   # one-time weight prep

    single_buf = [True]   # fall back once if this jax rejects pl.Buffered(1)

    def run(batch):
        x = jax.random.normal(jax.random.fold_in(k_x, batch),
                              (batch, CLASSES + VT_IN), dtype=jnp.float32)
        try:
            out = first_block_forward(x, prepped, classes=CLASSES,
                                      single_buffer_weights=single_buf[0])
            out = jax.block_until_ready(out)
        except Exception:
            if not single_buf[0]:
                raise
            single_buf[0] = False
            out = first_block_forward(x, prepped, classes=CLASSES,
                                      single_buffer_weights=False)
            out = jax.block_until_ready(out)

        ref = first_block_reference(x, params, CLASSES)
        assert out.shape == (batch, 3 * HIDDEN), out.shape
        # bf16 matmul operands / bf16 output with f32 accumulation -> loosened
        # tolerance vs the f32 reference.
        assert jnp.allclose(out.astype(jnp.float32), ref,
                            atol=4e-2, rtol=4e-2), "mismatch vs reference"

    run(2)     # small batch: single tile
    run(300)   # multi-tile path: n_tiles=2, tb=160 (balanced, megacore-ready)
    print("KERNEL_OK")
</pallas_src>

<mosaic_0001>
module attributes {stable_mosaic.version = 11 : i64} {
  func.func @first_block_kernel(%arg0: i32, %arg1: memref<16x896xbf16, #tpu.memory_space<vmem>>, %arg2: memref<896x512xbf16, #tpu.memory_space<vmem>>, %arg3: memref<1x512xf32, #tpu.memory_space<vmem>>, %arg4: memref<512x512xbf16, #tpu.memory_space<vmem>>, %arg5: memref<1x512xf32, #tpu.memory_space<vmem>>, %arg6: memref<128x1024xbf16, #tpu.memory_space<vmem>>, %arg7: memref<1x1024xf32, #tpu.memory_space<vmem>>, %arg8: memref<512x512xbf16, #tpu.memory_space<vmem>>, %arg9: memref<1x512xf32, #tpu.memory_space<vmem>>, %arg10: memref<512x512xbf16, #tpu.memory_space<vmem>>, %arg11: memref<1x512xf32, #tpu.memory_space<vmem>>, %arg12: memref<16x1536xbf16, #tpu.memory_space<vmem>>) attributes {dimension_semantics = [#tpu.dimension_semantics<parallel>], iteration_bounds = array<i64: 1>, scalar_prefetch = 0 : i64, scratch_operands = 0 : i64, tpu.core_type = #tpu.core_type<tc>, window_params = [{transform_indices = @transform_0, window_bounds = array<i64: 16, 896>}, {pipeline_mode = #tpu.pipeline_mode<synchronous>, transform_indices = @transform_1, window_bounds = array<i64: 896, 512>}, {pipeline_mode = #tpu.pipeline_mode<synchronous>, transform_indices = @transform_2, window_bounds = array<i64: 1, 512>}, {pipeline_mode = #tpu.pipeline_mode<synchronous>, transform_indices = @transform_3, window_bounds = array<i64: 512, 512>}, {pipeline_mode = #tpu.pipeline_mode<synchronous>, transform_indices = @transform_4, window_bounds = array<i64: 1, 512>}, {pipeline_mode = #tpu.pipeline_mode<synchronous>, transform_indices = @transform_5, window_bounds = array<i64: 128, 1024>}, {pipeline_mode = #tpu.pipeline_mode<synchronous>, transform_indices = @transform_6, window_bounds = array<i64: 1, 1024>}, {pipeline_mode = #tpu.pipeline_mode<synchronous>, transform_indices = @transform_7, window_bounds = array<i64: 512, 512>}, {pipeline_mode = #tpu.pipeline_mode<synchronous>, transform_indices = @transform_8, window_bounds = array<i64: 1, 512>}, {pipeline_mode = #tpu.pipeline_mode<synchronous>, transform_indices = @transform_9, window_bounds = array<i64: 512, 512>}, {pipeline_mode = #tpu.pipeline_mode<synchronous>, transform_indices = @transform_10, window_bounds = array<i64: 1, 512>}, {transform_indices = @transform_11, window_bounds = array<i64: 16, 1536>}]} {
    %c0 = arith.constant 0 : index
    %c0_0 = arith.constant 0 : index
    %0 = vector.load %arg1[%c0, %c0_0] : memref<16x896xbf16, #tpu.memory_space<vmem>>, vector<16x896xbf16>
    %c0_1 = arith.constant 0 : index
    %c0_2 = arith.constant 0 : index
    %1 = vector.load %arg2[%c0_1, %c0_2] : memref<896x512xbf16, #tpu.memory_space<vmem>>, vector<896x512xbf16>
    %cst = arith.constant dense<0.000000e+00> : vector<16x512xf32>
    %2 = tpu.matmul %0, %1, %cst {dimension_numbers = #tpu.dot_dimension_numbers<[1], [0], [0], [1], [0, 0, 1, 1], [], []>} : vector<16x896xbf16>, vector<896x512xbf16>, vector<16x512xf32> -> vector<16x512xf32>
    %c0_3 = arith.constant 0 : index
    %c0_4 = arith.constant 0 : index
    %3 = vector.load %arg3[%c0_3, %c0_4] : memref<1x512xf32, #tpu.memory_space<vmem>>, vector<1x512xf32>
    %4 = vector.broadcast %3 : vector<1x512xf32> to vector<16x512xf32>
    %5 = arith.addf %2, %4 : vector<16x512xf32>
    %cst_5 = arith.constant 0.000000e+00 : f32
    %6 = vector.broadcast %cst_5 : f32 to vector<16x512xf32>
    %7 = arith.maximumf %5, %6 : vector<16x512xf32>
    %8 = arith.truncf %7 : vector<16x512xf32> to vector<16x512xbf16>
    %c0_6 = arith.constant 0 : index
    %c0_7 = arith.constant 0 : index
    %9 = vector.load %arg4[%c0_6, %c0_7] : memref<512x512xbf16, #tpu.memory_space<vmem>>, vector<512x512xbf16>
    %cst_8 = arith.constant dense<0.000000e+00> : vector<16x512xf32>
    %10 = tpu.matmul %8, %9, %cst_8 {dimension_numbers = #tpu.dot_dimension_numbers<[1], [0], [0], [1], [0, 0, 1, 1], [], []>} : vector<16x512xbf16>, vector<512x512xbf16>, vector<16x512xf32> -> vector<16x512xf32>
    %c0_9 = arith.constant 0 : index
    %c0_10 = arith.constant 0 : index
    %11 = vector.load %arg5[%c0_9, %c0_10] : memref<1x512xf32, #tpu.memory_space<vmem>>, vector<1x512xf32>
    %12 = vector.broadcast %11 : vector<1x512xf32> to vector<16x512xf32>
    %13 = arith.addf %10, %12 : vector<16x512xf32>
    %cst_11 = arith.constant 0.000000e+00 : f32
    %14 = vector.broadcast %cst_11 : f32 to vector<16x512xf32>
    %15 = arith.maximumf %13, %14 : vector<16x512xf32>
    %16 = arith.truncf %15 : vector<16x512xf32> to vector<16x512xbf16>
    %c0_12 = arith.constant 0 : index
    %c0_13 = arith.constant 0 : index
    %17 = vector.load %arg12[%c0_12, %c0_13] : memref<16x1536xbf16, #tpu.memory_space<vmem>>, vector<16x512xbf16>
    tpu.vector_store %arg12[%c0_12, %c0_13], %16 {strides = array<i32>} : memref<16x1536xbf16, #tpu.memory_space<vmem>>, vector<16x512xbf16>,
    %18 = vector.extract_strided_slice %0 {offsets = [0, 768], sizes = [16, 128], strides = [1, 1]} : vector<16x896xbf16> to vector<16x128xbf16>
    %c0_14 = arith.constant 0 : index
    %c0_15 = arith.constant 0 : index
    %19 = vector.load %arg6[%c0_14, %c0_15] : memref<128x1024xbf16, #tpu.memory_space<vmem>>, vector<128x1024xbf16>
    %cst_16 = arith.constant dense<0.000000e+00> : vector<16x1024xf32>
    %20 = tpu.matmul %18, %19, %cst_16 {dimension_numbers = #tpu.dot_dimension_numbers<[1], [0], [0], [1], [0, 0, 1, 1], [], []>} : vector<16x128xbf16>, vector<128x1024xbf16>, vector<16x1024xf32> -> vector<16x1024xf32>
    %c0_17 = arith.constant 0 : index
    %c0_18 = arith.constant 0 : index
    %21 = vector.load %arg7[%c0_17, %c0_18] : memref<1x1024xf32, #tpu.memory_space<vmem>>, vector<1x1024xf32>
    %22 = vector.broadcast %21 : vector<1x1024xf32> to vector<16x1024xf32>
    %23 = arith.addf %20, %22 : vector<16x1024xf32>
    %cst_19 = arith.constant 0.000000e+00 : f32
    %24 = vector.broadcast %cst_19 : f32 to vector<16x1024xf32>
    %25 = arith.maximumf %23, %24 : vector<16x1024xf32>
    %26 = arith.truncf %25 : vector<16x1024xf32> to vector<16x1024xbf16>
    %27 = vector.extract_strided_slice %26 {offsets = [0, 0], sizes = [16, 512], strides = [1, 1]} : vector<16x1024xbf16> to vector<16x512xbf16>
    %c0_20 = arith.constant 0 : index
    %c0_21 = arith.constant 0 : index
    %28 = vector.load %arg8[%c0_20, %c0_21] : memref<512x512xbf16, #tpu.memory_space<vmem>>, vector<512x512xbf16>
    %cst_22 = arith.constant dense<0.000000e+00> : vector<16x512xf32>
    %29 = tpu.matmul %27, %28, %cst_22 {dimension_numbers = #tpu.dot_dimension_numbers<[1], [0], [0], [1], [0, 0, 1, 1], [], []>} : vector<16x512xbf16>, vector<512x512xbf16>, vector<16x512xf32> -> vector<16x512xf32>
    %c0_23 = arith.constant 0 : index
    %c0_24 = arith.constant 0 : index
    %30 = vector.load %arg9[%c0_23, %c0_24] : memref<1x512xf32, #tpu.memory_space<vmem>>, vector<1x512xf32>
    %31 = vector.broadcast %30 : vector<1x512xf32> to vector<16x512xf32>
    %32 = arith.addf %29, %31 : vector<16x512xf32>
    %cst_25 = arith.constant 0.000000e+00 : f32
    %33 = vector.broadcast %cst_25 : f32 to vector<16x512xf32>
    %34 = arith.maximumf %32, %33 : vector<16x512xf32>
    %35 = arith.truncf %34 : vector<16x512xf32> to vector<16x512xbf16>
    %c0_26 = arith.constant 0 : index
    %c512 = arith.constant 512 : index
    %36 = vector.load %arg12[%c0_26, %c512] : memref<16x1536xbf16, #tpu.memory_space<vmem>>, vector<16x512xbf16>
    tpu.vector_store %arg12[%c0_26, %c512], %35 {strides = array<i32>} : memref<16x1536xbf16, #tpu.memory_space<vmem>>, vector<16x512xbf16>,
    %37 = vector.extract_strided_slice %26 {offsets = [0, 512], sizes = [16, 512], strides = [1, 1]} : vector<16x1024xbf16> to vector<16x512xbf16>
    %c0_27 = arith.constant 0 : index
    %c0_28 = arith.constant 0 : index
    %38 = vector.load %arg10[%c0_27, %c0_28] : memref<512x512xbf16, #tpu.memory_space<vmem>>, vector<512x512xbf16>
    %cst_29 = arith.constant dense<0.000000e+00> : vector<16x512xf32>
    %39 = tpu.matmul %37, %38, %cst_29 {dimension_numbers = #tpu.dot_dimension_numbers<[1], [0], [0], [1], [0, 0, 1, 1], [], []>} : vector<16x512xbf16>, vector<512x512xbf16>, vector<16x512xf32> -> vector<16x512xf32>
    %c0_30 = arith.constant 0 : index
    %c0_31 = arith.constant 0 : index
    %40 = vector.load %arg11[%c0_30, %c0_31] : memref<1x512xf32, #tpu.memory_space<vmem>>, vector<1x512xf32>
    %41 = vector.broadcast %40 : vector<1x512xf32> to vector<16x512xf32>
    %42 = arith.addf %39, %41 : vector<16x512xf32>
    %cst_32 = arith.constant 0.000000e+00 : f32
    %43 = vector.broadcast %cst_32 : f32 to vector<16x512xf32>
    %44 = arith.maximumf %42, %43 : vector<16x512xf32>
    %45 = arith.truncf %44 : vector<16x512xf32> to vector<16x512xbf16>
    %c0_33 = arith.constant 0 : index
    %c1024 = arith.constant 1024 : index
    %46 = vector.load %arg12[%c0_33, %c1024] : memref<16x1536xbf16, #tpu.memory_space<vmem>>, vector<16x512xbf16>
    tpu.vector_store %arg12[%c0_33, %c1024], %45 {strides = array<i32>} : memref<16x1536xbf16, #tpu.memory_space<vmem>>, vector<16x512xbf16>,
    return
  }
  func.func @transform_0(%arg0: i32) -> (i32, i32) {
    %c0_i32 = arith.constant 0 : i32
    %c0_i32_0 = arith.constant 0 : i32
    return %arg0, %c0_i32 : i32, i32
  }
  func.func @transform_1(%arg0: i32) -> (i32, i32) {
    %c0_i32 = arith.constant 0 : i32
    %c0_i32_0 = arith.constant 0 : i32
    %c0_i32_1 = arith.constant 0 : i32
    return %c0_i32, %c0_i32_0 : i32, i32
  }
  func.func @transform_2(%arg0: i32) -> (i32, i32) {
    %c0_i32 = arith.constant 0 : i32
    %c0_i32_0 = arith.constant 0 : i32
    %c0_i32_1 = arith.constant 0 : i32
    return %c0_i32, %c0_i32_0 : i32, i32
  }
  func.func @transform_3(%arg0: i32) -> (i32, i32) {
    %c0_i32 = arith.constant 0 : i32
    %c0_i32_0 = arith.constant 0 : i32
    %c0_i32_1 = arith.constant 0 : i32
    return %c0_i32, %c0_i32_0 : i32, i32
  }
  func.func @transform_4(%arg0: i32) -> (i32, i32) {
    %c0_i32 = arith.constant 0 : i32
    %c0_i32_0 = arith.constant 0 : i32
    %c0_i32_1 = arith.constant 0 : i32
    return %c0_i32, %c0_i32_0 : i32, i32
  }
  func.func @transform_5(%arg0: i32) -> (i32, i32) {
    %c0_i32 = arith.constant 0 : i32
    %c0_i32_0 = arith.constant 0 : i32
    %c0_i32_1 = arith.constant 0 : i32
    return %c0_i32, %c0_i32_0 : i32, i32
  }
  func.func @transform_6(%arg0: i32) -> (i32, i32) {
    %c0_i32 = arith.constant 0 : i32
    %c0_i32_0 = arith.constant 0 : i32
    %c0_i32_1 = arith.constant 0 : i32
    return %c0_i32, %c0_i32_0 : i32, i32
  }
  func.func @transform_7(%arg0: i32) -> (i32, i32) {
    %c0_i32 = arith.constant 0 : i32
    %c0_i32_0 = arith.constant 0 : i32
    %c0_i32_1 = arith.constant 0 : i32
    return %c0_i32, %c0_i32_0 : i32, i32
  }
  func.func @transform_8(%arg0: i32) -> (i32, i32) {
    %c0_i32 = arith.constant 0 : i32
    %c0_i32_0 = arith.constant 0 : i32
    %c0_i32_1 = arith.constant 0 : i32
    return %c0_i32, %c0_i32_0 : i32, i32
  }
  func.func @transform_9(%arg0: i32) -> (i32, i32) {
    %c0_i32 = arith.constant 0 : i32
    %c0_i32_0 = arith.constant 0 : i32
    %c0_i32_1 = arith.constant 0 : i32
    return %c0_i32, %c0_i32_0 : i32, i32
  }
  func.func @transform_10(%arg0: i32) -> (i32, i32) {
    %c0_i32 = arith.constant 0 : i32
    %c0_i32_0 = arith.constant 0 : i32
    %c0_i32_1 = arith.constant 0 : i32
    return %c0_i32, %c0_i32_0 : i32, i32
  }
  func.func @transform_11(%arg0: i32) -> (i32, i32) {
    %c0_i32 = arith.constant 0 : i32
    %c0_i32_0 = arith.constant 0 : i32
    return %arg0, %c0_i32 : i32, i32
  }
}

module attributes {stable_mosaic.version = 11 : i64} {
  func.func @first_block_kernel(%arg0: i32, %arg1: memref<16x896xbf16, #tpu.memory_space<vmem>>, %arg2: memref<896x512xbf16, #tpu.memory_space<vmem>>, %arg3: memref<1x512xf32, #tpu.memory_space<vmem>>, %arg4: memref<512x512xbf16, #tpu.memory_space<vmem>>, %arg5: memref<1x512xf32, #tpu.memory_space<vmem>>, %arg6: memref<128x1024xbf16, #tpu.memory_space<vmem>>, %arg7: memref<1x1024xf32, #tpu.memory_space<vmem>>, %arg8: memref<512x512xbf16, #tpu.memory_space<vmem>>, %arg9: memref<1x512xf32, #tpu.memory_space<vmem>>, %arg10: memref<512x512xbf16, #tpu.memory_space<vmem>>, %arg11: memref<1x512xf32, #tpu.memory_space<vmem>>, %arg12: memref<16x1536xbf16, #tpu.memory_space<vmem>>) attributes {dimension_semantics = [#tpu.dimension_semantics<parallel>], iteration_bounds = array<i64: 1>, scalar_prefetch = 0 : i64, scratch_operands = 0 : i64, tpu.core_type = #tpu.core_type<tc>, window_params = [{transform_indices = @transform_0, window_bounds = array<i64: 16, 896>}, {pipeline_mode = #tpu.pipeline_mode<synchronous>, transform_indices = @transform_1, window_bounds = array<i64: 896, 512>}, {pipeline_mode = #tpu.pipeline_mode<synchronous>, transform_indices = @transform_2, window_bounds = array<i64: 1, 512>}, {pipeline_mode = #tpu.pipeline_mode<synchronous>, transform_indices = @transform_3, window_bounds = array<i64: 512, 512>}, {pipeline_mode = #tpu.pipeline_mode<synchronous>, transform_indices = @transform_4, window_bounds = array<i64: 1, 512>}, {pipeline_mode = #tpu.pipeline_mode<synchronous>, transform_indices = @transform_5, window_bounds = array<i64: 128, 1024>}, {pipeline_mode = #tpu.pipeline_mode<synchronous>, transform_indices = @transform_6, window_bounds = array<i64: 1, 1024>}, {pipeline_mode = #tpu.pipeline_mode<synchronous>, transform_indices = @transform_7, window_bounds = array<i64: 512, 512>}, {pipeline_mode = #tpu.pipeline_mode<synchronous>, transform_indices = @transform_8, window_bounds = array<i64: 1, 512>}, {pipeline_mode = #tpu.pipeline_mode<synchronous>, transform_indices = @transform_9, window_bounds = array<i64: 512, 512>}, {pipeline_mode = #tpu.pipeline_mode<synchronous>, transform_indices = @transform_10, window_bounds = array<i64: 1, 512>}, {transform_indices = @transform_11, window_bounds = array<i64: 16, 1536>}]} {
    %c0 = arith.constant 0 : index
    %c0_0 = arith.constant 0 : index
    %0 = vector.load %arg1[%c0, %c0_0] : memref<16x896xbf16, #tpu.memory_space<vmem>>, vector<16x896xbf16>
    %c0_1 = arith.constant 0 : index
    %c0_2 = arith.constant 0 : index
    %1 = vector.load %arg2[%c0_1, %c0_2] : memref<896x512xbf16, #tpu.memory_space<vmem>>, vector<896x512xbf16>
    %cst = arith.constant dense<0.000000e+00> : vector<16x512xf32>
    %2 = tpu.matmul %0, %1, %cst {dimension_numbers = #tpu.dot_dimension_numbers<[1], [0], [0], [1], [0, 0, 1, 1], [], []>} : vector<16x896xbf16>, vector<896x512xbf16>, vector<16x512xf32> -> vector<16x512xf32>
    %c0_3 = arith.constant 0 : index
    %c0_4 = arith.constant 0 : index
    %3 = vector.load %arg3[%c0_3, %c0_4] : memref<1x512xf32, #tpu.memory_space<vmem>>, vector<1x512xf32>
    %4 = vector.broadcast %3 : vector<1x512xf32> to vector<16x512xf32>
    %5 = arith.addf %2, %4 : vector<16x512xf32>
    %cst_5 = arith.constant 0.000000e+00 : f32
    %6 = vector.broadcast %cst_5 : f32 to vector<16x512xf32>
    %7 = arith.maximumf %5, %6 : vector<16x512xf32>
    %8 = arith.truncf %7 : vector<16x512xf32> to vector<16x512xbf16>
    %c0_6 = arith.constant 0 : index
    %c0_7 = arith.constant 0 : index
    %9 = vector.load %arg4[%c0_6, %c0_7] : memref<512x512xbf16, #tpu.memory_space<vmem>>, vector<512x512xbf16>
    %cst_8 = arith.constant dense<0.000000e+00> : vector<16x512xf32>
    %10 = tpu.matmul %8, %9, %cst_8 {dimension_numbers = #tpu.dot_dimension_numbers<[1], [0], [0], [1], [0, 0, 1, 1], [], []>} : vector<16x512xbf16>, vector<512x512xbf16>, vector<16x512xf32> -> vector<16x512xf32>
    %c0_9 = arith.constant 0 : index
    %c0_10 = arith.constant 0 : index
    %11 = vector.load %arg5[%c0_9, %c0_10] : memref<1x512xf32, #tpu.memory_space<vmem>>, vector<1x512xf32>
    %12 = vector.broadcast %11 : vector<1x512xf32> to vector<16x512xf32>
    %13 = arith.addf %10, %12 : vector<16x512xf32>
    %cst_11 = arith.constant 0.000000e+00 : f32
    %14 = vector.broadcast %cst_11 : f32 to vector<16x512xf32>
    %15 = arith.maximumf %13, %14 : vector<16x512xf32>
    %16 = arith.truncf %15 : vector<16x512xf32> to vector<16x512xbf16>
    %c0_12 = arith.constant 0 : index
    %c0_13 = arith.constant 0 : index
    %17 = vector.load %arg12[%c0_12, %c0_13] : memref<16x1536xbf16, #tpu.memory_space<vmem>>, vector<16x512xbf16>
    tpu.vector_store %arg12[%c0_12, %c0_13], %16 {strides = array<i32>} : memref<16x1536xbf16, #tpu.memory_space<vmem>>, vector<16x512xbf16>,
    %18 = vector.extract_strided_slice %0 {offsets = [0, 768], sizes = [16, 128], strides = [1, 1]} : vector<16x896xbf16> to vector<16x128xbf16>
    %c0_14 = arith.constant 0 : index
    %c0_15 = arith.constant 0 : index
    %19 = vector.load %arg6[%c0_14, %c0_15] : memref<128x1024xbf16, #tpu.memory_space<vmem>>, vector<128x1024xbf16>
    %cst_16 = arith.constant dense<0.000000e+00> : vector<16x1024xf32>
    %20 = tpu.matmul %18, %19, %cst_16 {dimension_numbers = #tpu.dot_dimension_numbers<[1], [0], [0], [1], [0, 0, 1, 1], [], []>} : vector<16x128xbf16>, vector<128x1024xbf16>, vector<16x1024xf32> -> vector<16x1024xf32>
    %c0_17 = arith.constant 0 : index
    %c0_18 = arith.constant 0 : index
    %21 = vector.load %arg7[%c0_17, %c0_18] : memref<1x1024xf32, #tpu.memory_space<vmem>>, vector<1x1024xf32>
    %22 = vector.broadcast %21 : vector<1x1024xf32> to vector<16x1024xf32>
    %23 = arith.addf %20, %22 : vector<16x1024xf32>
    %cst_19 = arith.constant 0.000000e+00 : f32
    %24 = vector.broadcast %cst_19 : f32 to vector<16x1024xf32>
    %25 = arith.maximumf %23, %24 : vector<16x1024xf32>
    %26 = arith.truncf %25 : vector<16x1024xf32> to vector<16x1024xbf16>
    %27 = vector.extract_strided_slice %26 {offsets = [0, 0], sizes = [16, 512], strides = [1, 1]} : vector<16x1024xbf16> to vector<16x512xbf16>
    %c0_20 = arith.constant 0 : index
    %c0_21 = arith.constant 0 : index
    %28 = vector.load %arg8[%c0_20, %c0_21] : memref<512x512xbf16, #tpu.memory_space<vmem>>, vector<512x512xbf16>
    %cst_22 = arith.constant dense<0.000000e+00> : vector<16x512xf32>
    %29 = tpu.matmul %27, %28, %cst_22 {dimension_numbers = #tpu.dot_dimension_numbers<[1], [0], [0], [1], [0, 0, 1, 1], [], []>} : vector<16x512xbf16>, vector<512x512xbf16>, vector<16x512xf32> -> vector<16x512xf32>
    %c0_23 = arith.constant 0 : index
    %c0_24 = arith.constant 0 : index
    %30 = vector.load %arg9[%c0_23, %c0_24] : memref<1x512xf32, #tpu.memory_space<vmem>>, vector<1x512xf32>
    %31 = vector.broadcast %30 : vector<1x512xf32> to vector<16x512xf32>
    %32 = arith.addf %29, %31 : vector<16x512xf32>
    %cst_25 = arith.constant 0.000000e+00 : f32
    %33 = vector.broadcast %cst_25 : f32 to vector<16x512xf32>
    %34 = arith.maximumf %32, %33 : vector<16x512xf32>
    %35 = arith.truncf %34 : vector<16x512xf32> to vector<16x512xbf16>
    %c0_26 = arith.constant 0 : index
    %c512 = arith.constant 512 : index
    %36 = vector.load %arg12[%c0_26, %c512] : memref<16x1536xbf16, #tpu.memory_space<vmem>>, vector<16x512xbf16>
    tpu.vector_store %arg12[%c0_26, %c512], %35 {strides = array<i32>} : memref<16x1536xbf16, #tpu.memory_space<vmem>>, vector<16x512xbf16>,
    %37 = vector.extract_strided_slice %26 {offsets = [0, 512], sizes = [16, 512], strides = [1, 1]} : vector<16x1024xbf16> to vector<16x512xbf16>
    %c0_27 = arith.constant 0 : index
    %c0_28 = arith.constant 0 : index
    %38 = vector.load %arg10[%c0_27, %c0_28] : memref<512x512xbf16, #tpu.memory_space<vmem>>, vector<512x512xbf16>
    %cst_29 = arith.constant dense<0.000000e+00> : vector<16x512xf32>
    %39 = tpu.matmul %37, %38, %cst_29 {dimension_numbers = #tpu.dot_dimension_numbers<[1], [0], [0], [1], [0, 0, 1, 1], [], []>} : vector<16x512xbf16>, vector<512x512xbf16>, vector<16x512xf32> -> vector<16x512xf32>
    %c0_30 = arith.constant 0 : index
    %c0_31 = arith.constant 0 : index
    %40 = vector.load %arg11[%c0_30, %c0_31] : memref<1x512xf32, #tpu.memory_space<vmem>>, vector<1x512xf32>
    %41 = vector.broadcast %40 : vector<1x512xf32> to vector<16x512xf32>
    %42 = arith.addf %39, %41 : vector<16x512xf32>
    %cst_32 = arith.constant 0.000000e+00 : f32
    %43 = vector.broadcast %cst_32 : f32 to vector<16x512xf32>
    %44 = arith.maximumf %42, %43 : vector<16x512xf32>
    %45 = arith.truncf %44 : vector<16x512xf32> to vector<16x512xbf16>
    %c0_33 = arith.constant 0 : index
    %c1024 = arith.constant 1024 : index
    %46 = vector.load %arg12[%c0_33, %c1024] : memref<16x1536xbf16, #tpu.memory_space<vmem>>, vector<16x512xbf16>
    tpu.vector_store %arg12[%c0_33, %c1024], %45 {strides = array<i32>} : memref<16x1536xbf16, #tpu.memory_space<vmem>>, vector<16x512xbf16>,
    return
  }
  func.func @transform_0(%arg0: i32) -> (i32, i32) {
    %c0_i32 = arith.constant 0 : i32
    %c0_i32_0 = arith.constant 0 : i32
    return %arg0, %c0_i32 : i32, i32
  }
  func.func @transform_1(%arg0: i32) -> (i32, i32) {
    %c0_i32 = arith.constant 0 : i32
    %c0_i32_0 = arith.constant 0 : i32
    %c0_i32_1 = arith.constant 0 : i32
    return %c0_i32, %c0_i32_0 : i32, i32
  }
  func.func @transform_2(%arg0: i32) -> (i32, i32) {
    %c0_i32 = arith.constant 0 : i32
    %c0_i32_0 = arith.constant 0 : i32
    %c0_i32_1 = arith.constant 0 : i32
    return %c0_i32, %c0_i32_0 : i32, i32
  }
  func.func @transform_3(%arg0: i32) -> (i32, i32) {
    %c0_i32 = arith.constant 0 : i32
    %c0_i32_0 = arith.constant 0 : i32
    %c0_i32_1 = arith.constant 0 : i32
    return %c0_i32, %c0_i32_0 : i32, i32
  }
  func.func @transform_4(%arg0: i32) -> (i32, i32) {
    %c0_i32 = arith.constant 0 : i32
    %c0_i32_0 = arith.constant 0 : i32
    %c0_i32_1 = arith.constant 0 : i32
    return %c0_i32, %c0_i32_0 : i32, i32
  }
  func.func @transform_5(%arg0: i32) -> (i32, i32) {
    %c0_i32 = arith.constant 0 : i32
    %c0_i32_0 = arith.constant 0 : i32
    %c0_i32_1 = arith.constant 0 : i32
    return %c0_i32, %c0_i32_0 : i32, i32
  }
  func.func @transform_6(%arg0: i32) -> (i32, i32) {
    %c0_i32 = arith.constant 0 : i32
    %c0_i32_0 = arith.constant 0 : i32
    %c0_i32_1 = arith.constant 0 : i32
    return %c0_i32, %c0_i32_0 : i32, i32
  }
  func.func @transform_7(%arg0: i32) -> (i32, i32) {
    %c0_i32 = arith.constant 0 : i32
    %c0_i32_0 = arith.constant 0 : i32
    %c0_i32_1 = arith.constant 0 : i32
    return %c0_i32, %c0_i32_0 : i32, i32
  }
  func.func @transform_8(%arg0: i32) -> (i32, i32) {
    %c0_i32 = arith.constant 0 : i32
    %c0_i32_0 = arith.constant 0 : i32
    %c0_i32_1 = arith.constant 0 : i32
    return %c0_i32, %c0_i32_0 : i32, i32
  }
  func.func @transform_9(%arg0: i32) -> (i32, i32) {
    %c0_i32 = arith.constant 0 : i32
    %c0_i32_0 = arith.constant 0 : i32
    %c0_i32_1 = arith.constant 0 : i32
    return %c0_i32, %c0_i32_0 : i32, i32
  }
  func.func @transform_10(%arg0: i32) -> (i32, i32) {
    %c0_i32 = arith.constant 0 : i32
    %c0_i32_0 = arith.constant 0 : i32
    %c0_i32_1 = arith.constant 0 : i32
    return %c0_i32, %c0_i32_0 : i32, i32
  }
  func.func @transform_11(%arg0: i32) -> (i32, i32) {
    %c0_i32 = arith.constant 0 : i32
    %c0_i32_0 = arith.constant 0 : i32
    return %arg0, %c0_i32 : i32, i32
  }
}

</mosaic_0001>

<llo_original>
// kernel: first_block_forward.1
$region0: #{first_block_forward.1}
  #allocation0 [shape = 'u32[]', space=smem, size = 0x4, offset = 0x4, fixed_abs, tag = 'smem constant byte address 0x4 - core index']
  #allocation1 [shape = 'u32[144,128]{1,0:T(1,128)}', space=vmem, size = 0x12000, scoped, tag = 'internal scratch']
  %s0 = inlined_call_operand.vmem [shape: bf16[16,896], index: 0, kind: input, shape index: {}]
  %s1 = inlined_call_operand.hbm [shape: bf16[896,512], index: 1, kind: input, shape index: {}]
  %s2 = inlined_call_operand.vmem [shape: f32[1,512], index: 2, kind: input, shape index: {}]
  %s3 = inlined_call_operand.hbm [shape: bf16[512,512], index: 3, kind: input, shape index: {}]
  %s4 = inlined_call_operand.vmem [shape: f32[1,512], index: 4, kind: input, shape index: {}]
  %s5 = inlined_call_operand.hbm [shape: bf16[128,1024], index: 5, kind: input, shape index: {}]
  %s6 = inlined_call_operand.vmem [shape: f32[1,1024], index: 6, kind: input, shape index: {}]
  %s7 = inlined_call_operand.hbm [shape: bf16[512,512], index: 7, kind: input, shape index: {}]
  %s8 = inlined_call_operand.vmem [shape: f32[1,512], index: 8, kind: input, shape index: {}]
  %s9 = inlined_call_operand.hbm [shape: bf16[512,512], index: 9, kind: input, shape index: {}]
  %s10 = inlined_call_operand.vmem [shape: f32[1,512], index: 10, kind: input, shape index: {}]
  %s11 = inlined_call_operand.vmem [shape: bf16[16,1536], index: 11, kind: output, shape index: {}]
  %s12 = sld [smem:[#allocation0]]
  $region74: #{first_block_forward.1} parent=0
    _
  %s14 = ssub.s32 1, %s12
  %s15 = scalar_select 0, %s14, %s12
  $region1: #{first_block_forward.1} parent=0
    #allocation2 [shape = 'u8[917504]{0}', space=vmem, size = 0xe0000, scoped, tag = 'input window, operand 1, single buffered']
    #allocation3 [shape = 's32[1]{0}', space=sflag, size = 0x4, scoped, tag = 'scoped memory for first_block_forward.1']
    #allocation4 [shape = 'u8[524288]{0}', space=vmem, size = 0x80000, scoped, tag = 'input window, operand 3, single buffered']
    #allocation5 [shape = 's32[1]{0}', space=sflag, size = 0x4, scoped, tag = 'scoped memory for first_block_forward.1']
    #allocation6 [shape = 'u8[262144]{0}', space=vmem, size = 0x40000, scoped, tag = 'input window, operand 5, single buffered']
    #allocation7 [shape = 'u8[524288]{0}', space=vmem, size = 0x80000, scoped, tag = 'input window, operand 7, single buffered']
    #allocation8 [shape = 's32[1]{0}', space=sflag, size = 0x4, scoped, tag = 'scoped memory for first_block_forward.1']
    #allocation9 [shape = 'u8[524288]{0}', space=vmem, size = 0x80000, scoped, tag = 'input window, operand 9, single buffered']
    %16 = vsyncpa [#allocation3], 0
    %17 = vsyncpa [#allocation5], 0
    %18 = vsyncpa [#allocation8], 0
    // Predicated region
    $region2: #{first_block_forward.1} parent=1 // pred_check
      _
    $region3: #{first_block_forward.1} parent=1 // pred_check_branch
      %20 = sbr.rel (0) target = $region5
    $region4: #{first_block_forward.1} parent=1 // pred_region
      _
    $region5: #{first_block_forward.1} parent=1 // pred_fallthru
      _
    // Predicated region
    $region6: #{first_block_forward.1} parent=1 // pred_check
      _
    $region7: #{first_block_forward.1} parent=1 // pred_check_branch
      %22 = sbr.rel (0) target = $region9
    $region8: #{first_block_forward.1} parent=1 // pred_region
      %s24 = ssub.s32 28672, 28672
      %25 = vsyncadd [#allocation3], %s24
      %s26 = sshll.u32 [#allocation2], 4
      %s27 = int_to_ptr.vmem [resolvable:$true] %s26
      %32 = dma.hbm_to_vmem [thread:$0]  %s1, 28672, %s27, [#allocation3], 256, 256, 16
    $region9: #{first_block_forward.1} parent=1 // pred_fallthru
      _
    // Predicated region
    $region10: #{first_block_forward.1} parent=1 // pred_check
      _
    $region11: #{first_block_forward.1} parent=1 // pred_check_branch
      %34 = sbr.rel (0) target = $region13
    $region12: #{first_block_forward.1} parent=1 // pred_region
      _
    $region13: #{first_block_forward.1} parent=1 // pred_fallthru
      _
    // Predicated region
    $region14: #{first_block_forward.1} parent=1 // pred_check
      _
    $region15: #{first_block_forward.1} parent=1 // pred_check_branch
      %36 = sbr.rel (0) target = $region17
    $region16: #{first_block_forward.1} parent=1 // pred_region
      %s38 = ssub.s32 16384, 16384
      %39 = vsyncadd [#allocation5], %s38
      %s40 = sshll.u32 [#allocation4], 4
      %s41 = int_to_ptr.vmem [resolvable:$true] %s40
      %46 = dma.hbm_to_vmem [thread:$0]  %s3, 16384, %s41, [#allocation5], 256, 256, 16
    $region17: #{first_block_forward.1} parent=1 // pred_fallthru
      _
    // Predicated region
    $region18: #{first_block_forward.1} parent=1 // pred_check
      _
    $region19: #{first_block_forward.1} parent=1 // pred_check_branch
      %48 = sbr.rel (0) target = $region21
    $region20: #{first_block_forward.1} parent=1 // pred_region
      _
    $region21: #{first_block_forward.1} parent=1 // pred_fallthru
      _
    // Predicated region
    $region22: #{first_block_forward.1} parent=1 // pred_check
      _
    $region23: #{first_block_forward.1} parent=1 // pred_check_branch
      %50 = sbr.rel (0) target = $region25
    $region24: #{first_block_forward.1} parent=1 // pred_region
      %s52 = ssub.s32 8192, 8192
      %53 = vsyncadd [#allocation5], %s52
      %s54 = sshll.u32 [#allocation6], 4
      %s55 = int_to_ptr.vmem [resolvable:$true] %s54
      %60 = dma.hbm_to_vmem [thread:$0]  %s5, 8192, %s55, [#allocation5], 512, 512, 32
    $region25: #{first_block_forward.1} parent=1 // pred_fallthru
      _
    // Predicated region
    $region26: #{first_block_forward.1} parent=1 // pred_check
      _
    $region27: #{first_block_forward.1} parent=1 // pred_check_branch
      %62 = sbr.rel (0) target = $region29
    $region28: #{first_block_forward.1} parent=1 // pred_region
      _
    $region29: #{first_block_forward.1} parent=1 // pred_fallthru
      _
    // Predicated region
    $region30: #{first_block_forward.1} parent=1 // pred_check
      _
    $region31: #{first_block_forward.1} parent=1 // pred_check_branch
      %64 = sbr.rel (0) target = $region33
    $region32: #{first_block_forward.1} parent=1 // pred_region
      %s66 = ssub.s32 16384, 16384
      %67 = vsyncadd [#allocation8], %s66
      %s68 = sshll.u32 [#allocation7], 4
      %s69 = int_to_ptr.vmem [resolvable:$true] %s68
      %74 = dma.hbm_to_vmem [thread:$0]  %s7, 16384, %s69, [#allocation8], 256, 256, 16
    $region33: #{first_block_forward.1} parent=1 // pred_fallthru
      _
    // Predicated region
    $region34: #{first_block_forward.1} parent=1 // pred_check
      _
    $region35: #{first_block_forward.1} parent=1 // pred_check_branch
      %76 = sbr.rel (0) target = $region37
    $region36: #{first_block_forward.1} parent=1 // pred_region
      _
    $region37: #{first_block_forward.1} parent=1 // pred_fallthru
      _
    // Predicated region
    $region38: #{first_block_forward.1} parent=1 // pred_check
      _
    $region39: #{first_block_forward.1} parent=1 // pred_check_branch
      %78 = sbr.rel (0) target = $region41
    $region40: #{first_block_forward.1} parent=1 // pred_region
      %s80 = ssub.s32 16384, 16384
      %81 = vsyncadd [#allocation8], %s80
      %s82 = sshll.u32 [#allocation9], 4
      %s83 = int_to_ptr.vmem [resolvable:$true] %s82
      %88 = dma.hbm_to_vmem [thread:$0]  %s9, 16384, %s83, [#allocation8], 256, 256, 16
    $region41: #{first_block_forward.1} parent=1 // pred_fallthru
      _
    // Predicated region
    $region42: #{first_block_forward.1} parent=1 // pred_check
      _
    $region43: #{first_block_forward.1} parent=1 // pred_check_branch
      %90 = sbr.rel (0) target = $region45
    $region44: #{first_block_forward.1} parent=1 // pred_region
      _
    $region45: #{first_block_forward.1} parent=1 // pred_fallthru
      _
    // Predicated region
    $region46: #{first_block_forward.1} parent=1 // pred_check
      _
    $region47: #{first_block_forward.1} parent=1 // pred_check_branch
      %92 = sbr.rel (0) target = $region49
    $region48: #{first_block_forward.1} parent=1 // pred_region
      %93 = dma.done [#allocation3], 28672
    $region49: #{first_block_forward.1} parent=1 // pred_fallthru
      _
    // Predicated region
    $region50: #{first_block_forward.1} parent=1 // pred_check
      _
    $region51: #{first_block_forward.1} parent=1 // pred_check_branch
      %95 = sbr.rel (0) target = $region53
    $region52: #{first_block_forward.1} parent=1 // pred_region
      %96 = dma.done [#allocation5], 16384
    $region53: #{first_block_forward.1} parent=1 // pred_fallthru
      _
    // Predicated region
    $region54: #{first_block_forward.1} parent=1 // pred_check
      _
    $region55: #{first_block_forward.1} parent=1 // pred_check_branch
      %98 = sbr.rel (0) target = $region57
    $region56: #{first_block_forward.1} parent=1 // pred_region
      %99 = dma.done [#allocation5], 8192
    $region57: #{first_block_forward.1} parent=1 // pred_fallthru
      _
    // Predicated region
    $region58: #{first_block_forward.1} parent=1 // pred_check
      _
    $region59: #{first_block_forward.1} parent=1 // pred_check_branch
      %101 = sbr.rel (0) target = $region61
    $region60: #{first_block_forward.1} parent=1 // pred_region
      %102 = dma.done [#allocation8], 16384
    $region61: #{first_block_forward.1} parent=1 // pred_fallthru
      _
    // Predicated region
    $region62: #{first_block_forward.1} parent=1 // pred_check
      _
    $region63: #{first_block_forward.1} parent=1 // pred_check_branch
      %104 = sbr.rel (0) target = $region65
    $region64: #{first_block_forward.1} parent=1 // pred_region
      %105 = dma.done [#allocation8], 16384
    $region65: #{first_block_forward.1} parent=1 // pred_fallthru
      _
    %v107 = vld [vmem:[%s0] sm:$0xff]
    %v108 = vld [vmem:[%s0 + $0x8] sm:$0xff]
    %v109 = vld [vmem:[%s0 + $0x10] sm:$0xff]
    %v110 = vld [vmem:[%s0 + $0x18] sm:$0xf]
    %v111 = vld [vmem:[%s0 + $0x1c] sm:$0xff]
    %v112 = vld [vmem:[%s0 + $0x24] sm:$0xff]
    %v113 = vld [vmem:[%s0 + $0x2c] sm:$0xff]
    %v114 = vld [vmem:[%s0 + $0x34] sm:$0xf]
    %v115 = vld [vmem:[#allocation2] sm:$0xff]
    %v116 = vld [vmem:[#allocation2 + $0x8] sm:$0xff]
    %v117 = vld [vmem:[#allocation2 + $0x10] sm:$0xff]
    %v118 = vld [vmem:[#allocation2 + $0x18] sm:$0xff]
    %v119 = vld [vmem:[#allocation2 + $0x20] sm:$0xff]
    %v120 = vld [vmem:[#allocation2 + $0x28] sm:$0xff]
    %v121 = vld [vmem:[#allocation2 + $0x30] sm:$0xff]
    %v122 = vld [vmem:[#allocation2 + $0x38] sm:$0xff]
    %v123 = vld [vmem:[#allocation2 + $0x40] sm:$0xff]
    %v124 = vld [vmem:[#allocation2 + $0x48] sm:$0xff]
    %v125 = vld [vmem:[#allocation2 + $0x50] sm:$0xff]
    %v126 = vld [vmem:[#allocation2 + $0x58] sm:$0xff]
    %v127 = vld [vmem:[#allocation2 + $0x60] sm:$0xff]
    %v128 = vld [vmem:[#allocation2 + $0x68] sm:$0xff]
    %v129 = vld [vmem:[#allocation2 + $0x70] sm:$0xff]
    %v130 = vld [vmem:[#allocation2 + $0x78] sm:$0xff]
    %v131 = vld [vmem:[#allocation2 + $0x80] sm:$0xff]
    %v132 = vld [vmem:[#allocation2 + $0x88] sm:$0xff]
    %v133 = vld [vmem:[#allocation2 + $0x90] sm:$0xff]
    %v134 = vld [vmem:[#allocation2 + $0x98] sm:$0xff]
    %v135 = vld [vmem:[#allocation2 + $0xa0] sm:$0xff]
    %v136 = vld [vmem:[#allocation2 + $0xa8] sm:$0xff]
    %v137 = vld [vmem:[#allocation2 + $0xb0] sm:$0xff]
    %v138 = vld [vmem:[#allocation2 + $0xb8] sm:$0xff]
    %v139 = vld [vmem:[#allocation2 + $0xc0] sm:$0xff]
    %v140 = vld [vmem:[#allocation2 + $0xc8] sm:$0xff]
    %v141 = vld [vmem:[#allocation2 + $0xd0] sm:$0xff]
    %v142 = vld [vmem:[#allocation2 + $0xd8] sm:$0xff]
    %v143 = vld [vmem:[#allocation2 + $0xe0] sm:$0xff]
    %v144 = vld [vmem:[#allocation2 + $0xe8] sm:$0xff]
    %v145 = vld [vmem:[#allocation2 + $0xf0] sm:$0xff]
    %v146 = vld [vmem:[#allocation2 + $0xf8] sm:$0xff]
    %v147 = vld [vmem:[#allocation2 + $0x100] sm:$0xff]
    %v148 = vld [vmem:[#allocation2 + $0x108] sm:$0xff]
    %v149 = vld [vmem:[#allocation2 + $0x110] sm:$0xff]
    %v150 = vld [vmem:[#allocation2 + $0x118] sm:$0xff]
    %v151 = vld [vmem:[#allocation2 + $0x120] sm:$0xff]
    %v152 = vld [vmem:[#allocation2 + $0x128] sm:$0xff]
    %v153 = vld [vmem:[#allocation2 + $0x130] sm:$0xff]
    %v154 = vld [vmem:[#allocation2 + $0x138] sm:$0xff]
    %v155 = vld [vmem:[#allocation2 + $0x140] sm:$0xff]
    %v156 = vld [vmem:[#allocation2 + $0x148] sm:$0xff]
    %v157 = vld [vmem:[#allocation2 + $0x150] sm:$0xff]
    %v158 = vld [vmem:[#allocation2 + $0x158] sm:$0xff]
    %v159 = vld [vmem:[#allocation2 + $0x160] sm:$0xff]
    %v160 = vld [vmem:[#allocation2 + $0x168] sm:$0xff]
    %v161 = vld [vmem:[#allocation2 + $0x170] sm:$0xff]
    %v162 = vld [vmem:[#allocation2 + $0x178] sm:$0xff]
    %v163 = vld [vmem:[#allocation2 + $0x180] sm:$0xff]
    %v164 = vld [vmem:[#allocation2 + $0x188] sm:$0xff]
    %v165 = vld [vmem:[#allocation2 + $0x190] sm:$0xff]
    %v166 = vld [vmem:[#allocation2 + $0x198] sm:$0xff]
    %v167 = vld [vmem:[#allocation2 + $0x1a0] sm:$0xff]
    %v168 = vld [vmem:[#allocation2 + $0x1a8] sm:$0xff]
    %v169 = vld [vmem:[#allocation2 + $0x1b0] sm:$0xff]
    %v170 = vld [vmem:[#allocation2 + $0x1b8] sm:$0xff]
    %v171 = vld [vmem:[#allocation2 + $0x1c0] sm:$0xff]
    %v172 = vld [vmem:[#allocation2 + $0x1c8] sm:$0xff]
    %v173 = vld [vmem:[#allocation2 + $0x1d0] sm:$0xff]
    %v174 = vld [vmem:[#allocation2 + $0x1d8] sm:$0xff]
    %v175 = vld [vmem:[#allocation2 + $0x1e0] sm:$0xff]
    %v176 = vld [vmem:[#allocation2 + $0x1e8] sm:$0xff]
    %v177 = vld [vmem:[#allocation2 + $0x1f0] sm:$0xff]
    %v178 = vld [vmem:[#allocation2 + $0x1f8] sm:$0xff]
    %v179 = vld [vmem:[#allocation2 + $0x200] sm:$0xff]
    %v180 = vld [vmem:[#allocation2 + $0x208] sm:$0xff]
    %v181 = vld [vmem:[#allocation2 + $0x210] sm:$0xff]
    %v182 = vld [vmem:[#allocation2 + $0x218] sm:$0xff]
    %v183 = vld [vmem:[#allocation2 + $0x220] sm:$0xff]
    %v184 = vld [vmem:[#allocation2 + $0x228] sm:$0xff]
    %v185 = vld [vmem:[#allocation2 + $0x230] sm:$0xff]
    %v186 = vld [vmem:[#allocation2 + $0x238] sm:$0xff]
    %v187 = vld [vmem:[#allocation2 + $0x240] sm:$0xff]
    %v188 = vld [vmem:[#allocation2 + $0x248] sm:$0xff]
    %v189 = vld [vmem:[#allocation2 + $0x250] sm:$0xff]
    %v190 = vld [vmem:[#allocation2 + $0x258] sm:$0xff]
    %v191 = vld [vmem:[#allocation2 + $0x260] sm:$0xff]
    %v192 = vld [vmem:[#allocation2 + $0x268] sm:$0xff]
    %v193 = vld [vmem:[#allocation2 + $0x270] sm:$0xff]
    %v194 = vld [vmem:[#allocation2 + $0x278] sm:$0xff]
    %v195 = vld [vmem:[#allocation2 + $0x280] sm:$0xff]
    %v196 = vld [vmem:[#allocation2 + $0x288] sm:$0xff]
    %v197 = vld [vmem:[#allocation2 + $0x290] sm:$0xff]
    %v198 = vld [vmem:[#allocation2 + $0x298] sm:$0xff]
    %v199 = vld [vmem:[#allocation2 + $0x2a0] sm:$0xff]
    %v200 = vld [vmem:[#allocation2 + $0x2a8] sm:$0xff]
    %v201 = vld [vmem:[#allocation2 + $0x2b0] sm:$0xff]
    %v202 = vld [vmem:[#allocation2 + $0x2b8] sm:$0xff]
    %v203 = vld [vmem:[#allocation2 + $0x2c0] sm:$0xff]
    %v204 = vld [vmem:[#allocation2 + $0x2c8] sm:$0xff]
    %v205 = vld [vmem:[#allocation2 + $0x2d0] sm:$0xff]
    %v206 = vld [vmem:[#allocation2 + $0x2d8] sm:$0xff]
    %v207 = vld [vmem:[#allocation2 + $0x2e0] sm:$0xff]
    %v208 = vld [vmem:[#allocation2 + $0x2e8] sm:$0xff]
    %v209 = vld [vmem:[#allocation2 + $0x2f0] sm:$0xff]
    %v210 = vld [vmem:[#allocation2 + $0x2f8] sm:$0xff]
    %v211 = vld [vmem:[#allocation2 + $0x300] sm:$0xff]
    %v212 = vld [vmem:[#allocation2 + $0x308] sm:$0xff]
    %v213 = vld [vmem:[#allocation2 + $0x310] sm:$0xff]
    %v214 = vld [vmem:[#allocation2 + $0x318] sm:$0xff]
    %v215 = vld [vmem:[#allocation2 + $0x320] sm:$0xff]
    %v216 = vld [vmem:[#allocation2 + $0x328] sm:$0xff]
    %v217 = vld [vmem:[#allocation2 + $0x330] sm:$0xff]
    %v218 = vld [vmem:[#allocation2 + $0x338] sm:$0xff]
    %v219 = vld [vmem:[#allocation2 + $0x340] sm:$0xff]
    %v220 = vld [vmem:[#allocation2 + $0x348] sm:$0xff]
    %v221 = vld [vmem:[#allocation2 + $0x350] sm:$0xff]
    %v222 = vld [vmem:[#allocation2 + $0x358] sm:$0xff]
    %v223 = vld [vmem:[#allocation2 + $0x360] sm:$0xff]
    %v224 = vld [vmem:[#allocation2 + $0x368] sm:$0xff]
    %v225 = vld [vmem:[#allocation2 + $0x370] sm:$0xff]
    %v226 = vld [vmem:[#allocation2 + $0x378] sm:$0xff]
    %v227 = vld [vmem:[#allocation2 + $0x380] sm:$0xff]
    %v228 = vld [vmem:[#allocation2 + $0x388] sm:$0xff]
    %v229 = vld [vmem:[#allocation2 + $0x390] sm:$0xff]
    %v230 = vld [vmem:[#allocation2 + $0x398] sm:$0xff]
    %v231 = vld [vmem:[#allocation2 + $0x3a0] sm:$0xff]
    %v232 = vld [vmem:[#allocation2 + $0x3a8] sm:$0xff]
    %v233 = vld [vmem:[#allocation2 + $0x3b0] sm:$0xff]
    %v234 = vld [vmem:[#allocation2 + $0x3b8] sm:$0xff]
    %v235 = vld [vmem:[#allocation2 + $0x3c0] sm:$0xff]
    %v236 = vld [vmem:[#allocation2 + $0x3c8] sm:$0xff]
    %v237 = vld [vmem:[#allocation2 + $0x3d0] sm:$0xff]
    %v238 = vld [vmem:[#allocation2 + $0x3d8] sm:$0xff]
    %v239 = vld [vmem:[#allocation2 + $0x3e0] sm:$0xff]
    %v240 = vld [vmem:[#allocation2 + $0x3e8] sm:$0xff]
    %v241 = vld [vmem:[#allocation2 + $0x3f0] sm:$0xff]
    %v242 = vld [vmem:[#allocation2 + $0x3f8] sm:$0xff]
    %v243 = vld [vmem:[#allocation2 + $0x400] sm:$0xff]
    %v244 = vld [vmem:[#allocation2 + $0x408] sm:$0xff]
    %v245 = vld [vmem:[#allocation2 + $0x410] sm:$0xff]
    %v246 = vld [vmem:[#allocation2 + $0x418] sm:$0xff]
    %v247 = vld [vmem:[#allocation2 + $0x420] sm:$0xff]
    %v248 = vld [vmem:[#allocation2 + $0x428] sm:$0xff]
    %v249 = vld [vmem:[#allocation2 + $0x430] sm:$0xff]
    %v250 = vld [vmem:[#allocation2 + $0x438] sm:$0xff]
    %v251 = vld [vmem:[#allocation2 + $0x440] sm:$0xff]
    %v252 = vld [vmem:[#allocation2 + $0x448] sm:$0xff]
    %v253 = vld [vmem:[#allocation2 + $0x450] sm:$0xff]
    %v254 = vld [vmem:[#allocation2 + $0x458] sm:$0xff]
    %v255 = vld [vmem:[#allocation2 + $0x460] sm:$0xff]
    %v256 = vld [vmem:[#allocation2 + $0x468] sm:$0xff]
    %v257 = vld [vmem:[#allocation2 + $0x470] sm:$0xff]
    %v258 = vld [vmem:[#allocation2 + $0x478] sm:$0xff]
    %v259 = vld [vmem:[#allocation2 + $0x480] sm:$0xff]
    %v260 = vld [vmem:[#allocation2 + $0x488] sm:$0xff]
    %v261 = vld [vmem:[#allocation2 + $0x490] sm:$0xff]
    %v262 = vld [vmem:[#allocation2 + $0x498] sm:$0xff]
    %v263 = vld [vmem:[#allocation2 + $0x4a0] sm:$0xff]
    %v264 = vld [vmem:[#allocation2 + $0x4a8] sm:$0xff]
    %v265 = vld [vmem:[#allocation2 + $0x4b0] sm:$0xff]
    %v266 = vld [vmem:[#allocation2 + $0x4b8] sm:$0xff]
    %v267 = vld [vmem:[#allocation2 + $0x4c0] sm:$0xff]
    %v268 = vld [vmem:[#allocation2 + $0x4c8] sm:$0xff]
    %v269 = vld [vmem:[#allocation2 + $0x4d0] sm:$0xff]
    %v270 = vld [vmem:[#allocation2 + $0x4d8] sm:$0xff]
    %v271 = vld [vmem:[#allocation2 + $0x4e0] sm:$0xff]
    %v272 = vld [vmem:[#allocation2 + $0x4e8] sm:$0xff]
    %v273 = vld [vmem:[#allocation2 + $0x4f0] sm:$0xff]
    %v274 = vld [vmem:[#allocation2 + $0x4f8] sm:$0xff]
    %v275 = vld [vmem:[#allocation2 + $0x500] sm:$0xff]
    %v276 = vld [vmem:[#allocation2 + $0x508] sm:$0xff]
    %v277 = vld [vmem:[#allocation2 + $0x510] sm:$0xff]
    %v278 = vld [vmem:[#allocation2 + $0x518] sm:$0xff]
    %v279 = vld [vmem:[#allocation2 + $0x520] sm:$0xff]
    %v280 = vld [vmem:[#allocation2 + $0x528] sm:$0xff]
    %v281 = vld [vmem:[#allocation2 + $0x530] sm:$0xff]
    %v282 = vld [vmem:[#allocation2 + $0x538] sm:$0xff]
    %v283 = vld [vmem:[#allocation2 + $0x540] sm:$0xff]
    %v284 = vld [vmem:[#allocation2 + $0x548] sm:$0xff]
    %v285 = vld [vmem:[#allocation2 + $0x550] sm:$0xff]
    %v286 = vld [vmem:[#allocation2 + $0x558] sm:$0xff]
    %v287 = vld [vmem:[#allocation2 + $0x560] sm:$0xff]
    %v288 = vld [vmem:[#allocation2 + $0x568] sm:$0xff]
    %v289 = vld [vmem:[#allocation2 + $0x570] sm:$0xff]
    %v290 = vld [vmem:[#allocation2 + $0x578] sm:$0xff]
    %v291 = vld [vmem:[#allocation2 + $0x580] sm:$0xff]
    %v292 = vld [vmem:[#allocation2 + $0x588] sm:$0xff]
    %v293 = vld [vmem:[#allocation2 + $0x590] sm:$0xff]
    %v294 = vld [vmem:[#allocation2 + $0x598] sm:$0xff]
    %v295 = vld [vmem:[#allocation2 + $0x5a0] sm:$0xff]
    %v296 = vld [vmem:[#allocation2 + $0x5a8] sm:$0xff]
    %v297 = vld [vmem:[#allocation2 + $0x5b0] sm:$0xff]
    %v298 = vld [vmem:[#allocation2 + $0x5b8] sm:$0xff]
    %v299 = vld [vmem:[#allocation2 + $0x5c0] sm:$0xff]
    %v300 = vld [vmem:[#allocation2 + $0x5c8] sm:$0xff]
    %v301 = vld [vmem:[#allocation2 + $0x5d0] sm:$0xff]
    %v302 = vld [vmem:[#allocation2 + $0x5d8] sm:$0xff]
    %v303 = vld [vmem:[#allocation2 + $0x5e0] sm:$0xff]
    %v304 = vld [vmem:[#allocation2 + $0x5e8] sm:$0xff]
    %v305 = vld [vmem:[#allocation2 + $0x5f0] sm:$0xff]
    %v306 = vld [vmem:[#allocation2 + $0x5f8] sm:$0xff]
    %v307 = vld [vmem:[#allocation2 + $0x600] sm:$0xff]
    %v308 = vld [vmem:[#allocation2 + $0x608] sm:$0xff]
    %v309 = vld [vmem:[#allocation2 + $0x610] sm:$0xff]
    %v310 = vld [vmem:[#allocation2 + $0x618] sm:$0xff]
    %v311 = vld [vmem:[#allocation2 + $0x620] sm:$0xff]
    %v312 = vld [vmem:[#allocation2 + $0x628] sm:$0xff]
    %v313 = vld [vmem:[#allocation2 + $0x630] sm:$0xff]
    %v314 = vld [vmem:[#allocation2 + $0x638] sm:$0xff]
    %v315 = vld [vmem:[#allocation2 + $0x640] sm:$0xff]
    %v316 = vld [vmem:[#allocation2 + $0x648] sm:$0xff]
    %v317 = vld [vmem:[#allocation2 + $0x650] sm:$0xff]
    %v318 = vld [vmem:[#allocation2 + $0x658] sm:$0xff]
    %v319 = vld [vmem:[#allocation2 + $0x660] sm:$0xff]
    %v320 = vld [vmem:[#allocation2 + $0x668] sm:$0xff]
    %v321 = vld [vmem:[#allocation2 + $0x670] sm:$0xff]
    %v322 = vld [vmem:[#allocation2 + $0x678] sm:$0xff]
    %v323 = vld [vmem:[#allocation2 + $0x680] sm:$0xff]
    %v324 = vld [vmem:[#allocation2 + $0x688] sm:$0xff]
    %v325 = vld [vmem:[#allocation2 + $0x690] sm:$0xff]
    %v326 = vld [vmem:[#allocation2 + $0x698] sm:$0xff]
    %v327 = vld [vmem:[#allocation2 + $0x6a0] sm:$0xff]
    %v328 = vld [vmem:[#allocation2 + $0x6a8] sm:$0xff]
    %v329 = vld [vmem:[#allocation2 + $0x6b0] sm:$0xff]
    %v330 = vld [vmem:[#allocation2 + $0x6b8] sm:$0xff]
    %v331 = vld [vmem:[#allocation2 + $0x6c0] sm:$0xff]
    %v332 = vld [vmem:[#allocation2 + $0x6c8] sm:$0xff]
    %v333 = vld [vmem:[#allocation2 + $0x6d0] sm:$0xff]
    %v334 = vld [vmem:[#allocation2 + $0x6d8] sm:$0xff]
    %v335 = vld [vmem:[#allocation2 + $0x6e0] sm:$0xff]
    %v336 = vld [vmem:[#allocation2 + $0x6e8] sm:$0xff]
    %v337 = vld [vmem:[#allocation2 + $0x6f0] sm:$0xff]
    %v338 = vld [vmem:[#allocation2 + $0x6f8] sm:$0xff]
    %v339 = vld [vmem:[%s2] sm:$0xf]
    %v341 = vlaneseq
    %v342 = vshrl.u32 %v341, 7
    %v343 = vsub.s32 0, %v342
    %v344 = vrot.slane %v339, %v343
    %v345 = vlaneseq
    %v346 = vshrl.u32 %v345, 7
    %v347 = vsub.s32 1, %v346
    %v348 = vrot.slane %v339, %v347
    %v349 = vlaneseq
    %v350 = vshrl.u32 %v349, 7
    %v351 = vsub.s32 2, %v350
    %v352 = vrot.slane %v339, %v351
    %v353 = vlaneseq
    %v354 = vshrl.u32 %v353, 7
    %v355 = vsub.s32 3, %v354
    %v356 = vrot.slane %v339, %v355
    %v369 = vunpack.c.l.b16 %v107
    %v370 = vunpack.c.h.b16 %v107
    %v371 = vunpack.c.l.b16 %v108
    %v372 = vunpack.c.h.b16 %v108
    %v373 = vunpack.c.l.b16 %v109
    %v374 = vunpack.c.h.b16 %v109
    %v375 = vunpack.c.l.b16 %v110
    %v376 = vunpack.c.l.b16 %v111
    %v377 = vunpack.c.h.b16 %v111
    %v378 = vunpack.c.l.b16 %v112
    %v379 = vunpack.c.h.b16 %v112
    %v380 = vunpack.c.l.b16 %v113
    %v381 = vunpack.c.h.b16 %v113
    %v382 = vunpack.c.l.b16 %v114
    %v383 = vpack.c.b16 %v376, %v369
    %v384 = vpack.c.b16 %v377, %v370
    %v385 = vpack.c.b16 %v378, %v371
    %v386 = vpack.c.b16 %v379, %v372
    %v387 = vpack.c.b16 %v380, %v373
    %v388 = vpack.c.b16 %v381, %v374
    %v389 = vpack.c.b16 %v382, %v375
    %v621 = vunpack.c.l.b16 %v115
    %v622 = vunpack.c.h.b16 %v115
    %v623 = vunpack.c.l.b16 %v116
    %v624 = vunpack.c.h.b16 %v116
    %v625 = vunpack.c.l.b16 %v117
    %v626 = vunpack.c.h.b16 %v117
    %v627 = vunpack.c.l.b16 %v118
    %v628 = vunpack.c.h.b16 %v118
    %v629 = vunpack.c.l.b16 %v119
    %v630 = vunpack.c.h.b16 %v119
    %v631 = vunpack.c.l.b16 %v120
    %v632 = vunpack.c.h.b16 %v120
    %v633 = vunpack.c.l.b16 %v121
    %v634 = vunpack.c.h.b16 %v121
    %v635 = vunpack.c.l.b16 %v122
    %v636 = vunpack.c.h.b16 %v122
    %v637 = vunpack.c.l.b16 %v123
    %v638 = vunpack.c.h.b16 %v123
    %v639 = vunpack.c.l.b16 %v124
    %v640 = vunpack.c.h.b16 %v124
    %v641 = vunpack.c.l.b16 %v125
    %v642 = vunpack.c.h.b16 %v125
    %v643 = vunpack.c.l.b16 %v126
    %v644 = vunpack.c.h.b16 %v126
    %v645 = vunpack.c.l.b16 %v127
    %v646 = vunpack.c.h.b16 %v127
    %v647 = vunpack.c.l.b16 %v128
    %v648 = vunpack.c.h.b16 %v128
    %v649 = vunpack.c.l.b16 %v129
    %v650 = vunpack.c.h.b16 %v129
    %v651 = vunpack.c.l.b16 %v130
    %v652 = vunpack.c.h.b16 %v130
    %v653 = vunpack.c.l.b16 %v131
    %v654 = vunpack.c.h.b16 %v131
    %v655 = vunpack.c.l.b16 %v132
    %v656 = vunpack.c.h.b16 %v132
    %v657 = vunpack.c.l.b16 %v133
    %v658 = vunpack.c.h.b16 %v133
    %v659 = vunpack.c.l.b16 %v134
    %v660 = vunpack.c.h.b16 %v134
    %v661 = vunpack.c.l.b16 %v135
    %v662 = vunpack.c.h.b16 %v135
    %v663 = vunpack.c.l.b16 %v136
    %v664 = vunpack.c.h.b16 %v136
    %v665 = vunpack.c.l.b16 %v137
    %v666 = vunpack.c.h.b16 %v137
    %v667 = vunpack.c.l.b16 %v138
    %v668 = vunpack.c.h.b16 %v138
    %v669 = vunpack.c.l.b16 %v139
    %v670 = vunpack.c.h.b16 %v139
    %v671 = vunpack.c.l.b16 %v140
    %v672 = vunpack.c.h.b16 %v140
    %v673 = vunpack.c.l.b16 %v141
    %v674 = vunpack.c.h.b16 %v141
    %v675 = vunpack.c.l.b16 %v142
    %v676 = vunpack.c.h.b16 %v142
    %v677 = vunpack.c.l.b16 %v143
    %v678 = vunpack.c.h.b16 %v143
    %v679 = vunpack.c.l.b16 %v144
    %v680 = vunpack.c.h.b16 %v144
    %v681 = vunpack.c.l.b16 %v145
    %v682 = vunpack.c.h.b16 %v145
    %v683 = vunpack.c.l.b16 %v146
    %v684 = vunpack.c.h.b16 %v146
    %v685 = vunpack.c.l.b16 %v147
    %v686 = vunpack.c.h.b16 %v147
    %v687 = vunpack.c.l.b16 %v148
    %v688 = vunpack.c.h.b16 %v148
    %v689 = vunpack.c.l.b16 %v149
    %v690 = vunpack.c.h.b16 %v149
    %v691 = vunpack.c.l.b16 %v150
    %v692 = vunpack.c.h.b16 %v150
    %v693 = vunpack.c.l.b16 %v151
    %v694 = vunpack.c.h.b16 %v151
    %v695 = vunpack.c.l.b16 %v152
    %v696 = vunpack.c.h.b16 %v152
    %v697 = vunpack.c.l.b16 %v153
    %v698 = vunpack.c.h.b16 %v153
    %v699 = vunpack.c.l.b16 %v154
    %v700 = vunpack.c.h.b16 %v154
    %v701 = vunpack.c.l.b16 %v155
    %v702 = vunpack.c.h.b16 %v155
    %v703 = vunpack.c.l.b16 %v156
    %v704 = vunpack.c.h.b16 %v156
    %v705 = vunpack.c.l.b16 %v157
    %v706 = vunpack.c.h.b16 %v157
    %v707 = vunpack.c.l.b16 %v158
    %v708 = vunpack.c.h.b16 %v158
    %v709 = vunpack.c.l.b16 %v159
    %v710 = vunpack.c.h.b16 %v159
    %v711 = vunpack.c.l.b16 %v160
    %v712 = vunpack.c.h.b16 %v160
    %v713 = vunpack.c.l.b16 %v161
    %v714 = vunpack.c.h.b16 %v161
    %v715 = vunpack.c.l.b16 %v162
    %v716 = vunpack.c.h.b16 %v162
    %v717 = vunpack.c.l.b16 %v163
    %v718 = vunpack.c.h.b16 %v163
    %v719 = vunpack.c.l.b16 %v164
    %v720 = vunpack.c.h.b16 %v164
    %v721 = vunpack.c.l.b16 %v165
    %v722 = vunpack.c.h.b16 %v165
    %v723 = vunpack.c.l.b16 %v166
    %v724 = vunpack.c.h.b16 %v166
    %v725 = vunpack.c.l.b16 %v167
    %v726 = vunpack.c.h.b16 %v167
    %v727 = vunpack.c.l.b16 %v168
    %v728 = vunpack.c.h.b16 %v168
    %v729 = vunpack.c.l.b16 %v169
    %v730 = vunpack.c.h.b16 %v169
    %v731 = vunpack.c.l.b16 %v170
    %v732 = vunpack.c.h.b16 %v170
    %v733 = vunpack.c.l.b16 %v171
    %v734 = vunpack.c.h.b16 %v171
    %v735 = vunpack.c.l.b16 %v172
    %v736 = vunpack.c.h.b16 %v172
    %v737 = vunpack.c.l.b16 %v173
    %v738 = vunpack.c.h.b16 %v173
    %v739 = vunpack.c.l.b16 %v174
    %v740 = vunpack.c.h.b16 %v174
    %v741 = vunpack.c.l.b16 %v175
    %v742 = vunpack.c.h.b16 %v175
    %v743 = vunpack.c.l.b16 %v176
    %v744 = vunpack.c.h.b16 %v176
    %v745 = vunpack.c.l.b16 %v177
    %v746 = vunpack.c.h.b16 %v177
    %v747 = vunpack.c.l.b16 %v178
    %v748 = vunpack.c.h.b16 %v178
    %v749 = vunpack.c.l.b16 %v179
    %v750 = vunpack.c.h.b16 %v179
    %v751 = vunpack.c.l.b16 %v180
    %v752 = vunpack.c.h.b16 %v180
    %v753 = vunpack.c.l.b16 %v181
    %v754 = vunpack.c.h.b16 %v181
    %v755 = vunpack.c.l.b16 %v182
    %v756 = vunpack.c.h.b16 %v182
    %v757 = vunpack.c.l.b16 %v183
    %v758 = vunpack.c.h.b16 %v183
    %v759 = vunpack.c.l.b16 %v184
    %v760 = vunpack.c.h.b16 %v184
    %v761 = vunpack.c.l.b16 %v185
    %v762 = vunpack.c.h.b16 %v185
    %v763 = vunpack.c.l.b16 %v186
    %v764 = vunpack.c.h.b16 %v186
    %v765 = vunpack.c.l.b16 %v187
    %v766 = vunpack.c.h.b16 %v187
    %v767 = vunpack.c.l.b16 %v188
    %v768 = vunpack.c.h.b16 %v188
    %v769 = vunpack.c.l.b16 %v189
    %v770 = vunpack.c.h.b16 %v189
    %v771 = vunpack.c.l.b16 %v190
    %v772 = vunpack.c.h.b16 %v190
    %v773 = vunpack.c.l.b16 %v191
    %v774 = vunpack.c.h.b16 %v191
    %v775 = vunpack.c.l.b16 %v192
    %v776 = vunpack.c.h.b16 %v192
    %v777 = vunpack.c.l.b16 %v193
    %v778 = vunpack.c.h.b16 %v193
    %v779 = vunpack.c.l.b16 %v194
    %v780 = vunpack.c.h.b16 %v194
    %v781 = vunpack.c.l.b16 %v195
    %v782 = vunpack.c.h.b16 %v195
    %v783 = vunpack.c.l.b16 %v196
    %v784 = vunpack.c.h.b16 %v196
    %v785 = vunpack.c.l.b16 %v197
    %v786 = vunpack.c.h.b16 %v197
    %v787 = vunpack.c.l.b16 %v198
    %v788 = vunpack.c.h.b16 %v198
    %v789 = vunpack.c.l.b16 %v199
    %v790 = vunpack.c.h.b16 %v199
    %v791 = vunpack.c.l.b16 %v200
    %v792 = vunpack.c.h.b16 %v200
    %v793 = vunpack.c.l.b16 %v201
    %v794 = vunpack.c.h.b16 %v201
    %v795 = vunpack.c.l.b16 %v202
    %v796 = vunpack.c.h.b16 %v202
    %v797 = vunpack.c.l.b16 %v203
    %v798 = vunpack.c.h.b16 %v203
    %v799 = vunpack.c.l.b16 %v204
    %v800 = vunpack.c.h.b16 %v204
    %v801 = vunpack.c.l.b16 %v205
    %v802 = vunpack.c.h.b16 %v205
    %v803 = vunpack.c.l.b16 %v206
    %v804 = vunpack.c.h.b16 %v206
    %v805 = vunpack.c.l.b16 %v207
    %v806 = vunpack.c.h.b16 %v207
    %v807 = vunpack.c.l.b16 %v208
    %v808 = vunpack.c.h.b16 %v208
    %v809 = vunpack.c.l.b16 %v209
    %v810 = vunpack.c.h.b16 %v209
    %v811 = vunpack.c.l.b16 %v210
    %v812 = vunpack.c.h.b16 %v210
    %v813 = vunpack.c.l.b16 %v211
    %v814 = vunpack.c.h.b16 %v211
    %v815 = vunpack.c.l.b16 %v212
    %v816 = vunpack.c.h.b16 %v212
    %v817 = vunpack.c.l.b16 %v213
    %v818 = vunpack.c.h.b16 %v213
    %v819 = vunpack.c.l.b16 %v214
    %v820 = vunpack.c.h.b16 %v214
    %v821 = vunpack.c.l.b16 %v215
    %v822 = vunpack.c.h.b16 %v215
    %v823 = vunpack.c.l.b16 %v216
    %v824 = vunpack.c.h.b16 %v216
    %v825 = vunpack.c.l.b16 %v217
    %v826 = vunpack.c.h.b16 %v217
    %v827 = vunpack.c.l.b16 %v218
    %v828 = vunpack.c.h.b16 %v218
    %v829 = vunpack.c.l.b16 %v219
    %v830 = vunpack.c.h.b16 %v219
    %v831 = vunpack.c.l.b16 %v220
    %v832 = vunpack.c.h.b16 %v220
    %v833 = vunpack.c.l.b16 %v221
    %v834 = vunpack.c.h.b16 %v221
    %v835 = vunpack.c.l.b16 %v222
    %v836 = vunpack.c.h.b16 %v222
    %v837 = vunpack.c.l.b16 %v223
    %v838 = vunpack.c.h.b16 %v223
    %v839 = vunpack.c.l.b16 %v224
    %v840 = vunpack.c.h.b16 %v224
    %v841 = vunpack.c.l.b16 %v225
    %v842 = vunpack.c.h.b16 %v225
    %v843 = vunpack.c.l.b16 %v226
    %v844 = vunpack.c.h.b16 %v226
    %v845 = vunpack.c.l.b16 %v227
    %v846 = vunpack.c.h.b16 %v227
    %v847 = vunpack.c.l.b16 %v228
    %v848 = vunpack.c.h.b16 %v228
    %v849 = vunpack.c.l.b16 %v229
    %v850 = vunpack.c.h.b16 %v229
    %v851 = vunpack.c.l.b16 %v230
    %v852 = vunpack.c.h.b16 %v230
    %v853 = vunpack.c.l.b16 %v231
    %v854 = vunpack.c.h.b16 %v231
    %v855 = vunpack.c.l.b16 %v232
    %v856 = vunpack.c.h.b16 %v232
    %v857 = vunpack.c.l.b16 %v233
    %v858 = vunpack.c.h.b16 %v233
    %v859 = vunpack.c.l.b16 %v234
    %v860 = vunpack.c.h.b16 %v234
    %v861 = vunpack.c.l.b16 %v235
    %v862 = vunpack.c.h.b16 %v235
    %v863 = vunpack.c.l.b16 %v236
    %v864 = vunpack.c.h.b16 %v236
    %v865 = vunpack.c.l.b16 %v237
    %v866 = vunpack.c.h.b16 %v237
    %v867 = vunpack.c.l.b16 %v238
    %v868 = vunpack.c.h.b16 %v238
    %v869 = vunpack.c.l.b16 %v239
    %v870 = vunpack.c.h.b16 %v239
    %v871 = vunpack.c.l.b16 %v240
    %v872 = vunpack.c.h.b16 %v240
    %v873 = vunpack.c.l.b16 %v241
    %v874 = vunpack.c.h.b16 %v241
    %v875 = vunpack.c.l.b16 %v242
    %v876 = vunpack.c.h.b16 %v242
    %v877 = vunpack.c.l.b16 %v243
    %v878 = vunpack.c.h.b16 %v243
    %v879 = vunpack.c.l.b16 %v244
    %v880 = vunpack.c.h.b16 %v244
    %v881 = vunpack.c.l.b16 %v245
    %v882 = vunpack.c.h.b16 %v245
    %v883 = vunpack.c.l.b16 %v246
    %v884 = vunpack.c.h.b16 %v246
    %v885 = vunpack.c.l.b16 %v247
    %v886 = vunpack.c.h.b16 %v247
    %v887 = vunpack.c.l.b16 %v248
    %v888 = vunpack.c.h.b16 %v248
    %v889 = vunpack.c.l.b16 %v249
    %v890 = vunpack.c.h.b16 %v249
    %v891 = vunpack.c.l.b16 %v250
    %v892 = vunpack.c.h.b16 %v250
    %v893 = vunpack.c.l.b16 %v251
    %v894 = vunpack.c.h.b16 %v251
    %v895 = vunpack.c.l.b16 %v252
    %v896 = vunpack.c.h.b16 %v252
    %v897 = vunpack.c.l.b16 %v253
    %v898 = vunpack.c.h.b16 %v253
    %v899 = vunpack.c.l.b16 %v254
    %v900 = vunpack.c.h.b16 %v254
    %v901 = vunpack.c.l.b16 %v255
    %v902 = vunpack.c.h.b16 %v255
    %v903 = vunpack.c.l.b16 %v256
    %v904 = vunpack.c.h.b16 %v256
    %v905 = vunpack.c.l.b16 %v257
    %v906 = vunpack.c.h.b16 %v257
    %v907 = vunpack.c.l.b16 %v258
    %v908 = vunpack.c.h.b16 %v258
    %v909 = vunpack.c.l.b16 %v259
    %v910 = vunpack.c.h.b16 %v259
    %v911 = vunpack.c.l.b16 %v260
    %v912 = vunpack.c.h.b16 %v260
    %v913 = vunpack.c.l.b16 %v261
    %v914 = vunpack.c.h.b16 %v261
    %v915 = vunpack.c.l.b16 %v262
    %v916 = vunpack.c.h.b16 %v262
    %v917 = vunpack.c.l.b16 %v263
    %v918 = vunpack.c.h.b16 %v263
    %v919 = vunpack.c.l.b16 %v264
    %v920 = vunpack.c.h.b16 %v264
    %v921 = vunpack.c.l.b16 %v265
    %v922 = vunpack.c.h.b16 %v265
    %v923 = vunpack.c.l.b16 %v266
    %v924 = vunpack.c.h.b16 %v266
    %v925 = vunpack.c.l.b16 %v267
    %v926 = vunpack.c.h.b16 %v267
    %v927 = vunpack.c.l.b16 %v268
    %v928 = vunpack.c.h.b16 %v268
    %v929 = vunpack.c.l.b16 %v269
    %v930 = vunpack.c.h.b16 %v269
    %v931 = vunpack.c.l.b16 %v270
    %v932 = vunpack.c.h.b16 %v270
    %v933 = vunpack.c.l.b16 %v271
    %v934 = vunpack.c.h.b16 %v271
    %v935 = vunpack.c.l.b16 %v272
    %v936 = vunpack.c.h.b16 %v272
    %v937 = vunpack.c.l.b16 %v273
    %v938 = vunpack.c.h.b16 %v273
    %v939 = vunpack.c.l.b16 %v274
    %v940 = vunpack.c.h.b16 %v274
    %v941 = vunpack.c.l.b16 %v275
    %v942 = vunpack.c.h.b16 %v275
    %v943 = vunpack.c.l.b16 %v276
    %v944 = vunpack.c.h.b16 %v276
    %v945 = vunpack.c.l.b16 %v277
    %v946 = vunpack.c.h.b16 %v277
    %v947 = vunpack.c.l.b16 %v278
    %v948 = vunpack.c.h.b16 %v278
    %v949 = vunpack.c.l.b16 %v279
    %v950 = vunpack.c.h.b16 %v279
    %v951 = vunpack.c.l.b16 %v280
    %v952 = vunpack.c.h.b16 %v280
    %v953 = vunpack.c.l.b16 %v281
    %v954 = vunpack.c.h.b16 %v281
    %v955 = vunpack.c.l.b16 %v282
    %v956 = vunpack.c.h.b16 %v282
    %v957 = vunpack.c.l.b16 %v283
    %v958 = vunpack.c.h.b16 %v283
    %v959 = vunpack.c.l.b16 %v284
    %v960 = vunpack.c.h.b16 %v284
    %v961 = vunpack.c.l.b16 %v285
    %v962 = vunpack.c.h.b16 %v285
    %v963 = vunpack.c.l.b16 %v286
    %v964 = vunpack.c.h.b16 %v286
    %v965 = vunpack.c.l.b16 %v287
    %v966 = vunpack.c.h.b16 %v287
    %v967 = vunpack.c.l.b16 %v288
    %v968 = vunpack.c.h.b16 %v288
    %v969 = vunpack.c.l.b16 %v289
    %v970 = vunpack.c.h.b16 %v289
    %v971 = vunpack.c.l.b16 %v290
    %v972 = vunpack.c.h.b16 %v290
    %v973 = vunpack.c.l.b16 %v291
    %v974 = vunpack.c.h.b16 %v291
    %v975 = vunpack.c.l.b16 %v292
    %v976 = vunpack.c.h.b16 %v292
    %v977 = vunpack.c.l.b16 %v293
    %v978 = vunpack.c.h.b16 %v293
    %v979 = vunpack.c.l.b16 %v294
    %v980 = vunpack.c.h.b16 %v294
    %v981 = vunpack.c.l.b16 %v295
    %v982 = vunpack.c.h.b16 %v295
    %v983 = vunpack.c.l.b16 %v296
    %v984 = vunpack.c.h.b16 %v296
    %v985 = vunpack.c.l.b16 %v297
    %v986 = vunpack.c.h.b16 %v297
    %v987 = vunpack.c.l.b16 %v298
    %v988 = vunpack.c.h.b16 %v298
    %v989 = vunpack.c.l.b16 %v299
    %v990 = vunpack.c.h.b16 %v299
    %v991 = vunpack.c.l.b16 %v300
    %v992 = vunpack.c.h.b16 %v300
    %v993 = vunpack.c.l.b16 %v301
    %v994 = vunpack.c.h.b16 %v301
    %v995 = vunpack.c.l.b16 %v302
    %v996 = vunpack.c.h.b16 %v302
    %v997 = vunpack.c.l.b16 %v303
    %v998 = vunpack.c.h.b16 %v303
    %v999 = vunpack.c.l.b16 %v304
    %v1000 = vunpack.c.h.b16 %v304
    %v1001 = vunpack.c.l.b16 %v305
    %v1002 = vunpack.c.h.b16 %v305
    %v1003 = vunpack.c.l.b16 %v306
    %v1004 = vunpack.c.h.b16 %v306
    %v1005 = vunpack.c.l.b16 %v307
    %v1006 = vunpack.c.h.b16 %v307
    %v1007 = vunpack.c.l.b16 %v308
    %v1008 = vunpack.c.h.b16 %v308
    %v1009 = vunpack.c.l.b16 %v309
    %v1010 = vunpack.c.h.b16 %v309
    %v1011 = vunpack.c.l.b16 %v310
    %v1012 = vunpack.c.h.b16 %v310
    %v1013 = vunpack.c.l.b16 %v311
    %v1014 = vunpack.c.h.b16 %v311
    %v1015 = vunpack.c.l.b16 %v312
    %v1016 = vunpack.c.h.b16 %v312
    %v1017 = vunpack.c.l.b16 %v313
    %v1018 = vunpack.c.h.b16 %v313
    %v1019 = vunpack.c.l.b16 %v314
    %v1020 = vunpack.c.h.b16 %v314
    %v1021 = vunpack.c.l.b16 %v315
    %v1022 = vunpack.c.h.b16 %v315
    %v1023 = vunpack.c.l.b16 %v316
    %v1024 = vunpack.c.h.b16 %v316
    %v1025 = vunpack.c.l.b16 %v317
    %v1026 = vunpack.c.h.b16 %v317
    %v1027 = vunpack.c.l.b16 %v318
    %v1028 = vunpack.c.h.b16 %v318
    %v1029 = vunpack.c.l.b16 %v319
    %v1030 = vunpack.c.h.b16 %v319
    %v1031 = vunpack.c.l.b16 %v320
    %v1032 = vunpack.c.h.b16 %v320
    %v1033 = vunpack.c.l.b16 %v321
    %v1034 = vunpack.c.h.b16 %v321
    %v1035 = vunpack.c.l.b16 %v322
    %v1036 = vunpack.c.h.b16 %v322
    %v1037 = vunpack.c.l.b16 %v323
    %v1038 = vunpack.c.h.b16 %v323
    %v1039 = vunpack.c.l.b16 %v324
    %v1040 = vunpack.c.h.b16 %v324
    %v1041 = vunpack.c.l.b16 %v325
    %v1042 = vunpack.c.h.b16 %v325
    %v1043 = vunpack.c.l.b16 %v326
    %v1044 = vunpack.c.h.b16 %v326
    %v1045 = vunpack.c.l.b16 %v327
    %v1046 = vunpack.c.h.b16 %v327
    %v1047 = vunpack.c.l.b16 %v328
    %v1048 = vunpack.c.h.b16 %v328
    %v1049 = vunpack.c.l.b16 %v329
    %v1050 = vunpack.c.h.b16 %v329
    %v1051 = vunpack.c.l.b16 %v330
    %v1052 = vunpack.c.h.b16 %v330
    %v1053 = vunpack.c.l.b16 %v331
    %v1054 = vunpack.c.h.b16 %v331
    %v1055 = vunpack.c.l.b16 %v332
    %v1056 = vunpack.c.h.b16 %v332
    %v1057 = vunpack.c.l.b16 %v333
    %v1058 = vunpack.c.h.b16 %v333
    %v1059 = vunpack.c.l.b16 %v334
    %v1060 = vunpack.c.h.b16 %v334
    %v1061 = vunpack.c.l.b16 %v335
    %v1062 = vunpack.c.h.b16 %v335
    %v1063 = vunpack.c.l.b16 %v336
    %v1064 = vunpack.c.h.b16 %v336
    %v1065 = vunpack.c.l.b16 %v337
    %v1066 = vunpack.c.h.b16 %v337
    %v1067 = vunpack.c.l.b16 %v338
    %v1068 = vunpack.c.h.b16 %v338
    %v1069 = vpack.c.b16 %v625, %v621
    %v1070 = vpack.c.b16 %v626, %v622
    %v1071 = vpack.c.b16 %v627, %v623
    %v1072 = vpack.c.b16 %v628, %v624
    %v1073 = vpack.c.b16 %v633, %v629
    %v1074 = vpack.c.b16 %v634, %v630
    %v1075 = vpack.c.b16 %v635, %v631
    %v1076 = vpack.c.b16 %v636, %v632
    %v1077 = vpack.c.b16 %v641, %v637
    %v1078 = vpack.c.b16 %v642, %v638
    %v1079 = vpack.c.b16 %v643, %v639
    %v1080 = vpack.c.b16 %v644, %v640
    %v1081 = vpack.c.b16 %v649, %v645
    %v1082 = vpack.c.b16 %v650, %v646
    %v1083 = vpack.c.b16 %v651, %v647
    %v1084 = vpack.c.b16 %v652, %v648
    %v1085 = vpack.c.b16 %v657, %v653
    %v1086 = vpack.c.b16 %v658, %v654
    %v1087 = vpack.c.b16 %v659, %v655
    %v1088 = vpack.c.b16 %v660, %v656
    %v1089 = vpack.c.b16 %v665, %v661
    %v1090 = vpack.c.b16 %v666, %v662
    %v1091 = vpack.c.b16 %v667, %v663
    %v1092 = vpack.c.b16 %v668, %v664
    %v1093 = vpack.c.b16 %v673, %v669
    %v1094 = vpack.c.b16 %v674, %v670
    %v1095 = vpack.c.b16 %v675, %v671
    %v1096 = vpack.c.b16 %v676, %v672
    %v1097 = vpack.c.b16 %v681, %v677
    %v1098 = vpack.c.b16 %v682, %v678
    %v1099 = vpack.c.b16 %v683, %v679
    %v1100 = vpack.c.b16 %v684, %v680
    %v1101 = vpack.c.b16 %v689, %v685
    %v1102 = vpack.c.b16 %v690, %v686
    %v1103 = vpack.c.b16 %v691, %v687
    %v1104 = vpack.c.b16 %v692, %v688
    %v1105 = vpack.c.b16 %v697, %v693
    %v1106 = vpack.c.b16 %v698, %v694
    %v1107 = vpack.c.b16 %v699, %v695
    %v1108 = vpack.c.b16 %v700, %v696
    %v1109 = vpack.c.b16 %v705, %v701
    %v1110 = vpack.c.b16 %v706, %v702
    %v1111 = vpack.c.b16 %v707, %v703
    %v1112 = vpack.c.b16 %v708, %v704
    %v1113 = vpack.c.b16 %v713, %v709
    %v1114 = vpack.c.b16 %v714, %v710
    %v1115 = vpack.c.b16 %v715, %v711
    %v1116 = vpack.c.b16 %v716, %v712
    %v1117 = vpack.c.b16 %v721, %v717
    %v1118 = vpack.c.b16 %v722, %v718
    %v1119 = vpack.c.b16 %v723, %v719
    %v1120 = vpack.c.b16 %v724, %v720
    %v1121 = vpack.c.b16 %v729, %v725
    %v1122 = vpack.c.b16 %v730, %v726
    %v1123 = vpack.c.b16 %v731, %v727
    %v1124 = vpack.c.b16 %v732, %v728
    %v1125 = vpack.c.b16 %v737, %v733
    %v1126 = vpack.c.b16 %v738, %v734
    %v1127 = vpack.c.b16 %v739, %v735
    %v1128 = vpack.c.b16 %v740, %v736
    %v1129 = vpack.c.b16 %v745, %v741
    %v1130 = vpack.c.b16 %v746, %v742
    %v1131 = vpack.c.b16 %v747, %v743
    %v1132 = vpack.c.b16 %v748, %v744
    %v1133 = vpack.c.b16 %v753, %v749
    %v1134 = vpack.c.b16 %v754, %v750
    %v1135 = vpack.c.b16 %v755, %v751
    %v1136 = vpack.c.b16 %v756, %v752
    %v1137 = vpack.c.b16 %v761, %v757
    %v1138 = vpack.c.b16 %v762, %v758
    %v1139 = vpack.c.b16 %v763, %v759
    %v1140 = vpack.c.b16 %v764, %v760
    %v1141 = vpack.c.b16 %v769, %v765
    %v1142 = vpack.c.b16 %v770, %v766
    %v1143 = vpack.c.b16 %v771, %v767
    %v1144 = vpack.c.b16 %v772, %v768
    %v1145 = vpack.c.b16 %v777, %v773
    %v1146 = vpack.c.b16 %v778, %v774
    %v1147 = vpack.c.b16 %v779, %v775
    %v1148 = vpack.c.b16 %v780, %v776
    %v1149 = vpack.c.b16 %v785, %v781
    %v1150 = vpack.c.b16 %v786, %v782
    %v1151 = vpack.c.b16 %v787, %v783
    %v1152 = vpack.c.b16 %v788, %v784
    %v1153 = vpack.c.b16 %v793, %v789
    %v1154 = vpack.c.b16 %v794, %v790
    %v1155 = vpack.c.b16 %v795, %v791
    %v1156 = vpack.c.b16 %v796, %v792
    %v1157 = vpack.c.b16 %v801, %v797
    %v1158 = vpack.c.b16 %v802, %v798
    %v1159 = vpack.c.b16 %v803, %v799
    %v1160 = vpack.c.b16 %v804, %v800
    %v1161 = vpack.c.b16 %v809, %v805
    %v1162 = vpack.c.b16 %v810, %v806
    %v1163 = vpack.c.b16 %v811, %v807
    %v1164 = vpack.c.b16 %v812, %v808
    %v1165 = vpack.c.b16 %v817, %v813
    %v1166 = vpack.c.b16 %v818, %v814
    %v1167 = vpack.c.b16 %v819, %v815
    %v1168 = vpack.c.b16 %v820, %v816
    %v1169 = vpack.c.b16 %v825, %v821
    %v1170 = vpack.c.b16 %v826, %v822
    %v1171 = vpack.c.b16 %v827, %v823
    %v1172 = vpack.c.b16 %v828, %v824
    %v1173 = vpack.c.b16 %v833, %v829
    %v1174 = vpack.c.b16 %v834, %v830
    %v1175 = vpack.c.b16 %v835, %v831
    %v1176 = vpack.c.b16 %v836, %v832
    %v1177 = vpack.c.b16 %v841, %v837
    %v1178 = vpack.c.b16 %v842, %v838
    %v1179 = vpack.c.b16 %v843, %v839
    %v1180 = vpack.c.b16 %v844, %v840
    %v1181 = vpack.c.b16 %v849, %v845
    %v1182 = vpack.c.b16 %v850, %v846
    %v1183 = vpack.c.b16 %v851, %v847
    %v1184 = vpack.c.b16 %v852, %v848
    %v1185 = vpack.c.b16 %v857, %v853
    %v1186 = vpack.c.b16 %v858, %v854
    %v1187 = vpack.c.b16 %v859, %v855
    %v1188 = vpack.c.b16 %v860, %v856
    %v1189 = vpack.c.b16 %v865, %v861
    %v1190 = vpack.c.b16 %v866, %v862
    %v1191 = vpack.c.b16 %v867, %v863
    %v1192 = vpack.c.b16 %v868, %v864
    %v1193 = vpack.c.b16 %v873, %v869
    %v1194 = vpack.c.b16 %v874, %v870
    %v1195 = vpack.c.b16 %v875, %v871
    %v1196 = vpack.c.b16 %v876, %v872
    %v1197 = vpack.c.b16 %v881, %v877
    %v1198 = vpack.c.b16 %v882, %v878
    %v1199 = vpack.c.b16 %v883, %v879
    %v1200 = vpack.c.b16 %v884, %v880
    %v1201 = vpack.c.b16 %v889, %v885
    %v1202 = vpack.c.b16 %v890, %v886
    %v1203 = vpack.c.b16 %v891, %v887
    %v1204 = vpack.c.b16 %v892, %v888
    %v1205 = vpack.c.b16 %v897, %v893
    %v1206 = vpack.c.b16 %v898, %v894
    %v1207 = vpack.c.b16 %v899, %v895
    %v1208 = vpack.c.b16 %v900, %v896
    %v1209 = vpack.c.b16 %v905, %v901
    %v1210 = vpack.c.b16 %v906, %v902
    %v1211 = vpack.c.b16 %v907, %v903
    %v1212 = vpack.c.b16 %v908, %v904
    %v1213 = vpack.c.b16 %v913, %v909
    %v1214 = vpack.c.b16 %v914, %v910
    %v1215 = vpack.c.b16 %v915, %v911
    %v1216 = vpack.c.b16 %v916, %v912
    %v1217 = vpack.c.b16 %v921, %v917
    %v1218 = vpack.c.b16 %v922, %v918
    %v1219 = vpack.c.b16 %v923, %v919
    %v1220 = vpack.c.b16 %v924, %v920
    %v1221 = vpack.c.b16 %v929, %v925
    %v1222 = vpack.c.b16 %v930, %v926
    %v1223 = vpack.c.b16 %v931, %v927
    %v1224 = vpack.c.b16 %v932, %v928
    %v1225 = vpack.c.b16 %v937, %v933
    %v1226 = vpack.c.b16 %v938, %v934
    %v1227 = vpack.c.b16 %v939, %v935
    %v1228 = vpack.c.b16 %v940, %v936
    %v1229 = vpack.c.b16 %v945, %v941
    %v1230 = vpack.c.b16 %v946, %v942
    %v1231 = vpack.c.b16 %v947, %v943
    %v1232 = vpack.c.b16 %v948, %v944
    %v1233 = vpack.c.b16 %v953, %v949
    %v1234 = vpack.c.b16 %v954, %v950
    %v1235 = vpack.c.b16 %v955, %v951
    %v1236 = vpack.c.b16 %v956, %v952
    %v1237 = vpack.c.b16 %v961, %v957
    %v1238 = vpack.c.b16 %v962, %v958
    %v1239 = vpack.c.b16 %v963, %v959
    %v1240 = vpack.c.b16 %v964, %v960
    %v1241 = vpack.c.b16 %v969, %v965
    %v1242 = vpack.c.b16 %v970, %v966
    %v1243 = vpack.c.b16 %v971, %v967
    %v1244 = vpack.c.b16 %v972, %v968
    %v1245 = vpack.c.b16 %v977, %v973
    %v1246 = vpack.c.b16 %v978, %v974
    %v1247 = vpack.c.b16 %v979, %v975
    %v1248 = vpack.c.b16 %v980, %v976
    %v1249 = vpack.c.b16 %v985, %v981
    %v1250 = vpack.c.b16 %v986, %v982
    %v1251 = vpack.c.b16 %v987, %v983
    %v1252 = vpack.c.b16 %v988, %v984
    %v1253 = vpack.c.b16 %v993, %v989
    %v1254 = vpack.c.b16 %v994, %v990
    %v1255 = vpack.c.b16 %v995, %v991
    %v1256 = vpack.c.b16 %v996, %v992
    %v1257 = vpack.c.b16 %v1001, %v997
    %v1258 = vpack.c.b16 %v1002, %v998
    %v1259 = vpack.c.b16 %v1003, %v999
    %v1260 = vpack.c.b16 %v1004, %v1000
    %v1261 = vpack.c.b16 %v1009, %v1005
    %v1262 = vpack.c.b16 %v1010, %v1006
    %v1263 = vpack.c.b16 %v1011, %v1007
    %v1264 = vpack.c.b16 %v1012, %v1008
    %v1265 = vpack.c.b16 %v1017, %v1013
    %v1266 = vpack.c.b16 %v1018, %v1014
    %v1267 = vpack.c.b16 %v1019, %v1015
    %v1268 = vpack.c.b16 %v1020, %v1016
    %v1269 = vpack.c.b16 %v1025, %v1021
    %v1270 = vpack.c.b16 %v1026, %v1022
    %v1271 = vpack.c.b16 %v1027, %v1023
    %v1272 = vpack.c.b16 %v1028, %v1024
    %v1273 = vpack.c.b16 %v1033, %v1029
    %v1274 = vpack.c.b16 %v1034, %v1030
    %v1275 = vpack.c.b16 %v1035, %v1031
    %v1276 = vpack.c.b16 %v1036, %v1032
    %v1277 = vpack.c.b16 %v1041, %v1037
    %v1278 = vpack.c.b16 %v1042, %v1038
    %v1279 = vpack.c.b16 %v1043, %v1039
    %v1280 = vpack.c.b16 %v1044, %v1040
    %v1281 = vpack.c.b16 %v1049, %v1045
    %v1282 = vpack.c.b16 %v1050, %v1046
    %v1283 = vpack.c.b16 %v1051, %v1047
    %v1284 = vpack.c.b16 %v1052, %v1048
    %v1285 = vpack.c.b16 %v1057, %v1053
    %v1286 = vpack.c.b16 %v1058, %v1054
    %v1287 = vpack.c.b16 %v1059, %v1055
    %v1288 = vpack.c.b16 %v1060, %v1056
    %v1289 = vpack.c.b16 %v1065, %v1061
    %v1290 = vpack.c.b16 %v1066, %v1062
    %v1291 = vpack.c.b16 %v1067, %v1063
    %v1292 = vpack.c.b16 %v1068, %v1064
    %1517 = vmatprep.subr.bf16.mxu0 %v1070
    %1518 = vmatpush1.bf16.msra.mxu0 %v1069
    %1519 = vmatprep.subr.bf16.mxu0 %v1074
    %1520 = vmatpush1.bf16.msra.mxu0 %v1073
    %1521 = vmatprep.subr.bf16.mxu0 %v1078
    %1522 = vmatpush1.bf16.msra.mxu0 %v1077
    %1523 = vmatprep.subr.bf16.mxu0 %v1082
    %1524 = vmatpush1.bf16.msra.mxu0 %v1081
    %1525 = vmatprep.subr.bf16.mxu0 %v1086
    %1526 = vmatpush1.bf16.msra.mxu0 %v1085
    %1527 = vmatprep.subr.bf16.mxu0 %v1090
    %1528 = vmatpush1.bf16.msra.mxu0 %v1089
    %1529 = vmatprep.subr.bf16.mxu0 %v1094
    %1530 = vmatpush1.bf16.msra.mxu0 %v1093
    %1531 = vmatprep.subr.bf16.mxu0 %v1098
    %1532 = vmatpush1.bf16.msra.mxu0 %v1097
    %1533 = vmatprep.subr.bf16.mxu0 %v1102
    %1534 = vmatpush1.bf16.msra.mxu0 %v1101
    %1535 = vmatprep.subr.bf16.mxu0 %v1106
    %1536 = vmatpush1.bf16.msra.mxu0 %v1105
    %1537 = vmatprep.subr.bf16.mxu0 %v1110
    %1538 = vmatpush1.bf16.msra.mxu0 %v1109
    %1539 = vmatprep.subr.bf16.mxu0 %v1114
    %1540 = vmatpush1.bf16.msra.mxu0 %v1113
    %1541 = vmatprep.subr.bf16.mxu0 %v1118
    %1542 = vmatpush1.bf16.msra.mxu0 %v1117
    %1543 = vmatprep.subr.bf16.mxu0 %v1122
    %1544 = vmatpush1.bf16.msra.mxu0 %v1121
    %1545 = vmatprep.subr.bf16.mxu0 %v1126
    %1546 = vmatpush1.bf16.msra.mxu0 %v1125
    %1547 = vmatprep.subr.bf16.mxu0 %v1130
    %1548 = vmatpush1.bf16.msra.mxu0 %v1129
    %1549 = vmatprep.mubr.bf16.mxu0 %v384
    %1550 = vmatmul.mubr.bf16.gmra.mrb[0].mxu0 %v383
    %v1551 = vpop.f32.mrb[0].mxu0
    %v1552 = vadd.f32 %v344, %v1551
    %v1553 = vpop.f32.mrb[0].mxu0
    %v1554 = vadd.f32 %v348, %v1553
    %v1555 = vpop.f32.mrb[0].mxu0
    %v1556 = vadd.f32 %v344, %v1555
    %v1557 = vpop.f32.mrb[0].mxu0
    %v1558 = vadd.f32 %v348, %v1557
    %1559 = vdwg.mxu0
    %1560 = vmatprep.subr.bf16.mxu0 %v1134
    %1561 = vmatpush1.bf16.msra.mxu0 %v1133
    %1562 = vmatprep.subr.bf16.mxu0 %v1138
    %1563 = vmatpush1.bf16.msra.mxu0 %v1137
    %1564 = vmatprep.subr.bf16.mxu0 %v1142
    %1565 = vmatpush1.bf16.msra.mxu0 %v1141
    %1566 = vmatprep.subr.bf16.mxu0 %v1146
    %1567 = vmatpush1.bf16.msra.mxu0 %v1145
    %1568 = vmatprep.subr.bf16.mxu0 %v1150
    %1569 = vmatpush1.bf16.msra.mxu0 %v1149
    %1570 = vmatprep.subr.bf16.mxu0 %v1154
    %1571 = vmatpush1.bf16.msra.mxu0 %v1153
    %1572 = vmatprep.subr.bf16.mxu0 %v1158
    %1573 = vmatpush1.bf16.msra.mxu0 %v1157
    %1574 = vmatprep.subr.bf16.mxu0 %v1162
    %1575 = vmatpush1.bf16.msra.mxu0 %v1161
    %1576 = vmatprep.subr.bf16.mxu0 %v1166
    %1577 = vmatpush1.bf16.msra.mxu0 %v1165
    %1578 = vmatprep.subr.bf16.mxu0 %v1170
    %1579 = vmatpush1.bf16.msra.mxu0 %v1169
    %1580 = vmatprep.subr.bf16.mxu0 %v1174
    %1581 = vmatpush1.bf16.msra.mxu0 %v1173
    %1582 = vmatprep.subr.bf16.mxu0 %v1178
    %1583 = vmatpush1.bf16.msra.mxu0 %v1177
    %1584 = vmatprep.subr.bf16.mxu0 %v1182
    %1585 = vmatpush1.bf16.msra.mxu0 %v1181
    %1586 = vmatprep.subr.bf16.mxu0 %v1186
    %1587 = vmatpush1.bf16.msra.mxu0 %v1185
    %1588 = vmatprep.subr.bf16.mxu0 %v1190
    %1589 = vmatpush1.bf16.msra.mxu0 %v1189
    %1590 = vmatprep.subr.bf16.mxu0 %v1194
    %1591 = vmatpush1.bf16.msra.mxu0 %v1193
    %1592 = vmatprep.mubr.bf16.mxu0 %v386
    %1593 = vmatmul.mubr.bf16.gmra.mrb[0].mxu0 %v385
    %v1594 = vpop.f32.mrb[0].mxu0
    %v1595 = vadd.f32 %v1552, %v1594
    %v1596 = vpop.f32.mrb[0].mxu0
    %v1597 = vadd.f32 %v1554, %v1596
    %v1598 = vpop.f32.mrb[0].mxu0
    %v1599 = vadd.f32 %v1556, %v1598
    %v1600 = vpop.f32.mrb[0].mxu0
    %v1601 = vadd.f32 %v1558, %v1600
    %1602 = vdwg.mxu0
    %1603 = vmatprep.subr.bf16.mxu0 %v1198
    %1604 = vmatpush1.bf16.msra.mxu0 %v1197
    %1605 = vmatprep.subr.bf16.mxu0 %v1202
    %1606 = vmatpush1.bf16.msra.mxu0 %v1201
    %1607 = vmatprep.subr.bf16.mxu0 %v1206
    %1608 = vmatpush1.bf16.msra.mxu0 %v1205
    %1609 = vmatprep.subr.bf16.mxu0 %v1210
    %1610 = vmatpush1.bf16.msra.mxu0 %v1209
    %1611 = vmatprep.subr.bf16.mxu0 %v1214
    %1612 = vmatpush1.bf16.msra.mxu0 %v1213
    %1613 = vmatprep.subr.bf16.mxu0 %v1218
    %1614 = vmatpush1.bf16.msra.mxu0 %v1217
    %1615 = vmatprep.subr.bf16.mxu0 %v1222
    %1616 = vmatpush1.bf16.msra.mxu0 %v1221
    %1617 = vmatprep.subr.bf16.mxu0 %v1226
    %1618 = vmatpush1.bf16.msra.mxu0 %v1225
    %1619 = vmatprep.subr.bf16.mxu0 %v1230
    %1620 = vmatpush1.bf16.msra.mxu0 %v1229
    %1621 = vmatprep.subr.bf16.mxu0 %v1234
    %1622 = vmatpush1.bf16.msra.mxu0 %v1233
    %1623 = vmatprep.subr.bf16.mxu0 %v1238
    %1624 = vmatpush1.bf16.msra.mxu0 %v1237
    %1625 = vmatprep.subr.bf16.mxu0 %v1242
    %1626 = vmatpush1.bf16.msra.mxu0 %v1241
    %1627 = vmatprep.subr.bf16.mxu0 %v1246
    %1628 = vmatpush1.bf16.msra.mxu0 %v1245
    %1629 = vmatprep.subr.bf16.mxu0 %v1250
    %1630 = vmatpush1.bf16.msra.mxu0 %v1249
    %1631 = vmatprep.subr.bf16.mxu0 %v1254
    %1632 = vmatpush1.bf16.msra.mxu0 %v1253
    %1633 = vmatprep.subr.bf16.mxu0 %v1258
    %1634 = vmatpush1.bf16.msra.mxu0 %v1257
    %1635 = vmatprep.mubr.bf16.mxu0 %v388
    %1636 = vmatmul.mubr.bf16.gmra.mrb[0].mxu0 %v387
    %v1637 = vpop.f32.mrb[0].mxu0
    %v1638 = vadd.f32 %v1595, %v1637
    %v1639 = vpop.f32.mrb[0].mxu0
    %v1640 = vadd.f32 %v1597, %v1639
    %v1641 = vpop.f32.mrb[0].mxu0
    %v1642 = vadd.f32 %v1599, %v1641
    %v1643 = vpop.f32.mrb[0].mxu0
    %v1644 = vadd.f32 %v1601, %v1643
    %1645 = vdwg.mxu0
    %1646 = vmatprep.subr.bf16.mxu0 %v1262
    %1647 = vmatpush1.bf16.msra.mxu0 %v1261
    %1648 = vmatprep.subr.bf16.mxu0 %v1266
    %1649 = vmatpush1.bf16.msra.mxu0 %v1265
    %1650 = vmatprep.subr.bf16.mxu0 %v1270
    %1651 = vmatpush1.bf16.msra.mxu0 %v1269
    %1652 = vmatprep.subr.bf16.mxu0 %v1274
    %1653 = vmatpush1.bf16.msra.mxu0 %v1273
    %1654 = vmatprep.subr.bf16.mxu0 %v1278
    %1655 = vmatpush1.bf16.msra.mxu0 %v1277
    %1656 = vmatprep.subr.bf16.mxu0 %v1282
    %1657 = vmatpush1.bf16.msra.mxu0 %v1281
    %1658 = vmatprep.subr.bf16.mxu0 %v1286
    %1659 = vmatpush1.bf16.msra.mxu0 %v1285
    %1660 = vmatprep.subr.bf16.mxu0 %v1290
    %1661 = vmatpush1.bf16.msra.mxu0 %v1289
    %1662 = vmatprep.subr.bf16.mxu0 0
    %1663 = vmatpush1.bf16.msra.mxu0 0
    %1664 = vmatprep.subr.bf16.mxu0 0
    %1665 = vmatpush1.bf16.msra.mxu0 0
    %1666 = vmatprep.subr.bf16.mxu0 0
    %1667 = vmatpush1.bf16.msra.mxu0 0
    %1668 = vmatprep.subr.bf16.mxu0 0
    %1669 = vmatpush1.bf16.msra.mxu0 0
    %1670 = vmatprep.subr.bf16.mxu0 0
    %1671 = vmatpush1.bf16.msra.mxu0 0
    %1672 = vmatprep.subr.bf16.mxu0 0
    %1673 = vmatpush1.bf16.msra.mxu0 0
    %1674 = vmatprep.subr.bf16.mxu0 0
    %1675 = vmatpush1.bf16.msra.mxu0 0
    %1676 = vmatprep.subr.bf16.mxu0 0
    %1677 = vmatpush1.bf16.msra.mxu0 0
    %1678 = vmatprep.mubr.bf16.mxu0 0
    %1679 = vmatmul.mubr.bf16.gmra.mrb[0].mxu0 %v389
    %v1680 = vpop.f32.mrb[0].mxu0
    %v1681 = vadd.f32 %v1638, %v1680
    %v1682 = vpop.f32.mrb[0].mxu0
    %v1683 = vadd.f32 %v1640, %v1682
    %v1684 = vpop.f32.mrb[0].mxu0
    %v1685 = vadd.f32 %v1642, %v1684
    %v1686 = vpop.f32.mrb[0].mxu0
    %v1687 = vadd.f32 %v1644, %v1686
    %1688 = vdwg.mxu0
    %1689 = vmatprep.subr.bf16.mxu0 %v1072
    %1690 = vmatpush1.bf16.msra.mxu0 %v1071
    %1691 = vmatprep.subr.bf16.mxu0 %v1076
    %1692 = vmatpush1.bf16.msra.mxu0 %v1075
    %1693 = vmatprep.subr.bf16.mxu0 %v1080
    %1694 = vmatpush1.bf16.msra.mxu0 %v1079
    %1695 = vmatprep.subr.bf16.mxu0 %v1084
    %1696 = vmatpush1.bf16.msra.mxu0 %v1083
    %1697 = vmatprep.subr.bf16.mxu0 %v1088
    %1698 = vmatpush1.bf16.msra.mxu0 %v1087
    %1699 = vmatprep.subr.bf16.mxu0 %v1092
    %1700 = vmatpush1.bf16.msra.mxu0 %v1091
    %1701 = vmatprep.subr.bf16.mxu0 %v1096
    %1702 = vmatpush1.bf16.msra.mxu0 %v1095
    %1703 = vmatprep.subr.bf16.mxu0 %v1100
    %1704 = vmatpush1.bf16.msra.mxu0 %v1099
    %1705 = vmatprep.subr.bf16.mxu0 %v1104
    %1706 = vmatpush1.bf16.msra.mxu0 %v1103
    %1707 = vmatprep.subr.bf16.mxu0 %v1108
    %1708 = vmatpush1.bf16.msra.mxu0 %v1107
    %1709 = vmatprep.subr.bf16.mxu0 %v1112
    %1710 = vmatpush1.bf16.msra.mxu0 %v1111
    %1711 = vmatprep.subr.bf16.mxu0 %v1116
    %1712 = vmatpush1.bf16.msra.mxu0 %v1115
    %1713 = vmatprep.subr.bf16.mxu0 %v1120
    %1714 = vmatpush1.bf16.msra.mxu0 %v1119
    %1715 = vmatprep.subr.bf16.mxu0 %v1124
    %1716 = vmatpush1.bf16.msra.mxu0 %v1123
    %1717 = vmatprep.subr.bf16.mxu0 %v1128
    %1718 = vmatpush1.bf16.msra.mxu0 %v1127
    %1719 = vmatprep.subr.bf16.mxu0 %v1132
    %1720 = vmatpush1.bf16.msra.mxu0 %v1131
    %1721 = vmatprep.mubr.bf16.mxu0 %v384
    %1722 = vmatmul.mubr.bf16.gmra.mrb[0].mxu0 %v383
    %v1723 = vpop.f32.mrb[0].mxu0
    %v1724 = vadd.f32 %v352, %v1723
    %v1725 = vpop.f32.mrb[0].mxu0
    %v1726 = vadd.f32 %v356, %v1725
    %v1727 = vpop.f32.mrb[0].mxu0
    %v1728 = vadd.f32 %v352, %v1727
    %v1729 = vpop.f32.mrb[0].mxu0
    %v1730 = vadd.f32 %v356, %v1729
    %1731 = vdwg.mxu0
    %1732 = vmatprep.subr.bf16.mxu0 %v1136
    %1733 = vmatpush1.bf16.msra.mxu0 %v1135
    %1734 = vmatprep.subr.bf16.mxu0 %v1140
    %1735 = vmatpush1.bf16.msra.mxu0 %v1139
    %1736 = vmatprep.subr.bf16.mxu0 %v1144
    %1737 = vmatpush1.bf16.msra.mxu0 %v1143
    %1738 = vmatprep.subr.bf16.mxu0 %v1148
    %1739 = vmatpush1.bf16.msra.mxu0 %v1147
    %1740 = vmatprep.subr.bf16.mxu0 %v1152
    %1741 = vmatpush1.bf16.msra.mxu0 %v1151
    %1742 = vmatprep.subr.bf16.mxu0 %v1156
    %1743 = vmatpush1.bf16.msra.mxu0 %v1155
    %1744 = vmatprep.subr.bf16.mxu0 %v1160
    %1745 = vmatpush1.bf16.msra.mxu0 %v1159
    %1746 = vmatprep.subr.bf16.mxu0 %v1164
    %1747 = vmatpush1.bf16.msra.mxu0 %v1163
    %1748 = vmatprep.subr.bf16.mxu0 %v1168
    %1749 = vmatpush1.bf16.msra.mxu0 %v1167
    %1750 = vmatprep.subr.bf16.mxu0 %v1172
    %1751 = vmatpush1.bf16.msra.mxu0 %v1171
    %1752 = vmatprep.subr.bf16.mxu0 %v1176
    %1753 = vmatpush1.bf16.msra.mxu0 %v1175
    %1754 = vmatprep.subr.bf16.mxu0 %v1180
    %1755 = vmatpush1.bf16.msra.mxu0 %v1179
    %1756 = vmatprep.subr.bf16.mxu0 %v1184
    %1757 = vmatpush1.bf16.msra.mxu0 %v1183
    %1758 = vmatprep.subr.bf16.mxu0 %v1188
    %1759 = vmatpush1.bf16.msra.mxu0 %v1187
    %1760 = vmatprep.subr.bf16.mxu0 %v1192
    %1761 = vmatpush1.bf16.msra.mxu0 %v1191
    %1762 = vmatprep.subr.bf16.mxu0 %v1196
    %1763 = vmatpush1.bf16.msra.mxu0 %v1195
    %1764 = vmatprep.mubr.bf16.mxu0 %v386
    %1765 = vmatmul.mubr.bf16.gmra.mrb[0].mxu0 %v385
    %v1766 = vpop.f32.mrb[0].mxu0
    %v1767 = vadd.f32 %v1724, %v1766
    %v1768 = vpop.f32.mrb[0].mxu0
    %v1769 = vadd.f32 %v1726, %v1768
    %v1770 = vpop.f32.mrb[0].mxu0
    %v1771 = vadd.f32 %v1728, %v1770
    %v1772 = vpop.f32.mrb[0].mxu0
    %v1773 = vadd.f32 %v1730, %v1772
    %1774 = vdwg.mxu0
    %1775 = vmatprep.subr.bf16.mxu0 %v1200
    %1776 = vmatpush1.bf16.msra.mxu0 %v1199
    %1777 = vmatprep.subr.bf16.mxu0 %v1204
    %1778 = vmatpush1.bf16.msra.mxu0 %v1203
    %1779 = vmatprep.subr.bf16.mxu0 %v1208
    %1780 = vmatpush1.bf16.msra.mxu0 %v1207
    %1781 = vmatprep.subr.bf16.mxu0 %v1212
    %1782 = vmatpush1.bf16.msra.mxu0 %v1211
    %1783 = vmatprep.subr.bf16.mxu0 %v1216
    %1784 = vmatpush1.bf16.msra.mxu0 %v1215
    %1785 = vmatprep.subr.bf16.mxu0 %v1220
    %1786 = vmatpush1.bf16.msra.mxu0 %v1219
    %1787 = vmatprep.subr.bf16.mxu0 %v1224
    %1788 = vmatpush1.bf16.msra.mxu0 %v1223
    %1789 = vmatprep.subr.bf16.mxu0 %v1228
    %1790 = vmatpush1.bf16.msra.mxu0 %v1227
    %1791 = vmatprep.subr.bf16.mxu0 %v1232
    %1792 = vmatpush1.bf16.msra.mxu0 %v1231
    %1793 = vmatprep.subr.bf16.mxu0 %v1236
    %1794 = vmatpush1.bf16.msra.mxu0 %v1235
    %1795 = vmatprep.subr.bf16.mxu0 %v1240
    %1796 = vmatpush1.bf16.msra.mxu0 %v1239
    %1797 = vmatprep.subr.bf16.mxu0 %v1244
    %1798 = vmatpush1.bf16.msra.mxu0 %v1243
    %1799 = vmatprep.subr.bf16.mxu0 %v1248
    %1800 = vmatpush1.bf16.msra.mxu0 %v1247
    %1801 = vmatprep.subr.bf16.mxu0 %v1252
    %1802 = vmatpush1.bf16.msra.mxu0 %v1251
    %1803 = vmatprep.subr.bf16.mxu0 %v1256
    %1804 = vmatpush1.bf16.msra.mxu0 %v1255
    %1805 = vmatprep.subr.bf16.mxu0 %v1260
    %1806 = vmatpush1.bf16.msra.mxu0 %v1259
    %1807 = vmatprep.mubr.bf16.mxu0 %v388
    %1808 = vmatmul.mubr.bf16.gmra.mrb[0].mxu0 %v387
    %v1809 = vpop.f32.mrb[0].mxu0
    %v1810 = vadd.f32 %v1767, %v1809
    %v1811 = vpop.f32.mrb[0].mxu0
    %v1812 = vadd.f32 %v1769, %v1811
    %v1813 = vpop.f32.mrb[0].mxu0
    %v1814 = vadd.f32 %v1771, %v1813
    %v1815 = vpop.f32.mrb[0].mxu0
    %v1816 = vadd.f32 %v1773, %v1815
    %1817 = vdwg.mxu0
    %1818 = vmatprep.subr.bf16.mxu0 %v1264
    %1819 = vmatpush1.bf16.msra.mxu0 %v1263
    %1820 = vmatprep.subr.bf16.mxu0 %v1268
    %1821 = vmatpush1.bf16.msra.mxu0 %v1267
    %1822 = vmatprep.subr.bf16.mxu0 %v1272
    %1823 = vmatpush1.bf16.msra.mxu0 %v1271
    %1824 = vmatprep.subr.bf16.mxu0 %v1276
    %1825 = vmatpush1.bf16.msra.mxu0 %v1275
    %1826 = vmatprep.subr.bf16.mxu0 %v1280
    %1827 = vmatpush1.bf16.msra.mxu0 %v1279
    %1828 = vmatprep.subr.bf16.mxu0 %v1284
    %1829 = vmatpush1.bf16.msra.mxu0 %v1283
    %1830 = vmatprep.subr.bf16.mxu0 %v1288
    %1831 = vmatpush1.bf16.msra.mxu0 %v1287
    %1832 = vmatprep.subr.bf16.mxu0 %v1292
    %1833 = vmatpush1.bf16.msra.mxu0 %v1291
    %1834 = vmatprep.subr.bf16.mxu0 0
    %1835 = vmatpush1.bf16.msra.mxu0 0
    %1836 = vmatprep.subr.bf16.mxu0 0
    %1837 = vmatpush1.bf16.msra.mxu0 0
    %1838 = vmatprep.subr.bf16.mxu0 0
    %1839 = vmatpush1.bf16.msra.mxu0 0
    %1840 = vmatprep.subr.bf16.mxu0 0
    %1841 = vmatpush1.bf16.msra.mxu0 0
    %1842 = vmatprep.subr.bf16.mxu0 0
    %1843 = vmatpush1.bf16.msra.mxu0 0
    %1844 = vmatprep.subr.bf16.mxu0 0
    %1845 = vmatpush1.bf16.msra.mxu0 0
    %1846 = vmatprep.subr.bf16.mxu0 0
    %1847 = vmatpush1.bf16.msra.mxu0 0
    %1848 = vmatprep.subr.bf16.mxu0 0
    %1849 = vmatpush1.bf16.msra.mxu0 0
    %1850 = vmatprep.mubr.bf16.mxu0 0
    %1851 = vmatmul.mubr.bf16.gmra.mrb[0].mxu0 %v389
    %v1852 = vpop.f32.mrb[0].mxu0
    %v1853 = vadd.f32 %v1810, %v1852
    %v1854 = vpop.f32.mrb[0].mxu0
    %v1855 = vadd.f32 %v1812, %v1854
    %v1856 = vpop.f32.mrb[0].mxu0
    %v1857 = vadd.f32 %v1814, %v1856
    %v1858 = vpop.f32.mrb[0].mxu0
    %v1859 = vadd.f32 %v1816, %v1858
    %1860 = vdwg.mxu0
    %v1861 = vmax.f32 %v1681, 0.0
    %v1862 = vmax.f32 %v1683, 0.0
    %v1863 = vmax.f32 %v1853, 0.0
    %v1864 = vmax.f32 %v1855, 0.0
    %v1865 = vmax.f32 %v1685, 0.0
    %v1866 = vmax.f32 %v1687, 0.0
    %v1867 = vmax.f32 %v1857, 0.0
    %v1868 = vmax.f32 %v1859, 0.0
    %v1869 = vpack.c.bf16 %v1865, %v1861
    %v1870 = vpack.c.bf16 %v1866, %v1862
    %v1871 = vpack.c.bf16 %v1867, %v1863
    %v1872 = vpack.c.bf16 %v1868, %v1864
    %v1873 = vld [vmem:[#allocation4] sm:$0xff]
    %v1874 = vld [vmem:[#allocation4 + $0x8] sm:$0xff]
    %v1875 = vld [vmem:[#allocation4 + $0x10] sm:$0xff]
    %v1876 = vld [vmem:[#allocation4 + $0x18] sm:$0xff]
    %v1877 = vld [vmem:[#allocation4 + $0x20] sm:$0xff]
    %v1878 = vld [vmem:[#allocation4 + $0x28] sm:$0xff]
    %v1879 = vld [vmem:[#allocation4 + $0x30] sm:$0xff]
    %v1880 = vld [vmem:[#allocation4 + $0x38] sm:$0xff]
    %v1881 = vld [vmem:[#allocation4 + $0x40] sm:$0xff]
    %v1882 = vld [vmem:[#allocation4 + $0x48] sm:$0xff]
    %v1883 = vld [vmem:[#allocation4 + $0x50] sm:$0xff]
    %v1884 = vld [vmem:[#allocation4 + $0x58] sm:$0xff]
    %v1885 = vld [vmem:[#allocation4 + $0x60] sm:$0xff]
    %v1886 = vld [vmem:[#allocation4 + $0x68] sm:$0xff]
    %v1887 = vld [vmem:[#allocation4 + $0x70] sm:$0xff]
    %v1888 = vld [vmem:[#allocation4 + $0x78] sm:$0xff]
    %v1889 = vld [vmem:[#allocation4 + $0x80] sm:$0xff]
    %v1890 = vld [vmem:[#allocation4 + $0x88] sm:$0xff]
    %v1891 = vld [vmem:[#allocation4 + $0x90] sm:$0xff]
    %v1892 = vld [vmem:[#allocation4 + $0x98] sm:$0xff]
    %v1893 = vld [vmem:[#allocation4 + $0xa0] sm:$0xff]
    %v1894 = vld [vmem:[#allocation4 + $0xa8] sm:$0xff]
    %v1895 = vld [vmem:[#allocation4 + $0xb0] sm:$0xff]
    %v1896 = vld [vmem:[#allocation4 + $0xb8] sm:$0xff]
    %v1897 = vld [vmem:[#allocation4 + $0xc0] sm:$0xff]
    %v1898 = vld [vmem:[#allocation4 + $0xc8] sm:$0xff]
    %v1899 = vld [vmem:[#allocation4 + $0xd0] sm:$0xff]
    %v1900 = vld [vmem:[#allocation4 + $0xd8] sm:$0xff]
    %v1901 = vld [vmem:[#allocation4 + $0xe0] sm:$0xff]
    %v1902 = vld [vmem:[#allocation4 + $0xe8] sm:$0xff]
    %v1903 = vld [vmem:[#allocation4 + $0xf0] sm:$0xff]
    %v1904 = vld [vmem:[#allocation4 + $0xf8] sm:$0xff]
    %v1905 = vld [vmem:[#allocation4 + $0x100] sm:$0xff]
    %v1906 = vld [vmem:[#allocation4 + $0x108] sm:$0xff]
    %v1907 = vld [vmem:[#allocation4 + $0x110] sm:$0xff]
    %v1908 = vld [vmem:[#allocation4 + $0x118] sm:$0xff]
    %v1909 = vld [vmem:[#allocation4 + $0x120] sm:$0xff]
    %v1910 = vld [vmem:[#allocation4 + $0x128] sm:$0xff]
    %v1911 = vld [vmem:[#allocation4 + $0x130] sm:$0xff]
    %v1912 = vld [vmem:[#allocation4 + $0x138] sm:$0xff]
    %v1913 = vld [vmem:[#allocation4 + $0x140] sm:$0xff]
    %v1914 = vld [vmem:[#allocation4 + $0x148] sm:$0xff]
    %v1915 = vld [vmem:[#allocation4 + $0x150] sm:$0xff]
    %v1916 = vld [vmem:[#allocation4 + $0x158] sm:$0xff]
    %v1917 = vld [vmem:[#allocation4 + $0x160] sm:$0xff]
    %v1918 = vld [vmem:[#allocation4 + $0x168] sm:$0xff]
    %v1919 = vld [vmem:[#allocation4 + $0x170] sm:$0xff]
    %v1920 = vld [vmem:[#allocation4 + $0x178] sm:$0xff]
    %v1921 = vld [vmem:[#allocation4 + $0x180] sm:$0xff]
    %v1922 = vld [vmem:[#allocation4 + $0x188] sm:$0xff]
    %v1923 = vld [vmem:[#allocation4 + $0x190] sm:$0xff]
    %v1924 = vld [vmem:[#allocation4 + $0x198] sm:$0xff]
    %v1925 = vld [vmem:[#allocation4 + $0x1a0] sm:$0xff]
    %v1926 = vld [vmem:[#allocation4 + $0x1a8] sm:$0xff]
    %v1927 = vld [vmem:[#allocation4 + $0x1b0] sm:$0xff]
    %v1928 = vld [vmem:[#allocation4 + $0x1b8] sm:$0xff]
    %v1929 = vld [vmem:[#allocation4 + $0x1c0] sm:$0xff]
    %v1930 = vld [vmem:[#allocation4 + $0x1c8] sm:$0xff]
    %v1931 = vld [vmem:[#allocation4 + $0x1d0] sm:$0xff]
    %v1932 = vld [vmem:[#allocation4 + $0x1d8] sm:$0xff]
    %v1933 = vld [vmem:[#allocation4 + $0x1e0] sm:$0xff]
    %v1934 = vld [vmem:[#allocation4 + $0x1e8] sm:$0xff]
    %v1935 = vld [vmem:[#allocation4 + $0x1f0] sm:$0xff]
    %v1936 = vld [vmem:[#allocation4 + $0x1f8] sm:$0xff]
    %v1937 = vld [vmem:[#allocation4 + $0x200] sm:$0xff]
    %v1938 = vld [vmem:[#allocation4 + $0x208] sm:$0xff]
    %v1939 = vld [vmem:[#allocation4 + $0x210] sm:$0xff]
    %v1940 = vld [vmem:[#allocation4 + $0x218] sm:$0xff]
    %v1941 = vld [vmem:[#allocation4 + $0x220] sm:$0xff]
    %v1942 = vld [vmem:[#allocation4 + $0x228] sm:$0xff]
    %v1943 = vld [vmem:[#allocation4 + $0x230] sm:$0xff]
    %v1944 = vld [vmem:[#allocation4 + $0x238] sm:$0xff]
    %v1945 = vld [vmem:[#allocation4 + $0x240] sm:$0xff]
    %v1946 = vld [vmem:[#allocation4 + $0x248] sm:$0xff]
    %v1947 = vld [vmem:[#allocation4 + $0x250] sm:$0xff]
    %v1948 = vld [vmem:[#allocation4 + $0x258] sm:$0xff]
    %v1949 = vld [vmem:[#allocation4 + $0x260] sm:$0xff]
    %v1950 = vld [vmem:[#allocation4 + $0x268] sm:$0xff]
    %v1951 = vld [vmem:[#allocation4 + $0x270] sm:$0xff]
    %v1952 = vld [vmem:[#allocation4 + $0x278] sm:$0xff]
    %v1953 = vld [vmem:[#allocation4 + $0x280] sm:$0xff]
    %v1954 = vld [vmem:[#allocation4 + $0x288] sm:$0xff]
    %v1955 = vld [vmem:[#allocation4 + $0x290] sm:$0xff]
    %v1956 = vld [vmem:[#allocation4 + $0x298] sm:$0xff]
    %v1957 = vld [vmem:[#allocation4 + $0x2a0] sm:$0xff]
    %v1958 = vld [vmem:[#allocation4 + $0x2a8] sm:$0xff]
    %v1959 = vld [vmem:[#allocation4 + $0x2b0] sm:$0xff]
    %v1960 = vld [vmem:[#allocation4 + $0x2b8] sm:$0xff]
    %v1961 = vld [vmem:[#allocation4 + $0x2c0] sm:$0xff]
    %v1962 = vld [vmem:[#allocation4 + $0x2c8] sm:$0xff]
    %v1963 = vld [vmem:[#allocation4 + $0x2d0] sm:$0xff]
    %v1964 = vld [vmem:[#allocation4 + $0x2d8] sm:$0xff]
    %v1965 = vld [vmem:[#allocation4 + $0x2e0] sm:$0xff]
    %v1966 = vld [vmem:[#allocation4 + $0x2e8] sm:$0xff]
    %v1967 = vld [vmem:[#allocation4 + $0x2f0] sm:$0xff]
    %v1968 = vld [vmem:[#allocation4 + $0x2f8] sm:$0xff]
    %v1969 = vld [vmem:[#allocation4 + $0x300] sm:$0xff]
    %v1970 = vld [vmem:[#allocation4 + $0x308] sm:$0xff]
    %v1971 = vld [vmem:[#allocation4 + $0x310] sm:$0xff]
    %v1972 = vld [vmem:[#allocation4 + $0x318] sm:$0xff]
    %v1973 = vld [vmem:[#allocation4 + $0x320] sm:$0xff]
    %v1974 = vld [vmem:[#allocation4 + $0x328] sm:$0xff]
    %v1975 = vld [vmem:[#allocation4 + $0x330] sm:$0xff]
    %v1976 = vld [vmem:[#allocation4 + $0x338] sm:$0xff]
    %v1977 = vld [vmem:[#allocation4 + $0x340] sm:$0xff]
    %v1978 = vld [vmem:[#allocation4 + $0x348] sm:$0xff]
    %v1979 = vld [vmem:[#allocation4 + $0x350] sm:$0xff]
    %v1980 = vld [vmem:[#allocation4 + $0x358] sm:$0xff]
    %v1981 = vld [vmem:[#allocation4 + $0x360] sm:$0xff]
    %v1982 = vld [vmem:[#allocation4 + $0x368] sm:$0xff]
    %v1983 = vld [vmem:[#allocation4 + $0x370] sm:$0xff]
    %v1984 = vld [vmem:[#allocation4 + $0x378] sm:$0xff]
    %v1985 = vld [vmem:[#allocation4 + $0x380] sm:$0xff]
    %v1986 = vld [vmem:[#allocation4 + $0x388] sm:$0xff]
    %v1987 = vld [vmem:[#allocation4 + $0x390] sm:$0xff]
    %v1988 = vld [vmem:[#allocation4 + $0x398] sm:$0xff]
    %v1989 = vld [vmem:[#allocation4 + $0x3a0] sm:$0xff]
    %v1990 = vld [vmem:[#allocation4 + $0x3a8] sm:$0xff]
    %v1991 = vld [vmem:[#allocation4 + $0x3b0] sm:$0xff]
    %v1992 = vld [vmem:[#allocation4 + $0x3b8] sm:$0xff]
    %v1993 = vld [vmem:[#allocation4 + $0x3c0] sm:$0xff]
    %v1994 = vld [vmem:[#allocation4 + $0x3c8] sm:$0xff]
    %v1995 = vld [vmem:[#allocation4 + $0x3d0] sm:$0xff]
    %v1996 = vld [vmem:[#allocation4 + $0x3d8] sm:$0xff]
    %v1997 = vld [vmem:[#allocation4 + $0x3e0] sm:$0xff]
    %v1998 = vld [vmem:[#allocation4 + $0x3e8] sm:$0xff]
    %v1999 = vld [vmem:[#allocation4 + $0x3f0] sm:$0xff]
    %v2000 = vld [vmem:[#allocation4 + $0x3f8] sm:$0xff]
    %v2001 = vld [vmem:[%s4] sm:$0xf]
    %v2003 = vlaneseq
    %v2004 = vshrl.u32 %v2003, 7
    %v2005 = vsub.s32 0, %v2004
    %v2006 = vrot.slane %v2001, %v2005
    %v2007 = vlaneseq
    %v2008 = vshrl.u32 %v2007, 7
    %v2009 = vsub.s32 1, %v2008
    %v2010 = vrot.slane %v2001, %v2009
    %v2011 = vlaneseq
    %v2012 = vshrl.u32 %v2011, 7
    %v2013 = vsub.s32 2, %v2012
    %v2014 = vrot.slane %v2001, %v2013
    %v2015 = vlaneseq
    %v2016 = vshrl.u32 %v2015, 7
    %v2017 = vsub.s32 3, %v2016
    %v2018 = vrot.slane %v2001, %v2017
    %v2151 = vunpack.c.l.b16 %v1873
    %v2152 = vunpack.c.h.b16 %v1873
    %v2153 = vunpack.c.l.b16 %v1874
    %v2154 = vunpack.c.h.b16 %v1874
    %v2155 = vunpack.c.l.b16 %v1875
    %v2156 = vunpack.c.h.b16 %v1875
    %v2157 = vunpack.c.l.b16 %v1876
    %v2158 = vunpack.c.h.b16 %v1876
    %v2159 = vunpack.c.l.b16 %v1877
    %v2160 = vunpack.c.h.b16 %v1877
    %v2161 = vunpack.c.l.b16 %v1878
    %v2162 = vunpack.c.h.b16 %v1878
    %v2163 = vunpack.c.l.b16 %v1879
    %v2164 = vunpack.c.h.b16 %v1879
    %v2165 = vunpack.c.l.b16 %v1880
    %v2166 = vunpack.c.h.b16 %v1880
    %v2167 = vunpack.c.l.b16 %v1881
    %v2168 = vunpack.c.h.b16 %v1881
    %v2169 = vunpack.c.l.b16 %v1882
    %v2170 = vunpack.c.h.b16 %v1882
    %v2171 = vunpack.c.l.b16 %v1883
    %v2172 = vunpack.c.h.b16 %v1883
    %v2173 = vunpack.c.l.b16 %v1884
    %v2174 = vunpack.c.h.b16 %v1884
    %v2175 = vunpack.c.l.b16 %v1885
    %v2176 = vunpack.c.h.b16 %v1885
    %v2177 = vunpack.c.l.b16 %v1886
    %v2178 = vunpack.c.h.b16 %v1886
    %v2179 = vunpack.c.l.b16 %v1887
    %v2180 = vunpack.c.h.b16 %v1887
    %v2181 = vunpack.c.l.b16 %v1888
    %v2182 = vunpack.c.h.b16 %v1888
    %v2183 = vunpack.c.l.b16 %v1889
    %v2184 = vunpack.c.h.b16 %v1889
    %v2185 = vunpack.c.l.b16 %v1890
    %v2186 = vunpack.c.h.b16 %v1890
    %v2187 = vunpack.c.l.b16 %v1891
    %v2188 = vunpack.c.h.b16 %v1891
    %v2189 = vunpack.c.l.b16 %v1892
    %v2190 = vunpack.c.h.b16 %v1892
    %v2191 = vunpack.c.l.b16 %v1893
    %v2192 = vunpack.c.h.b16 %v1893
    %v2193 = vunpack.c.l.b16 %v1894
    %v2194 = vunpack.c.h.b16 %v1894
    %v2195 = vunpack.c.l.b16 %v1895
    %v2196 = vunpack.c.h.b16 %v1895
    %v2197 = vunpack.c.l.b16 %v1896
    %v2198 = vunpack.c.h.b16 %v1896
    %v2199 = vunpack.c.l.b16 %v1897
    %v2200 = vunpack.c.h.b16 %v1897
    %v2201 = vunpack.c.l.b16 %v1898
    %v2202 = vunpack.c.h.b16 %v1898
    %v2203 = vunpack.c.l.b16 %v1899
    %v2204 = vunpack.c.h.b16 %v1899
    %v2205 = vunpack.c.l.b16 %v1900
    %v2206 = vunpack.c.h.b16 %v1900
    %v2207 = vunpack.c.l.b16 %v1901
    %v2208 = vunpack.c.h.b16 %v1901
    %v2209 = vunpack.c.l.b16 %v1902
    %v2210 = vunpack.c.h.b16 %v1902
    %v2211 = vunpack.c.l.b16 %v1903
    %v2212 = vunpack.c.h.b16 %v1903
    %v2213 = vunpack.c.l.b16 %v1904
    %v2214 = vunpack.c.h.b16 %v1904
    %v2215 = vunpack.c.l.b16 %v1905
    %v2216 = vunpack.c.h.b16 %v1905
    %v2217 = vunpack.c.l.b16 %v1906
    %v2218 = vunpack.c.h.b16 %v1906
    %v2219 = vunpack.c.l.b16 %v1907
    %v2220 = vunpack.c.h.b16 %v1907
    %v2221 = vunpack.c.l.b16 %v1908
    %v2222 = vunpack.c.h.b16 %v1908
    %v2223 = vunpack.c.l.b16 %v1909
    %v2224 = vunpack.c.h.b16 %v1909
    %v2225 = vunpack.c.l.b16 %v1910
    %v2226 = vunpack.c.h.b16 %v1910
    %v2227 = vunpack.c.l.b16 %v1911
    %v2228 = vunpack.c.h.b16 %v1911
    %v2229 = vunpack.c.l.b16 %v1912
    %v2230 = vunpack.c.h.b16 %v1912
    %v2231 = vunpack.c.l.b16 %v1913
    %v2232 = vunpack.c.h.b16 %v1913
    %v2233 = vunpack.c.l.b16 %v1914
    %v2234 = vunpack.c.h.b16 %v1914
    %v2235 = vunpack.c.l.b16 %v1915
    %v2236 = vunpack.c.h.b16 %v1915
    %v2237 = vunpack.c.l.b16 %v1916
    %v2238 = vunpack.c.h.b16 %v1916
    %v2239 = vunpack.c.l.b16 %v1917
    %v2240 = vunpack.c.h.b16 %v1917
    %v2241 = vunpack.c.l.b16 %v1918
    %v2242 = vunpack.c.h.b16 %v1918
    %v2243 = vunpack.c.l.b16 %v1919
    %v2244 = vunpack.c.h.b16 %v1919
    %v2245 = vunpack.c.l.b16 %v1920
    %v2246 = vunpack.c.h.b16 %v1920
    %v2247 = vunpack.c.l.b16 %v1921
    %v2248 = vunpack.c.h.b16 %v1921
    %v2249 = vunpack.c.l.b16 %v1922
    %v2250 = vunpack.c.h.b16 %v1922
    %v2251 = vunpack.c.l.b16 %v1923
    %v2252 = vunpack.c.h.b16 %v1923
    %v2253 = vunpack.c.l.b16 %v1924
    %v2254 = vunpack.c.h.b16 %v1924
    %v2255 = vunpack.c.l.b16 %v1925
    %v2256 = vunpack.c.h.b16 %v1925
    %v2257 = vunpack.c.l.b16 %v1926
    %v2258 = vunpack.c.h.b16 %v1926
    %v2259 = vunpack.c.l.b16 %v1927
    %v2260 = vunpack.c.h.b16 %v1927
    %v2261 = vunpack.c.l.b16 %v1928
    %v2262 = vunpack.c.h.b16 %v1928
    %v2263 = vunpack.c.l.b16 %v1929
    %v2264 = vunpack.c.h.b16 %v1929
    %v2265 = vunpack.c.l.b16 %v1930
    %v2266 = vunpack.c.h.b16 %v1930
    %v2267 = vunpack.c.l.b16 %v1931
    %v2268 = vunpack.c.h.b16 %v1931
    %v2269 = vunpack.c.l.b16 %v1932
    %v2270 = vunpack.c.h.b16 %v1932
    %v2271 = vunpack.c.l.b16 %v1933
    %v2272 = vunpack.c.h.b16 %v1933
    %v2273 = vunpack.c.l.b16 %v1934
    %v2274 = vunpack.c.h.b16 %v1934
    %v2275 = vunpack.c.l.b16 %v1935
    %v2276 = vunpack.c.h.b16 %v1935
    %v2277 = vunpack.c.l.b16 %v1936
    %v2278 = vunpack.c.h.b16 %v1936
    %v2279 = vunpack.c.l.b16 %v1937
    %v2280 = vunpack.c.h.b16 %v1937
    %v2281 = vunpack.c.l.b16 %v1938
    %v2282 = vunpack.c.h.b16 %v1938
    %v2283 = vunpack.c.l.b16 %v1939
    %v2284 = vunpack.c.h.b16 %v1939
    %v2285 = vunpack.c.l.b16 %v1940
    %v2286 = vunpack.c.h.b16 %v1940
    %v2287 = vunpack.c.l.b16 %v1941
    %v2288 = vunpack.c.h.b16 %v1941
    %v2289 = vunpack.c.l.b16 %v1942
    %v2290 = vunpack.c.h.b16 %v1942
    %v2291 = vunpack.c.l.b16 %v1943
    %v2292 = vunpack.c.h.b16 %v1943
    %v2293 = vunpack.c.l.b16 %v1944
    %v2294 = vunpack.c.h.b16 %v1944
    %v2295 = vunpack.c.l.b16 %v1945
    %v2296 = vunpack.c.h.b16 %v1945
    %v2297 = vunpack.c.l.b16 %v1946
    %v2298 = vunpack.c.h.b16 %v1946
    %v2299 = vunpack.c.l.b16 %v1947
    %v2300 = vunpack.c.h.b16 %v1947
    %v2301 = vunpack.c.l.b16 %v1948
    %v2302 = vunpack.c.h.b16 %v1948
    %v2303 = vunpack.c.l.b16 %v1949
    %v2304 = vunpack.c.h.b16 %v1949
    %v2305 = vunpack.c.l.b16 %v1950
    %v2306 = vunpack.c.h.b16 %v1950
    %v2307 = vunpack.c.l.b16 %v1951
    %v2308 = vunpack.c.h.b16 %v1951
    %v2309 = vunpack.c.l.b16 %v1952
    %v2310 = vunpack.c.h.b16 %v1952
    %v2311 = vunpack.c.l.b16 %v1953
    %v2312 = vunpack.c.h.b16 %v1953
    %v2313 = vunpack.c.l.b16 %v1954
    %v2314 = vunpack.c.h.b16 %v1954
    %v2315 = vunpack.c.l.b16 %v1955
    %v2316 = vunpack.c.h.b16 %v1955
    %v2317 = vunpack.c.l.b16 %v1956
    %v2318 = vunpack.c.h.b16 %v1956
    %v2319 = vunpack.c.l.b16 %v1957
    %v2320 = vunpack.c.h.b16 %v1957
    %v2321 = vunpack.c.l.b16 %v1958
    %v2322 = vunpack.c.h.b16 %v1958
    %v2323 = vunpack.c.l.b16 %v1959
    %v2324 = vunpack.c.h.b16 %v1959
    %v2325 = vunpack.c.l.b16 %v1960
    %v2326 = vunpack.c.h.b16 %v1960
    %v2327 = vunpack.c.l.b16 %v1961
    %v2328 = vunpack.c.h.b16 %v1961
    %v2329 = vunpack.c.l.b16 %v1962
    %v2330 = vunpack.c.h.b16 %v1962
    %v2331 = vunpack.c.l.b16 %v1963
    %v2332 = vunpack.c.h.b16 %v1963
    %v2333 = vunpack.c.l.b16 %v1964
    %v2334 = vunpack.c.h.b16 %v1964
    %v2335 = vunpack.c.l.b16 %v1965
    %v2336 = vunpack.c.h.b16 %v1965
    %v2337 = vunpack.c.l.b16 %v1966
    %v2338 = vunpack.c.h.b16 %v1966
    %v2339 = vunpack.c.l.b16 %v1967
    %v2340 = vunpack.c.h.b16 %v1967
    %v2341 = vunpack.c.l.b16 %v1968
    %v2342 = vunpack.c.h.b16 %v1968
    %v2343 = vunpack.c.l.b16 %v1969
    %v2344 = vunpack.c.h.b16 %v1969
    %v2345 = vunpack.c.l.b16 %v1970
    %v2346 = vunpack.c.h.b16 %v1970
    %v2347 = vunpack.c.l.b16 %v1971
    %v2348 = vunpack.c.h.b16 %v1971
    %v2349 = vunpack.c.l.b16 %v1972
    %v2350 = vunpack.c.h.b16 %v1972
    %v2351 = vunpack.c.l.b16 %v1973
    %v2352 = vunpack.c.h.b16 %v1973
    %v2353 = vunpack.c.l.b16 %v1974
    %v2354 = vunpack.c.h.b16 %v1974
    %v2355 = vunpack.c.l.b16 %v1975
    %v2356 = vunpack.c.h.b16 %v1975
    %v2357 = vunpack.c.l.b16 %v1976
    %v2358 = vunpack.c.h.b16 %v1976
    %v2359 = vunpack.c.l.b16 %v1977
    %v2360 = vunpack.c.h.b16 %v1977
    %v2361 = vunpack.c.l.b16 %v1978
    %v2362 = vunpack.c.h.b16 %v1978
    %v2363 = vunpack.c.l.b16 %v1979
    %v2364 = vunpack.c.h.b16 %v1979
    %v2365 = vunpack.c.l.b16 %v1980
    %v2366 = vunpack.c.h.b16 %v1980
    %v2367 = vunpack.c.l.b16 %v1981
    %v2368 = vunpack.c.h.b16 %v1981
    %v2369 = vunpack.c.l.b16 %v1982
    %v2370 = vunpack.c.h.b16 %v1982
    %v2371 = vunpack.c.l.b16 %v1983
    %v2372 = vunpack.c.h.b16 %v1983
    %v2373 = vunpack.c.l.b16 %v1984
    %v2374 = vunpack.c.h.b16 %v1984
    %v2375 = vunpack.c.l.b16 %v1985
    %v2376 = vunpack.c.h.b16 %v1985
    %v2377 = vunpack.c.l.b16 %v1986
    %v2378 = vunpack.c.h.b16 %v1986
    %v2379 = vunpack.c.l.b16 %v1987
    %v2380 = vunpack.c.h.b16 %v1987
    %v2381 = vunpack.c.l.b16 %v1988
    %v2382 = vunpack.c.h.b16 %v1988
    %v2383 = vunpack.c.l.b16 %v1989
    %v2384 = vunpack.c.h.b16 %v1989
    %v2385 = vunpack.c.l.b16 %v1990
    %v2386 = vunpack.c.h.b16 %v1990
    %v2387 = vunpack.c.l.b16 %v1991
    %v2388 = vunpack.c.h.b16 %v1991
    %v2389 = vunpack.c.l.b16 %v1992
    %v2390 = vunpack.c.h.b16 %v1992
    %v2391 = vunpack.c.l.b16 %v1993
    %v2392 = vunpack.c.h.b16 %v1993
    %v2393 = vunpack.c.l.b16 %v1994
    %v2394 = vunpack.c.h.b16 %v1994
    %v2395 = vunpack.c.l.b16 %v1995
    %v2396 = vunpack.c.h.b16 %v1995
    %v2397 = vunpack.c.l.b16 %v1996
    %v2398 = vunpack.c.h.b16 %v1996
    %v2399 = vunpack.c.l.b16 %v1997
    %v2400 = vunpack.c.h.b16 %v1997
    %v2401 = vunpack.c.l.b16 %v1998
    %v2402 = vunpack.c.h.b16 %v1998
    %v2403 = vunpack.c.l.b16 %v1999
    %v2404 = vunpack.c.h.b16 %v1999
    %v2405 = vunpack.c.l.b16 %v2000
    %v2406 = vunpack.c.h.b16 %v2000
    %v2407 = vpack.c.b16 %v2155, %v2151
    %v2408 = vpack.c.b16 %v2156, %v2152
    %v2409 = vpack.c.b16 %v2157, %v2153
    %v2410 = vpack.c.b16 %v2158, %v2154
    %v2411 = vpack.c.b16 %v2163, %v2159
    %v2412 = vpack.c.b16 %v2164, %v2160
    %v2413 = vpack.c.b16 %v2165, %v2161
    %v2414 = vpack.c.b16 %v2166, %v2162
    %v2415 = vpack.c.b16 %v2171, %v2167
    %v2416 = vpack.c.b16 %v2172, %v2168
    %v2417 = vpack.c.b16 %v2173, %v2169
    %v2418 = vpack.c.b16 %v2174, %v2170
    %v2419 = vpack.c.b16 %v2179, %v2175
    %v2420 = vpack.c.b16 %v2180, %v2176
    %v2421 = vpack.c.b16 %v2181, %v2177
    %v2422 = vpack.c.b16 %v2182, %v2178
    %v2423 = vpack.c.b16 %v2187, %v2183
    %v2424 = vpack.c.b16 %v2188, %v2184
    %v2425 = vpack.c.b16 %v2189, %v2185
    %v2426 = vpack.c.b16 %v2190, %v2186
    %v2427 = vpack.c.b16 %v2195, %v2191
    %v2428 = vpack.c.b16 %v2196, %v2192
    %v2429 = vpack.c.b16 %v2197, %v2193
    %v2430 = vpack.c.b16 %v2198, %v2194
    %v2431 = vpack.c.b16 %v2203, %v2199
    %v2432 = vpack.c.b16 %v2204, %v2200
    %v2433 = vpack.c.b16 %v2205, %v2201
    %v2434 = vpack.c.b16 %v2206, %v2202
    %v2435 = vpack.c.b16 %v2211, %v2207
    %v2436 = vpack.c.b16 %v2212, %v2208
    %v2437 = vpack.c.b16 %v2213, %v2209
    %v2438 = vpack.c.b16 %v2214, %v2210
    %v2439 = vpack.c.b16 %v2219, %v2215
    %v2440 = vpack.c.b16 %v2220, %v2216
    %v2441 = vpack.c.b16 %v2221, %v2217
    %v2442 = vpack.c.b16 %v2222, %v2218
    %v2443 = vpack.c.b16 %v2227, %v2223
    %v2444 = vpack.c.b16 %v2228, %v2224
    %v2445 = vpack.c.b16 %v2229, %v2225
    %v2446 = vpack.c.b16 %v2230, %v2226
    %v2447 = vpack.c.b16 %v2235, %v2231
    %v2448 = vpack.c.b16 %v2236, %v2232
    %v2449 = vpack.c.b16 %v2237, %v2233
    %v2450 = vpack.c.b16 %v2238, %v2234
    %v2451 = vpack.c.b16 %v2243, %v2239
    %v2452 = vpack.c.b16 %v2244, %v2240
    %v2453 = vpack.c.b16 %v2245, %v2241
    %v2454 = vpack.c.b16 %v2246, %v2242
    %v2455 = vpack.c.b16 %v2251, %v2247
    %v2456 = vpack.c.b16 %v2252, %v2248
    %v2457 = vpack.c.b16 %v2253, %v2249
    %v2458 = vpack.c.b16 %v2254, %v2250
    %v2459 = vpack.c.b16 %v2259, %v2255
    %v2460 = vpack.c.b16 %v2260, %v2256
    %v2461 = vpack.c.b16 %v2261, %v2257
    %v2462 = vpack.c.b16 %v2262, %v2258
    %v2463 = vpack.c.b16 %v2267, %v2263
    %v2464 = vpack.c.b16 %v2268, %v2264
    %v2465 = vpack.c.b16 %v2269, %v2265
    %v2466 = vpack.c.b16 %v2270, %v2266
    %v2467 = vpack.c.b16 %v2275, %v2271
    %v2468 = vpack.c.b16 %v2276, %v2272
    %v2469 = vpack.c.b16 %v2277, %v2273
    %v2470 = vpack.c.b16 %v2278, %v2274
    %v2471 = vpack.c.b16 %v2283, %v2279
    %v2472 = vpack.c.b16 %v2284, %v2280
    %v2473 = vpack.c.b16 %v2285, %v2281
    %v2474 = vpack.c.b16 %v2286, %v2282
    %v2475 = vpack.c.b16 %v2291, %v2287
    %v2476 = vpack.c.b16 %v2292, %v2288
    %v2477 = vpack.c.b16 %v2293, %v2289
    %v2478 = vpack.c.b16 %v2294, %v2290
    %v2479 = vpack.c.b16 %v2299, %v2295
    %v2480 = vpack.c.b16 %v2300, %v2296
    %v2481 = vpack.c.b16 %v2301, %v2297
    %v2482 = vpack.c.b16 %v2302, %v2298
    %v2483 = vpack.c.b16 %v2307, %v2303
    %v2484 = vpack.c.b16 %v2308, %v2304
    %v2485 = vpack.c.b16 %v2309, %v2305
    %v2486 = vpack.c.b16 %v2310, %v2306
    %v2487 = vpack.c.b16 %v2315, %v2311
    %v2488 = vpack.c.b16 %v2316, %v2312
    %v2489 = vpack.c.b16 %v2317, %v2313
    %v2490 = vpack.c.b16 %v2318, %v2314
    %v2491 = vpack.c.b16 %v2323, %v2319
    %v2492 = vpack.c.b16 %v2324, %v2320
    %v2493 = vpack.c.b16 %v2325, %v2321
    %v2494 = vpack.c.b16 %v2326, %v2322
    %v2495 = vpack.c.b16 %v2331, %v2327
    %v2496 = vpack.c.b16 %v2332, %v2328
    %v2497 = vpack.c.b16 %v2333, %v2329
    %v2498 = vpack.c.b16 %v2334, %v2330
    %v2499 = vpack.c.b16 %v2339, %v2335
    %v2500 = vpack.c.b16 %v2340, %v2336
    %v2501 = vpack.c.b16 %v2341, %v2337
    %v2502 = vpack.c.b16 %v2342, %v2338
    %v2503 = vpack.c.b16 %v2347, %v2343
    %v2504 = vpack.c.b16 %v2348, %v2344
    %v2505 = vpack.c.b16 %v2349, %v2345
    %v2506 = vpack.c.b16 %v2350, %v2346
    %v2507 = vpack.c.b16 %v2355, %v2351
    %v2508 = vpack.c.b16 %v2356, %v2352
    %v2509 = vpack.c.b16 %v2357, %v2353
    %v2510 = vpack.c.b16 %v2358, %v2354
    %v2511 = vpack.c.b16 %v2363, %v2359
    %v2512 = vpack.c.b16 %v2364, %v2360
    %v2513 = vpack.c.b16 %v2365, %v2361
    %v2514 = vpack.c.b16 %v2366, %v2362
    %v2515 = vpack.c.b16 %v2371, %v2367
    %v2516 = vpack.c.b16 %v2372, %v2368
    %v2517 = vpack.c.b16 %v2373, %v2369
    %v2518 = vpack.c.b16 %v2374, %v2370
    %v2519 = vpack.c.b16 %v2379, %v2375
    %v2520 = vpack.c.b16 %v2380, %v2376
    %v2521 = vpack.c.b16 %v2381, %v2377
    %v2522 = vpack.c.b16 %v2382, %v2378
    %v2523 = vpack.c.b16 %v2387, %v2383
    %v2524 = vpack.c.b16 %v2388, %v2384
    %v2525 = vpack.c.b16 %v2389, %v2385
    %v2526 = vpack.c.b16 %v2390, %v2386
    %v2527 = vpack.c.b16 %v2395, %v2391
    %v2528 = vpack.c.b16 %v2396, %v2392
    %v2529 = vpack.c.b16 %v2397, %v2393
    %v2530 = vpack.c.b16 %v2398, %v2394
    %v2531 = vpack.c.b16 %v2403, %v2399
    %v2532 = vpack.c.b16 %v2404, %v2400
    %v2533 = vpack.c.b16 %v2405, %v2401
    %v2534 = vpack.c.b16 %v2406, %v2402
    %2663 = vmatprep.subr.bf16.mxu0 %v2408
    %2664 = vmatpush1.bf16.msra.mxu0 %v2407
    %2665 = vmatprep.subr.bf16.mxu0 %v2412
    %2666 = vmatpush1.bf16.msra.mxu0 %v2411
    %2667 = vmatprep.subr.bf16.mxu0 %v2416
    %2668 = vmatpush1.bf16.msra.mxu0 %v2415
    %2669 = vmatprep.subr.bf16.mxu0 %v2420
    %2670 = vmatpush1.bf16.msra.mxu0 %v2419
    %2671 = vmatprep.subr.bf16.mxu0 %v2424
    %2672 = vmatpush1.bf16.msra.mxu0 %v2423
    %2673 = vmatprep.subr.bf16.mxu0 %v2428
    %2674 = vmatpush1.bf16.msra.mxu0 %v2427
    %2675 = vmatprep.subr.bf16.mxu0 %v2432
    %2676 = vmatpush1.bf16.msra.mxu0 %v2431
    %2677 = vmatprep.subr.bf16.mxu0 %v2436
    %2678 = vmatpush1.bf16.msra.mxu0 %v2435
    %2679 = vmatprep.subr.bf16.mxu0 %v2440
    %2680 = vmatpush1.bf16.msra.mxu0 %v2439
    %2681 = vmatprep.subr.bf16.mxu0 %v2444
    %2682 = vmatpush1.bf16.msra.mxu0 %v2443
    %2683 = vmatprep.subr.bf16.mxu0 %v2448
    %2684 = vmatpush1.bf16.msra.mxu0 %v2447
    %2685 = vmatprep.subr.bf16.mxu0 %v2452
    %2686 = vmatpush1.bf16.msra.mxu0 %v2451
    %2687 = vmatprep.subr.bf16.mxu0 %v2456
    %2688 = vmatpush1.bf16.msra.mxu0 %v2455
    %2689 = vmatprep.subr.bf16.mxu0 %v2460
    %2690 = vmatpush1.bf16.msra.mxu0 %v2459
    %2691 = vmatprep.subr.bf16.mxu0 %v2464
    %2692 = vmatpush1.bf16.msra.mxu0 %v2463
    %2693 = vmatprep.subr.bf16.mxu0 %v2468
    %2694 = vmatpush1.bf16.msra.mxu0 %v2467
    %2695 = vmatprep.mubr.bf16.mxu0 %v1870
    %2696 = vmatmul.mubr.bf16.gmra.mrb[0].mxu0 %v1869
    %v2697 = vpop.f32.mrb[0].mxu0
    %v2698 = vadd.f32 %v2006, %v2697
    %v2699 = vpop.f32.mrb[0].mxu0
    %v2700 = vadd.f32 %v2010, %v2699
    %v2701 = vpop.f32.mrb[0].mxu0
    %v2702 = vadd.f32 %v2006, %v2701
    %v2703 = vpop.f32.mrb[0].mxu0
    %v2704 = vadd.f32 %v2010, %v2703
    %2705 = vdwg.mxu0
    %2706 = vmatprep.subr.bf16.mxu0 %v2472
    %2707 = vmatpush1.bf16.msra.mxu0 %v2471
    %2708 = vmatprep.subr.bf16.mxu0 %v2476
    %2709 = vmatpush1.bf16.msra.mxu0 %v2475
    %2710 = vmatprep.subr.bf16.mxu0 %v2480
    %2711 = vmatpush1.bf16.msra.mxu0 %v2479
    %2712 = vmatprep.subr.bf16.mxu0 %v2484
    %2713 = vmatpush1.bf16.msra.mxu0 %v2483
    %2714 = vmatprep.subr.bf16.mxu0 %v2488
    %2715 = vmatpush1.bf16.msra.mxu0 %v2487
    %2716 = vmatprep.subr.bf16.mxu0 %v2492
    %2717 = vmatpush1.bf16.msra.mxu0 %v2491
    %2718 = vmatprep.subr.bf16.mxu0 %v2496
    %2719 = vmatpush1.bf16.msra.mxu0 %v2495
    %2720 = vmatprep.subr.bf16.mxu0 %v2500
    %2721 = vmatpush1.bf16.msra.mxu0 %v2499
    %2722 = vmatprep.subr.bf16.mxu0 %v2504
    %2723 = vmatpush1.bf16.msra.mxu0 %v2503
    %2724 = vmatprep.subr.bf16.mxu0 %v2508
    %2725 = vmatpush1.bf16.msra.mxu0 %v2507
    %2726 = vmatprep.subr.bf16.mxu0 %v2512
    %2727 = vmatpush1.bf16.msra.mxu0 %v2511
    %2728 = vmatprep.subr.bf16.mxu0 %v2516
    %2729 = vmatpush1.bf16.msra.mxu0 %v2515
    %2730 = vmatprep.subr.bf16.mxu0 %v2520
    %2731 = vmatpush1.bf16.msra.mxu0 %v2519
    %2732 = vmatprep.subr.bf16.mxu0 %v2524
    %2733 = vmatpush1.bf16.msra.mxu0 %v2523
    %2734 = vmatprep.subr.bf16.mxu0 %v2528
    %2735 = vmatpush1.bf16.msra.mxu0 %v2527
    %2736 = vmatprep.subr.bf16.mxu0 %v2532
    %2737 = vmatpush1.bf16.msra.mxu0 %v2531
    %2738 = vmatprep.mubr.bf16.mxu0 %v1872
    %2739 = vmatmul.mubr.bf16.gmra.mrb[0].mxu0 %v1871
    %v2740 = vpop.f32.mrb[0].mxu0
    %v2741 = vadd.f32 %v2698, %v2740
    %v2742 = vpop.f32.mrb[0].mxu0
    %v2743 = vadd.f32 %v2700, %v2742
    %v2744 = vpop.f32.mrb[0].mxu0
    %v2745 = vadd.f32 %v2702, %v2744
    %v2746 = vpop.f32.mrb[0].mxu0
    %v2747 = vadd.f32 %v2704, %v2746
    %2748 = vdwg.mxu0
    %2749 = vmatprep.subr.bf16.mxu0 %v2410
    %2750 = vmatpush1.bf16.msra.mxu0 %v2409
    %2751 = vmatprep.subr.bf16.mxu0 %v2414
    %2752 = vmatpush1.bf16.msra.mxu0 %v2413
    %2753 = vmatprep.subr.bf16.mxu0 %v2418
    %2754 = vmatpush1.bf16.msra.mxu0 %v2417
    %2755 = vmatprep.subr.bf16.mxu0 %v2422
    %2756 = vmatpush1.bf16.msra.mxu0 %v2421
    %2757 = vmatprep.subr.bf16.mxu0 %v2426
    %2758 = vmatpush1.bf16.msra.mxu0 %v2425
    %2759 = vmatprep.subr.bf16.mxu0 %v2430
    %2760 = vmatpush1.bf16.msra.mxu0 %v2429
    %2761 = vmatprep.subr.bf16.mxu0 %v2434
    %2762 = vmatpush1.bf16.msra.mxu0 %v2433
    %2763 = vmatprep.subr.bf16.mxu0 %v2438
    %2764 = vmatpush1.bf16.msra.mxu0 %v2437
    %2765 = vmatprep.subr.bf16.mxu0 %v2442
    %2766 = vmatpush1.bf16.msra.mxu0 %v2441
    %2767 = vmatprep.subr.bf16.mxu0 %v2446
    %2768 = vmatpush1.bf16.msra.mxu0 %v2445
    %2769 = vmatprep.subr.bf16.mxu0 %v2450
    %2770 = vmatpush1.bf16.msra.mxu0 %v2449
    %2771 = vmatprep.subr.bf16.mxu0 %v2454
    %2772 = vmatpush1.bf16.msra.mxu0 %v2453
    %2773 = vmatprep.subr.bf16.mxu0 %v2458
    %2774 = vmatpush1.bf16.msra.mxu0 %v2457
    %2775 = vmatprep.subr.bf16.mxu0 %v2462
    %2776 = vmatpush1.bf16.msra.mxu0 %v2461
    %2777 = vmatprep.subr.bf16.mxu0 %v2466
    %2778 = vmatpush1.bf16.msra.mxu0 %v2465
    %2779 = vmatprep.subr.bf16.mxu0 %v2470
    %2780 = vmatpush1.bf16.msra.mxu0 %v2469
    %2781 = vmatprep.mubr.bf16.mxu0 %v1870
    %2782 = vmatmul.mubr.bf16.gmra.mrb[0].mxu0 %v1869
    %v2783 = vpop.f32.mrb[0].mxu0
    %v2784 = vadd.f32 %v2014, %v2783
    %v2785 = vpop.f32.mrb[0].mxu0
    %v2786 = vadd.f32 %v2018, %v2785
    %v2787 = vpop.f32.mrb[0].mxu0
    %v2788 = vadd.f32 %v2014, %v2787
    %v2789 = vpop.f32.mrb[0].mxu0
    %v2790 = vadd.f32 %v2018, %v2789
    %2791 = vdwg.mxu0
    %2792 = vmatprep.subr.bf16.mxu0 %v2474
    %2793 = vmatpush1.bf16.msra.mxu0 %v2473
    %2794 = vmatprep.subr.bf16.mxu0 %v2478
    %2795 = vmatpush1.bf16.msra.mxu0 %v2477
    %2796 = vmatprep.subr.bf16.mxu0 %v2482
    %2797 = vmatpush1.bf16.msra.mxu0 %v2481
    %2798 = vmatprep.subr.bf16.mxu0 %v2486
    %2799 = vmatpush1.bf16.msra.mxu0 %v2485
    %2800 = vmatprep.subr.bf16.mxu0 %v2490
    %2801 = vmatpush1.bf16.msra.mxu0 %v2489
    %2802 = vmatprep.subr.bf16.mxu0 %v2494
    %2803 = vmatpush1.bf16.msra.mxu0 %v2493
    %2804 = vmatprep.subr.bf16.mxu0 %v2498
    %2805 = vmatpush1.bf16.msra.mxu0 %v2497
    %2806 = vmatprep.subr.bf16.mxu0 %v2502
    %2807 = vmatpush1.bf16.msra.mxu0 %v2501
    %2808 = vmatprep.subr.bf16.mxu0 %v2506
    %2809 = vmatpush1.bf16.msra.mxu0 %v2505
    %2810 = vmatprep.subr.bf16.mxu0 %v2510
    %2811 = vmatpush1.bf16.msra.mxu0 %v2509
    %2812 = vmatprep.subr.bf16.mxu0 %v2514
    %2813 = vmatpush1.bf16.msra.mxu0 %v2513
    %2814 = vmatprep.subr.bf16.mxu0 %v2518
    %2815 = vmatpush1.bf16.msra.mxu0 %v2517
    %2816 = vmatprep.subr.bf16.mxu0 %v2522
    %2817 = vmatpush1.bf16.msra.mxu0 %v2521
    %2818 = vmatprep.subr.bf16.mxu0 %v2526
    %2819 = vmatpush1.bf16.msra.mxu0 %v2525
    %2820 = vmatprep.subr.bf16.mxu0 %v2530
    %2821 = vmatpush1.bf16.msra.mxu0 %v2529
    %2822 = vmatprep.subr.bf16.mxu0 %v2534
    %2823 = vmatpush1.bf16.msra.mxu0 %v2533
    %2824 = vmatprep.mubr.bf16.mxu0 %v1872
    %2825 = vmatmul.mubr.bf16.gmra.mrb[0].mxu0 %v1871
    %v2826 = vpop.f32.mrb[0].mxu0
    %v2827 = vadd.f32 %v2784, %v2826
    %v2828 = vpop.f32.mrb[0].mxu0
    %v2829 = vadd.f32 %v2786, %v2828
    %v2830 = vpop.f32.mrb[0].mxu0
    %v2831 = vadd.f32 %v2788, %v2830
    %v2832 = vpop.f32.mrb[0].mxu0
    %v2833 = vadd.f32 %v2790, %v2832
    %2834 = vdwg.mxu0
    %v2835 = vmax.f32 %v2741, 0.0
    %v2836 = vmax.f32 %v2743, 0.0
    %v2837 = vmax.f32 %v2827, 0.0
    %v2838 = vmax.f32 %v2829, 0.0
    %v2839 = vmax.f32 %v2745, 0.0
    %v2840 = vmax.f32 %v2747, 0.0
    %v2841 = vmax.f32 %v2831, 0.0
    %v2842 = vmax.f32 %v2833, 0.0
    %v2843 = vpack.c.bf16 %v2839, %v2835
    %v2844 = vpack.c.bf16 %v2840, %v2836
    %v2845 = vpack.c.bf16 %v2841, %v2837
    %v2846 = vpack.c.bf16 %v2842, %v2838
    %v2851 = vunpack.c.l.b16 %v2843
    %v2852 = vunpack.c.l.b16 %v2844
    %v2853 = vunpack.c.l.b16 %v2845
    %v2854 = vunpack.c.l.b16 %v2846
    %v2855 = vunpack.c.h.b16 %v2843
    %v2856 = vunpack.c.h.b16 %v2844
    %v2857 = vunpack.c.h.b16 %v2845
    %v2858 = vunpack.c.h.b16 %v2846
    %v2859 = vpack.c.b16 %v2852, %v2851
    %v2860 = vpack.c.b16 %v2854, %v2853
    %v2861 = vpack.c.b16 %v2856, %v2855
    %v2862 = vpack.c.b16 %v2858, %v2857
    %2867 = vst [vmem:[%s11] sm:$0xff] %v2859
    %2868 = vst [vmem:[%s11 + $0x8] sm:$0xff] %v2860
    %2869 = vst [vmem:[%s11 + $0x30] sm:$0xff] %v2861
    %2870 = vst [vmem:[%s11 + $0x38] sm:$0xff] %v2862
    %v2871 = vld [vmem:[#allocation6] sm:$0xff]
    %v2872 = vld [vmem:[#allocation6 + $0x8] sm:$0xff]
    %v2873 = vld [vmem:[#allocation6 + $0x10] sm:$0xff]
    %v2874 = vld [vmem:[#allocation6 + $0x18] sm:$0xff]
    %v2875 = vld [vmem:[#allocation6 + $0x20] sm:$0xff]
    %v2876 = vld [vmem:[#allocation6 + $0x28] sm:$0xff]
    %v2877 = vld [vmem:[#allocation6 + $0x30] sm:$0xff]
    %v2878 = vld [vmem:[#allocation6 + $0x38] sm:$0xff]
    %v2879 = vld [vmem:[#allocation6 + $0x40] sm:$0xff]
    %v2880 = vld [vmem:[#allocation6 + $0x48] sm:$0xff]
    %v2881 = vld [vmem:[#allocation6 + $0x50] sm:$0xff]
    %v2882 = vld [vmem:[#allocation6 + $0x58] sm:$0xff]
    %v2883 = vld [vmem:[#allocation6 + $0x60] sm:$0xff]
    %v2884 = vld [vmem:[#allocation6 + $0x68] sm:$0xff]
    %v2885 = vld [vmem:[#allocation6 + $0x70] sm:$0xff]
    %v2886 = vld [vmem:[#allocation6 + $0x78] sm:$0xff]
    %v2887 = vld [vmem:[#allocation6 + $0x80] sm:$0xff]
    %v2888 = vld [vmem:[#allocation6 + $0x88] sm:$0xff]
    %v2889 = vld [vmem:[#allocation6 + $0x90] sm:$0xff]
    %v2890 = vld [vmem:[#allocation6 + $0x98] sm:$0xff]
    %v2891 = vld [vmem:[#allocation6 + $0xa0] sm:$0xff]
    %v2892 = vld [vmem:[#allocation6 + $0xa8] sm:$0xff]
    %v2893 = vld [vmem:[#allocation6 + $0xb0] sm:$0xff]
    %v2894 = vld [vmem:[#allocation6 + $0xb8] sm:$0xff]
    %v2895 = vld [vmem:[#allocation6 + $0xc0] sm:$0xff]
    %v2896 = vld [vmem:[#allocation6 + $0xc8] sm:$0xff]
    %v2897 = vld [vmem:[#allocation6 + $0xd0] sm:$0xff]
    %v2898 = vld [vmem:[#allocation6 + $0xd8] sm:$0xff]
    %v2899 = vld [vmem:[#allocation6 + $0xe0] sm:$0xff]
    %v2900 = vld [vmem:[#allocation6 + $0xe8] sm:$0xff]
    %v2901 = vld [vmem:[#allocation6 + $0xf0] sm:$0xff]
    %v2902 = vld [vmem:[#allocation6 + $0xf8] sm:$0xff]
    %v2903 = vld [vmem:[#allocation6 + $0x100] sm:$0xff]
    %v2904 = vld [vmem:[#allocation6 + $0x108] sm:$0xff]
    %v2905 = vld [vmem:[#allocation6 + $0x110] sm:$0xff]
    %v2906 = vld [vmem:[#allocation6 + $0x118] sm:$0xff]
    %v2907 = vld [vmem:[#allocation6 + $0x120] sm:$0xff]
    %v2908 = vld [vmem:[#allocation6 + $0x128] sm:$0xff]
    %v2909 = vld [vmem:[#allocation6 + $0x130] sm:$0xff]
    %v2910 = vld [vmem:[#allocation6 + $0x138] sm:$0xff]
    %v2911 = vld [vmem:[#allocation6 + $0x140] sm:$0xff]
    %v2912 = vld [vmem:[#allocation6 + $0x148] sm:$0xff]
    %v2913 = vld [vmem:[#allocation6 + $0x150] sm:$0xff]
    %v2914 = vld [vmem:[#allocation6 + $0x158] sm:$0xff]
    %v2915 = vld [vmem:[#allocation6 + $0x160] sm:$0xff]
    %v2916 = vld [vmem:[#allocation6 + $0x168] sm:$0xff]
    %v2917 = vld [vmem:[#allocation6 + $0x170] sm:$0xff]
    %v2918 = vld [vmem:[#allocation6 + $0x178] sm:$0xff]
    %v2919 = vld [vmem:[#allocation6 + $0x180] sm:$0xff]
    %v2920 = vld [vmem:[#allocation6 + $0x188] sm:$0xff]
    %v2921 = vld [vmem:[#allocation6 + $0x190] sm:$0xff]
    %v2922 = vld [vmem:[#allocation6 + $0x198] sm:$0xff]
    %v2923 = vld [vmem:[#allocation6 + $0x1a0] sm:$0xff]
    %v2924 = vld [vmem:[#allocation6 + $0x1a8] sm:$0xff]
    %v2925 = vld [vmem:[#allocation6 + $0x1b0] sm:$0xff]
    %v2926 = vld [vmem:[#allocation6 + $0x1b8] sm:$0xff]
    %v2927 = vld [vmem:[#allocation6 + $0x1c0] sm:$0xff]
    %v2928 = vld [vmem:[#allocation6 + $0x1c8] sm:$0xff]
    %v2929 = vld [vmem:[#allocation6 + $0x1d0] sm:$0xff]
    %v2930 = vld [vmem:[#allocation6 + $0x1d8] sm:$0xff]
    %v2931 = vld [vmem:[#allocation6 + $0x1e0] sm:$0xff]
    %v2932 = vld [vmem:[#allocation6 + $0x1e8] sm:$0xff]
    %v2933 = vld [vmem:[#allocation6 + $0x1f0] sm:$0xff]
    %v2934 = vld [vmem:[#allocation6 + $0x1f8] sm:$0xff]
    %v2935 = vld [vmem:[%s6] sm:$0xff]
    %v2937 = vlaneseq
    %v2938 = vshrl.u32 %v2937, 7
    %v2939 = vsub.s32 0, %v2938
    %v2940 = vrot.slane %v2935, %v2939
    %v2941 = vlaneseq
    %v2942 = vshrl.u32 %v2941, 7
    %v2943 = vsub.s32 1, %v2942
    %v2944 = vrot.slane %v2935, %v2943
    %v2945 = vlaneseq
    %v2946 = vshrl.u32 %v2945, 7
    %v2947 = vsub.s32 2, %v2946
    %v2948 = vrot.slane %v2935, %v2947
    %v2949 = vlaneseq
    %v2950 = vshrl.u32 %v2949, 7
    %v2951 = vsub.s32 3, %v2950
    %v2952 = vrot.slane %v2935, %v2951
    %v2953 = vlaneseq
    %v2954 = vshrl.u32 %v2953, 7
    %v2955 = vsub.s32 4, %v2954
    %v2956 = vrot.slane %v2935, %v2955
    %v2957 = vlaneseq
    %v2958 = vshrl.u32 %v2957, 7
    %v2959 = vsub.s32 5, %v2958
    %v2960 = vrot.slane %v2935, %v2959
    %v2961 = vlaneseq
    %v2962 = vshrl.u32 %v2961, 7
    %v2963 = vsub.s32 6, %v2962
    %v2964 = vrot.slane %v2935, %v2963
    %v2965 = vlaneseq
    %v2966 = vshrl.u32 %v2965, 7
    %v2967 = vsub.s32 7, %v2966
    %v2968 = vrot.slane %v2935, %v2967
    %v3041 = vunpack.c.l.b16 %v2871
    %v3042 = vunpack.c.h.b16 %v2871
    %v3043 = vunpack.c.l.b16 %v2872
    %v3044 = vunpack.c.h.b16 %v2872
    %v3045 = vunpack.c.l.b16 %v2873
    %v3046 = vunpack.c.h.b16 %v2873
    %v3047 = vunpack.c.l.b16 %v2874
    %v3048 = vunpack.c.h.b16 %v2874
    %v3049 = vunpack.c.l.b16 %v2875
    %v3050 = vunpack.c.h.b16 %v2875
    %v3051 = vunpack.c.l.b16 %v2876
    %v3052 = vunpack.c.h.b16 %v2876
    %v3053 = vunpack.c.l.b16 %v2877
    %v3054 = vunpack.c.h.b16 %v2877
    %v3055 = vunpack.c.l.b16 %v2878
    %v3056 = vunpack.c.h.b16 %v2878
    %v3057 = vunpack.c.l.b16 %v2879
    %v3058 = vunpack.c.h.b16 %v2879
    %v3059 = vunpack.c.l.b16 %v2880
    %v3060 = vunpack.c.h.b16 %v2880
    %v3061 = vunpack.c.l.b16 %v2881
    %v3062 = vunpack.c.h.b16 %v2881
    %v3063 = vunpack.c.l.b16 %v2882
    %v3064 = vunpack.c.h.b16 %v2882
    %v3065 = vunpack.c.l.b16 %v2883
    %v3066 = vunpack.c.h.b16 %v2883
    %v3067 = vunpack.c.l.b16 %v2884
    %v3068 = vunpack.c.h.b16 %v2884
    %v3069 = vunpack.c.l.b16 %v2885
    %v3070 = vunpack.c.h.b16 %v2885
    %v3071 = vunpack.c.l.b16 %v2886
    %v3072 = vunpack.c.h.b16 %v2886
    %v3073 = vunpack.c.l.b16 %v2887
    %v3074 = vunpack.c.h.b16 %v2887
    %v3075 = vunpack.c.l.b16 %v2888
    %v3076 = vunpack.c.h.b16 %v2888
    %v3077 = vunpack.c.l.b16 %v2889
    %v3078 = vunpack.c.h.b16 %v2889
    %v3079 = vunpack.c.l.b16 %v2890
    %v3080 = vunpack.c.h.b16 %v2890
    %v3081 = vunpack.c.l.b16 %v2891
    %v3082 = vunpack.c.h.b16 %v2891
    %v3083 = vunpack.c.l.b16 %v2892
    %v3084 = vunpack.c.h.b16 %v2892
    %v3085 = vunpack.c.l.b16 %v2893
    %v3086 = vunpack.c.h.b16 %v2893
    %v3087 = vunpack.c.l.b16 %v2894
    %v3088 = vunpack.c.h.b16 %v2894
    %v3089 = vunpack.c.l.b16 %v2895
    %v3090 = vunpack.c.h.b16 %v2895
    %v3091 = vunpack.c.l.b16 %v2896
    %v3092 = vunpack.c.h.b16 %v2896
    %v3093 = vunpack.c.l.b16 %v2897
    %v3094 = vunpack.c.h.b16 %v2897
    %v3095 = vunpack.c.l.b16 %v2898
    %v3096 = vunpack.c.h.b16 %v2898
    %v3097 = vunpack.c.l.b16 %v2899
    %v3098 = vunpack.c.h.b16 %v2899
    %v3099 = vunpack.c.l.b16 %v2900
    %v3100 = vunpack.c.h.b16 %v2900
    %v3101 = vunpack.c.l.b16 %v2901
    %v3102 = vunpack.c.h.b16 %v2901
    %v3103 = vunpack.c.l.b16 %v2902
    %v3104 = vunpack.c.h.b16 %v2902
    %v3105 = vunpack.c.l.b16 %v2903
    %v3106 = vunpack.c.h.b16 %v2903
    %v3107 = vunpack.c.l.b16 %v2904
    %v3108 = vunpack.c.h.b16 %v2904
    %v3109 = vunpack.c.l.b16 %v2905
    %v3110 = vunpack.c.h.b16 %v2905
    %v3111 = vunpack.c.l.b16 %v2906
    %v3112 = vunpack.c.h.b16 %v2906
    %v3113 = vunpack.c.l.b16 %v2907
    %v3114 = vunpack.c.h.b16 %v2907
    %v3115 = vunpack.c.l.b16 %v2908
    %v3116 = vunpack.c.h.b16 %v2908
    %v3117 = vunpack.c.l.b16 %v2909
    %v3118 = vunpack.c.h.b16 %v2909
    %v3119 = vunpack.c.l.b16 %v2910
    %v3120 = vunpack.c.h.b16 %v2910
    %v3121 = vunpack.c.l.b16 %v2911
    %v3122 = vunpack.c.h.b16 %v2911
    %v3123 = vunpack.c.l.b16 %v2912
    %v3124 = vunpack.c.h.b16 %v2912
    %v3125 = vunpack.c.l.b16 %v2913
    %v3126 = vunpack.c.h.b16 %v2913
    %v3127 = vunpack.c.l.b16 %v2914
    %v3128 = vunpack.c.h.b16 %v2914
    %v3129 = vunpack.c.l.b16 %v2915
    %v3130 = vunpack.c.h.b16 %v2915
    %v3131 = vunpack.c.l.b16 %v2916
    %v3132 = vunpack.c.h.b16 %v2916
    %v3133 = vunpack.c.l.b16 %v2917
    %v3134 = vunpack.c.h.b16 %v2917
    %v3135 = vunpack.c.l.b16 %v2918
    %v3136 = vunpack.c.h.b16 %v2918
    %v3137 = vunpack.c.l.b16 %v2919
    %v3138 = vunpack.c.h.b16 %v2919
    %v3139 = vunpack.c.l.b16 %v2920
    %v3140 = vunpack.c.h.b16 %v2920
    %v3141 = vunpack.c.l.b16 %v2921
    %v3142 = vunpack.c.h.b16 %v2921
    %v3143 = vunpack.c.l.b16 %v2922
    %v3144 = vunpack.c.h.b16 %v2922
    %v3145 = vunpack.c.l.b16 %v2923
    %v3146 = vunpack.c.h.b16 %v2923
    %v3147 = vunpack.c.l.b16 %v2924
    %v3148 = vunpack.c.h.b16 %v2924
    %v3149 = vunpack.c.l.b16 %v2925
    %v3150 = vunpack.c.h.b16 %v2925
    %v3151 = vunpack.c.l.b16 %v2926
    %v3152 = vunpack.c.h.b16 %v2926
    %v3153 = vunpack.c.l.b16 %v2927
    %v3154 = vunpack.c.h.b16 %v2927
    %v3155 = vunpack.c.l.b16 %v2928
    %v3156 = vunpack.c.h.b16 %v2928
    %v3157 = vunpack.c.l.b16 %v2929
    %v3158 = vunpack.c.h.b16 %v2929
    %v3159 = vunpack.c.l.b16 %v2930
    %v3160 = vunpack.c.h.b16 %v2930
    %v3161 = vunpack.c.l.b16 %v2931
    %v3162 = vunpack.c.h.b16 %v2931
    %v3163 = vunpack.c.l.b16 %v2932
    %v3164 = vunpack.c.h.b16 %v2932
    %v3165 = vunpack.c.l.b16 %v2933
    %v3166 = vunpack.c.h.b16 %v2933
    %v3167 = vunpack.c.l.b16 %v2934
    %v3168 = vunpack.c.h.b16 %v2934
    %v3169 = vpack.c.b16 %v3049, %v3041
    %v3170 = vpack.c.b16 %v3050, %v3042
    %v3171 = vpack.c.b16 %v3051, %v3043
    %v3172 = vpack.c.b16 %v3052, %v3044
    %v3173 = vpack.c.b16 %v3053, %v3045
    %v3174 = vpack.c.b16 %v3054, %v3046
    %v3175 = vpack.c.b16 %v3055, %v3047
    %v3176 = vpack.c.b16 %v3056, %v3048
    %v3177 = vpack.c.b16 %v3065, %v3057
    %v3178 = vpack.c.b16 %v3066, %v3058
    %v3179 = vpack.c.b16 %v3067, %v3059
    %v3180 = vpack.c.b16 %v3068, %v3060
    %v3181 = vpack.c.b16 %v3069, %v3061
    %v3182 = vpack.c.b16 %v3070, %v3062
    %v3183 = vpack.c.b16 %v3071, %v3063
    %v3184 = vpack.c.b16 %v3072, %v3064
    %v3185 = vpack.c.b16 %v3081, %v3073
    %v3186 = vpack.c.b16 %v3082, %v3074
    %v3187 = vpack.c.b16 %v3083, %v3075
    %v3188 = vpack.c.b16 %v3084, %v3076
    %v3189 = vpack.c.b16 %v3085, %v3077
    %v3190 = vpack.c.b16 %v3086, %v3078
    %v3191 = vpack.c.b16 %v3087, %v3079
    %v3192 = vpack.c.b16 %v3088, %v3080
    %v3193 = vpack.c.b16 %v3097, %v3089
    %v3194 = vpack.c.b16 %v3098, %v3090
    %v3195 = vpack.c.b16 %v3099, %v3091
    %v3196 = vpack.c.b16 %v3100, %v3092
    %v3197 = vpack.c.b16 %v3101, %v3093
    %v3198 = vpack.c.b16 %v3102, %v3094
    %v3199 = vpack.c.b16 %v3103, %v3095
    %v3200 = vpack.c.b16 %v3104, %v3096
    %v3201 = vpack.c.b16 %v3113, %v3105
    %v3202 = vpack.c.b16 %v3114, %v3106
    %v3203 = vpack.c.b16 %v3115, %v3107
    %v3204 = vpack.c.b16 %v3116, %v3108
    %v3205 = vpack.c.b16 %v3117, %v3109
    %v3206 = vpack.c.b16 %v3118, %v3110
    %v3207 = vpack.c.b16 %v3119, %v3111
    %v3208 = vpack.c.b16 %v3120, %v3112
    %v3209 = vpack.c.b16 %v3129, %v3121
    %v3210 = vpack.c.b16 %v3130, %v3122
    %v3211 = vpack.c.b16 %v3131, %v3123
    %v3212 = vpack.c.b16 %v3132, %v3124
    %v3213 = vpack.c.b16 %v3133, %v3125
    %v3214 = vpack.c.b16 %v3134, %v3126
    %v3215 = vpack.c.b16 %v3135, %v3127
    %v3216 = vpack.c.b16 %v3136, %v3128
    %v3217 = vpack.c.b16 %v3145, %v3137
    %v3218 = vpack.c.b16 %v3146, %v3138
    %v3219 = vpack.c.b16 %v3147, %v3139
    %v3220 = vpack.c.b16 %v3148, %v3140
    %v3221 = vpack.c.b16 %v3149, %v3141
    %v3222 = vpack.c.b16 %v3150, %v3142
    %v3223 = vpack.c.b16 %v3151, %v3143
    %v3224 = vpack.c.b16 %v3152, %v3144
    %v3225 = vpack.c.b16 %v3161, %v3153
    %v3226 = vpack.c.b16 %v3162, %v3154
    %v3227 = vpack.c.b16 %v3163, %v3155
    %v3228 = vpack.c.b16 %v3164, %v3156
    %v3229 = vpack.c.b16 %v3165, %v3157
    %v3230 = vpack.c.b16 %v3166, %v3158
    %v3231 = vpack.c.b16 %v3167, %v3159
    %v3232 = vpack.c.b16 %v3168, %v3160
    %3297 = vmatprep.subr.bf16.mxu0 %v3170
    %3298 = vmatpush1.bf16.msra.mxu0 %v3169
    %3299 = vmatprep.subr.bf16.mxu0 %v3178
    %3300 = vmatpush1.bf16.msra.mxu0 %v3177
    %3301 = vmatprep.subr.bf16.mxu0 %v3186
    %3302 = vmatpush1.bf16.msra.mxu0 %v3185
    %3303 = vmatprep.subr.bf16.mxu0 %v3194
    %3304 = vmatpush1.bf16.msra.mxu0 %v3193
    %3305 = vmatprep.subr.bf16.mxu0 %v3202
    %3306 = vmatpush1.bf16.msra.mxu0 %v3201
    %3307 = vmatprep.subr.bf16.mxu0 %v3210
    %3308 = vmatpush1.bf16.msra.mxu0 %v3209
    %3309 = vmatprep.subr.bf16.mxu0 %v3218
    %3310 = vmatpush1.bf16.msra.mxu0 %v3217
    %3311 = vmatprep.subr.bf16.mxu0 %v3226
    %3312 = vmatpush1.bf16.msra.mxu0 %v3225
    %3313 = vmatprep.subr.bf16.mxu0 0
    %3314 = vmatpush1.bf16.msra.mxu0 0
    %3315 = vmatprep.subr.bf16.mxu0 0
    %3316 = vmatpush1.bf16.msra.mxu0 0
    %3317 = vmatprep.subr.bf16.mxu0 0
    %3318 = vmatpush1.bf16.msra.mxu0 0
    %3319 = vmatprep.subr.bf16.mxu0 0
    %3320 = vmatpush1.bf16.msra.mxu0 0
    %3321 = vmatprep.subr.bf16.mxu0 0
    %3322 = vmatpush1.bf16.msra.mxu0 0
    %3323 = vmatprep.subr.bf16.mxu0 0
    %3324 = vmatpush1.bf16.msra.mxu0 0
    %3325 = vmatprep.subr.bf16.mxu0 0
    %3326 = vmatpush1.bf16.msra.mxu0 0
    %3327 = vmatprep.subr.bf16.mxu0 0
    %3328 = vmatpush1.bf16.msra.mxu0 0
    %3329 = vmatprep.mubr.bf16.mxu0 0
    %3330 = vmatmul.mubr.bf16.gmra.mrb[0].mxu0 %v389
    %v3331 = vpop.f32.mrb[0].mxu0
    %v3332 = vadd.f32 %v2940, %v3331
    %v3333 = vpop.f32.mrb[0].mxu0
    %v3334 = vadd.f32 %v2944, %v3333
    %v3335 = vpop.f32.mrb[0].mxu0
    %v3336 = vadd.f32 %v2940, %v3335
    %v3337 = vpop.f32.mrb[0].mxu0
    %v3338 = vadd.f32 %v2944, %v3337
    %3339 = vdwg.mxu0
    %3340 = vmatprep.subr.bf16.mxu0 %v3172
    %3341 = vmatpush1.bf16.msra.mxu0 %v3171
    %3342 = vmatprep.subr.bf16.mxu0 %v3180
    %3343 = vmatpush1.bf16.msra.mxu0 %v3179
    %3344 = vmatprep.subr.bf16.mxu0 %v3188
    %3345 = vmatpush1.bf16.msra.mxu0 %v3187
    %3346 = vmatprep.subr.bf16.mxu0 %v3196
    %3347 = vmatpush1.bf16.msra.mxu0 %v3195
    %3348 = vmatprep.subr.bf16.mxu0 %v3204
    %3349 = vmatpush1.bf16.msra.mxu0 %v3203
    %3350 = vmatprep.subr.bf16.mxu0 %v3212
    %3351 = vmatpush1.bf16.msra.mxu0 %v3211
    %3352 = vmatprep.subr.bf16.mxu0 %v3220
    %3353 = vmatpush1.bf16.msra.mxu0 %v3219
    %3354 = vmatprep.subr.bf16.mxu0 %v3228
    %3355 = vmatpush1.bf16.msra.mxu0 %v3227
    %3356 = vmatprep.subr.bf16.mxu0 0
    %3357 = vmatpush1.bf16.msra.mxu0 0
    %3358 = vmatprep.subr.bf16.mxu0 0
    %3359 = vmatpush1.bf16.msra.mxu0 0
    %3360 = vmatprep.subr.bf16.mxu0 0
    %3361 = vmatpush1.bf16.msra.mxu0 0
    %3362 = vmatprep.subr.bf16.mxu0 0
    %3363 = vmatpush1.bf16.msra.mxu0 0
    %3364 = vmatprep.subr.bf16.mxu0 0
    %3365 = vmatpush1.bf16.msra.mxu0 0
    %3366 = vmatprep.subr.bf16.mxu0 0
    %3367 = vmatpush1.bf16.msra.mxu0 0
    %3368 = vmatprep.subr.bf16.mxu0 0
    %3369 = vmatpush1.bf16.msra.mxu0 0
    %3370 = vmatprep.subr.bf16.mxu0 0
    %3371 = vmatpush1.bf16.msra.mxu0 0
    %3372 = vmatprep.mubr.bf16.mxu0 0
    %3373 = vmatmul.mubr.bf16.gmra.mrb[0].mxu0 %v389
    %v3374 = vpop.f32.mrb[0].mxu0
    %v3375 = vadd.f32 %v2948, %v3374
    %v3376 = vpop.f32.mrb[0].mxu0
    %v3377 = vadd.f32 %v2952, %v3376
    %v3378 = vpop.f32.mrb[0].mxu0
    %v3379 = vadd.f32 %v2948, %v3378
    %v3380 = vpop.f32.mrb[0].mxu0
    %v3381 = vadd.f32 %v2952, %v3380
    %3382 = vdwg.mxu0
    %3383 = vmatprep.subr.bf16.mxu0 %v3174
    %3384 = vmatpush1.bf16.msra.mxu0 %v3173
    %3385 = vmatprep.subr.bf16.mxu0 %v3182
    %3386 = vmatpush1.bf16.msra.mxu0 %v3181
    %3387 = vmatprep.subr.bf16.mxu0 %v3190
    %3388 = vmatpush1.bf16.msra.mxu0 %v3189
    %3389 = vmatprep.subr.bf16.mxu0 %v3198
    %3390 = vmatpush1.bf16.msra.mxu0 %v3197
    %3391 = vmatprep.subr.bf16.mxu0 %v3206
    %3392 = vmatpush1.bf16.msra.mxu0 %v3205
    %3393 = vmatprep.subr.bf16.mxu0 %v3214
    %3394 = vmatpush1.bf16.msra.mxu0 %v3213
    %3395 = vmatprep.subr.bf16.mxu0 %v3222
    %3396 = vmatpush1.bf16.msra.mxu0 %v3221
    %3397 = vmatprep.subr.bf16.mxu0 %v3230
    %3398 = vmatpush1.bf16.msra.mxu0 %v3229
    %3399 = vmatprep.subr.bf16.mxu0 0
    %3400 = vmatpush1.bf16.msra.mxu0 0
    %3401 = vmatprep.subr.bf16.mxu0 0
    %3402 = vmatpush1.bf16.msra.mxu0 0
    %3403 = vmatprep.subr.bf16.mxu0 0
    %3404 = vmatpush1.bf16.msra.mxu0 0
    %3405 = vmatprep.subr.bf16.mxu0 0
    %3406 = vmatpush1.bf16.msra.mxu0 0
    %3407 = vmatprep.subr.bf16.mxu0 0
    %3408 = vmatpush1.bf16.msra.mxu0 0
    %3409 = vmatprep.subr.bf16.mxu0 0
    %3410 = vmatpush1.bf16.msra.mxu0 0
    %3411 = vmatprep.subr.bf16.mxu0 0
    %3412 = vmatpush1.bf16.msra.mxu0 0
    %3413 = vmatprep.subr.bf16.mxu0 0
    %3414 = vmatpush1.bf16.msra.mxu0 0
    %3415 = vmatprep.mubr.bf16.mxu0 0
    %3416 = vmatmul.mubr.bf16.gmra.mrb[0].mxu0 %v389
    %v3417 = vpop.f32.mrb[0].mxu0
    %v3418 = vadd.f32 %v2956, %v3417
    %v3419 = vpop.f32.mrb[0].mxu0
    %v3420 = vadd.f32 %v2960, %v3419
    %v3421 = vpop.f32.mrb[0].mxu0
    %v3422 = vadd.f32 %v2956, %v3421
    %v3423 = vpop.f32.mrb[0].mxu0
    %v3424 = vadd.f32 %v2960, %v3423
    %3425 = vdwg.mxu0
    %3426 = vmatprep.subr.bf16.mxu0 %v3176
    %3427 = vmatpush1.bf16.msra.mxu0 %v3175
    %3428 = vmatprep.subr.bf16.mxu0 %v3184
    %3429 = vmatpush1.bf16.msra.mxu0 %v3183
    %3430 = vmatprep.subr.bf16.mxu0 %v3192
    %3431 = vmatpush1.bf16.msra.mxu0 %v3191
    %3432 = vmatprep.subr.bf16.mxu0 %v3200
    %3433 = vmatpush1.bf16.msra.mxu0 %v3199
    %3434 = vmatprep.subr.bf16.mxu0 %v3208
    %3435 = vmatpush1.bf16.msra.mxu0 %v3207
    %3436 = vmatprep.subr.bf16.mxu0 %v3216
    %3437 = vmatpush1.bf16.msra.mxu0 %v3215
    %3438 = vmatprep.subr.bf16.mxu0 %v3224
    %3439 = vmatpush1.bf16.msra.mxu0 %v3223
    %3440 = vmatprep.subr.bf16.mxu0 %v3232
    %3441 = vmatpush1.bf16.msra.mxu0 %v3231
    %3442 = vmatprep.subr.bf16.mxu0 0
    %3443 = vmatpush1.bf16.msra.mxu0 0
    %3444 = vmatprep.subr.bf16.mxu0 0
    %3445 = vmatpush1.bf16.msra.mxu0 0
    %3446 = vmatprep.subr.bf16.mxu0 0
    %3447 = vmatpush1.bf16.msra.mxu0 0
    %3448 = vmatprep.subr.bf16.mxu0 0
    %3449 = vmatpush1.bf16.msra.mxu0 0
    %3450 = vmatprep.subr.bf16.mxu0 0
    %3451 = vmatpush1.bf16.msra.mxu0 0
    %3452 = vmatprep.subr.bf16.mxu0 0
    %3453 = vmatpush1.bf16.msra.mxu0 0
    %3454 = vmatprep.subr.bf16.mxu0 0
    %3455 = vmatpush1.bf16.msra.mxu0 0
    %3456 = vmatprep.subr.bf16.mxu0 0
    %3457 = vmatpush1.bf16.msra.mxu0 0
    %3458 = vmatprep.mubr.bf16.mxu0 0
    %3459 = vmatmul.mubr.bf16.gmra.mrb[0].mxu0 %v389
    %v3460 = vpop.f32.mrb[0].mxu0
    %v3461 = vadd.f32 %v2964, %v3460
    %v3462 = vpop.f32.mrb[0].mxu0
    %v3463 = vadd.f32 %v2968, %v3462
    %v3464 = vpop.f32.mrb[0].mxu0
    %v3465 = vadd.f32 %v2964, %v3464
    %v3466 = vpop.f32.mrb[0].mxu0
    %v3467 = vadd.f32 %v2968, %v3466
    %3468 = vdwg.mxu0
    %v3469 = vmax.f32 %v3332, 0.0
    %v3470 = vmax.f32 %v3334, 0.0
    %v3471 = vmax.f32 %v3375, 0.0
    %v3472 = vmax.f32 %v3377, 0.0
    %v3473 = vmax.f32 %v3418, 0.0
    %v3474 = vmax.f32 %v3420, 0.0
    %v3475 = vmax.f32 %v3461, 0.0
    %v3476 = vmax.f32 %v3463, 0.0
    %v3477 = vmax.f32 %v3336, 0.0
    %v3478 = vmax.f32 %v3338, 0.0
    %v3479 = vmax.f32 %v3379, 0.0
    %v3480 = vmax.f32 %v3381, 0.0
    %v3481 = vmax.f32 %v3422, 0.0
    %v3482 = vmax.f32 %v3424, 0.0
    %v3483 = vmax.f32 %v3465, 0.0
    %v3484 = vmax.f32 %v3467, 0.0
    %v3485 = vpack.c.bf16 %v3477, %v3469
    %v3486 = vpack.c.bf16 %v3478, %v3470
    %v3487 = vpack.c.bf16 %v3479, %v3471
    %v3488 = vpack.c.bf16 %v3480, %v3472
    %v3489 = vpack.c.bf16 %v3481, %v3473
    %v3490 = vpack.c.bf16 %v3482, %v3474
    %v3491 = vpack.c.bf16 %v3483, %v3475
    %v3492 = vpack.c.bf16 %v3484, %v3476
    %v3493 = vld [vmem:[#allocation7] sm:$0xff]
    %v3494 = vld [vmem:[#allocation7 + $0x8] sm:$0xff]
    %v3495 = vld [vmem:[#allocation7 + $0x10] sm:$0xff]
    %v3496 = vld [vmem:[#allocation7 + $0x18] sm:$0xff]
    %v3497 = vld [vmem:[#allocation7 + $0x20] sm:$0xff]
    %v3498 = vld [vmem:[#allocation7 + $0x28] sm:$0xff]
    %v3499 = vld [vmem:[#allocation7 + $0x30] sm:$0xff]
    %v3500 = vld [vmem:[#allocation7 + $0x38] sm:$0xff]
    %v3501 = vld [vmem:[#allocation7 + $0x40] sm:$0xff]
    %v3502 = vld [vmem:[#allocation7 + $0x48] sm:$0xff]
    %v3503 = vld [vmem:[#allocation7 + $0x50] sm:$0xff]
    %v3504 = vld [vmem:[#allocation7 + $0x58] sm:$0xff]
    %v3505 = vld [vmem:[#allocation7 + $0x60] sm:$0xff]
    %v3506 = vld [vmem:[#allocation7 + $0x68] sm:$0xff]
    %v3507 = vld [vmem:[#allocation7 + $0x70] sm:$0xff]
    %v3508 = vld [vmem:[#allocation7 + $0x78] sm:$0xff]
    %v3509 = vld [vmem:[#allocation7 + $0x80] sm:$0xff]
    %v3510 = vld [vmem:[#allocation7 + $0x88] sm:$0xff]
    %v3511 = vld [vmem:[#allocation7 + $0x90] sm:$0xff]
    %v3512 = vld [vmem:[#allocation7 + $0x98] sm:$0xff]
    %v3513 = vld [vmem:[#allocation7 + $0xa0] sm:$0xff]
    %v3514 = vld [vmem:[#allocation7 + $0xa8] sm:$0xff]
    %v3515 = vld [vmem:[#allocation7 + $0xb0] sm:$0xff]
    %v3516 = vld [vmem:[#allocation7 + $0xb8] sm:$0xff]
    %v3517 = vld [vmem:[#allocation7 + $0xc0] sm:$0xff]
    %v3518 = vld [vmem:[#allocation7 + $0xc8] sm:$0xff]
    %v3519 = vld [vmem:[#allocation7 + $0xd0] sm:$0xff]
    %v3520 = vld [vmem:[#allocation7 + $0xd8] sm:$0xff]
    %v3521 = vld [vmem:[#allocation7 + $0xe0] sm:$0xff]
    %v3522 = vld [vmem:[#allocation7 + $0xe8] sm:$0xff]
    %v3523 = vld [vmem:[#allocation7 + $0xf0] sm:$0xff]
    %v3524 = vld [vmem:[#allocation7 + $0xf8] sm:$0xff]
    %v3525 = vld [vmem:[#allocation7 + $0x100] sm:$0xff]
    %v3526 = vld [vmem:[#allocation7 + $0x108] sm:$0xff]
    %v3527 = vld [vmem:[#allocation7 + $0x110] sm:$0xff]
    %v3528 = vld [vmem:[#allocation7 + $0x118] sm:$0xff]
    %v3529 = vld [vmem:[#allocation7 + $0x120] sm:$0xff]
    %v3530 = vld [vmem:[#allocation7 + $0x128] sm:$0xff]
    %v3531 = vld [vmem:[#allocation7 + $0x130] sm:$0xff]
    %v3532 = vld [vmem:[#allocation7 + $0x138] sm:$0xff]
    %v3533 = vld [vmem:[#allocation7 + $0x140] sm:$0xff]
    %v3534 = vld [vmem:[#allocation7 + $0x148] sm:$0xff]
    %v3535 = vld [vmem:[#allocation7 + $0x150] sm:$0xff]
    %v3536 = vld [vmem:[#allocation7 + $0x158] sm:$0xff]
    %v3537 = vld [vmem:[#allocation7 + $0x160] sm:$0xff]
    %v3538 = vld [vmem:[#allocation7 + $0x168] sm:$0xff]
    %v3539 = vld [vmem:[#allocation7 + $0x170] sm:$0xff]
    %v3540 = vld [vmem:[#allocation7 + $0x178] sm:$0xff]
    %v3541 = vld [vmem:[#allocation7 + $0x180] sm:$0xff]
    %v3542 = vld [vmem:[#allocation7 + $0x188] sm:$0xff]
    %v3543 = vld [vmem:[#allocation7 + $0x190] sm:$0xff]
    %v3544 = vld [vmem:[#allocation7 + $0x198] sm:$0xff]
    %v3545 = vld [vmem:[#allocation7 + $0x1a0] sm:$0xff]
    %v3546 = vld [vmem:[#allocation7 + $0x1a8] sm:$0xff]
    %v3547 = vld [vmem:[#allocation7 + $0x1b0] sm:$0xff]
    %v3548 = vld [vmem:[#allocation7 + $0x1b8] sm:$0xff]
    %v3549 = vld [vmem:[#allocation7 + $0x1c0] sm:$0xff]
    %v3550 = vld [vmem:[#allocation7 + $0x1c8] sm:$0xff]
    %v3551 = vld [vmem:[#allocation7 + $0x1d0] sm:$0xff]
    %v3552 = vld [vmem:[#allocation7 + $0x1d8] sm:$0xff]
    %v3553 = vld [vmem:[#allocation7 + $0x1e0] sm:$0xff]
    %v3554 = vld [vmem:[#allocation7 + $0x1e8] sm:$0xff]
    %v3555 = vld [vmem:[#allocation7 + $0x1f0] sm:$0xff]
    %v3556 = vld [vmem:[#allocation7 + $0x1f8] sm:$0xff]
    %v3557 = vld [vmem:[#allocation7 + $0x200] sm:$0xff]
    %v3558 = vld [vmem:[#allocation7 + $0x208] sm:$0xff]
    %v3559 = vld [vmem:[#allocation7 + $0x210] sm:$0xff]
    %v3560 = vld [vmem:[#allocation7 + $0x218] sm:$0xff]
    %v3561 = vld [vmem:[#allocation7 + $0x220] sm:$0xff]
    %v3562 = vld [vmem:[#allocation7 + $0x228] sm:$0xff]
    %v3563 = vld [vmem:[#allocation7 + $0x230] sm:$0xff]
    %v3564 = vld [vmem:[#allocation7 + $0x238] sm:$0xff]
    %v3565 = vld [vmem:[#allocation7 + $0x240] sm:$0xff]
    %v3566 = vld [vmem:[#allocation7 + $0x248] sm:$0xff]
    %v3567 = vld [vmem:[#allocation7 + $0x250] sm:$0xff]
    %v3568 = vld [vmem:[#allocation7 + $0x258] sm:$0xff]
    %v3569 = vld [vmem:[#allocation7 + $0x260] sm:$0xff]
    %v3570 = vld [vmem:[#allocation7 + $0x268] sm:$0xff]
    %v3571 = vld [vmem:[#allocation7 + $0x270] sm:$0xff]
    %v3572 = vld [vmem:[#allocation7 + $0x278] sm:$0xff]
    %v3573 = vld [vmem:[#allocation7 + $0x280] sm:$0xff]
    %v3574 = vld [vmem:[#allocation7 + $0x288] sm:$0xff]
    %v3575 = vld [vmem:[#allocation7 + $0x290] sm:$0xff]
    %v3576 = vld [vmem:[#allocation7 + $0x298] sm:$0xff]
    %v3577 = vld [vmem:[#allocation7 + $0x2a0] sm:$0xff]
    %v3578 = vld [vmem:[#allocation7 + $0x2a8] sm:$0xff]
    %v3579 = vld [vmem:[#allocation7 + $0x2b0] sm:$0xff]
    %v3580 = vld [vmem:[#allocation7 + $0x2b8] sm:$0xff]
    %v3581 = vld [vmem:[#allocation7 + $0x2c0] sm:$0xff]
    %v3582 = vld [vmem:[#allocation7 + $0x2c8] sm:$0xff]
    %v3583 = vld [vmem:[#allocation7 + $0x2d0] sm:$0xff]
    %v3584 = vld [vmem:[#allocation7 + $0x2d8] sm:$0xff]
    %v3585 = vld [vmem:[#allocation7 + $0x2e0] sm:$0xff]
    %v3586 = vld [vmem:[#allocation7 + $0x2e8] sm:$0xff]
    %v3587 = vld [vmem:[#allocation7 + $0x2f0] sm:$0xff]
    %v3588 = vld [vmem:[#allocation7 + $0x2f8] sm:$0xff]
    %v3589 = vld [vmem:[#allocation7 + $0x300] sm:$0xff]
    %v3590 = vld [vmem:[#allocation7 + $0x308] sm:$0xff]
    %v3591 = vld [vmem:[#allocation7 + $0x310] sm:$0xff]
    %v3592 = vld [vmem:[#allocation7 + $0x318] sm:$0xff]
    %v3593 = vld [vmem:[#allocation7 + $0x320] sm:$0xff]
    %v3594 = vld [vmem:[#allocation7 + $0x328] sm:$0xff]
    %v3595 = vld [vmem:[#allocation7 + $0x330] sm:$0xff]
    %v3596 = vld [vmem:[#allocation7 + $0x338] sm:$0xff]
    %v3597 = vld [vmem:[#allocation7 + $0x340] sm:$0xff]
    %v3598 = vld [vmem:[#allocation7 + $0x348] sm:$0xff]
    %v3599 = vld [vmem:[#allocation7 + $0x350] sm:$0xff]
    %v3600 = vld [vmem:[#allocation7 + $0x358] sm:$0xff]
    %v3601 = vld [vmem:[#allocation7 + $0x360] sm:$0xff]
    %v3602 = vld [vmem:[#allocation7 + $0x368] sm:$0xff]
    %v3603 = vld [vmem:[#allocation7 + $0x370] sm:$0xff]
    %v3604 = vld [vmem:[#allocation7 + $0x378] sm:$0xff]
    %v3605 = vld [vmem:[#allocation7 + $0x380] sm:$0xff]
    %v3606 = vld [vmem:[#allocation7 + $0x388] sm:$0xff]
    %v3607 = vld [vmem:[#allocation7 + $0x390] sm:$0xff]
    %v3608 = vld [vmem:[#allocation7 + $0x398] sm:$0xff]
    %v3609 = vld [vmem:[#allocation7 + $0x3a0] sm:$0xff]
    %v3610 = vld [vmem:[#allocation7 + $0x3a8] sm:$0xff]
    %v3611 = vld [vmem:[#allocation7 + $0x3b0] sm:$0xff]
    %v3612 = vld [vmem:[#allocation7 + $0x3b8] sm:$0xff]
    %v3613 = vld [vmem:[#allocation7 + $0x3c0] sm:$0xff]
    %v3614 = vld [vmem:[#allocation7 + $0x3c8] sm:$0xff]
    %v3615 = vld [vmem:[#allocation7 + $0x3d0] sm:$0xff]
    %v3616 = vld [vmem:[#allocation7 + $0x3d8] sm:$0xff]
    %v3617 = vld [vmem:[#allocation7 + $0x3e0] sm:$0xff]
    %v3618 = vld [vmem:[#allocation7 + $0x3e8] sm:$0xff]
    %v3619 = vld [vmem:[#allocation7 + $0x3f0] sm:$0xff]
    %v3620 = vld [vmem:[#allocation7 + $0x3f8] sm:$0xff]
    %v3621 = vld [vmem:[%s8] sm:$0xf]
    %v3623 = vlaneseq
    %v3624 = vshrl.u32 %v3623, 7
    %v3625 = vsub.s32 0, %v3624
    %v3626 = vrot.slane %v3621, %v3625
    %v3627 = vlaneseq
    %v3628 = vshrl.u32 %v3627, 7
    %v3629 = vsub.s32 1, %v3628
    %v3630 = vrot.slane %v3621, %v3629
    %v3631 = vlaneseq
    %v3632 = vshrl.u32 %v3631, 7
    %v3633 = vsub.s32 2, %v3632
    %v3634 = vrot.slane %v3621, %v3633
    %v3635 = vlaneseq
    %v3636 = vshrl.u32 %v3635, 7
    %v3637 = vsub.s32 3, %v3636
    %v3638 = vrot.slane %v3621, %v3637
    %v3771 = vunpack.c.l.b16 %v3493
    %v3772 = vunpack.c.h.b16 %v3493
    %v3773 = vunpack.c.l.b16 %v3494
    %v3774 = vunpack.c.h.b16 %v3494
    %v3775 = vunpack.c.l.b16 %v3495
    %v3776 = vunpack.c.h.b16 %v3495
    %v3777 = vunpack.c.l.b16 %v3496
    %v3778 = vunpack.c.h.b16 %v3496
    %v3779 = vunpack.c.l.b16 %v3497
    %v3780 = vunpack.c.h.b16 %v3497
    %v3781 = vunpack.c.l.b16 %v3498
    %v3782 = vunpack.c.h.b16 %v3498
    %v3783 = vunpack.c.l.b16 %v3499
    %v3784 = vunpack.c.h.b16 %v3499
    %v3785 = vunpack.c.l.b16 %v3500
    %v3786 = vunpack.c.h.b16 %v3500
    %v3787 = vunpack.c.l.b16 %v3501
    %v3788 = vunpack.c.h.b16 %v3501
    %v3789 = vunpack.c.l.b16 %v3502
    %v3790 = vunpack.c.h.b16 %v3502
    %v3791 = vunpack.c.l.b16 %v3503
    %v3792 = vunpack.c.h.b16 %v3503
    %v3793 = vunpack.c.l.b16 %v3504
    %v3794 = vunpack.c.h.b16 %v3504
    %v3795 = vunpack.c.l.b16 %v3505
    %v3796 = vunpack.c.h.b16 %v3505
    %v3797 = vunpack.c.l.b16 %v3506
    %v3798 = vunpack.c.h.b16 %v3506
    %v3799 = vunpack.c.l.b16 %v3507
    %v3800 = vunpack.c.h.b16 %v3507
    %v3801 = vunpack.c.l.b16 %v3508
    %v3802 = vunpack.c.h.b16 %v3508
    %v3803 = vunpack.c.l.b16 %v3509
    %v3804 = vunpack.c.h.b16 %v3509
    %v3805 = vunpack.c.l.b16 %v3510
    %v3806 = vunpack.c.h.b16 %v3510
    %v3807 = vunpack.c.l.b16 %v3511
    %v3808 = vunpack.c.h.b16 %v3511
    %v3809 = vunpack.c.l.b16 %v3512
    %v3810 = vunpack.c.h.b16 %v3512
    %v3811 = vunpack.c.l.b16 %v3513
    %v3812 = vunpack.c.h.b16 %v3513
    %v3813 = vunpack.c.l.b16 %v3514
    %v3814 = vunpack.c.h.b16 %v3514
    %v3815 = vunpack.c.l.b16 %v3515
    %v3816 = vunpack.c.h.b16 %v3515
    %v3817 = vunpack.c.l.b16 %v3516
    %v3818 = vunpack.c.h.b16 %v3516
    %v3819 = vunpack.c.l.b16 %v3517
    %v3820 = vunpack.c.h.b16 %v3517
    %v3821 = vunpack.c.l.b16 %v3518
    %v3822 = vunpack.c.h.b16 %v3518
    %v3823 = vunpack.c.l.b16 %v3519
    %v3824 = vunpack.c.h.b16 %v3519
    %v3825 = vunpack.c.l.b16 %v3520
    %v3826 = vunpack.c.h.b16 %v3520
    %v3827 = vunpack.c.l.b16 %v3521
    %v3828 = vunpack.c.h.b16 %v3521
    %v3829 = vunpack.c.l.b16 %v3522
    %v3830 = vunpack.c.h.b16 %v3522
    %v3831 = vunpack.c.l.b16 %v3523
    %v3832 = vunpack.c.h.b16 %v3523
    %v3833 = vunpack.c.l.b16 %v3524
    %v3834 = vunpack.c.h.b16 %v3524
    %v3835 = vunpack.c.l.b16 %v3525
    %v3836 = vunpack.c.h.b16 %v3525
    %v3837 = vunpack.c.l.b16 %v3526
    %v3838 = vunpack.c.h.b16 %v3526
    %v3839 = vunpack.c.l.b16 %v3527
    %v3840 = vunpack.c.h.b16 %v3527
    %v3841 = vunpack.c.l.b16 %v3528
    %v3842 = vunpack.c.h.b16 %v3528
    %v3843 = vunpack.c.l.b16 %v3529
    %v3844 = vunpack.c.h.b16 %v3529
    %v3845 = vunpack.c.l.b16 %v3530
    %v3846 = vunpack.c.h.b16 %v3530
    %v3847 = vunpack.c.l.b16 %v3531
    %v3848 = vunpack.c.h.b16 %v3531
    %v3849 = vunpack.c.l.b16 %v3532
    %v3850 = vunpack.c.h.b16 %v3532
    %v3851 = vunpack.c.l.b16 %v3533
    %v3852 = vunpack.c.h.b16 %v3533
    %v3853 = vunpack.c.l.b16 %v3534
    %v3854 = vunpack.c.h.b16 %v3534
    %v3855 = vunpack.c.l.b16 %v3535
    %v3856 = vunpack.c.h.b16 %v3535
    %v3857 = vunpack.c.l.b16 %v3536
    %v3858 = vunpack.c.h.b16 %v3536
    %v3859 = vunpack.c.l.b16 %v3537
    %v3860 = vunpack.c.h.b16 %v3537
    %v3861 = vunpack.c.l.b16 %v3538
    %v3862 = vunpack.c.h.b16 %v3538
    %v3863 = vunpack.c.l.b16 %v3539
    %v3864 = vunpack.c.h.b16 %v3539
    %v3865 = vunpack.c.l.b16 %v3540
    %v3866 = vunpack.c.h.b16 %v3540
    %v3867 = vunpack.c.l.b16 %v3541
    %v3868 = vunpack.c.h.b16 %v3541
    %v3869 = vunpack.c.l.b16 %v3542
    %v3870 = vunpack.c.h.b16 %v3542
    %v3871 = vunpack.c.l.b16 %v3543
    %v3872 = vunpack.c.h.b16 %v3543
    %v3873 = vunpack.c.l.b16 %v3544
    %v3874 = vunpack.c.h.b16 %v3544
    %v3875 = vunpack.c.l.b16 %v3545
    %v3876 = vunpack.c.h.b16 %v3545
    %v3877 = vunpack.c.l.b16 %v3546
    %v3878 = vunpack.c.h.b16 %v3546
    %v3879 = vunpack.c.l.b16 %v3547
    %v3880 = vunpack.c.h.b16 %v3547
    %v3881 = vunpack.c.l.b16 %v3548
    %v3882 = vunpack.c.h.b16 %v3548
    %v3883 = vunpack.c.l.b16 %v3549
    %v3884 = vunpack.c.h.b16 %v3549
    %v3885 = vunpack.c.l.b16 %v3550
    %v3886 = vunpack.c.h.b16 %v3550
    %v3887 = vunpack.c.l.b16 %v3551
    %v3888 = vunpack.c.h.b16 %v3551
    %v3889 = vunpack.c.l.b16 %v3552
    %v3890 = vunpack.c.h.b16 %v3552
    %v3891 = vunpack.c.l.b16 %v3553
    %v3892 = vunpack.c.h.b16 %v3553
    %v3893 = vunpack.c.l.b16 %v3554
    %v3894 = vunpack.c.h.b16 %v3554
    %v3895 = vunpack.c.l.b16 %v3555
    %v3896 = vunpack.c.h.b16 %v3555
    %v3897 = vunpack.c.l.b16 %v3556
    %v3898 = vunpack.c.h.b16 %v3556
    %v3899 = vunpack.c.l.b16 %v3557
    %v3900 = vunpack.c.h.b16 %v3557
    %v3901 = vunpack.c.l.b16 %v3558
    %v3902 = vunpack.c.h.b16 %v3558
    %v3903 = vunpack.c.l.b16 %v3559
    %v3904 = vunpack.c.h.b16 %v3559
    %v3905 = vunpack.c.l.b16 %v3560
    %v3906 = vunpack.c.h.b16 %v3560
    %v3907 = vunpack.c.l.b16 %v3561
    %v3908 = vunpack.c.h.b16 %v3561
    %v3909 = vunpack.c.l.b16 %v3562
    %v3910 = vunpack.c.h.b16 %v3562
    %v3911 = vunpack.c.l.b16 %v3563
    %v3912 = vunpack.c.h.b16 %v3563
    %v3913 = vunpack.c.l.b16 %v3564
    %v3914 = vunpack.c.h.b16 %v3564
    %v3915 = vunpack.c.l.b16 %v3565
    %v3916 = vunpack.c.h.b16 %v3565
    %v3917 = vunpack.c.l.b16 %v3566
    %v3918 = vunpack.c.h.b16 %v3566
    %v3919 = vunpack.c.l.b16 %v3567
    %v3920 = vunpack.c.h.b16 %v3567
    %v3921 = vunpack.c.l.b16 %v3568
    %v3922 = vunpack.c.h.b16 %v3568
    %v3923 = vunpack.c.l.b16 %v3569
    %v3924 = vunpack.c.h.b16 %v3569
    %v3925 = vunpack.c.l.b16 %v3570
    %v3926 = vunpack.c.h.b16 %v3570
    %v3927 = vunpack.c.l.b16 %v3571
    %v3928 = vunpack.c.h.b16 %v3571
    %v3929 = vunpack.c.l.b16 %v3572
    %v3930 = vunpack.c.h.b16 %v3572
    %v3931 = vunpack.c.l.b16 %v3573
    %v3932 = vunpack.c.h.b16 %v3573
    %v3933 = vunpack.c.l.b16 %v3574
    %v3934 = vunpack.c.h.b16 %v3574
    %v3935 = vunpack.c.l.b16 %v3575
    %v3936 = vunpack.c.h.b16 %v3575
    %v3937 = vunpack.c.l.b16 %v3576
    %v3938 = vunpack.c.h.b16 %v3576
    %v3939 = vunpack.c.l.b16 %v3577
    %v3940 = vunpack.c.h.b16 %v3577
    %v3941 = vunpack.c.l.b16 %v3578
    %v3942 = vunpack.c.h.b16 %v3578
    %v3943 = vunpack.c.l.b16 %v3579
    %v3944 = vunpack.c.h.b16 %v3579
    %v3945 = vunpack.c.l.b16 %v3580
    %v3946 = vunpack.c.h.b16 %v3580
    %v3947 = vunpack.c.l.b16 %v3581
    %v3948 = vunpack.c.h.b16 %v3581
    %v3949 = vunpack.c.l.b16 %v3582
    %v3950 = vunpack.c.h.b16 %v3582
    %v3951 = vunpack.c.l.b16 %v3583
    %v3952 = vunpack.c.h.b16 %v3583
    %v3953 = vunpack.c.l.b16 %v3584
    %v3954 = vunpack.c.h.b16 %v3584
    %v3955 = vunpack.c.l.b16 %v3585
    %v3956 = vunpack.c.h.b16 %v3585
    %v3957 = vunpack.c.l.b16 %v3586
    %v3958 = vunpack.c.h.b16 %v3586
    %v3959 = vunpack.c.l.b16 %v3587
    %v3960 = vunpack.c.h.b16 %v3587
    %v3961 = vunpack.c.l.b16 %v3588
    %v3962 = vunpack.c.h.b16 %v3588
    %v3963 = vunpack.c.l.b16 %v3589
    %v3964 = vunpack.c.h.b16 %v3589
    %v3965 = vunpack.c.l.b16 %v3590
    %v3966 = vunpack.c.h.b16 %v3590
    %v3967 = vunpack.c.l.b16 %v3591
    %v3968 = vunpack.c.h.b16 %v3591
    %v3969 = vunpack.c.l.b16 %v3592
    %v3970 = vunpack.c.h.b16 %v3592
    %v3971 = vunpack.c.l.b16 %v3593
    %v3972 = vunpack.c.h.b16 %v3593
    %v3973 = vunpack.c.l.b16 %v3594
    %v3974 = vunpack.c.h.b16 %v3594
    %v3975 = vunpack.c.l.b16 %v3595
    %v3976 = vunpack.c.h.b16 %v3595
    %v3977 = vunpack.c.l.b16 %v3596
    %v3978 = vunpack.c.h.b16 %v3596
    %v3979 = vunpack.c.l.b16 %v3597
    %v3980 = vunpack.c.h.b16 %v3597
    %v3981 = vunpack.c.l.b16 %v3598
    %v3982 = vunpack.c.h.b16 %v3598
    %v3983 = vunpack.c.l.b16 %v3599
    %v3984 = vunpack.c.h.b16 %v3599
    %v3985 = vunpack.c.l.b16 %v3600
    %v3986 = vunpack.c.h.b16 %v3600
    %v3987 = vunpack.c.l.b16 %v3601
    %v3988 = vunpack.c.h.b16 %v3601
    %v3989 = vunpack.c.l.b16 %v3602
    %v3990 = vunpack.c.h.b16 %v3602
    %v3991 = vunpack.c.l.b16 %v3603
    %v3992 = vunpack.c.h.b16 %v3603
    %v3993 = vunpack.c.l.b16 %v3604
    %v3994 = vunpack.c.h.b16 %v3604
    %v3995 = vunpack.c.l.b16 %v3605
    %v3996 = vunpack.c.h.b16 %v3605
    %v3997 = vunpack.c.l.b16 %v3606
    %v3998 = vunpack.c.h.b16 %v3606
    %v3999 = vunpack.c.l.b16 %v3607
    %v4000 = vunpack.c.h.b16 %v3607
    %v4001 = vunpack.c.l.b16 %v3608
    %v4002 = vunpack.c.h.b16 %v3608
    %v4003 = vunpack.c.l.b16 %v3609
    %v4004 = vunpack.c.h.b16 %v3609
    %v4005 = vunpack.c.l.b16 %v3610
    %v4006 = vunpack.c.h.b16 %v3610
    %v4007 = vunpack.c.l.b16 %v3611
    %v4008 = vunpack.c.h.b16 %v3611
    %v4009 = vunpack.c.l.b16 %v3612
    %v4010 = vunpack.c.h.b16 %v3612
    %v4011 = vunpack.c.l.b16 %v3613
    %v4012 = vunpack.c.h.b16 %v3613
    %v4013 = vunpack.c.l.b16 %v3614
    %v4014 = vunpack.c.h.b16 %v3614
    %v4015 = vunpack.c.l.b16 %v3615
    %v4016 = vunpack.c.h.b16 %v3615
    %v4017 = vunpack.c.l.b16 %v3616
    %v4018 = vunpack.c.h.b16 %v3616
    %v4019 = vunpack.c.l.b16 %v3617
    %v4020 = vunpack.c.h.b16 %v3617
    %v4021 = vunpack.c.l.b16 %v3618
    %v4022 = vunpack.c.h.b16 %v3618
    %v4023 = vunpack.c.l.b16 %v3619
    %v4024 = vunpack.c.h.b16 %v3619
    %v4025 = vunpack.c.l.b16 %v3620
    %v4026 = vunpack.c.h.b16 %v3620
    %v4027 = vpack.c.b16 %v3775, %v3771
    %v4028 = vpack.c.b16 %v3776, %v3772
    %v4029 = vpack.c.b16 %v3777, %v3773
    %v4030 = vpack.c.b16 %v3778, %v3774
    %v4031 = vpack.c.b16 %v3783, %v3779
    %v4032 = vpack.c.b16 %v3784, %v3780
    %v4033 = vpack.c.b16 %v3785, %v3781
    %v4034 = vpack.c.b16 %v3786, %v3782
    %v4035 = vpack.c.b16 %v3791, %v3787
    %v4036 = vpack.c.b16 %v3792, %v3788
    %v4037 = vpack.c.b16 %v3793, %v3789
    %v4038 = vpack.c.b16 %v3794, %v3790
    %v4039 = vpack.c.b16 %v3799, %v3795
    %v4040 = vpack.c.b16 %v3800, %v3796
    %v4041 = vpack.c.b16 %v3801, %v3797
    %v4042 = vpack.c.b16 %v3802, %v3798
    %v4043 = vpack.c.b16 %v3807, %v3803
    %v4044 = vpack.c.b16 %v3808, %v3804
    %v4045 = vpack.c.b16 %v3809, %v3805
    %v4046 = vpack.c.b16 %v3810, %v3806
    %v4047 = vpack.c.b16 %v3815, %v3811
    %v4048 = vpack.c.b16 %v3816, %v3812
    %v4049 = vpack.c.b16 %v3817, %v3813
    %v4050 = vpack.c.b16 %v3818, %v3814
    %v4051 = vpack.c.b16 %v3823, %v3819
    %v4052 = vpack.c.b16 %v3824, %v3820
    %v4053 = vpack.c.b16 %v3825, %v3821
    %v4054 = vpack.c.b16 %v3826, %v3822
    %v4055 = vpack.c.b16 %v3831, %v3827
    %v4056 = vpack.c.b16 %v3832, %v3828
    %v4057 = vpack.c.b16 %v3833, %v3829
    %v4058 = vpack.c.b16 %v3834, %v3830
    %v4059 = vpack.c.b16 %v3839, %v3835
    %v4060 = vpack.c.b16 %v3840, %v3836
    %v4061 = vpack.c.b16 %v3841, %v3837
    %v4062 = vpack.c.b16 %v3842, %v3838
    %v4063 = vpack.c.b16 %v3847, %v3843
    %v4064 = vpack.c.b16 %v3848, %v3844
    %v4065 = vpack.c.b16 %v3849, %v3845
    %v4066 = vpack.c.b16 %v3850, %v3846
    %v4067 = vpack.c.b16 %v3855, %v3851
    %v4068 = vpack.c.b16 %v3856, %v3852
    %v4069 = vpack.c.b16 %v3857, %v3853
    %v4070 = vpack.c.b16 %v3858, %v3854
    %v4071 = vpack.c.b16 %v3863, %v3859
    %v4072 = vpack.c.b16 %v3864, %v3860
    %v4073 = vpack.c.b16 %v3865, %v3861
    %v4074 = vpack.c.b16 %v3866, %v3862
    %v4075 = vpack.c.b16 %v3871, %v3867
    %v4076 = vpack.c.b16 %v3872, %v3868
    %v4077 = vpack.c.b16 %v3873, %v3869
    %v4078 = vpack.c.b16 %v3874, %v3870
    %v4079 = vpack.c.b16 %v3879, %v3875
    %v4080 = vpack.c.b16 %v3880, %v3876
    %v4081 = vpack.c.b16 %v3881, %v3877
    %v4082 = vpack.c.b16 %v3882, %v3878
    %v4083 = vpack.c.b16 %v3887, %v3883
    %v4084 = vpack.c.b16 %v3888, %v3884
    %v4085 = vpack.c.b16 %v3889, %v3885
    %v4086 = vpack.c.b16 %v3890, %v3886
    %v4087 = vpack.c.b16 %v3895, %v3891
    %v4088 = vpack.c.b16 %v3896, %v3892
    %v4089 = vpack.c.b16 %v3897, %v3893
    %v4090 = vpack.c.b16 %v3898, %v3894
    %v4091 = vpack.c.b16 %v3903, %v3899
    %v4092 = vpack.c.b16 %v3904, %v3900
    %v4093 = vpack.c.b16 %v3905, %v3901
    %v4094 = vpack.c.b16 %v3906, %v3902
    %v4095 = vpack.c.b16 %v3911, %v3907
    %v4096 = vpack.c.b16 %v3912, %v3908
    %v4097 = vpack.c.b16 %v3913, %v3909
    %v4098 = vpack.c.b16 %v3914, %v3910
    %v4099 = vpack.c.b16 %v3919, %v3915
    %v4100 = vpack.c.b16 %v3920, %v3916
    %v4101 = vpack.c.b16 %v3921, %v3917
    %v4102 = vpack.c.b16 %v3922, %v3918
    %v4103 = vpack.c.b16 %v3927, %v3923
    %v4104 = vpack.c.b16 %v3928, %v3924
    %v4105 = vpack.c.b16 %v3929, %v3925
    %v4106 = vpack.c.b16 %v3930, %v3926
    %v4107 = vpack.c.b16 %v3935, %v3931
    %v4108 = vpack.c.b16 %v3936, %v3932
    %v4109 = vpack.c.b16 %v3937, %v3933
    %v4110 = vpack.c.b16 %v3938, %v3934
    %v4111 = vpack.c.b16 %v3943, %v3939
    %v4112 = vpack.c.b16 %v3944, %v3940
    %v4113 = vpack.c.b16 %v3945, %v3941
    %v4114 = vpack.c.b16 %v3946, %v3942
    %v4115 = vpack.c.b16 %v3951, %v3947
    %v4116 = vpack.c.b16 %v3952, %v3948
    %v4117 = vpack.c.b16 %v3953, %v3949
    %v4118 = vpack.c.b16 %v3954, %v3950
    %v4119 = vpack.c.b16 %v3959, %v3955
    %v4120 = vpack.c.b16 %v3960, %v3956
    %v4121 = vpack.c.b16 %v3961, %v3957
    %v4122 = vpack.c.b16 %v3962, %v3958
    %v4123 = vpack.c.b16 %v3967, %v3963
    %v4124 = vpack.c.b16 %v3968, %v3964
    %v4125 = vpack.c.b16 %v3969, %v3965
    %v4126 = vpack.c.b16 %v3970, %v3966
    %v4127 = vpack.c.b16 %v3975, %v3971
    %v4128 = vpack.c.b16 %v3976, %v3972
    %v4129 = vpack.c.b16 %v3977, %v3973
    %v4130 = vpack.c.b16 %v3978, %v3974
    %v4131 = vpack.c.b16 %v3983, %v3979
    %v4132 = vpack.c.b16 %v3984, %v3980
    %v4133 = vpack.c.b16 %v3985, %v3981
    %v4134 = vpack.c.b16 %v3986, %v3982
    %v4135 = vpack.c.b16 %v3991, %v3987
    %v4136 = vpack.c.b16 %v3992, %v3988
    %v4137 = vpack.c.b16 %v3993, %v3989
    %v4138 = vpack.c.b16 %v3994, %v3990
    %v4139 = vpack.c.b16 %v3999, %v3995
    %v4140 = vpack.c.b16 %v4000, %v3996
    %v4141 = vpack.c.b16 %v4001, %v3997
    %v4142 = vpack.c.b16 %v4002, %v3998
    %v4143 = vpack.c.b16 %v4007, %v4003
    %v4144 = vpack.c.b16 %v4008, %v4004
    %v4145 = vpack.c.b16 %v4009, %v4005
    %v4146 = vpack.c.b16 %v4010, %v4006
    %v4147 = vpack.c.b16 %v4015, %v4011
    %v4148 = vpack.c.b16 %v4016, %v4012
    %v4149 = vpack.c.b16 %v4017, %v4013
    %v4150 = vpack.c.b16 %v4018, %v4014
    %v4151 = vpack.c.b16 %v4023, %v4019
    %v4152 = vpack.c.b16 %v4024, %v4020
    %v4153 = vpack.c.b16 %v4025, %v4021
    %v4154 = vpack.c.b16 %v4026, %v4022
    %4283 = vmatprep.subr.bf16.mxu0 %v4028
    %4284 = vmatpush1.bf16.msra.mxu0 %v4027
    %4285 = vmatprep.subr.bf16.mxu0 %v4032
    %4286 = vmatpush1.bf16.msra.mxu0 %v4031
    %4287 = vmatprep.subr.bf16.mxu0 %v4036
    %4288 = vmatpush1.bf16.msra.mxu0 %v4035
    %4289 = vmatprep.subr.bf16.mxu0 %v4040
    %4290 = vmatpush1.bf16.msra.mxu0 %v4039
    %4291 = vmatprep.subr.bf16.mxu0 %v4044
    %4292 = vmatpush1.bf16.msra.mxu0 %v4043
    %4293 = vmatprep.subr.bf16.mxu0 %v4048
    %4294 = vmatpush1.bf16.msra.mxu0 %v4047
    %4295 = vmatprep.subr.bf16.mxu0 %v4052
    %4296 = vmatpush1.bf16.msra.mxu0 %v4051
    %4297 = vmatprep.subr.bf16.mxu0 %v4056
    %4298 = vmatpush1.bf16.msra.mxu0 %v4055
    %4299 = vmatprep.subr.bf16.mxu0 %v4060
    %4300 = vmatpush1.bf16.msra.mxu0 %v4059
    %4301 = vmatprep.subr.bf16.mxu0 %v4064
    %4302 = vmatpush1.bf16.msra.mxu0 %v4063
    %4303 = vmatprep.subr.bf16.mxu0 %v4068
    %4304 = vmatpush1.bf16.msra.mxu0 %v4067
    %4305 = vmatprep.subr.bf16.mxu0 %v4072
    %4306 = vmatpush1.bf16.msra.mxu0 %v4071
    %4307 = vmatprep.subr.bf16.mxu0 %v4076
    %4308 = vmatpush1.bf16.msra.mxu0 %v4075
    %4309 = vmatprep.subr.bf16.mxu0 %v4080
    %4310 = vmatpush1.bf16.msra.mxu0 %v4079
    %4311 = vmatprep.subr.bf16.mxu0 %v4084
    %4312 = vmatpush1.bf16.msra.mxu0 %v4083
    %4313 = vmatprep.subr.bf16.mxu0 %v4088
    %4314 = vmatpush1.bf16.msra.mxu0 %v4087
    %4315 = vmatprep.mubr.bf16.mxu0 %v3486
    %4316 = vmatmul.mubr.bf16.gmra.mrb[0].mxu0 %v3485
    %v4317 = vpop.f32.mrb[0].mxu0
    %v4318 = vadd.f32 %v3626, %v4317
    %v4319 = vpop.f32.mrb[0].mxu0
    %v4320 = vadd.f32 %v3630, %v4319
    %v4321 = vpop.f32.mrb[0].mxu0
    %v4322 = vadd.f32 %v3626, %v4321
    %v4323 = vpop.f32.mrb[0].mxu0
    %v4324 = vadd.f32 %v3630, %v4323
    %4325 = vdwg.mxu0
    %4326 = vmatprep.subr.bf16.mxu0 %v4092
    %4327 = vmatpush1.bf16.msra.mxu0 %v4091
    %4328 = vmatprep.subr.bf16.mxu0 %v4096
    %4329 = vmatpush1.bf16.msra.mxu0 %v4095
    %4330 = vmatprep.subr.bf16.mxu0 %v4100
    %4331 = vmatpush1.bf16.msra.mxu0 %v4099
    %4332 = vmatprep.subr.bf16.mxu0 %v4104
    %4333 = vmatpush1.bf16.msra.mxu0 %v4103
    %4334 = vmatprep.subr.bf16.mxu0 %v4108
    %4335 = vmatpush1.bf16.msra.mxu0 %v4107
    %4336 = vmatprep.subr.bf16.mxu0 %v4112
    %4337 = vmatpush1.bf16.msra.mxu0 %v4111
    %4338 = vmatprep.subr.bf16.mxu0 %v4116
    %4339 = vmatpush1.bf16.msra.mxu0 %v4115
    %4340 = vmatprep.subr.bf16.mxu0 %v4120
    %4341 = vmatpush1.bf16.msra.mxu0 %v4119
    %4342 = vmatprep.subr.bf16.mxu0 %v4124
    %4343 = vmatpush1.bf16.msra.mxu0 %v4123
    %4344 = vmatprep.subr.bf16.mxu0 %v4128
    %4345 = vmatpush1.bf16.msra.mxu0 %v4127
    %4346 = vmatprep.subr.bf16.mxu0 %v4132
    %4347 = vmatpush1.bf16.msra.mxu0 %v4131
    %4348 = vmatprep.subr.bf16.mxu0 %v4136
    %4349 = vmatpush1.bf16.msra.mxu0 %v4135
    %4350 = vmatprep.subr.bf16.mxu0 %v4140
    %4351 = vmatpush1.bf16.msra.mxu0 %v4139
    %4352 = vmatprep.subr.bf16.mxu0 %v4144
    %4353 = vmatpush1.bf16.msra.mxu0 %v4143
    %4354 = vmatprep.subr.bf16.mxu0 %v4148
    %4355 = vmatpush1.bf16.msra.mxu0 %v4147
    %4356 = vmatprep.subr.bf16.mxu0 %v4152
    %4357 = vmatpush1.bf16.msra.mxu0 %v4151
    %4358 = vmatprep.mubr.bf16.mxu0 %v3488
    %4359 = vmatmul.mubr.bf16.gmra.mrb[0].mxu0 %v3487
    %v4360 = vpop.f32.mrb[0].mxu0
    %v4361 = vadd.f32 %v4318, %v4360
    %v4362 = vpop.f32.mrb[0].mxu0
    %v4363 = vadd.f32 %v4320, %v4362
    %v4364 = vpop.f32.mrb[0].mxu0
    %v4365 = vadd.f32 %v4322, %v4364
    %v4366 = vpop.f32.mrb[0].mxu0
    %v4367 = vadd.f32 %v4324, %v4366
    %4368 = vdwg.mxu0
    %4369 = vmatprep.subr.bf16.mxu0 %v4030
    %4370 = vmatpush1.bf16.msra.mxu0 %v4029
    %4371 = vmatprep.subr.bf16.mxu0 %v4034
    %4372 = vmatpush1.bf16.msra.mxu0 %v4033
    %4373 = vmatprep.subr.bf16.mxu0 %v4038
    %4374 = vmatpush1.bf16.msra.mxu0 %v4037
    %4375 = vmatprep.subr.bf16.mxu0 %v4042
    %4376 = vmatpush1.bf16.msra.mxu0 %v4041
    %4377 = vmatprep.subr.bf16.mxu0 %v4046
    %4378 = vmatpush1.bf16.msra.mxu0 %v4045
    %4379 = vmatprep.subr.bf16.mxu0 %v4050
    %4380 = vmatpush1.bf16.msra.mxu0 %v4049
    %4381 = vmatprep.subr.bf16.mxu0 %v4054
    %4382 = vmatpush1.bf16.msra.mxu0 %v4053
    %4383 = vmatprep.subr.bf16.mxu0 %v4058
    %4384 = vmatpush1.bf16.msra.mxu0 %v4057
    %4385 = vmatprep.subr.bf16.mxu0 %v4062
    %4386 = vmatpush1.bf16.msra.mxu0 %v4061
    %4387 = vmatprep.subr.bf16.mxu0 %v4066
    %4388 = vmatpush1.bf16.msra.mxu0 %v4065
    %4389 = vmatprep.subr.bf16.mxu0 %v4070
    %4390 = vmatpush1.bf16.msra.mxu0 %v4069
    %4391 = vmatprep.subr.bf16.mxu0 %v4074
    %4392 = vmatpush1.bf16.msra.mxu0 %v4073
    %4393 = vmatprep.subr.bf16.mxu0 %v4078
    %4394 = vmatpush1.bf16.msra.mxu0 %v4077
    %4395 = vmatprep.subr.bf16.mxu0 %v4082
    %4396 = vmatpush1.bf16.msra.mxu0 %v4081
    %4397 = vmatprep.subr.bf16.mxu0 %v4086
    %4398 = vmatpush1.bf16.msra.mxu0 %v4085
    %4399 = vmatprep.subr.bf16.mxu0 %v4090
    %4400 = vmatpush1.bf16.msra.mxu0 %v4089
    %4401 = vmatprep.mubr.bf16.mxu0 %v3486
    %4402 = vmatmul.mubr.bf16.gmra.mrb[0].mxu0 %v3485
    %v4403 = vpop.f32.mrb[0].mxu0
    %v4404 = vadd.f32 %v3634, %v4403
    %v4405 = vpop.f32.mrb[0].mxu0
    %v4406 = vadd.f32 %v3638, %v4405
    %v4407 = vpop.f32.mrb[0].mxu0
    %v4408 = vadd.f32 %v3634, %v4407
    %v4409 = vpop.f32.mrb[0].mxu0
    %v4410 = vadd.f32 %v3638, %v4409
    %4411 = vdwg.mxu0
    %4412 = vmatprep.subr.bf16.mxu0 %v4094
    %4413 = vmatpush1.bf16.msra.mxu0 %v4093
    %4414 = vmatprep.subr.bf16.mxu0 %v4098
    %4415 = vmatpush1.bf16.msra.mxu0 %v4097
    %4416 = vmatprep.subr.bf16.mxu0 %v4102
    %4417 = vmatpush1.bf16.msra.mxu0 %v4101
    %4418 = vmatprep.subr.bf16.mxu0 %v4106
    %4419 = vmatpush1.bf16.msra.mxu0 %v4105
    %4420 = vmatprep.subr.bf16.mxu0 %v4110
    %4421 = vmatpush1.bf16.msra.mxu0 %v4109
    %4422 = vmatprep.subr.bf16.mxu0 %v4114
    %4423 = vmatpush1.bf16.msra.mxu0 %v4113
    %4424 = vmatprep.subr.bf16.mxu0 %v4118
    %4425 = vmatpush1.bf16.msra.mxu0 %v4117
    %4426 = vmatprep.subr.bf16.mxu0 %v4122
    %4427 = vmatpush1.bf16.msra.mxu0 %v4121
    %4428 = vmatprep.subr.bf16.mxu0 %v4126
    %4429 = vmatpush1.bf16.msra.mxu0 %v4125
    %4430 = vmatprep.subr.bf16.mxu0 %v4130
    %4431 = vmatpush1.bf16.msra.mxu0 %v4129
    %4432 = vmatprep.subr.bf16.mxu0 %v4134
    %4433 = vmatpush1.bf16.msra.mxu0 %v4133
    %4434 = vmatprep.subr.bf16.mxu0 %v4138
    %4435 = vmatpush1.bf16.msra.mxu0 %v4137
    %4436 = vmatprep.subr.bf16.mxu0 %v4142
    %4437 = vmatpush1.bf16.msra.mxu0 %v4141
    %4438 = vmatprep.subr.bf16.mxu0 %v4146
    %4439 = vmatpush1.bf16.msra.mxu0 %v4145
    %4440 = vmatprep.subr.bf16.mxu0 %v4150
    %4441 = vmatpush1.bf16.msra.mxu0 %v4149
    %4442 = vmatprep.subr.bf16.mxu0 %v4154
    %4443 = vmatpush1.bf16.msra.mxu0 %v4153
    %4444 = vmatprep.mubr.bf16.mxu0 %v3488
    %4445 = vmatmul.mubr.bf16.gmra.mrb[0].mxu0 %v3487
    %v4446 = vpop.f32.mrb[0].mxu0
    %v4447 = vadd.f32 %v4404, %v4446
    %v4448 = vpop.f32.mrb[0].mxu0
    %v4449 = vadd.f32 %v4406, %v4448
    %v4450 = vpop.f32.mrb[0].mxu0
    %v4451 = vadd.f32 %v4408, %v4450
    %v4452 = vpop.f32.mrb[0].mxu0
    %v4453 = vadd.f32 %v4410, %v4452
    %4454 = vdwg.mxu0
    %v4455 = vmax.f32 %v4361, 0.0
    %v4456 = vmax.f32 %v4363, 0.0
    %v4457 = vmax.f32 %v4447, 0.0
    %v4458 = vmax.f32 %v4449, 0.0
    %v4459 = vmax.f32 %v4365, 0.0
    %v4460 = vmax.f32 %v4367, 0.0
    %v4461 = vmax.f32 %v4451, 0.0
    %v4462 = vmax.f32 %v4453, 0.0
    %v4463 = vpack.c.bf16 %v4459, %v4455
    %v4464 = vpack.c.bf16 %v4460, %v4456
    %v4465 = vpack.c.bf16 %v4461, %v4457
    %v4466 = vpack.c.bf16 %v4462, %v4458
    %v4471 = vunpack.c.l.b16 %v4463
    %v4472 = vunpack.c.l.b16 %v4464
    %v4473 = vunpack.c.l.b16 %v4465
    %v4474 = vunpack.c.l.b16 %v4466
    %v4475 = vunpack.c.h.b16 %v4463
    %v4476 = vunpack.c.h.b16 %v4464
    %v4477 = vunpack.c.h.b16 %v4465
    %v4478 = vunpack.c.h.b16 %v4466
    %v4479 = vpack.c.b16 %v4472, %v4471
    %v4480 = vpack.c.b16 %v4474, %v4473
    %v4481 = vpack.c.b16 %v4476, %v4475
    %v4482 = vpack.c.b16 %v4478, %v4477
    %4487 = vst [vmem:[%s11 + $0x10] sm:$0xff] %v4479
    %4488 = vst [vmem:[%s11 + $0x18] sm:$0xff] %v4480
    %4489 = vst [vmem:[%s11 + $0x40] sm:$0xff] %v4481
    %4490 = vst [vmem:[%s11 + $0x48] sm:$0xff] %v4482
    %v4491 = vld [vmem:[#allocation9] sm:$0xff]
    %v4492 = vld [vmem:[#allocation9 + $0x8] sm:$0xff]
    %v4493 = vld [vmem:[#allocation9 + $0x10] sm:$0xff]
    %v4494 = vld [vmem:[#allocation9 + $0x18] sm:$0xff]
    %v4495 = vld [vmem:[#allocation9 + $0x20] sm:$0xff]
    %v4496 = vld [vmem:[#allocation9 + $0x28] sm:$0xff]
    %v4497 = vld [vmem:[#allocation9 + $0x30] sm:$0xff]
    %v4498 = vld [vmem:[#allocation9 + $0x38] sm:$0xff]
    %v4499 = vld [vmem:[#allocation9 + $0x40] sm:$0xff]
    %v4500 = vld [vmem:[#allocation9 + $0x48] sm:$0xff]
    %v4501 = vld [vmem:[#allocation9 + $0x50] sm:$0xff]
    %v4502 = vld [vmem:[#allocation9 + $0x58] sm:$0xff]
    %v4503 = vld [vmem:[#allocation9 + $0x60] sm:$0xff]
    %v4504 = vld [vmem:[#allocation9 + $0x68] sm:$0xff]
    %v4505 = vld [vmem:[#allocation9 + $0x70] sm:$0xff]
    %v4506 = vld [vmem:[#allocation9 + $0x78] sm:$0xff]
    %v4507 = vld [vmem:[#allocation9 + $0x80] sm:$0xff]
    %v4508 = vld [vmem:[#allocation9 + $0x88] sm:$0xff]
    %v4509 = vld [vmem:[#allocation9 + $0x90] sm:$0xff]
    %v4510 = vld [vmem:[#allocation9 + $0x98] sm:$0xff]
    %v4511 = vld [vmem:[#allocation9 + $0xa0] sm:$0xff]
    %v4512 = vld [vmem:[#allocation9 + $0xa8] sm:$0xff]
    %v4513 = vld [vmem:[#allocation9 + $0xb0] sm:$0xff]
    %v4514 = vld [vmem:[#allocation9 + $0xb8] sm:$0xff]
    %v4515 = vld [vmem:[#allocation9 + $0xc0] sm:$0xff]
    %v4516 = vld [vmem:[#allocation9 + $0xc8] sm:$0xff]
    %v4517 = vld [vmem:[#allocation9 + $0xd0] sm:$0xff]
    %v4518 = vld [vmem:[#allocation9 + $0xd8] sm:$0xff]
    %v4519 = vld [vmem:[#allocation9 + $0xe0] sm:$0xff]
    %v4520 = vld [vmem:[#allocation9 + $0xe8] sm:$0xff]
    %v4521 = vld [vmem:[#allocation9 + $0xf0] sm:$0xff]
    %v4522 = vld [vmem:[#allocation9 + $0xf8] sm:$0xff]
    %v4523 = vld [vmem:[#allocation9 + $0x100] sm:$0xff]
    %v4524 = vld [vmem:[#allocation9 + $0x108] sm:$0xff]
    %v4525 = vld [vmem:[#allocation9 + $0x110] sm:$0xff]
    %v4526 = vld [vmem:[#allocation9 + $0x118] sm:$0xff]
    %v4527 = vld [vmem:[#allocation9 + $0x120] sm:$0xff]
    %v4528 = vld [vmem:[#allocation9 + $0x128] sm:$0xff]
    %v4529 = vld [vmem:[#allocation9 + $0x130] sm:$0xff]
    %v4530 = vld [vmem:[#allocation9 + $0x138] sm:$0xff]
    %v4531 = vld [vmem:[#allocation9 + $0x140] sm:$0xff]
    %v4532 = vld [vmem:[#allocation9 + $0x148] sm:$0xff]
    %v4533 = vld [vmem:[#allocation9 + $0x150] sm:$0xff]
    %v4534 = vld [vmem:[#allocation9 + $0x158] sm:$0xff]
    %v4535 = vld [vmem:[#allocation9 + $0x160] sm:$0xff]
    %v4536 = vld [vmem:[#allocation9 + $0x168] sm:$0xff]
    %v4537 = vld [vmem:[#allocation9 + $0x170] sm:$0xff]
    %v4538 = vld [vmem:[#allocation9 + $0x178] sm:$0xff]
    %v4539 = vld [vmem:[#allocation9 + $0x180] sm:$0xff]
    %v4540 = vld [vmem:[#allocation9 + $0x188] sm:$0xff]
    %v4541 = vld [vmem:[#allocation9 + $0x190] sm:$0xff]
    %v4542 = vld [vmem:[#allocation9 + $0x198] sm:$0xff]
    %v4543 = vld [vmem:[#allocation9 + $0x1a0] sm:$0xff]
    %v4544 = vld [vmem:[#allocation9 + $0x1a8] sm:$0xff]
    %v4545 = vld [vmem:[#allocation9 + $0x1b0] sm:$0xff]
    %v4546 = vld [vmem:[#allocation9 + $0x1b8] sm:$0xff]
    %v4547 = vld [vmem:[#allocation9 + $0x1c0] sm:$0xff]
    %v4548 = vld [vmem:[#allocation9 + $0x1c8] sm:$0xff]
    %v4549 = vld [vmem:[#allocation9 + $0x1d0] sm:$0xff]
    %v4550 = vld [vmem:[#allocation9 + $0x1d8] sm:$0xff]
    %v4551 = vld [vmem:[#allocation9 + $0x1e0] sm:$0xff]
    %v4552 = vld [vmem:[#allocation9 + $0x1e8] sm:$0xff]
    %v4553 = vld [vmem:[#allocation9 + $0x1f0] sm:$0xff]
    %v4554 = vld [vmem:[#allocation9 + $0x1f8] sm:$0xff]
    %v4555 = vld [vmem:[#allocation9 + $0x200] sm:$0xff]
    %v4556 = vld [vmem:[#allocation9 + $0x208] sm:$0xff]
    %v4557 = vld [vmem:[#allocation9 + $0x210] sm:$0xff]
    %v4558 = vld [vmem:[#allocation9 + $0x218] sm:$0xff]
    %v4559 = vld [vmem:[#allocation9 + $0x220] sm:$0xff]
    %v4560 = vld [vmem:[#allocation9 + $0x228] sm:$0xff]
    %v4561 = vld [vmem:[#allocation9 + $0x230] sm:$0xff]
    %v4562 = vld [vmem:[#allocation9 + $0x238] sm:$0xff]
    %v4563 = vld [vmem:[#allocation9 + $0x240] sm:$0xff]
    %v4564 = vld [vmem:[#allocation9 + $0x248] sm:$0xff]
    %v4565 = vld [vmem:[#allocation9 + $0x250] sm:$0xff]
    %v4566 = vld [vmem:[#allocation9 + $0x258] sm:$0xff]
    %v4567 = vld [vmem:[#allocation9 + $0x260] sm:$0xff]
    %v4568 = vld [vmem:[#allocation9 + $0x268] sm:$0xff]
    %v4569 = vld [vmem:[#allocation9 + $0x270] sm:$0xff]
    %v4570 = vld [vmem:[#allocation9 + $0x278] sm:$0xff]
    %v4571 = vld [vmem:[#allocation9 + $0x280] sm:$0xff]
    %v4572 = vld [vmem:[#allocation9 + $0x288] sm:$0xff]
    %v4573 = vld [vmem:[#allocation9 + $0x290] sm:$0xff]
    %v4574 = vld [vmem:[#allocation9 + $0x298] sm:$0xff]
    %v4575 = vld [vmem:[#allocation9 + $0x2a0] sm:$0xff]
    %v4576 = vld [vmem:[#allocation9 + $0x2a8] sm:$0xff]
    %v4577 = vld [vmem:[#allocation9 + $0x2b0] sm:$0xff]
    %v4578 = vld [vmem:[#allocation9 + $0x2b8] sm:$0xff]
    %v4579 = vld [vmem:[#allocation9 + $0x2c0] sm:$0xff]
    %v4580 = vld [vmem:[#allocation9 + $0x2c8] sm:$0xff]
    %v4581 = vld [vmem:[#allocation9 + $0x2d0] sm:$0xff]
    %v4582 = vld [vmem:[#allocation9 + $0x2d8] sm:$0xff]
    %v4583 = vld [vmem:[#allocation9 + $0x2e0] sm:$0xff]
    %v4584 = vld [vmem:[#allocation9 + $0x2e8] sm:$0xff]
    %v4585 = vld [vmem:[#allocation9 + $0x2f0] sm:$0xff]
    %v4586 = vld [vmem:[#allocation9 + $0x2f8] sm:$0xff]
    %v4587 = vld [vmem:[#allocation9 + $0x300] sm:$0xff]
    %v4588 = vld [vmem:[#allocation9 + $0x308] sm:$0xff]
    %v4589 = vld [vmem:[#allocation9 + $0x310] sm:$0xff]
    %v4590 = vld [vmem:[#allocation9 + $0x318] sm:$0xff]
    %v4591 = vld [vmem:[#allocation9 + $0x320] sm:$0xff]
    %v4592 = vld [vmem:[#allocation9 + $0x328] sm:$0xff]
    %v4593 = vld [vmem:[#allocation9 + $0x330] sm:$0xff]
    %v4594 = vld [vmem:[#allocation9 + $0x338] sm:$0xff]
    %v4595 = vld [vmem:[#allocation9 + $0x340] sm:$0xff]
    %v4596 = vld [vmem:[#allocation9 + $0x348] sm:$0xff]
    %v4597 = vld [vmem:[#allocation9 + $0x350] sm:$0xff]
    %v4598 = vld [vmem:[#allocation9 + $0x358] sm:$0xff]
    %v4599 = vld [vmem:[#allocation9 + $0x360] sm:$0xff]
    %v4600 = vld [vmem:[#allocation9 + $0x368] sm:$0xff]
    %v4601 = vld [vmem:[#allocation9 + $0x370] sm:$0xff]
    %v4602 = vld [vmem:[#allocation9 + $0x378] sm:$0xff]
    %v4603 = vld [vmem:[#allocation9 + $0x380] sm:$0xff]
    %v4604 = vld [vmem:[#allocation9 + $0x388] sm:$0xff]
    %v4605 = vld [vmem:[#allocation9 + $0x390] sm:$0xff]
    %v4606 = vld [vmem:[#allocation9 + $0x398] sm:$0xff]
    %v4607 = vld [vmem:[#allocation9 + $0x3a0] sm:$0xff]
    %v4608 = vld [vmem:[#allocation9 + $0x3a8] sm:$0xff]
    %v4609 = vld [vmem:[#allocation9 + $0x3b0] sm:$0xff]
    %v4610 = vld [vmem:[#allocation9 + $0x3b8] sm:$0xff]
    %v4611 = vld [vmem:[#allocation9 + $0x3c0] sm:$0xff]
    %v4612 = vld [vmem:[#allocation9 + $0x3c8] sm:$0xff]
    %v4613 = vld [vmem:[#allocation9 + $0x3d0] sm:$0xff]
    %v4614 = vld [vmem:[#allocation9 + $0x3d8] sm:$0xff]
    %v4615 = vld [vmem:[#allocation9 + $0x3e0] sm:$0xff]
    %v4616 = vld [vmem:[#allocation9 + $0x3e8] sm:$0xff]
    %v4617 = vld [vmem:[#allocation9 + $0x3f0] sm:$0xff]
    %v4618 = vld [vmem:[#allocation9 + $0x3f8] sm:$0xff]
    %v4619 = vld [vmem:[%s10] sm:$0xf]
    %v4621 = vlaneseq
    %v4622 = vshrl.u32 %v4621, 7
    %v4623 = vsub.s32 0, %v4622
    %v4624 = vrot.slane %v4619, %v4623
    %v4625 = vlaneseq
    %v4626 = vshrl.u32 %v4625, 7
    %v4627 = vsub.s32 1, %v4626
    %v4628 = vrot.slane %v4619, %v4627
    %v4629 = vlaneseq
    %v4630 = vshrl.u32 %v4629, 7
    %v4631 = vsub.s32 2, %v4630
    %v4632 = vrot.slane %v4619, %v4631
    %v4633 = vlaneseq
    %v4634 = vshrl.u32 %v4633, 7
    %v4635 = vsub.s32 3, %v4634
    %v4636 = vrot.slane %v4619, %v4635
    %v4769 = vunpack.c.l.b16 %v4491
    %v4770 = vunpack.c.h.b16 %v4491
    %v4771 = vunpack.c.l.b16 %v4492
    %v4772 = vunpack.c.h.b16 %v4492
    %v4773 = vunpack.c.l.b16 %v4493
    %v4774 = vunpack.c.h.b16 %v4493
    %v4775 = vunpack.c.l.b16 %v4494
    %v4776 = vunpack.c.h.b16 %v4494
    %v4777 = vunpack.c.l.b16 %v4495
    %v4778 = vunpack.c.h.b16 %v4495
    %v4779 = vunpack.c.l.b16 %v4496
    %v4780 = vunpack.c.h.b16 %v4496
    %v4781 = vunpack.c.l.b16 %v4497
    %v4782 = vunpack.c.h.b16 %v4497
    %v4783 = vunpack.c.l.b16 %v4498
    %v4784 = vunpack.c.h.b16 %v4498
    %v4785 = vunpack.c.l.b16 %v4499
    %v4786 = vunpack.c.h.b16 %v4499
    %v4787 = vunpack.c.l.b16 %v4500
    %v4788 = vunpack.c.h.b16 %v4500
    %v4789 = vunpack.c.l.b16 %v4501
    %v4790 = vunpack.c.h.b16 %v4501
    %v4791 = vunpack.c.l.b16 %v4502
    %v4792 = vunpack.c.h.b16 %v4502
    %v4793 = vunpack.c.l.b16 %v4503
    %v4794 = vunpack.c.h.b16 %v4503
    %v4795 = vunpack.c.l.b16 %v4504
    %v4796 = vunpack.c.h.b16 %v4504
    %v4797 = vunpack.c.l.b16 %v4505
    %v4798 = vunpack.c.h.b16 %v4505
    %v4799 = vunpack.c.l.b16 %v4506
    %v4800 = vunpack.c.h.b16 %v4506
    %v4801 = vunpack.c.l.b16 %v4507
    %v4802 = vunpack.c.h.b16 %v4507
    %v4803 = vunpack.c.l.b16 %v4508
    %v4804 = vunpack.c.h.b16 %v4508
    %v4805 = vunpack.c.l.b16 %v4509
    %v4806 = vunpack.c.h.b16 %v4509
    %v4807 = vunpack.c.l.b16 %v4510
    %v4808 = vunpack.c.h.b16 %v4510
    %v4809 = vunpack.c.l.b16 %v4511
    %v4810 = vunpack.c.h.b16 %v4511
    %v4811 = vunpack.c.l.b16 %v4512
    %v4812 = vunpack.c.h.b16 %v4512
    %v4813 = vunpack.c.l.b16 %v4513
    %v4814 = vunpack.c.h.b16 %v4513
    %v4815 = vunpack.c.l.b16 %v4514
    %v4816 = vunpack.c.h.b16 %v4514
    %v4817 = vunpack.c.l.b16 %v4515
    %v4818 = vunpack.c.h.b16 %v4515
    %v4819 = vunpack.c.l.b16 %v4516
    %v4820 = vunpack.c.h.b16 %v4516
    %v4821 = vunpack.c.l.b16 %v4517
    %v4822 = vunpack.c.h.b16 %v4517
    %v4823 = vunpack.c.l.b16 %v4518
    %v4824 = vunpack.c.h.b16 %v4518
    %v4825 = vunpack.c.l.b16 %v4519
    %v4826 = vunpack.c.h.b16 %v4519
    %v4827 = vunpack.c.l.b16 %v4520
    %v4828 = vunpack.c.h.b16 %v4520
    %v4829 = vunpack.c.l.b16 %v4521
    %v4830 = vunpack.c.h.b16 %v4521
    %v4831 = vunpack.c.l.b16 %v4522
    %v4832 = vunpack.c.h.b16 %v4522
    %v4833 = vunpack.c.l.b16 %v4523
    %v4834 = vunpack.c.h.b16 %v4523
    %v4835 = vunpack.c.l.b16 %v4524
    %v4836 = vunpack.c.h.b16 %v4524
    %v4837 = vunpack.c.l.b16 %v4525
    %v4838 = vunpack.c.h.b16 %v4525
    %v4839 = vunpack.c.l.b16 %v4526
    %v4840 = vunpack.c.h.b16 %v4526
    %v4841 = vunpack.c.l.b16 %v4527
    %v4842 = vunpack.c.h.b16 %v4527
    %v4843 = vunpack.c.l.b16 %v4528
    %v4844 = vunpack.c.h.b16 %v4528
    %v4845 = vunpack.c.l.b16 %v4529
    %v4846 = vunpack.c.h.b16 %v4529
    %v4847 = vunpack.c.l.b16 %v4530
    %v4848 = vunpack.c.h.b16 %v4530
    %v4849 = vunpack.c.l.b16 %v4531
    %v4850 = vunpack.c.h.b16 %v4531
    %v4851 = vunpack.c.l.b16 %v4532
    %v4852 = vunpack.c.h.b16 %v4532
    %v4853 = vunpack.c.l.b16 %v4533
    %v4854 = vunpack.c.h.b16 %v4533
    %v4855 = vunpack.c.l.b16 %v4534
    %v4856 = vunpack.c.h.b16 %v4534
    %v4857 = vunpack.c.l.b16 %v4535
    %v4858 = vunpack.c.h.b16 %v4535
    %v4859 = vunpack.c.l.b16 %v4536
    %v4860 = vunpack.c.h.b16 %v4536
    %v4861 = vunpack.c.l.b16 %v4537
    %v4862 = vunpack.c.h.b16 %v4537
    %v4863 = vunpack.c.l.b16 %v4538
    %v4864 = vunpack.c.h.b16 %v4538
    %v4865 = vunpack.c.l.b16 %v4539
    %v4866 = vunpack.c.h.b16 %v4539
    %v4867 = vunpack.c.l.b16 %v4540
    %v4868 = vunpack.c.h.b16 %v4540
    %v4869 = vunpack.c.l.b16 %v4541
    %v4870 = vunpack.c.h.b16 %v4541
    %v4871 = vunpack.c.l.b16 %v4542
    %v4872 = vunpack.c.h.b16 %v4542
    %v4873 = vunpack.c.l.b16 %v4543
    %v4874 = vunpack.c.h.b16 %v4543
    %v4875 = vunpack.c.l.b16 %v4544
    %v4876 = vunpack.c.h.b16 %v4544
    %v4877 = vunpack.c.l.b16 %v4545
    %v4878 = vunpack.c.h.b16 %v4545
    %v4879 = vunpack.c.l.b16 %v4546
    %v4880 = vunpack.c.h.b16 %v4546
    %v4881 = vunpack.c.l.b16 %v4547
    %v4882 = vunpack.c.h.b16 %v4547
    %v4883 = vunpack.c.l.b16 %v4548
    %v4884 = vunpack.c.h.b16 %v4548
    %v4885 = vunpack.c.l.b16 %v4549
    %v4886 = vunpack.c.h.b16 %v4549
    %v4887 = vunpack.c.l.b16 %v4550
    %v4888 = vunpack.c.h.b16 %v4550
    %v4889 = vunpack.c.l.b16 %v4551
    %v4890 = vunpack.c.h.b16 %v4551
    %v4891 = vunpack.c.l.b16 %v4552
    %v4892 = vunpack.c.h.b16 %v4552
    %v4893 = vunpack.c.l.b16 %v4553
    %v4894 = vunpack.c.h.b16 %v4553
    %v4895 = vunpack.c.l.b16 %v4554
    %v4896 = vunpack.c.h.b16 %v4554
    %v4897 = vunpack.c.l.b16 %v4555
    %v4898 = vunpack.c.h.b16 %v4555
    %v4899 = vunpack.c.l.b16 %v4556
    %v4900 = vunpack.c.h.b16 %v4556
    %v4901 = vunpack.c.l.b16 %v4557
    %v4902 = vunpack.c.h.b16 %v4557
    %v4903 = vunpack.c.l.b16 %v4558
    %v4904 = vunpack.c.h.b16 %v4558
    %v4905 = vunpack.c.l.b16 %v4559
    %v4906 = vunpack.c.h.b16 %v4559
    %v4907 = vunpack.c.l.b16 %v4560
    %v4908 = vunpack.c.h.b16 %v4560
    %v4909 = vunpack.c.l.b16 %v4561
    %v4910 = vunpack.c.h.b16 %v4561
    %v4911 = vunpack.c.l.b16 %v4562
    %v4912 = vunpack.c.h.b16 %v4562
    %v4913 = vunpack.c.l.b16 %v4563
    %v4914 = vunpack.c.h.b16 %v4563
    %v4915 = vunpack.c.l.b16 %v4564
    %v4916 = vunpack.c.h.b16 %v4564
    %v4917 = vunpack.c.l.b16 %v4565
    %v4918 = vunpack.c.h.b16 %v4565
    %v4919 = vunpack.c.l.b16 %v4566
    %v4920 = vunpack.c.h.b16 %v4566
    %v4921 = vunpack.c.l.b16 %v4567
    %v4922 = vunpack.c.h.b16 %v4567
    %v4923 = vunpack.c.l.b16 %v4568
    %v4924 = vunpack.c.h.b16 %v4568
    %v4925 = vunpack.c.l.b16 %v4569
    %v4926 = vunpack.c.h.b16 %v4569
    %v4927 = vunpack.c.l.b16 %v4570
    %v4928 = vunpack.c.h.b16 %v4570
    %v4929 = vunpack.c.l.b16 %v4571
    %v4930 = vunpack.c.h.b16 %v4571
    %v4931 = vunpack.c.l.b16 %v4572
    %v4932 = vunpack.c.h.b16 %v4572
    %v4933 = vunpack.c.l.b16 %v4573
    %v4934 = vunpack.c.h.b16 %v4573
    %v4935 = vunpack.c.l.b16 %v4574
    %v4936 = vunpack.c.h.b16 %v4574
    %v4937 = vunpack.c.l.b16 %v4575
    %v4938 = vunpack.c.h.b16 %v4575
    %v4939 = vunpack.c.l.b16 %v4576
    %v4940 = vunpack.c.h.b16 %v4576
    %v4941 = vunpack.c.l.b16 %v4577
    %v4942 = vunpack.c.h.b16 %v4577
    %v4943 = vunpack.c.l.b16 %v4578
    %v4944 = vunpack.c.h.b16 %v4578
    %v4945 = vunpack.c.l.b16 %v4579
    %v4946 = vunpack.c.h.b16 %v4579
    %v4947 = vunpack.c.l.b16 %v4580
    %v4948 = vunpack.c.h.b16 %v4580
    %v4949 = vunpack.c.l.b16 %v4581
    %v4950 = vunpack.c.h.b16 %v4581
    %v4951 = vunpack.c.l.b16 %v4582
    %v4952 = vunpack.c.h.b16 %v4582
    %v4953 = vunpack.c.l.b16 %v4583
    %v4954 = vunpack.c.h.b16 %v4583
    %v4955 = vunpack.c.l.b16 %v4584
    %v4956 = vunpack.c.h.b16 %v4584
    %v4957 = vunpack.c.l.b16 %v4585
    %v4958 = vunpack.c.h.b16 %v4585
    %v4959 = vunpack.c.l.b16 %v4586
    %v4960 = vunpack.c.h.b16 %v4586
    %v4961 = vunpack.c.l.b16 %v4587
    %v4962 = vunpack.c.h.b16 %v4587
    %v4963 = vunpack.c.l.b16 %v4588
    %v4964 = vunpack.c.h.b16 %v4588
    %v4965 = vunpack.c.l.b16 %v4589
    %v4966 = vunpack.c.h.b16 %v4589
    %v4967 = vunpack.c.l.b16 %v4590
    %v4968 = vunpack.c.h.b16 %v4590
    %v4969 = vunpack.c.l.b16 %v4591
    %v4970 = vunpack.c.h.b16 %v4591
    %v4971 = vunpack.c.l.b16 %v4592
    %v4972 = vunpack.c.h.b16 %v4592
    %v4973 = vunpack.c.l.b16 %v4593
    %v4974 = vunpack.c.h.b16 %v4593
    %v4975 = vunpack.c.l.b16 %v4594
    %v4976 = vunpack.c.h.b16 %v4594
    %v4977 = vunpack.c.l.b16 %v4595
    %v4978 = vunpack.c.h.b16 %v4595
    %v4979 = vunpack.c.l.b16 %v4596
    %v4980 = vunpack.c.h.b16 %v4596
    %v4981 = vunpack.c.l.b16 %v4597
    %v4982 = vunpack.c.h.b16 %v4597
    %v4983 = vunpack.c.l.b16 %v4598
    %v4984 = vunpack.c.h.b16 %v4598
    %v4985 = vunpack.c.l.b16 %v4599
    %v4986 = vunpack.c.h.b16 %v4599
    %v4987 = vunpack.c.l.b16 %v4600
    %v4988 = vunpack.c.h.b16 %v4600
    %v4989 = vunpack.c.l.b16 %v4601
    %v4990 = vunpack.c.h.b16 %v4601
    %v4991 = vunpack.c.l.b16 %v4602
    %v4992 = vunpack.c.h.b16 %v4602
    %v4993 = vunpack.c.l.b16 %v4603
    %v4994 = vunpack.c.h.b16 %v4603
    %v4995 = vunpack.c.l.b16 %v4604
    %v4996 = vunpack.c.h.b16 %v4604
    %v4997 = vunpack.c.l.b16 %v4605
    %v4998 = vunpack.c.h.b16 %v4605
    %v4999 = vunpack.c.l.b16 %v4606
    %v5000 = vunpack.c.h.b16 %v4606
    %v5001 = vunpack.c.l.b16 %v4607
    %v5002 = vunpack.c.h.b16 %v4607
    %v5003 = vunpack.c.l.b16 %v4608
    %v5004 = vunpack.c.h.b16 %v4608
    %v5005 = vunpack.c.l.b16 %v4609
    %v5006 = vunpack.c.h.b16 %v4609
    %v5007 = vunpack.c.l.b16 %v4610
    %v5008 = vunpack.c.h.b16 %v4610
    %v5009 = vunpack.c.l.b16 %v4611
    %v5010 = vunpack.c.h.b16 %v4611
    %v5011 = vunpack.c.l.b16 %v4612
    %v5012 = vunpack.c.h.b16 %v4612
    %v5013 = vunpack.c.l.b16 %v4613
    %v5014 = vunpack.c.h.b16 %v4613
    %v5015 = vunpack.c.l.b16 %v4614
    %v5016 = vunpack.c.h.b16 %v4614
    %v5017 = vunpack.c.l.b16 %v4615
    %v5018 = vunpack.c.h.b16 %v4615
    %v5019 = vunpack.c.l.b16 %v4616
    %v5020 = vunpack.c.h.b16 %v4616
    %v5021 = vunpack.c.l.b16 %v4617
    %v5022 = vunpack.c.h.b16 %v4617
    %v5023 = vunpack.c.l.b16 %v4618
    %v5024 = vunpack.c.h.b16 %v4618
    %v5025 = vpack.c.b16 %v4773, %v4769
    %v5026 = vpack.c.b16 %v4774, %v4770
    %v5027 = vpack.c.b16 %v4775, %v4771
    %v5028 = vpack.c.b16 %v4776, %v4772
    %v5029 = vpack.c.b16 %v4781, %v4777
    %v5030 = vpack.c.b16 %v4782, %v4778
    %v5031 = vpack.c.b16 %v4783, %v4779
    %v5032 = vpack.c.b16 %v4784, %v4780
    %v5033 = vpack.c.b16 %v4789, %v4785
    %v5034 = vpack.c.b16 %v4790, %v4786
    %v5035 = vpack.c.b16 %v4791, %v4787
    %v5036 = vpack.c.b16 %v4792, %v4788
    %v5037 = vpack.c.b16 %v4797, %v4793
    %v5038 = vpack.c.b16 %v4798, %v4794
    %v5039 = vpack.c.b16 %v4799, %v4795
    %v5040 = vpack.c.b16 %v4800, %v4796
    %v5041 = vpack.c.b16 %v4805, %v4801
    %v5042 = vpack.c.b16 %v4806, %v4802
    %v5043 = vpack.c.b16 %v4807, %v4803
    %v5044 = vpack.c.b16 %v4808, %v4804
    %v5045 = vpack.c.b16 %v4813, %v4809
    %v5046 = vpack.c.b16 %v4814, %v4810
    %v5047 = vpack.c.b16 %v4815, %v4811
    %v5048 = vpack.c.b16 %v4816, %v4812
    %v5049 = vpack.c.b16 %v4821, %v4817
    %v5050 = vpack.c.b16 %v4822, %v4818
    %v5051 = vpack.c.b16 %v4823, %v4819
    %v5052 = vpack.c.b16 %v4824, %v4820
    %v5053 = vpack.c.b16 %v4829, %v4825
    %v5054 = vpack.c.b16 %v4830, %v4826
    %v5055 = vpack.c.b16 %v4831, %v4827
    %v5056 = vpack.c.b16 %v4832, %v4828
    %v5057 = vpack.c.b16 %v4837, %v4833
    %v5058 = vpack.c.b16 %v4838, %v4834
    %v5059 = vpack.c.b16 %v4839, %v4835
    %v5060 = vpack.c.b16 %v4840, %v4836
    %v5061 = vpack.c.b16 %v4845, %v4841
    %v5062 = vpack.c.b16 %v4846, %v4842
    %v5063 = vpack.c.b16 %v4847, %v4843
    %v5064 = vpack.c.b16 %v4848, %v4844
    %v5065 = vpack.c.b16 %v4853, %v4849
    %v5066 = vpack.c.b16 %v4854, %v4850
    %v5067 = vpack.c.b16 %v4855, %v4851
    %v5068 = vpack.c.b16 %v4856, %v4852
    %v5069 = vpack.c.b16 %v4861, %v4857
    %v5070 = vpack.c.b16 %v4862, %v4858
    %v5071 = vpack.c.b16 %v4863, %v4859
    %v5072 = vpack.c.b16 %v4864, %v4860
    %v5073 = vpack.c.b16 %v4869, %v4865
    %v5074 = vpack.c.b16 %v4870, %v4866
    %v5075 = vpack.c.b16 %v4871, %v4867
    %v5076 = vpack.c.b16 %v4872, %v4868
    %v5077 = vpack.c.b16 %v4877, %v4873
    %v5078 = vpack.c.b16 %v4878, %v4874
    %v5079 = vpack.c.b16 %v4879, %v4875
    %v5080 = vpack.c.b16 %v4880, %v4876
    %v5081 = vpack.c.b16 %v4885, %v4881
    %v5082 = vpack.c.b16 %v4886, %v4882
    %v5083 = vpack.c.b16 %v4887, %v4883
    %v5084 = vpack.c.b16 %v4888, %v4884
    %v5085 = vpack.c.b16 %v4893, %v4889
    %v5086 = vpack.c.b16 %v4894, %v4890
    %v5087 = vpack.c.b16 %v4895, %v4891
    %v5088 = vpack.c.b16 %v4896, %v4892
    %v5089 = vpack.c.b16 %v4901, %v4897
    %v5090 = vpack.c.b16 %v4902, %v4898
    %v5091 = vpack.c.b16 %v4903, %v4899
    %v5092 = vpack.c.b16 %v4904, %v4900
    %v5093 = vpack.c.b16 %v4909, %v4905
    %v5094 = vpack.c.b16 %v4910, %v4906
    %v5095 = vpack.c.b16 %v4911, %v4907
    %v5096 = vpack.c.b16 %v4912, %v4908
    %v5097 = vpack.c.b16 %v4917, %v4913
    %v5098 = vpack.c.b16 %v4918, %v4914
    %v5099 = vpack.c.b16 %v4919, %v4915
    %v5100 = vpack.c.b16 %v4920, %v4916
    %v5101 = vpack.c.b16 %v4925, %v4921
    %v5102 = vpack.c.b16 %v4926, %v4922
    %v5103 = vpack.c.b16 %v4927, %v4923
    %v5104 = vpack.c.b16 %v4928, %v4924
    %v5105 = vpack.c.b16 %v4933, %v4929
    %v5106 = vpack.c.b16 %v4934, %v4930
    %v5107 = vpack.c.b16 %v4935, %v4931
    %v5108 = vpack.c.b16 %v4936, %v4932
    %v5109 = vpack.c.b16 %v4941, %v4937
    %v5110 = vpack.c.b16 %v4942, %v4938
    %v5111 = vpack.c.b16 %v4943, %v4939
    %v5112 = vpack.c.b16 %v4944, %v4940
    %v5113 = vpack.c.b16 %v4949, %v4945
    %v5114 = vpack.c.b16 %v4950, %v4946
    %v5115 = vpack.c.b16 %v4951, %v4947
    %v5116 = vpack.c.b16 %v4952, %v4948
    %v5117 = vpack.c.b16 %v4957, %v4953
    %v5118 = vpack.c.b16 %v4958, %v4954
    %v5119 = vpack.c.b16 %v4959, %v4955
    %v5120 = vpack.c.b16 %v4960, %v4956
    %v5121 = vpack.c.b16 %v4965, %v4961
    %v5122 = vpack.c.b16 %v4966, %v4962
    %v5123 = vpack.c.b16 %v4967, %v4963
    %v5124 = vpack.c.b16 %v4968, %v4964
    %v5125 = vpack.c.b16 %v4973, %v4969
    %v5126 = vpack.c.b16 %v4974, %v4970
    %v5127 = vpack.c.b16 %v4975, %v4971
    %v5128 = vpack.c.b16 %v4976, %v4972
    %v5129 = vpack.c.b16 %v4981, %v4977
    %v5130 = vpack.c.b16 %v4982, %v4978
    %v5131 = vpack.c.b16 %v4983, %v4979
    %v5132 = vpack.c.b16 %v4984, %v4980
    %v5133 = vpack.c.b16 %v4989, %v4985
    %v5134 = vpack.c.b16 %v4990, %v4986
    %v5135 = vpack.c.b16 %v4991, %v4987
    %v5136 = vpack.c.b16 %v4992, %v4988
    %v5137 = vpack.c.b16 %v4997, %v4993
    %v5138 = vpack.c.b16 %v4998, %v4994
    %v5139 = vpack.c.b16 %v4999, %v4995
    %v5140 = vpack.c.b16 %v5000, %v4996
    %v5141 = vpack.c.b16 %v5005, %v5001
    %v5142 = vpack.c.b16 %v5006, %v5002
    %v5143 = vpack.c.b16 %v5007, %v5003
    %v5144 = vpack.c.b16 %v5008, %v5004
    %v5145 = vpack.c.b16 %v5013, %v5009
    %v5146 = vpack.c.b16 %v5014, %v5010
    %v5147 = vpack.c.b16 %v5015, %v5011
    %v5148 = vpack.c.b16 %v5016, %v5012
    %v5149 = vpack.c.b16 %v5021, %v5017
    %v5150 = vpack.c.b16 %v5022, %v5018
    %v5151 = vpack.c.b16 %v5023, %v5019
    %v5152 = vpack.c.b16 %v5024, %v5020
    %5281 = vmatprep.subr.bf16.mxu0 %v5026
    %5282 = vmatpush1.bf16.msra.mxu0 %v5025
    %5283 = vmatprep.subr.bf16.mxu0 %v5030
    %5284 = vmatpush1.bf16.msra.mxu0 %v5029
    %5285 = vmatprep.subr.bf16.mxu0 %v5034
    %5286 = vmatpush1.bf16.msra.mxu0 %v5033
    %5287 = vmatprep.subr.bf16.mxu0 %v5038
    %5288 = vmatpush1.bf16.msra.mxu0 %v5037
    %5289 = vmatprep.subr.bf16.mxu0 %v5042
    %5290 = vmatpush1.bf16.msra.mxu0 %v5041
    %5291 = vmatprep.subr.bf16.mxu0 %v5046
    %5292 = vmatpush1.bf16.msra.mxu0 %v5045
    %5293 = vmatprep.subr.bf16.mxu0 %v5050
    %5294 = vmatpush1.bf16.msra.mxu0 %v5049
    %5295 = vmatprep.subr.bf16.mxu0 %v5054
    %5296 = vmatpush1.bf16.msra.mxu0 %v5053
    %5297 = vmatprep.subr.bf16.mxu0 %v5058
    %5298 = vmatpush1.bf16.msra.mxu0 %v5057
    %5299 = vmatprep.subr.bf16.mxu0 %v5062
    %5300 = vmatpush1.bf16.msra.mxu0 %v5061
    %5301 = vmatprep.subr.bf16.mxu0 %v5066
    %5302 = vmatpush1.bf16.msra.mxu0 %v5065
    %5303 = vmatprep.subr.bf16.mxu0 %v5070
    %5304 = vmatpush1.bf16.msra.mxu0 %v5069
    %5305 = vmatprep.subr.bf16.mxu0 %v5074
    %5306 = vmatpush1.bf16.msra.mxu0 %v5073
    %5307 = vmatprep.subr.bf16.mxu0 %v5078
    %5308 = vmatpush1.bf16.msra.mxu0 %v5077
    %5309 = vmatprep.subr.bf16.mxu0 %v5082
    %5310 = vmatpush1.bf16.msra.mxu0 %v5081
    %5311 = vmatprep.subr.bf16.mxu0 %v5086
    %5312 = vmatpush1.bf16.msra.mxu0 %v5085
    %5313 = vmatprep.mubr.bf16.mxu0 %v3490
    %5314 = vmatmul.mubr.bf16.gmra.mrb[0].mxu0 %v3489
    %v5315 = vpop.f32.mrb[0].mxu0
    %v5316 = vadd.f32 %v4624, %v5315
    %v5317 = vpop.f32.mrb[0].mxu0
    %v5318 = vadd.f32 %v4628, %v5317
    %v5319 = vpop.f32.mrb[0].mxu0
    %v5320 = vadd.f32 %v4624, %v5319
    %v5321 = vpop.f32.mrb[0].mxu0
    %v5322 = vadd.f32 %v4628, %v5321
    %5323 = vdwg.mxu0
    %5324 = vmatprep.subr.bf16.mxu0 %v5090
    %5325 = vmatpush1.bf16.msra.mxu0 %v5089
    %5326 = vmatprep.subr.bf16.mxu0 %v5094
    %5327 = vmatpush1.bf16.msra.mxu0 %v5093
    %5328 = vmatprep.subr.bf16.mxu0 %v5098
    %5329 = vmatpush1.bf16.msra.mxu0 %v5097
    %5330 = vmatprep.subr.bf16.mxu0 %v5102
    %5331 = vmatpush1.bf16.msra.mxu0 %v5101
    %5332 = vmatprep.subr.bf16.mxu0 %v5106
    %5333 = vmatpush1.bf16.msra.mxu0 %v5105
    %5334 = vmatprep.subr.bf16.mxu0 %v5110
    %5335 = vmatpush1.bf16.msra.mxu0 %v5109
    %5336 = vmatprep.subr.bf16.mxu0 %v5114
    %5337 = vmatpush1.bf16.msra.mxu0 %v5113
    %5338 = vmatprep.subr.bf16.mxu0 %v5118
    %5339 = vmatpush1.bf16.msra.mxu0 %v5117
    %5340 = vmatprep.subr.bf16.mxu0 %v5122
    %5341 = vmatpush1.bf16.msra.mxu0 %v5121
    %5342 = vmatprep.subr.bf16.mxu0 %v5126
    %5343 = vmatpush1.bf16.msra.mxu0 %v5125
    %5344 = vmatprep.subr.bf16.mxu0 %v5130
    %5345 = vmatpush1.bf16.msra.mxu0 %v5129
    %5346 = vmatprep.subr.bf16.mxu0 %v5134
    %5347 = vmatpush1.bf16.msra.mxu0 %v5133
    %5348 = vmatprep.subr.bf16.mxu0 %v5138
    %5349 = vmatpush1.bf16.msra.mxu0 %v5137
    %5350 = vmatprep.subr.bf16.mxu0 %v5142
    %5351 = vmatpush1.bf16.msra.mxu0 %v5141
    %5352 = vmatprep.subr.bf16.mxu0 %v5146
    %5353 = vmatpush1.bf16.msra.mxu0 %v5145
    %5354 = vmatprep.subr.bf16.mxu0 %v5150
    %5355 = vmatpush1.bf16.msra.mxu0 %v5149
    %5356 = vmatprep.mubr.bf16.mxu0 %v3492
    %5357 = vmatmul.mubr.bf16.gmra.mrb[0].mxu0 %v3491
    %v5358 = vpop.f32.mrb[0].mxu0
    %v5359 = vadd.f32 %v5316, %v5358
    %v5360 = vpop.f32.mrb[0].mxu0
    %v5361 = vadd.f32 %v5318, %v5360
    %v5362 = vpop.f32.mrb[0].mxu0
    %v5363 = vadd.f32 %v5320, %v5362
    %v5364 = vpop.f32.mrb[0].mxu0
    %v5365 = vadd.f32 %v5322, %v5364
    %5366 = vdwg.mxu0
    %5367 = vmatprep.subr.bf16.mxu0 %v5028
    %5368 = vmatpush1.bf16.msra.mxu0 %v5027
    %5369 = vmatprep.subr.bf16.mxu0 %v5032
    %5370 = vmatpush1.bf16.msra.mxu0 %v5031
    %5371 = vmatprep.subr.bf16.mxu0 %v5036
    %5372 = vmatpush1.bf16.msra.mxu0 %v5035
    %5373 = vmatprep.subr.bf16.mxu0 %v5040
    %5374 = vmatpush1.bf16.msra.mxu0 %v5039
    %5375 = vmatprep.subr.bf16.mxu0 %v5044
    %5376 = vmatpush1.bf16.msra.mxu0 %v5043
    %5377 = vmatprep.subr.bf16.mxu0 %v5048
    %5378 = vmatpush1.bf16.msra.mxu0 %v5047
    %5379 = vmatprep.subr.bf16.mxu0 %v5052
    %5380 = vmatpush1.bf16.msra.mxu0 %v5051
    %5381 = vmatprep.subr.bf16.mxu0 %v5056
    %5382 = vmatpush1.bf16.msra.mxu0 %v5055
    %5383 = vmatprep.subr.bf16.mxu0 %v5060
    %5384 = vmatpush1.bf16.msra.mxu0 %v5059
    %5385 = vmatprep.subr.bf16.mxu0 %v5064
    %5386 = vmatpush1.bf16.msra.mxu0 %v5063
    %5387 = vmatprep.subr.bf16.mxu0 %v5068
    %5388 = vmatpush1.bf16.msra.mxu0 %v5067
    %5389 = vmatprep.subr.bf16.mxu0 %v5072
    %5390 = vmatpush1.bf16.msra.mxu0 %v5071
    %5391 = vmatprep.subr.bf16.mxu0 %v5076
    %5392 = vmatpush1.bf16.msra.mxu0 %v5075
    %5393 = vmatprep.subr.bf16.mxu0 %v5080
    %5394 = vmatpush1.bf16.msra.mxu0 %v5079
    %5395 = vmatprep.subr.bf16.mxu0 %v5084
    %5396 = vmatpush1.bf16.msra.mxu0 %v5083
    %5397 = vmatprep.subr.bf16.mxu0 %v5088
    %5398 = vmatpush1.bf16.msra.mxu0 %v5087
    %5399 = vmatprep.mubr.bf16.mxu0 %v3490
    %5400 = vmatmul.mubr.bf16.gmra.mrb[0].mxu0 %v3489
    %v5401 = vpop.f32.mrb[0].mxu0
    %v5402 = vadd.f32 %v4632, %v5401
    %v5403 = vpop.f32.mrb[0].mxu0
    %v5404 = vadd.f32 %v4636, %v5403
    %v5405 = vpop.f32.mrb[0].mxu0
    %v5406 = vadd.f32 %v4632, %v5405
    %v5407 = vpop.f32.mrb[0].mxu0
    %v5408 = vadd.f32 %v4636, %v5407
    %5409 = vdwg.mxu0
    %5410 = vmatprep.subr.bf16.mxu0 %v5092
    %5411 = vmatpush1.bf16.msra.mxu0 %v5091
    %5412 = vmatprep.subr.bf16.mxu0 %v5096
    %5413 = vmatpush1.bf16.msra.mxu0 %v5095
    %5414 = vmatprep.subr.bf16.mxu0 %v5100
    %5415 = vmatpush1.bf16.msra.mxu0 %v5099
    %5416 = vmatprep.subr.bf16.mxu0 %v5104
    %5417 = vmatpush1.bf16.msra.mxu0 %v5103
    %5418 = vmatprep.subr.bf16.mxu0 %v5108
    %5419 = vmatpush1.bf16.msra.mxu0 %v5107
    %5420 = vmatprep.subr.bf16.mxu0 %v5112
    %5421 = vmatpush1.bf16.msra.mxu0 %v5111
    %5422 = vmatprep.subr.bf16.mxu0 %v5116
    %5423 = vmatpush1.bf16.msra.mxu0 %v5115
    %5424 = vmatprep.subr.bf16.mxu0 %v5120
    %5425 = vmatpush1.bf16.msra.mxu0 %v5119
    %5426 = vmatprep.subr.bf16.mxu0 %v5124
    %5427 = vmatpush1.bf16.msra.mxu0 %v5123
    %5428 = vmatprep.subr.bf16.mxu0 %v5128
    %5429 = vmatpush1.bf16.msra.mxu0 %v5127
    %5430 = vmatprep.subr.bf16.mxu0 %v5132
    %5431 = vmatpush1.bf16.msra.mxu0 %v5131
    %5432 = vmatprep.subr.bf16.mxu0 %v5136
    %5433 = vmatpush1.bf16.msra.mxu0 %v5135
    %5434 = vmatprep.subr.bf16.mxu0 %v5140
    %5435 = vmatpush1.bf16.msra.mxu0 %v5139
    %5436 = vmatprep.subr.bf16.mxu0 %v5144
    %5437 = vmatpush1.bf16.msra.mxu0 %v5143
    %5438 = vmatprep.subr.bf16.mxu0 %v5148
    %5439 = vmatpush1.bf16.msra.mxu0 %v5147
    %5440 = vmatprep.subr.bf16.mxu0 %v5152
    %5441 = vmatpush1.bf16.msra.mxu0 %v5151
    %5442 = vmatprep.mubr.bf16.mxu0 %v3492
    %5443 = vmatmul.mubr.bf16.gmra.mrb[0].mxu0 %v3491
    %v5444 = vpop.f32.mrb[0].mxu0
    %v5445 = vadd.f32 %v5402, %v5444
    %v5446 = vpop.f32.mrb[0].mxu0
    %v5447 = vadd.f32 %v5404, %v5446
    %v5448 = vpop.f32.mrb[0].mxu0
    %v5449 = vadd.f32 %v5406, %v5448
    %v5450 = vpop.f32.mrb[0].mxu0
    %v5451 = vadd.f32 %v5408, %v5450
    %5452 = vdwg.mxu0
    %v5453 = vmax.f32 %v5359, 0.0
    %v5454 = vmax.f32 %v5361, 0.0
    %v5455 = vmax.f32 %v5445, 0.0
    %v5456 = vmax.f32 %v5447, 0.0
    %v5457 = vmax.f32 %v5363, 0.0
    %v5458 = vmax.f32 %v5365, 0.0
    %v5459 = vmax.f32 %v5449, 0.0
    %v5460 = vmax.f32 %v5451, 0.0
    %v5461 = vpack.c.bf16 %v5457, %v5453
    %v5462 = vpack.c.bf16 %v5458, %v5454
    %v5463 = vpack.c.bf16 %v5459, %v5455
    %v5464 = vpack.c.bf16 %v5460, %v5456
    %v5469 = vunpack.c.l.b16 %v5461
    %v5470 = vunpack.c.l.b16 %v5462
    %v5471 = vunpack.c.l.b16 %v5463
    %v5472 = vunpack.c.l.b16 %v5464
    %v5473 = vunpack.c.h.b16 %v5461
    %v5474 = vunpack.c.h.b16 %v5462
    %v5475 = vunpack.c.h.b16 %v5463
    %v5476 = vunpack.c.h.b16 %v5464
    %v5477 = vpack.c.b16 %v5470, %v5469
    %v5478 = vpack.c.b16 %v5472, %v5471
    %v5479 = vpack.c.b16 %v5474, %v5473
    %v5480 = vpack.c.b16 %v5476, %v5475
    %5485 = vst [vmem:[%s11 + $0x20] sm:$0xff] %v5477
    %5486 = vst [vmem:[%s11 + $0x28] sm:$0xff] %v5478
    %5487 = vst [vmem:[%s11 + $0x50] sm:$0xff] %v5479
    %5488 = vst [vmem:[%s11 + $0x58] sm:$0xff] %v5480
    // Predicated region
    $region66: #{first_block_forward.1} parent=1 // pred_check
      _
    $region67: #{first_block_forward.1} parent=1 // pred_check_branch
      %5490 = sbr.rel (0) target = $region69
    $region68: #{first_block_forward.1} parent=1 // pred_region
      _
    $region69: #{first_block_forward.1} parent=1 // pred_fallthru
      _
    // Predicated region
    $region70: #{first_block_forward.1} parent=1 // pred_check
      _
    $region71: #{first_block_forward.1} parent=1 // pred_check_branch
      %5492 = sbr.rel (0) target = $region73
    $region72: #{first_block_forward.1} parent=1 // pred_region
      _
    $region73: #{first_block_forward.1} parent=1 // pred_fallthru
      _
    %5493 = vsyncpa [#allocation3], 1
    %5494 = vsyncpa [#allocation5], 1
    %5495 = vsyncpa [#allocation8], 1

// kernel: first_block_forward.1
$region0: #{first_block_forward.1}
  #allocation0 [shape = 'u32[]', space=smem, size = 0x4, offset = 0x4, fixed_abs, tag = 'smem constant byte address 0x4 - core index']
  #allocation1 [shape = 'u32[144,128]{1,0:T(1,128)}', space=vmem, size = 0x12000, scoped, tag = 'internal scratch']
  %s0 = inlined_call_operand.vmem [shape: bf16[16,896], index: 0, kind: input, shape index: {}]
  %s1 = inlined_call_operand.hbm [shape: bf16[896,512], index: 1, kind: input, shape index: {}]
  %s2 = inlined_call_operand.vmem [shape: f32[1,512], index: 2, kind: input, shape index: {}]
  %s3 = inlined_call_operand.hbm [shape: bf16[512,512], index: 3, kind: input, shape index: {}]
  %s4 = inlined_call_operand.vmem [shape: f32[1,512], index: 4, kind: input, shape index: {}]
  %s5 = inlined_call_operand.hbm [shape: bf16[128,1024], index: 5, kind: input, shape index: {}]
  %s6 = inlined_call_operand.vmem [shape: f32[1,1024], index: 6, kind: input, shape index: {}]
  %s7 = inlined_call_operand.hbm [shape: bf16[512,512], index: 7, kind: input, shape index: {}]
  %s8 = inlined_call_operand.vmem [shape: f32[1,512], index: 8, kind: input, shape index: {}]
  %s9 = inlined_call_operand.hbm [shape: bf16[512,512], index: 9, kind: input, shape index: {}]
  %s10 = inlined_call_operand.vmem [shape: f32[1,512], index: 10, kind: input, shape index: {}]
  %s11 = inlined_call_operand.vmem [shape: bf16[16,1536], index: 11, kind: output, shape index: {}]
  %s12 = sld [smem:[#allocation0]]
  $region74: #{first_block_forward.1} parent=0
    _
  %s14 = ssub.s32 1, %s12
  %s15 = scalar_select 0, %s14, %s12
  $region1: #{first_block_forward.1} parent=0
    #allocation2 [shape = 'u8[917504]{0}', space=vmem, size = 0xe0000, scoped, tag = 'input window, operand 1, single buffered']
    #allocation3 [shape = 's32[1]{0}', space=sflag, size = 0x4, scoped, tag = 'scoped memory for first_block_forward.1']
    #allocation4 [shape = 'u8[524288]{0}', space=vmem, size = 0x80000, scoped, tag = 'input window, operand 3, single buffered']
    #allocation5 [shape = 's32[1]{0}', space=sflag, size = 0x4, scoped, tag = 'scoped memory for first_block_forward.1']
    #allocation6 [shape = 'u8[262144]{0}', space=vmem, size = 0x40000, scoped, tag = 'input window, operand 5, single buffered']
    #allocation7 [shape = 'u8[524288]{0}', space=vmem, size = 0x80000, scoped, tag = 'input window, operand 7, single buffered']
    #allocation8 [shape = 's32[1]{0}', space=sflag, size = 0x4, scoped, tag = 'scoped memory for first_block_forward.1']
    #allocation9 [shape = 'u8[524288]{0}', space=vmem, size = 0x80000, scoped, tag = 'input window, operand 9, single buffered']
    %16 = vsyncpa [#allocation3], 0
    %17 = vsyncpa [#allocation5], 0
    %18 = vsyncpa [#allocation8], 0
    // Predicated region
    $region2: #{first_block_forward.1} parent=1 // pred_check
      _
    $region3: #{first_block_forward.1} parent=1 // pred_check_branch
      %20 = sbr.rel (0) target = $region5
    $region4: #{first_block_forward.1} parent=1 // pred_region
      _
    $region5: #{first_block_forward.1} parent=1 // pred_fallthru
      _
    // Predicated region
    $region6: #{first_block_forward.1} parent=1 // pred_check
      _
    $region7: #{first_block_forward.1} parent=1 // pred_check_branch
      %22 = sbr.rel (0) target = $region9
    $region8: #{first_block_forward.1} parent=1 // pred_region
      %s24 = ssub.s32 28672, 28672
      %25 = vsyncadd [#allocation3], %s24
      %s26 = sshll.u32 [#allocation2], 4
      %s27 = int_to_ptr.vmem [resolvable:$true] %s26
      %32 = dma.hbm_to_vmem [thread:$0]  %s1, 28672, %s27, [#allocation3], 256, 256, 16
    $region9: #{first_block_forward.1} parent=1 // pred_fallthru
      _
    // Predicated region
    $region10: #{first_block_forward.1} parent=1 // pred_check
      _
    $region11: #{first_block_forward.1} parent=1 // pred_check_branch
      %34 = sbr.rel (0) target = $region13
    $region12: #{first_block_forward.1} parent=1 // pred_region
      _
    $region13: #{first_block_forward.1} parent=1 // pred_fallthru
      _
    // Predicated region
    $region14: #{first_block_forward.1} parent=1 // pred_check
      _
    $region15: #{first_block_forward.1} parent=1 // pred_check_branch
      %36 = sbr.rel (0) target = $region17
    $region16: #{first_block_forward.1} parent=1 // pred_region
      %s38 = ssub.s32 16384, 16384
      %39 = vsyncadd [#allocation5], %s38
      %s40 = sshll.u32 [#allocation4], 4
      %s41 = int_to_ptr.vmem [resolvable:$true] %s40
      %46 = dma.hbm_to_vmem [thread:$0]  %s3, 16384, %s41, [#allocation5], 256, 256, 16
    $region17: #{first_block_forward.1} parent=1 // pred_fallthru
      _
    // Predicated region
    $region18: #{first_block_forward.1} parent=1 // pred_check
      _
    $region19: #{first_block_forward.1} parent=1 // pred_check_branch
      %48 = sbr.rel (0) target = $region21
    $region20: #{first_block_forward.1} parent=1 // pred_region
      _
    $region21: #{first_block_forward.1} parent=1 // pred_fallthru
      _
    // Predicated region
    $region22: #{first_block_forward.1} parent=1 // pred_check
      _
    $region23: #{first_block_forward.1} parent=1 // pred_check_branch
      %50 = sbr.rel (0) target = $region25
    $region24: #{first_block_forward.1} parent=1 // pred_region
      %s52 = ssub.s32 8192, 8192
      %53 = vsyncadd [#allocation5], %s52
      %s54 = sshll.u32 [#allocation6], 4
      %s55 = int_to_ptr.vmem [resolvable:$true] %s54
      %60 = dma.hbm_to_vmem [thread:$0]  %s5, 8192, %s55, [#allocation5], 512, 512, 32
    $region25: #{first_block_forward.1} parent=1 // pred_fallthru
      _
    // Predicated region
    $region26: #{first_block_forward.1} parent=1 // pred_check
      _
    $region27: #{first_block_forward.1} parent=1 // pred_check_branch
      %62 = sbr.rel (0) target = $region29
    $region28: #{first_block_forward.1} parent=1 // pred_region
      _
    $region29: #{first_block_forward.1} parent=1 // pred_fallthru
      _
    // Predicated region
    $region30: #{first_block_forward.1} parent=1 // pred_check
      _
    $region31: #{first_block_forward.1} parent=1 // pred_check_branch
      %64 = sbr.rel (0) target = $region33
    $region32: #{first_block_forward.1} parent=1 // pred_region
      %s66 = ssub.s32 16384, 16384
      %67 = vsyncadd [#allocation8], %s66
      %s68 = sshll.u32 [#allocation7], 4
      %s69 = int_to_ptr.vmem [resolvable:$true] %s68
      %74 = dma.hbm_to_vmem [thread:$0]  %s7, 16384, %s69, [#allocation8], 256, 256, 16
    $region33: #{first_block_forward.1} parent=1 // pred_fallthru
      _
    // Predicated region
    $region34: #{first_block_forward.1} parent=1 // pred_check
      _
    $region35: #{first_block_forward.1} parent=1 // pred_check_branch
      %76 = sbr.rel (0) target = $region37
    $region36: #{first_block_forward.1} parent=1 // pred_region
      _
    $region37: #{first_block_forward.1} parent=1 // pred_fallthru
      _
    // Predicated region
    $region38: #{first_block_forward.1} parent=1 // pred_check
      _
    $region39: #{first_block_forward.1} parent=1 // pred_check_branch
      %78 = sbr.rel (0) target = $region41
    $region40: #{first_block_forward.1} parent=1 // pred_region
      %s80 = ssub.s32 16384, 16384
      %81 = vsyncadd [#allocation8], %s80
      %s82 = sshll.u32 [#allocation9], 4
      %s83 = int_to_ptr.vmem [resolvable:$true] %s82
      %88 = dma.hbm_to_vmem [thread:$0]  %s9, 16384, %s83, [#allocation8], 256, 256, 16
    $region41: #{first_block_forward.1} parent=1 // pred_fallthru
      _
    // Predicated region
    $region42: #{first_block_forward.1} parent=1 // pred_check
      _
    $region43: #{first_block_forward.1} parent=1 // pred_check_branch
      %90 = sbr.rel (0) target = $region45
    $region44: #{first_block_forward.1} parent=1 // pred_region
      _
    $region45: #{first_block_forward.1} parent=1 // pred_fallthru
      _
    // Predicated region
    $region46: #{first_block_forward.1} parent=1 // pred_check
      _
    $region47: #{first_block_forward.1} parent=1 // pred_check_branch
      %92 = sbr.rel (0) target = $region49
    $region48: #{first_block_forward.1} parent=1 // pred_region
      %93 = dma.done [#allocation3], 28672
    $region49: #{first_block_forward.1} parent=1 // pred_fallthru
      _
    // Predicated region
    $region50: #{first_block_forward.1} parent=1 // pred_check
      _
    $region51: #{first_block_forward.1} parent=1 // pred_check_branch
      %95 = sbr.rel (0) target = $region53
    $region52: #{first_block_forward.1} parent=1 // pred_region
      %96 = dma.done [#allocation5], 16384
    $region53: #{first_block_forward.1} parent=1 // pred_fallthru
      _
    // Predicated region
    $region54: #{first_block_forward.1} parent=1 // pred_check
      _
    $region55: #{first_block_forward.1} parent=1 // pred_check_branch
      %98 = sbr.rel (0) target = $region57
    $region56: #{first_block_forward.1} parent=1 // pred_region
      %99 = dma.done [#allocation5], 8192
    $region57: #{first_block_forward.1} parent=1 // pred_fallthru
      _
    // Predicated region
    $region58: #{first_block_forward.1} parent=1 // pred_check
      _
    $region59: #{first_block_forward.1} parent=1 // pred_check_branch
      %101 = sbr.rel (0) target = $region61
    $region60: #{first_block_forward.1} parent=1 // pred_region
      %102 = dma.done [#allocation8], 16384
    $region61: #{first_block_forward.1} parent=1 // pred_fallthru
      _
    // Predicated region
    $region62: #{first_block_forward.1} parent=1 // pred_check
      _
    $region63: #{first_block_forward.1} parent=1 // pred_check_branch
      %104 = sbr.rel (0) target = $region65
    $region64: #{first_block_forward.1} parent=1 // pred_region
      %105 = dma.done [#allocation8], 16384
    $region65: #{first_block_forward.1} parent=1 // pred_fallthru
      _
    %v107 = vld [vmem:[%s0] sm:$0xff]
    %v108 = vld [vmem:[%s0 + $0x8] sm:$0xff]
    %v109 = vld [vmem:[%s0 + $0x10] sm:$0xff]
    %v110 = vld [vmem:[%s0 + $0x18] sm:$0xf]
    %v111 = vld [vmem:[%s0 + $0x1c] sm:$0xff]
    %v112 = vld [vmem:[%s0 + $0x24] sm:$0xff]
    %v113 = vld [vmem:[%s0 + $0x2c] sm:$0xff]
    %v114 = vld [vmem:[%s0 + $0x34] sm:$0xf]
    %v115 = vld [vmem:[#allocation2] sm:$0xff]
    %v116 = vld [vmem:[#allocation2 + $0x8] sm:$0xff]
    %v117 = vld [vmem:[#allocation2 + $0x10] sm:$0xff]
    %v118 = vld [vmem:[#allocation2 + $0x18] sm:$0xff]
    %v119 = vld [vmem:[#allocation2 + $0x20] sm:$0xff]
    %v120 = vld [vmem:[#allocation2 + $0x28] sm:$0xff]
    %v121 = vld [vmem:[#allocation2 + $0x30] sm:$0xff]
    %v122 = vld [vmem:[#allocation2 + $0x38] sm:$0xff]
    %v123 = vld [vmem:[#allocation2 + $0x40] sm:$0xff]
    %v124 = vld [vmem:[#allocation2 + $0x48] sm:$0xff]
    %v125 = vld [vmem:[#allocation2 + $0x50] sm:$0xff]
    %v126 = vld [vmem:[#allocation2 + $0x58] sm:$0xff]
    %v127 = vld [vmem:[#allocation2 + $0x60] sm:$0xff]
    %v128 = vld [vmem:[#allocation2 + $0x68] sm:$0xff]
    %v129 = vld [vmem:[#allocation2 + $0x70] sm:$0xff]
    %v130 = vld [vmem:[#allocation2 + $0x78] sm:$0xff]
    %v131 = vld [vmem:[#allocation2 + $0x80] sm:$0xff]
    %v132 = vld [vmem:[#allocation2 + $0x88] sm:$0xff]
    %v133 = vld [vmem:[#allocation2 + $0x90] sm:$0xff]
    %v134 = vld [vmem:[#allocation2 + $0x98] sm:$0xff]
    %v135 = vld [vmem:[#allocation2 + $0xa0] sm:$0xff]
    %v136 = vld [vmem:[#allocation2 + $0xa8] sm:$0xff]
    %v137 = vld [vmem:[#allocation2 + $0xb0] sm:$0xff]
    %v138 = vld [vmem:[#allocation2 + $0xb8] sm:$0xff]
    %v139 = vld [vmem:[#allocation2 + $0xc0] sm:$0xff]
    %v140 = vld [vmem:[#allocation2 + $0xc8] sm:$0xff]
    %v141 = vld [vmem:[#allocation2 + $0xd0] sm:$0xff]
    %v142 = vld [vmem:[#allocation2 + $0xd8] sm:$0xff]
    %v143 = vld [vmem:[#allocation2 + $0xe0] sm:$0xff]
    %v144 = vld [vmem:[#allocation2 + $0xe8] sm:$0xff]
    %v145 = vld [vmem:[#allocation2 + $0xf0] sm:$0xff]
    %v146 = vld [vmem:[#allocation2 + $0xf8] sm:$0xff]
    %v147 = vld [vmem:[#allocation2 + $0x100] sm:$0xff]
    %v148 = vld [vmem:[#allocation2 + $0x108] sm:$0xff]
    %v149 = vld [vmem:[#allocation2 + $0x110] sm:$0xff]
    %v150 = vld [vmem:[#allocation2 + $0x118] sm:$0xff]
    %v151 = vld [vmem:[#allocation2 + $0x120] sm:$0xff]
    %v152 = vld [vmem:[#allocation2 + $0x128] sm:$0xff]
    %v153 = vld [vmem:[#allocation2 + $0x130] sm:$0xff]
    %v154 = vld [vmem:[#allocation2 + $0x138] sm:$0xff]
    %v155 = vld [vmem:[#allocation2 + $0x140] sm:$0xff]
    %v156 = vld [vmem:[#allocation2 + $0x148] sm:$0xff]
    %v157 = vld [vmem:[#allocation2 + $0x150] sm:$0xff]
    %v158 = vld [vmem:[#allocation2 + $0x158] sm:$0xff]
    %v159 = vld [vmem:[#allocation2 + $0x160] sm:$0xff]
    %v160 = vld [vmem:[#allocation2 + $0x168] sm:$0xff]
    %v161 = vld [vmem:[#allocation2 + $0x170] sm:$0xff]
    %v162 = vld [vmem:[#allocation2 + $0x178] sm:$0xff]
    %v163 = vld [vmem:[#allocation2 + $0x180] sm:$0xff]
    %v164 = vld [vmem:[#allocation2 + $0x188] sm:$0xff]
    %v165 = vld [vmem:[#allocation2 + $0x190] sm:$0xff]
    %v166 = vld [vmem:[#allocation2 + $0x198] sm:$0xff]
    %v167 = vld [vmem:[#allocation2 + $0x1a0] sm:$0xff]
    %v168 = vld [vmem:[#allocation2 + $0x1a8] sm:$0xff]
    %v169 = vld [vmem:[#allocation2 + $0x1b0] sm:$0xff]
    %v170 = vld [vmem:[#allocation2 + $0x1b8] sm:$0xff]
    %v171 = vld [vmem:[#allocation2 + $0x1c0] sm:$0xff]
    %v172 = vld [vmem:[#allocation2 + $0x1c8] sm:$0xff]
    %v173 = vld [vmem:[#allocation2 + $0x1d0] sm:$0xff]
    %v174 = vld [vmem:[#allocation2 + $0x1d8] sm:$0xff]
    %v175 = vld [vmem:[#allocation2 + $0x1e0] sm:$0xff]
    %v176 = vld [vmem:[#allocation2 + $0x1e8] sm:$0xff]
    %v177 = vld [vmem:[#allocation2 + $0x1f0] sm:$0xff]
    %v178 = vld [vmem:[#allocation2 + $0x1f8] sm:$0xff]
    %v179 = vld [vmem:[#allocation2 + $0x200] sm:$0xff]
    %v180 = vld [vmem:[#allocation2 + $0x208] sm:$0xff]
    %v181 = vld [vmem:[#allocation2 + $0x210] sm:$0xff]
    %v182 = vld [vmem:[#allocation2 + $0x218] sm:$0xff]
    %v183 = vld [vmem:[#allocation2 + $0x220] sm:$0xff]
    %v184 = vld [vmem:[#allocation2 + $0x228] sm:$0xff]
    %v185 = vld [vmem:[#allocation2 + $0x230] sm:$0xff]
    %v186 = vld [vmem:[#allocation2 + $0x238] sm:$0xff]
    %v187 = vld [vmem:[#allocation2 + $0x240] sm:$0xff]
    %v188 = vld [vmem:[#allocation2 + $0x248] sm:$0xff]
    %v189 = vld [vmem:[#allocation2 + $0x250] sm:$0xff]
    %v190 = vld [vmem:[#allocation2 + $0x258] sm:$0xff]
    %v191 = vld [vmem:[#allocation2 + $0x260] sm:$0xff]
    %v192 = vld [vmem:[#allocation2 + $0x268] sm:$0xff]
    %v193 = vld [vmem:[#allocation2 + $0x270] sm:$0xff]
    %v194 = vld [vmem:[#allocation2 + $0x278] sm:$0xff]
    %v195 = vld [vmem:[#allocation2 + $0x280] sm:$0xff]
    %v196 = vld [vmem:[#allocation2 + $0x288] sm:$0xff]
    %v197 = vld [vmem:[#allocation2 + $0x290] sm:$0xff]
    %v198 = vld [vmem:[#allocation2 + $0x298] sm:$0xff]
    %v199 = vld [vmem:[#allocation2 + $0x2a0] sm:$0xff]
    %v200 = vld [vmem:[#allocation2 + $0x2a8] sm:$0xff]
    %v201 = vld [vmem:[#allocation2 + $0x2b0] sm:$0xff]
    %v202 = vld [vmem:[#allocation2 + $0x2b8] sm:$0xff]
    %v203 = vld [vmem:[#allocation2 + $0x2c0] sm:$0xff]
    %v204 = vld [vmem:[#allocation2 + $0x2c8] sm:$0xff]
    %v205 = vld [vmem:[#allocation2 + $0x2d0] sm:$0xff]
    %v206 = vld [vmem:[#allocation2 + $0x2d8] sm:$0xff]
    %v207 = vld [vmem:[#allocation2 + $0x2e0] sm:$0xff]
    %v208 = vld [vmem:[#allocation2 + $0x2e8] sm:$0xff]
    %v209 = vld [vmem:[#allocation2 + $0x2f0] sm:$0xff]
    %v210 = vld [vmem:[#allocation2 + $0x2f8] sm:$0xff]
    %v211 = vld [vmem:[#allocation2 + $0x300] sm:$0xff]
    %v212 = vld [vmem:[#allocation2 + $0x308] sm:$0xff]
    %v213 = vld [vmem:[#allocation2 + $0x310] sm:$0xff]
    %v214 = vld [vmem:[#allocation2 + $0x318] sm:$0xff]
    %v215 = vld [vmem:[#allocation2 + $0x320] sm:$0xff]
    %v216 = vld [vmem:[#allocation2 + $0x328] sm:$0xff]
    %v217 = vld [vmem:[#allocation2 + $0x330] sm:$0xff]
    %v218 = vld [vmem:[#allocation2 + $0x338] sm:$0xff]
    %v219 = vld [vmem:[#allocation2 + $0x340] sm:$0xff]
    %v220 = vld [vmem:[#allocation2 + $0x348] sm:$0xff]
    %v221 = vld [vmem:[#allocation2 + $0x350] sm:$0xff]
    %v222 = vld [vmem:[#allocation2 + $0x358] sm:$0xff]
    %v223 = vld [vmem:[#allocation2 + $0x360] sm:$0xff]
    %v224 = vld [vmem:[#allocation2 + $0x368] sm:$0xff]
    %v225 = vld [vmem:[#allocation2 + $0x370] sm:$0xff]
    %v226 = vld [vmem:[#allocation2 + $0x378] sm:$0xff]
    %v227 = vld [vmem:[#allocation2 + $0x380] sm:$0xff]
    %v228 = vld [vmem:[#allocation2 + $0x388] sm:$0xff]
    %v229 = vld [vmem:[#allocation2 + $0x390] sm:$0xff]
    %v230 = vld [vmem:[#allocation2 + $0x398] sm:$0xff]
    %v231 = vld [vmem:[#allocation2 + $0x3a0] sm:$0xff]
    %v232 = vld [vmem:[#allocation2 + $0x3a8] sm:$0xff]
    %v233 = vld [vmem:[#allocation2 + $0x3b0] sm:$0xff]
    %v234 = vld [vmem:[#allocation2 + $0x3b8] sm:$0xff]
    %v235 = vld [vmem:[#allocation2 + $0x3c0] sm:$0xff]
    %v236 = vld [vmem:[#allocation2 + $0x3c8] sm:$0xff]
    %v237 = vld [vmem:[#allocation2 + $0x3d0] sm:$0xff]
    %v238 = vld [vmem:[#allocation2 + $0x3d8] sm:$0xff]
    %v239 = vld [vmem:[#allocation2 + $0x3e0] sm:$0xff]
    %v240 = vld [vmem:[#allocation2 + $0x3e8] sm:$0xff]
    %v241 = vld [vmem:[#allocation2 + $0x3f0] sm:$0xff]
    %v242 = vld [vmem:[#allocation2 + $0x3f8] sm:$0xff]
    %v243 = vld [vmem:[#allocation2 + $0x400] sm:$0xff]
    %v244 = vld [vmem:[#allocation2 + $0x408] sm:$0xff]
    %v245 = vld [vmem:[#allocation2 + $0x410] sm:$0xff]
    %v246 = vld [vmem:[#allocation2 + $0x418] sm:$0xff]
    %v247 = vld [vmem:[#allocation2 + $0x420] sm:$0xff]
    %v248 = vld [vmem:[#allocation2 + $0x428] sm:$0xff]
    %v249 = vld [vmem:[#allocation2 + $0x430] sm:$0xff]
    %v250 = vld [vmem:[#allocation2 + $0x438] sm:$0xff]
    %v251 = vld [vmem:[#allocation2 + $0x440] sm:$0xff]
    %v252 = vld [vmem:[#allocation2 + $0x448] sm:$0xff]
    %v253 = vld [vmem:[#allocation2 + $0x450] sm:$0xff]
    %v254 = vld [vmem:[#allocation2 + $0x458] sm:$0xff]
    %v255 = vld [vmem:[#allocation2 + $0x460] sm:$0xff]
    %v256 = vld [vmem:[#allocation2 + $0x468] sm:$0xff]
    %v257 = vld [vmem:[#allocation2 + $0x470] sm:$0xff]
    %v258 = vld [vmem:[#allocation2 + $0x478] sm:$0xff]
    %v259 = vld [vmem:[#allocation2 + $0x480] sm:$0xff]
    %v260 = vld [vmem:[#allocation2 + $0x488] sm:$0xff]
    %v261 = vld [vmem:[#allocation2 + $0x490] sm:$0xff]
    %v262 = vld [vmem:[#allocation2 + $0x498] sm:$0xff]
    %v263 = vld [vmem:[#allocation2 + $0x4a0] sm:$0xff]
    %v264 = vld [vmem:[#allocation2 + $0x4a8] sm:$0xff]
    %v265 = vld [vmem:[#allocation2 + $0x4b0] sm:$0xff]
    %v266 = vld [vmem:[#allocation2 + $0x4b8] sm:$0xff]
    %v267 = vld [vmem:[#allocation2 + $0x4c0] sm:$0xff]
    %v268 = vld [vmem:[#allocation2 + $0x4c8] sm:$0xff]
    %v269 = vld [vmem:[#allocation2 + $0x4d0] sm:$0xff]
    %v270 = vld [vmem:[#allocation2 + $0x4d8] sm:$0xff]
    %v271 = vld [vmem:[#allocation2 + $0x4e0] sm:$0xff]
    %v272 = vld [vmem:[#allocation2 + $0x4e8] sm:$0xff]
    %v273 = vld [vmem:[#allocation2 + $0x4f0] sm:$0xff]
    %v274 = vld [vmem:[#allocation2 + $0x4f8] sm:$0xff]
    %v275 = vld [vmem:[#allocation2 + $0x500] sm:$0xff]
    %v276 = vld [vmem:[#allocation2 + $0x508] sm:$0xff]
    %v277 = vld [vmem:[#allocation2 + $0x510] sm:$0xff]
    %v278 = vld [vmem:[#allocation2 + $0x518] sm:$0xff]
    %v279 = vld [vmem:[#allocation2 + $0x520] sm:$0xff]
    %v280 = vld [vmem:[#allocation2 + $0x528] sm:$0xff]
    %v281 = vld [vmem:[#allocation2 + $0x530] sm:$0xff]
    %v282 = vld [vmem:[#allocation2 + $0x538] sm:$0xff]
    %v283 = vld [vmem:[#allocation2 + $0x540] sm:$0xff]
    %v284 = vld [vmem:[#allocation2 + $0x548] sm:$0xff]
    %v285 = vld [vmem:[#allocation2 + $0x550] sm:$0xff]
    %v286 = vld [vmem:[#allocation2 + $0x558] sm:$0xff]
    %v287 = vld [vmem:[#allocation2 + $0x560] sm:$0xff]
    %v288 = vld [vmem:[#allocation2 + $0x568] sm:$0xff]
    %v289 = vld [vmem:[#allocation2 + $0x570] sm:$0xff]
    %v290 = vld [vmem:[#allocation2 + $0x578] sm:$0xff]
    %v291 = vld [vmem:[#allocation2 + $0x580] sm:$0xff]
    %v292 = vld [vmem:[#allocation2 + $0x588] sm:$0xff]
    %v293 = vld [vmem:[#allocation2 + $0x590] sm:$0xff]
    %v294 = vld [vmem:[#allocation2 + $0x598] sm:$0xff]
    %v295 = vld [vmem:[#allocation2 + $0x5a0] sm:$0xff]
    %v296 = vld [vmem:[#allocation2 + $0x5a8] sm:$0xff]
    %v297 = vld [vmem:[#allocation2 + $0x5b0] sm:$0xff]
    %v298 = vld [vmem:[#allocation2 + $0x5b8] sm:$0xff]
    %v299 = vld [vmem:[#allocation2 + $0x5c0] sm:$0xff]
    %v300 = vld [vmem:[#allocation2 + $0x5c8] sm:$0xff]
    %v301 = vld [vmem:[#allocation2 + $0x5d0] sm:$0xff]
    %v302 = vld [vmem:[#allocation2 + $0x5d8] sm:$0xff]
    %v303 = vld [vmem:[#allocation2 + $0x5e0] sm:$0xff]
    %v304 = vld [vmem:[#allocation2 + $0x5e8] sm:$0xff]
    %v305 = vld [vmem:[#allocation2 + $0x5f0] sm:$0xff]
    %v306 = vld [vmem:[#allocation2 + $0x5f8] sm:$0xff]
    %v307 = vld [vmem:[#allocation2 + $0x600] sm:$0xff]
    %v308 = vld [vmem:[#allocation2 + $0x608] sm:$0xff]
    %v309 = vld [vmem:[#allocation2 + $0x610] sm:$0xff]
    %v310 = vld [vmem:[#allocation2 + $0x618] sm:$0xff]
    %v311 = vld [vmem:[#allocation2 + $0x620] sm:$0xff]
    %v312 = vld [vmem:[#allocation2 + $0x628] sm:$0xff]
    %v313 = vld [vmem:[#allocation2 + $0x630] sm:$0xff]
    %v314 = vld [vmem:[#allocation2 + $0x638] sm:$0xff]
    %v315 = vld [vmem:[#allocation2 + $0x640] sm:$0xff]
    %v316 = vld [vmem:[#allocation2 + $0x648] sm:$0xff]
    %v317 = vld [vmem:[#allocation2 + $0x650] sm:$0xff]
    %v318 = vld [vmem:[#allocation2 + $0x658] sm:$0xff]
    %v319 = vld [vmem:[#allocation2 + $0x660] sm:$0xff]
    %v320 = vld [vmem:[#allocation2 + $0x668] sm:$0xff]
    %v321 = vld [vmem:[#allocation2 + $0x670] sm:$0xff]
    %v322 = vld [vmem:[#allocation2 + $0x678] sm:$0xff]
    %v323 = vld [vmem:[#allocation2 + $0x680] sm:$0xff]
    %v324 = vld [vmem:[#allocation2 + $0x688] sm:$0xff]
    %v325 = vld [vmem:[#allocation2 + $0x690] sm:$0xff]
    %v326 = vld [vmem:[#allocation2 + $0x698] sm:$0xff]
    %v327 = vld [vmem:[#allocation2 + $0x6a0] sm:$0xff]
    %v328 = vld [vmem:[#allocation2 + $0x6a8] sm:$0xff]
    %v329 = vld [vmem:[#allocation2 + $0x6b0] sm:$0xff]
    %v330 = vld [vmem:[#allocation2 + $0x6b8] sm:$0xff]
    %v331 = vld [vmem:[#allocation2 + $0x6c0] sm:$0xff]
    %v332 = vld [vmem:[#allocation2 + $0x6c8] sm:$0xff]
    %v333 = vld [vmem:[#allocation2 + $0x6d0] sm:$0xff]
    %v334 = vld [vmem:[#allocation2 + $0x6d8] sm:$0xff]
    %v335 = vld [vmem:[#allocation2 + $0x6e0] sm:$0xff]
    %v336 = vld [vmem:[#allocation2 + $0x6e8] sm:$0xff]
    %v337 = vld [vmem:[#allocation2 + $0x6f0] sm:$0xff]
    %v338 = vld [vmem:[#allocation2 + $0x6f8] sm:$0xff]
    %v339 = vld [vmem:[%s2] sm:$0xf]
    %v341 = vlaneseq
    %v342 = vshrl.u32 %v341, 7
    %v343 = vsub.s32 0, %v342
    %v344 = vrot.slane %v339, %v343
    %v345 = vlaneseq
    %v346 = vshrl.u32 %v345, 7
    %v347 = vsub.s32 1, %v346
    %v348 = vrot.slane %v339, %v347
    %v349 = vlaneseq
    %v350 = vshrl.u32 %v349, 7
    %v351 = vsub.s32 2, %v350
    %v352 = vrot.slane %v339, %v351
    %v353 = vlaneseq
    %v354 = vshrl.u32 %v353, 7
    %v355 = vsub.s32 3, %v354
    %v356 = vrot.slane %v339, %v355
    %v369 = vunpack.c.l.b16 %v107
    %v370 = vunpack.c.h.b16 %v107
    %v371 = vunpack.c.l.b16 %v108
    %v372 = vunpack.c.h.b16 %v108
    %v373 = vunpack.c.l.b16 %v109
    %v374 = vunpack.c.h.b16 %v109
    %v375 = vunpack.c.l.b16 %v110
    %v376 = vunpack.c.l.b16 %v111
    %v377 = vunpack.c.h.b16 %v111
    %v378 = vunpack.c.l.b16 %v112
    %v379 = vunpack.c.h.b16 %v112
    %v380 = vunpack.c.l.b16 %v113
    %v381 = vunpack.c.h.b16 %v113
    %v382 = vunpack.c.l.b16 %v114
    %v383 = vpack.c.b16 %v376, %v369
    %v384 = vpack.c.b16 %v377, %v370
    %v385 = vpack.c.b16 %v378, %v371
    %v386 = vpack.c.b16 %v379, %v372
    %v387 = vpack.c.b16 %v380, %v373
    %v388 = vpack.c.b16 %v381, %v374
    %v389 = vpack.c.b16 %v382, %v375
    %v621 = vunpack.c.l.b16 %v115
    %v622 = vunpack.c.h.b16 %v115
    %v623 = vunpack.c.l.b16 %v116
    %v624 = vunpack.c.h.b16 %v116
    %v625 = vunpack.c.l.b16 %v117
    %v626 = vunpack.c.h.b16 %v117
    %v627 = vunpack.c.l.b16 %v118
    %v628 = vunpack.c.h.b16 %v118
    %v629 = vunpack.c.l.b16 %v119
    %v630 = vunpack.c.h.b16 %v119
    %v631 = vunpack.c.l.b16 %v120
    %v632 = vunpack.c.h.b16 %v120
    %v633 = vunpack.c.l.b16 %v121
    %v634 = vunpack.c.h.b16 %v121
    %v635 = vunpack.c.l.b16 %v122
    %v636 = vunpack.c.h.b16 %v122
    %v637 = vunpack.c.l.b16 %v123
    %v638 = vunpack.c.h.b16 %v123
    %v639 = vunpack.c.l.b16 %v124
    %v640 = vunpack.c.h.b16 %v124
    %v641 = vunpack.c.l.b16 %v125
    %v642 = vunpack.c.h.b16 %v125
    %v643 = vunpack.c.l.b16 %v126
    %v644 = vunpack.c.h.b16 %v126
    %v645 = vunpack.c.l.b16 %v127
    %v646 = vunpack.c.h.b16 %v127
    %v647 = vunpack.c.l.b16 %v128
    %v648 = vunpack.c.h.b16 %v128
    %v649 = vunpack.c.l.b16 %v129
    %v650 = vunpack.c.h.b16 %v129
    %v651 = vunpack.c.l.b16 %v130
    %v652 = vunpack.c.h.b16 %v130
    %v653 = vunpack.c.l.b16 %v131
    %v654 = vunpack.c.h.b16 %v131
    %v655 = vunpack.c.l.b16 %v132
    %v656 = vunpack.c.h.b16 %v132
    %v657 = vunpack.c.l.b16 %v133
    %v658 = vunpack.c.h.b16 %v133
    %v659 = vunpack.c.l.b16 %v134
    %v660 = vunpack.c.h.b16 %v134
    %v661 = vunpack.c.l.b16 %v135
    %v662 = vunpack.c.h.b16 %v135
    %v663 = vunpack.c.l.b16 %v136
    %v664 = vunpack.c.h.b16 %v136
    %v665 = vunpack.c.l.b16 %v137
    %v666 = vunpack.c.h.b16 %v137
    %v667 = vunpack.c.l.b16 %v138
    %v668 = vunpack.c.h.b16 %v138
    %v669 = vunpack.c.l.b16 %v139
    %v670 = vunpack.c.h.b16 %v139
    %v671 = vunpack.c.l.b16 %v140
    %v672 = vunpack.c.h.b16 %v140
    %v673 = vunpack.c.l.b16 %v141
    %v674 = vunpack.c.h.b16 %v141
    %v675 = vunpack.c.l.b16 %v142
    %v676 = vunpack.c.h.b16 %v142
    %v677 = vunpack.c.l.b16 %v143
    %v678 = vunpack.c.h.b16 %v143
    %v679 = vunpack.c.l.b16 %v144
    %v680 = vunpack.c.h.b16 %v144
    %v681 = vunpack.c.l.b16 %v145
    %v682 = vunpack.c.h.b16 %v145
    %v683 = vunpack.c.l.b16 %v146
    %v684 = vunpack.c.h.b16 %v146
    %v685 = vunpack.c.l.b16 %v147
    %v686 = vunpack.c.h.b16 %v147
    %v687 = vunpack.c.l.b16 %v148
    %v688 = vunpack.c.h.b16 %v148
    %v689 = vunpack.c.l.b16 %v149
    %v690 = vunpack.c.h.b16 %v149
    %v691 = vunpack.c.l.b16 %v150
    %v692 = vunpack.c.h.b16 %v150
    %v693 = vunpack.c.l.b16 %v151
    %v694 = vunpack.c.h.b16 %v151
    %v695 = vunpack.c.l.b16 %v152
    %v696 = vunpack.c.h.b16 %v152
    %v697 = vunpack.c.l.b16 %v153
    %v698 = vunpack.c.h.b16 %v153
    %v699 = vunpack.c.l.b16 %v154
    %v700 = vunpack.c.h.b16 %v154
    %v701 = vunpack.c.l.b16 %v155
    %v702 = vunpack.c.h.b16 %v155
    %v703 = vunpack.c.l.b16 %v156
    %v704 = vunpack.c.h.b16 %v156
    %v705 = vunpack.c.l.b16 %v157
    %v706 = vunpack.c.h.b16 %v157
    %v707 = vunpack.c.l.b16 %v158
    %v708 = vunpack.c.h.b16 %v158
    %v709 = vunpack.c.l.b16 %v159
    %v710 = vunpack.c.h.b16 %v159
    %v711 = vunpack.c.l.b16 %v160
    %v712 = vunpack.c.h.b16 %v160
    %v713 = vunpack.c.l.b16 %v161
    %v714 = vunpack.c.h.b16 %v161
    %v715 = vunpack.c.l.b16 %v162
    %v716 = vunpack.c.h.b16 %v162
    %v717 = vunpack.c.l.b16 %v163
    %v718 = vunpack.c.h.b16 %v163
    %v719 = vunpack.c.l.b16 %v164
    %v720 = vunpack.c.h.b16 %v164
    %v721 = vunpack.c.l.b16 %v165
    %v722 = vunpack.c.h.b16 %v165
    %v723 = vunpack.c.l.b16 %v166
    %v724 = vunpack.c.h.b16 %v166
    %v725 = vunpack.c.l.b16 %v167
    %v726 = vunpack.c.h.b16 %v167
    %v727 = vunpack.c.l.b16 %v168
    %v728 = vunpack.c.h.b16 %v168
    %v729 = vunpack.c.l.b16 %v169
    %v730 = vunpack.c.h.b16 %v169
    %v731 = vunpack.c.l.b16 %v170
    %v732 = vunpack.c.h.b16 %v170
    %v733 = vunpack.c.l.b16 %v171
    %v734 = vunpack.c.h.b16 %v171
    %v735 = vunpack.c.l.b16 %v172
    %v736 = vunpack.c.h.b16 %v172
    %v737 = vunpack.c.l.b16 %v173
    %v738 = vunpack.c.h.b16 %v173
    %v739 = vunpack.c.l.b16 %v174
    %v740 = vunpack.c.h.b16 %v174
    %v741 = vunpack.c.l.b16 %v175
    %v742 = vunpack.c.h.b16 %v175
    %v743 = vunpack.c.l.b16 %v176
    %v744 = vunpack.c.h.b16 %v176
    %v745 = vunpack.c.l.b16 %v177
    %v746 = vunpack.c.h.b16 %v177
    %v747 = vunpack.c.l.b16 %v178
    %v748 = vunpack.c.h.b16 %v178
    %v749 = vunpack.c.l.b16 %v179
    %v750 = vunpack.c.h.b16 %v179
    %v751 = vunpack.c.l.b16 %v180
    %v752 = vunpack.c.h.b16 %v180
    %v753 = vunpack.c.l.b16 %v181
    %v754 = vunpack.c.h.b16 %v181
    %v755 = vunpack.c.l.b16 %v182
    %v756 = vunpack.c.h.b16 %v182
    %v757 = vunpack.c.l.b16 %v183
    %v758 = vunpack.c.h.b16 %v183
    %v759 = vunpack.c.l.b16 %v184
    %v760 = vunpack.c.h.b16 %v184
    %v761 = vunpack.c.l.b16 %v185
    %v762 = vunpack.c.h.b16 %v185
    %v763 = vunpack.c.l.b16 %v186
    %v764 = vunpack.c.h.b16 %v186
    %v765 = vunpack.c.l.b16 %v187
    %v766 = vunpack.c.h.b16 %v187
    %v767 = vunpack.c.l.b16 %v188
    %v768 = vunpack.c.h.b16 %v188
    %v769 = vunpack.c.l.b16 %v189
    %v770 = vunpack.c.h.b16 %v189
    %v771 = vunpack.c.l.b16 %v190
    %v772 = vunpack.c.h.b16 %v190
    %v773 = vunpack.c.l.b16 %v191
    %v774 = vunpack.c.h.b16 %v191
    %v775 = vunpack.c.l.b16 %v192
    %v776 = vunpack.c.h.b16 %v192
    %v777 = vunpack.c.l.b16 %v193
    %v778 = vunpack.c.h.b16 %v193
    %v779 = vunpack.c.l.b16 %v194
    %v780 = vunpack.c.h.b16 %v194
    %v781 = vunpack.c.l.b16 %v195
    %v782 = vunpack.c.h.b16 %v195
    %v783 = vunpack.c.l.b16 %v196
    %v784 = vunpack.c.h.b16 %v196
    %v785 = vunpack.c.l.b16 %v197
    %v786 = vunpack.c.h.b16 %v197
    %v787 = vunpack.c.l.b16 %v198
    %v788 = vunpack.c.h.b16 %v198
    %v789 = vunpack.c.l.b16 %v199
    %v790 = vunpack.c.h.b16 %v199
    %v791 = vunpack.c.l.b16 %v200
    %v792 = vunpack.c.h.b16 %v200
    %v793 = vunpack.c.l.b16 %v201
    %v794 = vunpack.c.h.b16 %v201
    %v795 = vunpack.c.l.b16 %v202
    %v796 = vunpack.c.h.b16 %v202
    %v797 = vunpack.c.l.b16 %v203
    %v798 = vunpack.c.h.b16 %v203
    %v799 = vunpack.c.l.b16 %v204
    %v800 = vunpack.c.h.b16 %v204
    %v801 = vunpack.c.l.b16 %v205
    %v802 = vunpack.c.h.b16 %v205
    %v803 = vunpack.c.l.b16 %v206
    %v804 = vunpack.c.h.b16 %v206
    %v805 = vunpack.c.l.b16 %v207
    %v806 = vunpack.c.h.b16 %v207
    %v807 = vunpack.c.l.b16 %v208
    %v808 = vunpack.c.h.b16 %v208
    %v809 = vunpack.c.l.b16 %v209
    %v810 = vunpack.c.h.b16 %v209
    %v811 = vunpack.c.l.b16 %v210
    %v812 = vunpack.c.h.b16 %v210
    %v813 = vunpack.c.l.b16 %v211
    %v814 = vunpack.c.h.b16 %v211
    %v815 = vunpack.c.l.b16 %v212
    %v816 = vunpack.c.h.b16 %v212
    %v817 = vunpack.c.l.b16 %v213
    %v818 = vunpack.c.h.b16 %v213
    %v819 = vunpack.c.l.b16 %v214
    %v820 = vunpack.c.h.b16 %v214
    %v821 = vunpack.c.l.b16 %v215
    %v822 = vunpack.c.h.b16 %v215
    %v823 = vunpack.c.l.b16 %v216
    %v824 = vunpack.c.h.b16 %v216
    %v825 = vunpack.c.l.b16 %v217
    %v826 = vunpack.c.h.b16 %v217
    %v827 = vunpack.c.l.b16 %v218
    %v828 = vunpack.c.h.b16 %v218
    %v829 = vunpack.c.l.b16 %v219
    %v830 = vunpack.c.h.b16 %v219
    %v831 = vunpack.c.l.b16 %v220
    %v832 = vunpack.c.h.b16 %v220
    %v833 = vunpack.c.l.b16 %v221
    %v834 = vunpack.c.h.b16 %v221
    %v835 = vunpack.c.l.b16 %v222
    %v836 = vunpack.c.h.b16 %v222
    %v837 = vunpack.c.l.b16 %v223
    %v838 = vunpack.c.h.b16 %v223
    %v839 = vunpack.c.l.b16 %v224
    %v840 = vunpack.c.h.b16 %v224
    %v841 = vunpack.c.l.b16 %v225
    %v842 = vunpack.c.h.b16 %v225
    %v843 = vunpack.c.l.b16 %v226
    %v844 = vunpack.c.h.b16 %v226
    %v845 = vunpack.c.l.b16 %v227
    %v846 = vunpack.c.h.b16 %v227
    %v847 = vunpack.c.l.b16 %v228
    %v848 = vunpack.c.h.b16 %v228
    %v849 = vunpack.c.l.b16 %v229
    %v850 = vunpack.c.h.b16 %v229
    %v851 = vunpack.c.l.b16 %v230
    %v852 = vunpack.c.h.b16 %v230
    %v853 = vunpack.c.l.b16 %v231
    %v854 = vunpack.c.h.b16 %v231
    %v855 = vunpack.c.l.b16 %v232
    %v856 = vunpack.c.h.b16 %v232
    %v857 = vunpack.c.l.b16 %v233
    %v858 = vunpack.c.h.b16 %v233
    %v859 = vunpack.c.l.b16 %v234
    %v860 = vunpack.c.h.b16 %v234
    %v861 = vunpack.c.l.b16 %v235
    %v862 = vunpack.c.h.b16 %v235
    %v863 = vunpack.c.l.b16 %v236
    %v864 = vunpack.c.h.b16 %v236
    %v865 = vunpack.c.l.b16 %v237
    %v866 = vunpack.c.h.b16 %v237
    %v867 = vunpack.c.l.b16 %v238
    %v868 = vunpack.c.h.b16 %v238
    %v869 = vunpack.c.l.b16 %v239
    %v870 = vunpack.c.h.b16 %v239
    %v871 = vunpack.c.l.b16 %v240
    %v872 = vunpack.c.h.b16 %v240
    %v873 = vunpack.c.l.b16 %v241
    %v874 = vunpack.c.h.b16 %v241
    %v875 = vunpack.c.l.b16 %v242
    %v876 = vunpack.c.h.b16 %v242
    %v877 = vunpack.c.l.b16 %v243
    %v878 = vunpack.c.h.b16 %v243
    %v879 = vunpack.c.l.b16 %v244
    %v880 = vunpack.c.h.b16 %v244
    %v881 = vunpack.c.l.b16 %v245
    %v882 = vunpack.c.h.b16 %v245
    %v883 = vunpack.c.l.b16 %v246
    %v884 = vunpack.c.h.b16 %v246
    %v885 = vunpack.c.l.b16 %v247
    %v886 = vunpack.c.h.b16 %v247
    %v887 = vunpack.c.l.b16 %v248
    %v888 = vunpack.c.h.b16 %v248
    %v889 = vunpack.c.l.b16 %v249
    %v890 = vunpack.c.h.b16 %v249
    %v891 = vunpack.c.l.b16 %v250
    %v892 = vunpack.c.h.b16 %v250
    %v893 = vunpack.c.l.b16 %v251
    %v894 = vunpack.c.h.b16 %v251
    %v895 = vunpack.c.l.b16 %v252
    %v896 = vunpack.c.h.b16 %v252
    %v897 = vunpack.c.l.b16 %v253
    %v898 = vunpack.c.h.b16 %v253
    %v899 = vunpack.c.l.b16 %v254
    %v900 = vunpack.c.h.b16 %v254
    %v901 = vunpack.c.l.b16 %v255
    %v902 = vunpack.c.h.b16 %v255
    %v903 = vunpack.c.l.b16 %v256
    %v904 = vunpack.c.h.b16 %v256
    %v905 = vunpack.c.l.b16 %v257
    %v906 = vunpack.c.h.b16 %v257
    %v907 = vunpack.c.l.b16 %v258
    %v908 = vunpack.c.h.b16 %v258
    %v909 = vunpack.c.l.b16 %v259
    %v910 = vunpack.c.h.b16 %v259
    %v911 = vunpack.c.l.b16 %v260
    %v912 = vunpack.c.h.b16 %v260
    %v913 = vunpack.c.l.b16 %v261
    %v914 = vunpack.c.h.b16 %v261
    %v915 = vunpack.c.l.b16 %v262
    %v916 = vunpack.c.h.b16 %v262
    %v917 = vunpack.c.l.b16 %v263
    %v918 = vunpack.c.h.b16 %v263
    %v919 = vunpack.c.l.b16 %v264
    %v920 = vunpack.c.h.b16 %v264
    %v921 = vunpack.c.l.b16 %v265
    %v922 = vunpack.c.h.b16 %v265
    %v923 = vunpack.c.l.b16 %v266
    %v924 = vunpack.c.h.b16 %v266
    %v925 = vunpack.c.l.b16 %v267
    %v926 = vunpack.c.h.b16 %v267
    %v927 = vunpack.c.l.b16 %v268
    %v928 = vunpack.c.h.b16 %v268
    %v929 = vunpack.c.l.b16 %v269
    %v930 = vunpack.c.h.b16 %v269
    %v931 = vunpack.c.l.b16 %v270
    %v932 = vunpack.c.h.b16 %v270
    %v933 = vunpack.c.l.b16 %v271
    %v934 = vunpack.c.h.b16 %v271
    %v935 = vunpack.c.l.b16 %v272
    %v936 = vunpack.c.h.b16 %v272
    %v937 = vunpack.c.l.b16 %v273
    %v938 = vunpack.c.h.b16 %v273
    %v939 = vunpack.c.l.b16 %v274
    %v940 = vunpack.c.h.b16 %v274
    %v941 = vunpack.c.l.b16 %v275
    %v942 = vunpack.c.h.b16 %v275
    %v943 = vunpack.c.l.b16 %v276
    %v944 = vunpack.c.h.b16 %v276
    %v945 = vunpack.c.l.b16 %v277
    %v946 = vunpack.c.h.b16 %v277
    %v947 = vunpack.c.l.b16 %v278
    %v948 = vunpack.c.h.b16 %v278
    %v949 = vunpack.c.l.b16 %v279
    %v950 = vunpack.c.h.b16 %v279
    %v951 = vunpack.c.l.b16 %v280
    %v952 = vunpack.c.h.b16 %v280
    %v953 = vunpack.c.l.b16 %v281
    %v954 = vunpack.c.h.b16 %v281
    %v955 = vunpack.c.l.b16 %v282
    %v956 = vunpack.c.h.b16 %v282
    %v957 = vunpack.c.l.b16 %v283
    %v958 = vunpack.c.h.b16 %v283
    %v959 = vunpack.c.l.b16 %v284
    %v960 = vunpack.c.h.b16 %v284
    %v961 = vunpack.c.l.b16 %v285
    %v962 = vunpack.c.h.b16 %v285
    %v963 = vunpack.c.l.b16 %v286
    %v964 = vunpack.c.h.b16 %v286
    %v965 = vunpack.c.l.b16 %v287
    %v966 = vunpack.c.h.b16 %v287
    %v967 = vunpack.c.l.b16 %v288
    %v968 = vunpack.c.h.b16 %v288
    %v969 = vunpack.c.l.b16 %v289
    %v970 = vunpack.c.h.b16 %v289
    %v971 = vunpack.c.l.b16 %v290
    %v972 = vunpack.c.h.b16 %v290
    %v973 = vunpack.c.l.b16 %v291
    %v974 = vunpack.c.h.b16 %v291
    %v975 = vunpack.c.l.b16 %v292
    %v976 = vunpack.c.h.b16 %v292
    %v977 = vunpack.c.l.b16 %v293
    %v978 = vunpack.c.h.b16 %v293
    %v979 = vunpack.c.l.b16 %v294
    %v980 = vunpack.c.h.b16 %v294
    %v981 = vunpack.c.l.b16 %v295
    %v982 = vunpack.c.h.b16 %v295
    %v983 = vunpack.c.l.b16 %v296
    %v984 = vunpack.c.h.b16 %v296
    %v985 = vunpack.c.l.b16 %v297
    %v986 = vunpack.c.h.b16 %v297
    %v987 = vunpack.c.l.b16 %v298
    %v988 = vunpack.c.h.b16 %v298
    %v989 = vunpack.c.l.b16 %v299
    %v990 = vunpack.c.h.b16 %v299
    %v991 = vunpack.c.l.b16 %v300
    %v992 = vunpack.c.h.b16 %v300
    %v993 = vunpack.c.l.b16 %v301
    %v994 = vunpack.c.h.b16 %v301
    %v995 = vunpack.c.l.b16 %v302
    %v996 = vunpack.c.h.b16 %v302
    %v997 = vunpack.c.l.b16 %v303
    %v998 = vunpack.c.h.b16 %v303
    %v999 = vunpack.c.l.b16 %v304
    %v1000 = vunpack.c.h.b16 %v304
    %v1001 = vunpack.c.l.b16 %v305
    %v1002 = vunpack.c.h.b16 %v305
    %v1003 = vunpack.c.l.b16 %v306
    %v1004 = vunpack.c.h.b16 %v306
    %v1005 = vunpack.c.l.b16 %v307
    %v1006 = vunpack.c.h.b16 %v307
    %v1007 = vunpack.c.l.b16 %v308
    %v1008 = vunpack.c.h.b16 %v308
    %v1009 = vunpack.c.l.b16 %v309
    %v1010 = vunpack.c.h.b16 %v309
    %v1011 = vunpack.c.l.b16 %v310
    %v1012 = vunpack.c.h.b16 %v310
    %v1013 = vunpack.c.l.b16 %v311
    %v1014 = vunpack.c.h.b16 %v311
    %v1015 = vunpack.c.l.b16 %v312
    %v1016 = vunpack.c.h.b16 %v312
    %v1017 = vunpack.c.l.b16 %v313
    %v1018 = vunpack.c.h.b16 %v313
    %v1019 = vunpack.c.l.b16 %v314
    %v1020 = vunpack.c.h.b16 %v314
    %v1021 = vunpack.c.l.b16 %v315
    %v1022 = vunpack.c.h.b16 %v315
    %v1023 = vunpack.c.l.b16 %v316
    %v1024 = vunpack.c.h.b16 %v316
    %v1025 = vunpack.c.l.b16 %v317
    %v1026 = vunpack.c.h.b16 %v317
    %v1027 = vunpack.c.l.b16 %v318
    %v1028 = vunpack.c.h.b16 %v318
    %v1029 = vunpack.c.l.b16 %v319
    %v1030 = vunpack.c.h.b16 %v319
    %v1031 = vunpack.c.l.b16 %v320
    %v1032 = vunpack.c.h.b16 %v320
    %v1033 = vunpack.c.l.b16 %v321
    %v1034 = vunpack.c.h.b16 %v321
    %v1035 = vunpack.c.l.b16 %v322
    %v1036 = vunpack.c.h.b16 %v322
    %v1037 = vunpack.c.l.b16 %v323
    %v1038 = vunpack.c.h.b16 %v323
    %v1039 = vunpack.c.l.b16 %v324
    %v1040 = vunpack.c.h.b16 %v324
    %v1041 = vunpack.c.l.b16 %v325
    %v1042 = vunpack.c.h.b16 %v325
    %v1043 = vunpack.c.l.b16 %v326
    %v1044 = vunpack.c.h.b16 %v326
    %v1045 = vunpack.c.l.b16 %v327
    %v1046 = vunpack.c.h.b16 %v327
    %v1047 = vunpack.c.l.b16 %v328
    %v1048 = vunpack.c.h.b16 %v328
    %v1049 = vunpack.c.l.b16 %v329
    %v1050 = vunpack.c.h.b16 %v329
    %v1051 = vunpack.c.l.b16 %v330
    %v1052 = vunpack.c.h.b16 %v330
    %v1053 = vunpack.c.l.b16 %v331
    %v1054 = vunpack.c.h.b16 %v331
    %v1055 = vunpack.c.l.b16 %v332
    %v1056 = vunpack.c.h.b16 %v332
    %v1057 = vunpack.c.l.b16 %v333
    %v1058 = vunpack.c.h.b16 %v333
    %v1059 = vunpack.c.l.b16 %v334
    %v1060 = vunpack.c.h.b16 %v334
    %v1061 = vunpack.c.l.b16 %v335
    %v1062 = vunpack.c.h.b16 %v335
    %v1063 = vunpack.c.l.b16 %v336
    %v1064 = vunpack.c.h.b16 %v336
    %v1065 = vunpack.c.l.b16 %v337
    %v1066 = vunpack.c.h.b16 %v337
    %v1067 = vunpack.c.l.b16 %v338
    %v1068 = vunpack.c.h.b16 %v338
    %v1069 = vpack.c.b16 %v625, %v621
    %v1070 = vpack.c.b16 %v626, %v622
    %v1071 = vpack.c.b16 %v627, %v623
    %v1072 = vpack.c.b16 %v628, %v624
    %v1073 = vpack.c.b16 %v633, %v629
    %v1074 = vpack.c.b16 %v634, %v630
    %v1075 = vpack.c.b16 %v635, %v631
    %v1076 = vpack.c.b16 %v636, %v632
    %v1077 = vpack.c.b16 %v641, %v637
    %v1078 = vpack.c.b16 %v642, %v638
    %v1079 = vpack.c.b16 %v643, %v639
    %v1080 = vpack.c.b16 %v644, %v640
    %v1081 = vpack.c.b16 %v649, %v645
    %v1082 = vpack.c.b16 %v650, %v646
    %v1083 = vpack.c.b16 %v651, %v647
    %v1084 = vpack.c.b16 %v652, %v648
    %v1085 = vpack.c.b16 %v657, %v653
    %v1086 = vpack.c.b16 %v658, %v654
    %v1087 = vpack.c.b16 %v659, %v655
    %v1088 = vpack.c.b16 %v660, %v656
    %v1089 = vpack.c.b16 %v665, %v661
    %v1090 = vpack.c.b16 %v666, %v662
    %v1091 = vpack.c.b16 %v667, %v663
    %v1092 = vpack.c.b16 %v668, %v664
    %v1093 = vpack.c.b16 %v673, %v669
    %v1094 = vpack.c.b16 %v674, %v670
    %v1095 = vpack.c.b16 %v675, %v671
    %v1096 = vpack.c.b16 %v676, %v672
    %v1097 = vpack.c.b16 %v681, %v677
    %v1098 = vpack.c.b16 %v682, %v678
    %v1099 = vpack.c.b16 %v683, %v679
    %v1100 = vpack.c.b16 %v684, %v680
    %v1101 = vpack.c.b16 %v689, %v685
    %v1102 = vpack.c.b16 %v690, %v686
    %v1103 = vpack.c.b16 %v691, %v687
    %v1104 = vpack.c.b16 %v692, %v688
    %v1105 = vpack.c.b16 %v697, %v693
    %v1106 = vpack.c.b16 %v698, %v694
    %v1107 = vpack.c.b16 %v699, %v695
    %v1108 = vpack.c.b16 %v700, %v696
    %v1109 = vpack.c.b16 %v705, %v701
    %v1110 = vpack.c.b16 %v706, %v702
    %v1111 = vpack.c.b16 %v707, %v703
    %v1112 = vpack.c.b16 %v708, %v704
    %v1113 = vpack.c.b16 %v713, %v709
    %v1114 = vpack.c.b16 %v714, %v710
    %v1115 = vpack.c.b16 %v715, %v711
    %v1116 = vpack.c.b16 %v716, %v712
    %v1117 = vpack.c.b16 %v721, %v717
    %v1118 = vpack.c.b16 %v722, %v718
    %v1119 = vpack.c.b16 %v723, %v719
    %v1120 = vpack.c.b16 %v724, %v720
    %v1121 = vpack.c.b16 %v729, %v725
    %v1122 = vpack.c.b16 %v730, %v726
    %v1123 = vpack.c.b16 %v731, %v727
    %v1124 = vpack.c.b16 %v732, %v728
    %v1125 = vpack.c.b16 %v737, %v733
    %v1126 = vpack.c.b16 %v738, %v734
    %v1127 = vpack.c.b16 %v739, %v735
    %v1128 = vpack.c.b16 %v740, %v736
    %v1129 = vpack.c.b16 %v745, %v741
    %v1130 = vpack.c.b16 %v746, %v742
    %v1131 = vpack.c.b16 %v747, %v743
    %v1132 = vpack.c.b16 %v748, %v744
    %v1133 = vpack.c.b16 %v753, %v749
    %v1134 = vpack.c.b16 %v754, %v750
    %v1135 = vpack.c.b16 %v755, %v751
    %v1136 = vpack.c.b16 %v756, %v752
    %v1137 = vpack.c.b16 %v761, %v757
    %v1138 = vpack.c.b16 %v762, %v758
    %v1139 = vpack.c.b16 %v763, %v759
    %v1140 = vpack.c.b16 %v764, %v760
    %v1141 = vpack.c.b16 %v769, %v765
    %v1142 = vpack.c.b16 %v770, %v766
    %v1143 = vpack.c.b16 %v771, %v767
    %v1144 = vpack.c.b16 %v772, %v768
    %v1145 = vpack.c.b16 %v777, %v773
    %v1146 = vpack.c.b16 %v778, %v774
    %v1147 = vpack.c.b16 %v779, %v775
    %v1148 = vpack.c.b16 %v780, %v776
    %v1149 = vpack.c.b16 %v785, %v781
    %v1150 = vpack.c.b16 %v786, %v782
    %v1151 = vpack.c.b16 %v787, %v783
    %v1152 = vpack.c.b16 %v788, %v784
    %v1153 = vpack.c.b16 %v793, %v789
    %v1154 = vpack.c.b16 %v794, %v790
    %v1155 = vpack.c.b16 %v795, %v791
    %v1156 = vpack.c.b16 %v796, %v792
    %v1157 = vpack.c.b16 %v801, %v797
    %v1158 = vpack.c.b16 %v802, %v798
    %v1159 = vpack.c.b16 %v803, %v799
    %v1160 = vpack.c.b16 %v804, %v800
    %v1161 = vpack.c.b16 %v809, %v805
    %v1162 = vpack.c.b16 %v810, %v806
    %v1163 = vpack.c.b16 %v811, %v807
    %v1164 = vpack.c.b16 %v812, %v808
    %v1165 = vpack.c.b16 %v817, %v813
    %v1166 = vpack.c.b16 %v818, %v814
    %v1167 = vpack.c.b16 %v819, %v815
    %v1168 = vpack.c.b16 %v820, %v816
    %v1169 = vpack.c.b16 %v825, %v821
    %v1170 = vpack.c.b16 %v826, %v822
    %v1171 = vpack.c.b16 %v827, %v823
    %v1172 = vpack.c.b16 %v828, %v824
    %v1173 = vpack.c.b16 %v833, %v829
    %v1174 = vpack.c.b16 %v834, %v830
    %v1175 = vpack.c.b16 %v835, %v831
    %v1176 = vpack.c.b16 %v836, %v832
    %v1177 = vpack.c.b16 %v841, %v837
    %v1178 = vpack.c.b16 %v842, %v838
    %v1179 = vpack.c.b16 %v843, %v839
    %v1180 = vpack.c.b16 %v844, %v840
    %v1181 = vpack.c.b16 %v849, %v845
    %v1182 = vpack.c.b16 %v850, %v846
    %v1183 = vpack.c.b16 %v851, %v847
    %v1184 = vpack.c.b16 %v852, %v848
    %v1185 = vpack.c.b16 %v857, %v853
    %v1186 = vpack.c.b16 %v858, %v854
    %v1187 = vpack.c.b16 %v859, %v855
    %v1188 = vpack.c.b16 %v860, %v856
    %v1189 = vpack.c.b16 %v865, %v861
    %v1190 = vpack.c.b16 %v866, %v862
    %v1191 = vpack.c.b16 %v867, %v863
    %v1192 = vpack.c.b16 %v868, %v864
    %v1193 = vpack.c.b16 %v873, %v869
    %v1194 = vpack.c.b16 %v874, %v870
    %v1195 = vpack.c.b16 %v875, %v871
    %v1196 = vpack.c.b16 %v876, %v872
    %v1197 = vpack.c.b16 %v881, %v877
    %v1198 = vpack.c.b16 %v882, %v878
    %v1199 = vpack.c.b16 %v883, %v879
    %v1200 = vpack.c.b16 %v884, %v880
    %v1201 = vpack.c.b16 %v889, %v885
    %v1202 = vpack.c.b16 %v890, %v886
    %v1203 = vpack.c.b16 %v891, %v887
    %v1204 = vpack.c.b16 %v892, %v888
    %v1205 = vpack.c.b16 %v897, %v893
    %v1206 = vpack.c.b16 %v898, %v894
    %v1207 = vpack.c.b16 %v899, %v895
    %v1208 = vpack.c.b16 %v900, %v896
    %v1209 = vpack.c.b16 %v905, %v901
    %v1210 = vpack.c.b16 %v906, %v902
    %v1211 = vpack.c.b16 %v907, %v903
    %v1212 = vpack.c.b16 %v908, %v904
    %v1213 = vpack.c.b16 %v913, %v909
    %v1214 = vpack.c.b16 %v914, %v910
    %v1215 = vpack.c.b16 %v915, %v911
    %v1216 = vpack.c.b16 %v916, %v912
    %v1217 = vpack.c.b16 %v921, %v917
    %v1218 = vpack.c.b16 %v922, %v918
    %v1219 = vpack.c.b16 %v923, %v919
    %v1220 = vpack.c.b16 %v924, %v920
    %v1221 = vpack.c.b16 %v929, %v925
    %v1222 = vpack.c.b16 %v930, %v926
    %v1223 = vpack.c.b16 %v931, %v927
    %v1224 = vpack.c.b16 %v932, %v928
    %v1225 = vpack.c.b16 %v937, %v933
    %v1226 = vpack.c.b16 %v938, %v934
    %v1227 = vpack.c.b16 %v939, %v935
    %v1228 = vpack.c.b16 %v940, %v936
    %v1229 = vpack.c.b16 %v945, %v941
    %v1230 = vpack.c.b16 %v946, %v942
    %v1231 = vpack.c.b16 %v947, %v943
    %v1232 = vpack.c.b16 %v948, %v944
    %v1233 = vpack.c.b16 %v953, %v949
    %v1234 = vpack.c.b16 %v954, %v950
    %v1235 = vpack.c.b16 %v955, %v951
    %v1236 = vpack.c.b16 %v956, %v952
    %v1237 = vpack.c.b16 %v961, %v957
    %v1238 = vpack.c.b16 %v962, %v958
    %v1239 = vpack.c.b16 %v963, %v959
    %v1240 = vpack.c.b16 %v964, %v960
    %v1241 = vpack.c.b16 %v969, %v965
    %v1242 = vpack.c.b16 %v970, %v966
    %v1243 = vpack.c.b16 %v971, %v967
    %v1244 = vpack.c.b16 %v972, %v968
    %v1245 = vpack.c.b16 %v977, %v973
    %v1246 = vpack.c.b16 %v978, %v974
    %v1247 = vpack.c.b16 %v979, %v975
    %v1248 = vpack.c.b16 %v980, %v976
    %v1249 = vpack.c.b16 %v985, %v981
    %v1250 = vpack.c.b16 %v986, %v982
    %v1251 = vpack.c.b16 %v987, %v983
    %v1252 = vpack.c.b16 %v988, %v984
    %v1253 = vpack.c.b16 %v993, %v989
    %v1254 = vpack.c.b16 %v994, %v990
    %v1255 = vpack.c.b16 %v995, %v991
    %v1256 = vpack.c.b16 %v996, %v992
    %v1257 = vpack.c.b16 %v1001, %v997
    %v1258 = vpack.c.b16 %v1002, %v998
    %v1259 = vpack.c.b16 %v1003, %v999
    %v1260 = vpack.c.b16 %v1004, %v1000
    %v1261 = vpack.c.b16 %v1009, %v1005
    %v1262 = vpack.c.b16 %v1010, %v1006
    %v1263 = vpack.c.b16 %v1011, %v1007
    %v1264 = vpack.c.b16 %v1012, %v1008
    %v1265 = vpack.c.b16 %v1017, %v1013
    %v1266 = vpack.c.b16 %v1018, %v1014
    %v1267 = vpack.c.b16 %v1019, %v1015
    %v1268 = vpack.c.b16 %v1020, %v1016
    %v1269 = vpack.c.b16 %v1025, %v1021
    %v1270 = vpack.c.b16 %v1026, %v1022
    %v1271 = vpack.c.b16 %v1027, %v1023
    %v1272 = vpack.c.b16 %v1028, %v1024
    %v1273 = vpack.c.b16 %v1033, %v1029
    %v1274 = vpack.c.b16 %v1034, %v1030
    %v1275 = vpack.c.b16 %v1035, %v1031
    %v1276 = vpack.c.b16 %v1036, %v1032
    %v1277 = vpack.c.b16 %v1041, %v1037
    %v1278 = vpack.c.b16 %v1042, %v1038
    %v1279 = vpack.c.b16 %v1043, %v1039
    %v1280 = vpack.c.b16 %v1044, %v1040
    %v1281 = vpack.c.b16 %v1049, %v1045
    %v1282 = vpack.c.b16 %v1050, %v1046
    %v1283 = vpack.c.b16 %v1051, %v1047
    %v1284 = vpack.c.b16 %v1052, %v1048
    %v1285 = vpack.c.b16 %v1057, %v1053
    %v1286 = vpack.c.b16 %v1058, %v1054
    %v1287 = vpack.c.b16 %v1059, %v1055
    %v1288 = vpack.c.b16 %v1060, %v1056
    %v1289 = vpack.c.b16 %v1065, %v1061
    %v1290 = vpack.c.b16 %v1066, %v1062
    %v1291 = vpack.c.b16 %v1067, %v1063
    %v1292 = vpack.c.b16 %v1068, %v1064
    %1517 = vmatprep.subr.bf16.mxu0 %v1070
    %1518 = vmatpush1.bf16.msra.mxu0 %v1069
    %1519 = vmatprep.subr.bf16.mxu0 %v1074
    %1520 = vmatpush1.bf16.msra.mxu0 %v1073
    %1521 = vmatprep.subr.bf16.mxu0 %v1078
    %1522 = vmatpush1.bf16.msra.mxu0 %v1077
    %1523 = vmatprep.subr.bf16.mxu0 %v1082
    %1524 = vmatpush1.bf16.msra.mxu0 %v1081
    %1525 = vmatprep.subr.bf16.mxu0 %v1086
    %1526 = vmatpush1.bf16.msra.mxu0 %v1085
    %1527 = vmatprep.subr.bf16.mxu0 %v1090
    %1528 = vmatpush1.bf16.msra.mxu0 %v1089
    %1529 = vmatprep.subr.bf16.mxu0 %v1094
    %1530 = vmatpush1.bf16.msra.mxu0 %v1093
    %1531 = vmatprep.subr.bf16.mxu0 %v1098
    %1532 = vmatpush1.bf16.msra.mxu0 %v1097
    %1533 = vmatprep.subr.bf16.mxu0 %v1102
    %1534 = vmatpush1.bf16.msra.mxu0 %v1101
    %1535 = vmatprep.subr.bf16.mxu0 %v1106
    %1536 = vmatpush1.bf16.msra.mxu0 %v1105
    %1537 = vmatprep.subr.bf16.mxu0 %v1110
    %1538 = vmatpush1.bf16.msra.mxu0 %v1109
    %1539 = vmatprep.subr.bf16.mxu0 %v1114
    %1540 = vmatpush1.bf16.msra.mxu0 %v1113
    %1541 = vmatprep.subr.bf16.mxu0 %v1118
    %1542 = vmatpush1.bf16.msra.mxu0 %v1117
    %1543 = vmatprep.subr.bf16.mxu0 %v1122
    %1544 = vmatpush1.bf16.msra.mxu0 %v1121
    %1545 = vmatprep.subr.bf16.mxu0 %v1126
    %1546 = vmatpush1.bf16.msra.mxu0 %v1125
    %1547 = vmatprep.subr.bf16.mxu0 %v1130
    %1548 = vmatpush1.bf16.msra.mxu0 %v1129
    %1549 = vmatprep.mubr.bf16.mxu0 %v384
    %1550 = vmatmul.mubr.bf16.gmra.mrb[0].mxu0 %v383
    %v1551 = vpop.f32.mrb[0].mxu0
    %v1552 = vadd.f32 %v344, %v1551
    %v1553 = vpop.f32.mrb[0].mxu0
    %v1554 = vadd.f32 %v348, %v1553
    %v1555 = vpop.f32.mrb[0].mxu0
    %v1556 = vadd.f32 %v344, %v1555
    %v1557 = vpop.f32.mrb[0].mxu0
    %v1558 = vadd.f32 %v348, %v1557
    %1559 = vdwg.mxu0
    %1560 = vmatprep.subr.bf16.mxu0 %v1134
    %1561 = vmatpush1.bf16.msra.mxu0 %v1133
    %1562 = vmatprep.subr.bf16.mxu0 %v1138
    %1563 = vmatpush1.bf16.msra.mxu0 %v1137
    %1564 = vmatprep.subr.bf16.mxu0 %v1142
    %1565 = vmatpush1.bf16.msra.mxu0 %v1141
    %1566 = vmatprep.subr.bf16.mxu0 %v1146
    %1567 = vmatpush1.bf16.msra.mxu0 %v1145
    %1568 = vmatprep.subr.bf16.mxu0 %v1150
    %1569 = vmatpush1.bf16.msra.mxu0 %v1149
    %1570 = vmatprep.subr.bf16.mxu0 %v1154
    %1571 = vmatpush1.bf16.msra.mxu0 %v1153
    %1572 = vmatprep.subr.bf16.mxu0 %v1158
    %1573 = vmatpush1.bf16.msra.mxu0 %v1157
    %1574 = vmatprep.subr.bf16.mxu0 %v1162
    %1575 = vmatpush1.bf16.msra.mxu0 %v1161
    %1576 = vmatprep.subr.bf16.mxu0 %v1166
    %1577 = vmatpush1.bf16.msra.mxu0 %v1165
    %1578 = vmatprep.subr.bf16.mxu0 %v1170
    %1579 = vmatpush1.bf16.msra.mxu0 %v1169
    %1580 = vmatprep.subr.bf16.mxu0 %v1174
    %1581 = vmatpush1.bf16.msra.mxu0 %v1173
    %1582 = vmatprep.subr.bf16.mxu0 %v1178
    %1583 = vmatpush1.bf16.msra.mxu0 %v1177
    %1584 = vmatprep.subr.bf16.mxu0 %v1182
    %1585 = vmatpush1.bf16.msra.mxu0 %v1181
    %1586 = vmatprep.subr.bf16.mxu0 %v1186
    %1587 = vmatpush1.bf16.msra.mxu0 %v1185
    %1588 = vmatprep.subr.bf16.mxu0 %v1190
    %1589 = vmatpush1.bf16.msra.mxu0 %v1189
    %1590 = vmatprep.subr.bf16.mxu0 %v1194
    %1591 = vmatpush1.bf16.msra.mxu0 %v1193
    %1592 = vmatprep.mubr.bf16.mxu0 %v386
    %1593 = vmatmul.mubr.bf16.gmra.mrb[0].mxu0 %v385
    %v1594 = vpop.f32.mrb[0].mxu0
    %v1595 = vadd.f32 %v1552, %v1594
    %v1596 = vpop.f32.mrb[0].mxu0
    %v1597 = vadd.f32 %v1554, %v1596
    %v1598 = vpop.f32.mrb[0].mxu0
    %v1599 = vadd.f32 %v1556, %v1598
    %v1600 = vpop.f32.mrb[0].mxu0
    %v1601 = vadd.f32 %v1558, %v1600
    %1602 = vdwg.mxu0
    %1603 = vmatprep.subr.bf16.mxu0 %v1198
    %1604 = vmatpush1.bf16.msra.mxu0 %v1197
    %1605 = vmatprep.subr.bf16.mxu0 %v1202
    %1606 = vmatpush1.bf16.msra.mxu0 %v1201
    %1607 = vmatprep.subr.bf16.mxu0 %v1206
    %1608 = vmatpush1.bf16.msra.mxu0 %v1205
    %1609 = vmatprep.subr.bf16.mxu0 %v1210
    %1610 = vmatpush1.bf16.msra.mxu0 %v1209
    %1611 = vmatprep.subr.bf16.mxu0 %v1214
    %1612 = vmatpush1.bf16.msra.mxu0 %v1213
    %1613 = vmatprep.subr.bf16.mxu0 %v1218
    %1614 = vmatpush1.bf16.msra.mxu0 %v1217
    %1615 = vmatprep.subr.bf16.mxu0 %v1222
    %1616 = vmatpush1.bf16.msra.mxu0 %v1221
    %1617 = vmatprep.subr.bf16.mxu0 %v1226
    %1618 = vmatpush1.bf16.msra.mxu0 %v1225
    %1619 = vmatprep.subr.bf16.mxu0 %v1230
    %1620 = vmatpush1.bf16.msra.mxu0 %v1229
    %1621 = vmatprep.subr.bf16.mxu0 %v1234
    %1622 = vmatpush1.bf16.msra.mxu0 %v1233
    %1623 = vmatprep.subr.bf16.mxu0 %v1238
    %1624 = vmatpush1.bf16.msra.mxu0 %v1237
    %1625 = vmatprep.subr.bf16.mxu0 %v1242
    %1626 = vmatpush1.bf16.msra.mxu0 %v1241
    %1627 = vmatprep.subr.bf16.mxu0 %v1246
    %1628 = vmatpush1.bf16.msra.mxu0 %v1245
    %1629 = vmatprep.subr.bf16.mxu0 %v1250
    %1630 = vmatpush1.bf16.msra.mxu0 %v1249
    %1631 = vmatprep.subr.bf16.mxu0 %v1254
    %1632 = vmatpush1.bf16.msra.mxu0 %v1253
    %1633 = vmatprep.subr.bf16.mxu0 %v1258
    %1634 = vmatpush1.bf16.msra.mxu0 %v1257
    %1635 = vmatprep.mubr.bf16.mxu0 %v388
    %1636 = vmatmul.mubr.bf16.gmra.mrb[0].mxu0 %v387
    %v1637 = vpop.f32.mrb[0].mxu0
    %v1638 = vadd.f32 %v1595, %v1637
    %v1639 = vpop.f32.mrb[0].mxu0
    %v1640 = vadd.f32 %v1597, %v1639
    %v1641 = vpop.f32.mrb[0].mxu0
    %v1642 = vadd.f32 %v1599, %v1641
    %v1643 = vpop.f32.mrb[0].mxu0
    %v1644 = vadd.f32 %v1601, %v1643
    %1645 = vdwg.mxu0
    %1646 = vmatprep.subr.bf16.mxu0 %v1262
    %1647 = vmatpush1.bf16.msra.mxu0 %v1261
    %1648 = vmatprep.subr.bf16.mxu0 %v1266
    %1649 = vmatpush1.bf16.msra.mxu0 %v1265
    %1650 = vmatprep.subr.bf16.mxu0 %v1270
    %1651 = vmatpush1.bf16.msra.mxu0 %v1269
    %1652 = vmatprep.subr.bf16.mxu0 %v1274
    %1653 = vmatpush1.bf16.msra.mxu0 %v1273
    %1654 = vmatprep.subr.bf16.mxu0 %v1278
    %1655 = vmatpush1.bf16.msra.mxu0 %v1277
    %1656 = vmatprep.subr.bf16.mxu0 %v1282
    %1657 = vmatpush1.bf16.msra.mxu0 %v1281
    %1658 = vmatprep.subr.bf16.mxu0 %v1286
    %1659 = vmatpush1.bf16.msra.mxu0 %v1285
    %1660 = vmatprep.subr.bf16.mxu0 %v1290
    %1661 = vmatpush1.bf16.msra.mxu0 %v1289
    %1662 = vmatprep.subr.bf16.mxu0 0
    %1663 = vmatpush1.bf16.msra.mxu0 0
    %1664 = vmatprep.subr.bf16.mxu0 0
    %1665 = vmatpush1.bf16.msra.mxu0 0
    %1666 = vmatprep.subr.bf16.mxu0 0
    %1667 = vmatpush1.bf16.msra.mxu0 0
    %1668 = vmatprep.subr.bf16.mxu0 0
    %1669 = vmatpush1.bf16.msra.mxu0 0
    %1670 = vmatprep.subr.bf16.mxu0 0
    %1671 = vmatpush1.bf16.msra.mxu0 0
    %1672 = vmatprep.subr.bf16.mxu0 0
    %1673 = vmatpush1.bf16.msra.mxu0 0
    %1674 = vmatprep.subr.bf16.mxu0 0
    %1675 = vmatpush1.bf16.msra.mxu0 0
    %1676 = vmatprep.subr.bf16.mxu0 0
    %1677 = vmatpush1.bf16.msra.mxu0 0
    %1678 = vmatprep.mubr.bf16.mxu0 0
    %1679 = vmatmul.mubr.bf16.gmra.mrb[0].mxu0 %v389
    %v1680 = vpop.f32.mrb[0].mxu0
    %v1681 = vadd.f32 %v1638, %v1680
    %v1682 = vpop.f32.mrb[0].mxu0
    %v1683 = vadd.f32 %v1640, %v1682
    %v1684 = vpop.f32.mrb[0].mxu0
    %v1685 = vadd.f32 %v1642, %v1684
    %v1686 = vpop.f32.mrb[0].mxu0
    %v1687 = vadd.f32 %v1644, %v1686
    %1688 = vdwg.mxu0
    %1689 = vmatprep.subr.bf16.mxu0 %v1072
    %1690 = vmatpush1.bf16.msra.mxu0 %v1071
    %1691 = vmatprep.subr.bf16.mxu0 %v1076
    %1692 = vmatpush1.bf16.msra.mxu0 %v1075
    %1693 = vmatprep.subr.bf16.mxu0 %v1080
    %1694 = vmatpush1.bf16.msra.mxu0 %v1079
    %1695 = vmatprep.subr.bf16.mxu0 %v1084
    %1696 = vmatpush1.bf16.msra.mxu0 %v1083
    %1697 = vmatprep.subr.bf16.mxu0 %v1088
    %1698 = vmatpush1.bf16.msra.mxu0 %v1087
    %1699 = vmatprep.subr.bf16.mxu0 %v1092
    %1700 = vmatpush1.bf16.msra.mxu0 %v1091
    %1701 = vmatprep.subr.bf16.mxu0 %v1096
    %1702 = vmatpush1.bf16.msra.mxu0 %v1095
    %1703 = vmatprep.subr.bf16.mxu0 %v1100
    %1704 = vmatpush1.bf16.msra.mxu0 %v1099
    %1705 = vmatprep.subr.bf16.mxu0 %v1104
    %1706 = vmatpush1.bf16.msra.mxu0 %v1103
    %1707 = vmatprep.subr.bf16.mxu0 %v1108
    %1708 = vmatpush1.bf16.msra.mxu0 %v1107
    %1709 = vmatprep.subr.bf16.mxu0 %v1112
    %1710 = vmatpush1.bf16.msra.mxu0 %v1111
    %1711 = vmatprep.subr.bf16.mxu0 %v1116
    %1712 = vmatpush1.bf16.msra.mxu0 %v1115
    %1713 = vmatprep.subr.bf16.mxu0 %v1120
    %1714 = vmatpush1.bf16.msra.mxu0 %v1119
    %1715 = vmatprep.subr.bf16.mxu0 %v1124
    %1716 = vmatpush1.bf16.msra.mxu0 %v1123
    %1717 = vmatprep.subr.bf16.mxu0 %v1128
    %1718 = vmatpush1.bf16.msra.mxu0 %v1127
    %1719 = vmatprep.subr.bf16.mxu0 %v1132
    %1720 = vmatpush1.bf16.msra.mxu0 %v1131
    %1721 = vmatprep.mubr.bf16.mxu0 %v384
    %1722 = vmatmul.mubr.bf16.gmra.mrb[0].mxu0 %v383
    %v1723 = vpop.f32.mrb[0].mxu0
    %v1724 = vadd.f32 %v352, %v1723
    %v1725 = vpop.f32.mrb[0].mxu0
    %v1726 = vadd.f32 %v356, %v1725
    %v1727 = vpop.f32.mrb[0].mxu0
    %v1728 = vadd.f32 %v352, %v1727
    %v1729 = vpop.f32.mrb[0].mxu0
    %v1730 = vadd.f32 %v356, %v1729
    %1731 = vdwg.mxu0
    %1732 = vmatprep.subr.bf16.mxu0 %v1136
    %1733 = vmatpush1.bf16.msra.mxu0 %v1135
    %1734 = vmatprep.subr.bf16.mxu0 %v1140
    %1735 = vmatpush1.bf16.msra.mxu0 %v1139
    %1736 = vmatprep.subr.bf16.mxu0 %v1144
    %1737 = vmatpush1.bf16.msra.mxu0 %v1143
    %1738 = vmatprep.subr.bf16.mxu0 %v1148
    %1739 = vmatpush1.bf16.msra.mxu0 %v1147
    %1740 = vmatprep.subr.bf16.mxu0 %v1152
    %1741 = vmatpush1.bf16.msra.mxu0 %v1151
    %1742 = vmatprep.subr.bf16.mxu0 %v1156
    %1743 = vmatpush1.bf16.msra.mxu0 %v1155
    %1744 = vmatprep.subr.bf16.mxu0 %v1160
    %1745 = vmatpush1.bf16.msra.mxu0 %v1159
    %1746 = vmatprep.subr.bf16.mxu0 %v1164
    %1747 = vmatpush1.bf16.msra.mxu0 %v1163
    %1748 = vmatprep.subr.bf16.mxu0 %v1168
    %1749 = vmatpush1.bf16.msra.mxu0 %v1167
    %1750 = vmatprep.subr.bf16.mxu0 %v1172
    %1751 = vmatpush1.bf16.msra.mxu0 %v1171
    %1752 = vmatprep.subr.bf16.mxu0 %v1176
    %1753 = vmatpush1.bf16.msra.mxu0 %v1175
    %1754 = vmatprep.subr.bf16.mxu0 %v1180
    %1755 = vmatpush1.bf16.msra.mxu0 %v1179
    %1756 = vmatprep.subr.bf16.mxu0 %v1184
    %1757 = vmatpush1.bf16.msra.mxu0 %v1183
    %1758 = vmatprep.subr.bf16.mxu0 %v1188
    %1759 = vmatpush1.bf16.msra.mxu0 %v1187
    %1760 = vmatprep.subr.bf16.mxu0 %v1192
    %1761 = vmatpush1.bf16.msra.mxu0 %v1191
    %1762 = vmatprep.subr.bf16.mxu0 %v1196
    %1763 = vmatpush1.bf16.msra.mxu0 %v1195
    %1764 = vmatprep.mubr.bf16.mxu0 %v386
    %1765 = vmatmul.mubr.bf16.gmra.mrb[0].mxu0 %v385
    %v1766 = vpop.f32.mrb[0].mxu0
    %v1767 = vadd.f32 %v1724, %v1766
    %v1768 = vpop.f32.mrb[0].mxu0
    %v1769 = vadd.f32 %v1726, %v1768
    %v1770 = vpop.f32.mrb[0].mxu0
    %v1771 = vadd.f32 %v1728, %v1770
    %v1772 = vpop.f32.mrb[0].mxu0
    %v1773 = vadd.f32 %v1730, %v1772
    %1774 = vdwg.mxu0
    %1775 = vmatprep.subr.bf16.mxu0 %v1200
    %1776 = vmatpush1.bf16.msra.mxu0 %v1199
    %1777 = vmatprep.subr.bf16.mxu0 %v1204
    %1778 = vmatpush1.bf16.msra.mxu0 %v1203
    %1779 = vmatprep.subr.bf16.mxu0 %v1208
    %1780 = vmatpush1.bf16.msra.mxu0 %v1207
    %1781 = vmatprep.subr.bf16.mxu0 %v1212
    %1782 = vmatpush1.bf16.msra.mxu0 %v1211
    %1783 = vmatprep.subr.bf16.mxu0 %v1216
    %1784 = vmatpush1.bf16.msra.mxu0 %v1215
    %1785 = vmatprep.subr.bf16.mxu0 %v1220
    %1786 = vmatpush1.bf16.msra.mxu0 %v1219
    %1787 = vmatprep.subr.bf16.mxu0 %v1224
    %1788 = vmatpush1.bf16.msra.mxu0 %v1223
    %1789 = vmatprep.subr.bf16.mxu0 %v1228
    %1790 = vmatpush1.bf16.msra.mxu0 %v1227
    %1791 = vmatprep.subr.bf16.mxu0 %v1232
    %1792 = vmatpush1.bf16.msra.mxu0 %v1231
    %1793 = vmatprep.subr.bf16.mxu0 %v1236
    %1794 = vmatpush1.bf16.msra.mxu0 %v1235
    %1795 = vmatprep.subr.bf16.mxu0 %v1240
    %1796 = vmatpush1.bf16.msra.mxu0 %v1239
    %1797 = vmatprep.subr.bf16.mxu0 %v1244
    %1798 = vmatpush1.bf16.msra.mxu0 %v1243
    %1799 = vmatprep.subr.bf16.mxu0 %v1248
    %1800 = vmatpush1.bf16.msra.mxu0 %v1247
    %1801 = vmatprep.subr.bf16.mxu0 %v1252
    %1802 = vmatpush1.bf16.msra.mxu0 %v1251
    %1803 = vmatprep.subr.bf16.mxu0 %v1256
    %1804 = vmatpush1.bf16.msra.mxu0 %v1255
    %1805 = vmatprep.subr.bf16.mxu0 %v1260
    %1806 = vmatpush1.bf16.msra.mxu0 %v1259
    %1807 = vmatprep.mubr.bf16.mxu0 %v388
    %1808 = vmatmul.mubr.bf16.gmra.mrb[0].mxu0 %v387
    %v1809 = vpop.f32.mrb[0].mxu0
    %v1810 = vadd.f32 %v1767, %v1809
    %v1811 = vpop.f32.mrb[0].mxu0
    %v1812 = vadd.f32 %v1769, %v1811
    %v1813 = vpop.f32.mrb[0].mxu0
    %v1814 = vadd.f32 %v1771, %v1813
    %v1815 = vpop.f32.mrb[0].mxu0
    %v1816 = vadd.f32 %v1773, %v1815
    %1817 = vdwg.mxu0
    %1818 = vmatprep.subr.bf16.mxu0 %v1264
    %1819 = vmatpush1.bf16.msra.mxu0 %v1263
    %1820 = vmatprep.subr.bf16.mxu0 %v1268
    %1821 = vmatpush1.bf16.msra.mxu0 %v1267
    %1822 = vmatprep.subr.bf16.mxu0 %v1272
    %1823 = vmatpush1.bf16.msra.mxu0 %v1271
    %1824 = vmatprep.subr.bf16.mxu0 %v1276
    %1825 = vmatpush1.bf16.msra.mxu0 %v1275
    %1826 = vmatprep.subr.bf16.mxu0 %v1280
    %1827 = vmatpush1.bf16.msra.mxu0 %v1279
    %1828 = vmatprep.subr.bf16.mxu0 %v1284
    %1829 = vmatpush1.bf16.msra.mxu0 %v1283
    %1830 = vmatprep.subr.bf16.mxu0 %v1288
    %1831 = vmatpush1.bf16.msra.mxu0 %v1287
    %1832 = vmatprep.subr.bf16.mxu0 %v1292
    %1833 = vmatpush1.bf16.msra.mxu0 %v1291
    %1834 = vmatprep.subr.bf16.mxu0 0
    %1835 = vmatpush1.bf16.msra.mxu0 0
    %1836 = vmatprep.subr.bf16.mxu0 0
    %1837 = vmatpush1.bf16.msra.mxu0 0
    %1838 = vmatprep.subr.bf16.mxu0 0
    %1839 = vmatpush1.bf16.msra.mxu0 0
    %1840 = vmatprep.subr.bf16.mxu0 0
    %1841 = vmatpush1.bf16.msra.mxu0 0
    %1842 = vmatprep.subr.bf16.mxu0 0
    %1843 = vmatpush1.bf16.msra.mxu0 0
    %1844 = vmatprep.subr.bf16.mxu0 0
    %1845 = vmatpush1.bf16.msra.mxu0 0
    %1846 = vmatprep.subr.bf16.mxu0 0
    %1847 = vmatpush1.bf16.msra.mxu0 0
    %1848 = vmatprep.subr.bf16.mxu0 0
    %1849 = vmatpush1.bf16.msra.mxu0 0
    %1850 = vmatprep.mubr.bf16.mxu0 0
    %1851 = vmatmul.mubr.bf16.gmra.mrb[0].mxu0 %v389
    %v1852 = vpop.f32.mrb[0].mxu0
    %v1853 = vadd.f32 %v1810, %v1852
    %v1854 = vpop.f32.mrb[0].mxu0
    %v1855 = vadd.f32 %v1812, %v1854
    %v1856 = vpop.f32.mrb[0].mxu0
    %v1857 = vadd.f32 %v1814, %v1856
    %v1858 = vpop.f32.mrb[0].mxu0
    %v1859 = vadd.f32 %v1816, %v1858
    %1860 = vdwg.mxu0
    %v1861 = vmax.f32 %v1681, 0.0
    %v1862 = vmax.f32 %v1683, 0.0
    %v1863 = vmax.f32 %v1853, 0.0
    %v1864 = vmax.f32 %v1855, 0.0
    %v1865 = vmax.f32 %v1685, 0.0
    %v1866 = vmax.f32 %v1687, 0.0
    %v1867 = vmax.f32 %v1857, 0.0
    %v1868 = vmax.f32 %v1859, 0.0
    %v1869 = vpack.c.bf16 %v1865, %v1861
    %v1870 = vpack.c.bf16 %v1866, %v1862
    %v1871 = vpack.c.bf16 %v1867, %v1863
    %v1872 = vpack.c.bf16 %v1868, %v1864
    %v1873 = vld [vmem:[#allocation4] sm:$0xff]
    %v1874 = vld [vmem:[#allocation4 + $0x8] sm:$0xff]
    %v1875 = vld [vmem:[#allocation4 + $0x10] sm:$0xff]
    %v1876 = vld [vmem:[#allocation4 + $0x18] sm:$0xff]
    %v1877 = vld [vmem:[#allocation4 + $0x20] sm:$0xff]
    %v1878 = vld [vmem:[#allocation4 + $0x28] sm:$0xff]
    %v1879 = vld [vmem:[#allocation4 + $0x30] sm:$0xff]
    %v1880 = vld [vmem:[#allocation4 + $0x38] sm:$0xff]
    %v1881 = vld [vmem:[#allocation4 + $0x40] sm:$0xff]
    %v1882 = vld [vmem:[#allocation4 + $0x48] sm:$0xff]
    %v1883 = vld [vmem:[#allocation4 + $0x50] sm:$0xff]
    %v1884 = vld [vmem:[#allocation4 + $0x58] sm:$0xff]
    %v1885 = vld [vmem:[#allocation4 + $0x60] sm:$0xff]
    %v1886 = vld [vmem:[#allocation4 + $0x68] sm:$0xff]
    %v1887 = vld [vmem:[#allocation4 + $0x70] sm:$0xff]
    %v1888 = vld [vmem:[#allocation4 + $0x78] sm:$0xff]
    %v1889 = vld [vmem:[#allocation4 + $0x80] sm:$0xff]
    %v1890 = vld [vmem:[#allocation4 + $0x88] sm:$0xff]
    %v1891 = vld [vmem:[#allocation4 + $0x90] sm:$0xff]
    %v1892 = vld [vmem:[#allocation4 + $0x98] sm:$0xff]
    %v1893 = vld [vmem:[#allocation4 + $0xa0] sm:$0xff]
    %v1894 = vld [vmem:[#allocation4 + $0xa8] sm:$0xff]
    %v1895 = vld [vmem:[#allocation4 + $0xb0] sm:$0xff]
    %v1896 = vld [vmem:[#allocation4 + $0xb8] sm:$0xff]
    %v1897 = vld [vmem:[#allocation4 + $0xc0] sm:$0xff]
    %v1898 = vld [vmem:[#allocation4 + $0xc8] sm:$0xff]
    %v1899 = vld [vmem:[#allocation4 + $0xd0] sm:$0xff]
    %v1900 = vld [vmem:[#allocation4 + $0xd8] sm:$0xff]
    %v1901 = vld [vmem:[#allocation4 + $0xe0] sm:$0xff]
    %v1902 = vld [vmem:[#allocation4 + $0xe8] sm:$0xff]
    %v1903 = vld [vmem:[#allocation4 + $0xf0] sm:$0xff]
    %v1904 = vld [vmem:[#allocation4 + $0xf8] sm:$0xff]
    %v1905 = vld [vmem:[#allocation4 + $0x100] sm:$0xff]
    %v1906 = vld [vmem:[#allocation4 + $0x108] sm:$0xff]
    %v1907 = vld [vmem:[#allocation4 + $0x110] sm:$0xff]
    %v1908 = vld [vmem:[#allocation4 + $0x118] sm:$0xff]
    %v1909 = vld [vmem:[#allocation4 + $0x120] sm:$0xff]
    %v1910 = vld [vmem:[#allocation4 + $0x128] sm:$0xff]
    %v1911 = vld [vmem:[#allocation4 + $0x130] sm:$0xff]
    %v1912 = vld [vmem:[#allocation4 + $0x138] sm:$0xff]
    %v1913 = vld [vmem:[#allocation4 + $0x140] sm:$0xff]
    %v1914 = vld [vmem:[#allocation4 + $0x148] sm:$0xff]
    %v1915 = vld [vmem:[#allocation4 + $0x150] sm:$0xff]
    %v1916 = vld [vmem:[#allocation4 + $0x158] sm:$0xff]
    %v1917 = vld [vmem:[#allocation4 + $0x160] sm:$0xff]
    %v1918 = vld [vmem:[#allocation4 + $0x168] sm:$0xff]
    %v1919 = vld [vmem:[#allocation4 + $0x170] sm:$0xff]
    %v1920 = vld [vmem:[#allocation4 + $0x178] sm:$0xff]
    %v1921 = vld [vmem:[#allocation4 + $0x180] sm:$0xff]
    %v1922 = vld [vmem:[#allocation4 + $0x188] sm:$0xff]
    %v1923 = vld [vmem:[#allocation4 + $0x190] sm:$0xff]
    %v1924 = vld [vmem:[#allocation4 + $0x198] sm:$0xff]
    %v1925 = vld [vmem:[#allocation4 + $0x1a0] sm:$0xff]
    %v1926 = vld [vmem:[#allocation4 + $0x1a8] sm:$0xff]
    %v1927 = vld [vmem:[#allocation4 + $0x1b0] sm:$0xff]
    %v1928 = vld [vmem:[#allocation4 + $0x1b8] sm:$0xff]
    %v1929 = vld [vmem:[#allocation4 + $0x1c0] sm:$0xff]
    %v1930 = vld [vmem:[#allocation4 + $0x1c8] sm:$0xff]
    %v1931 = vld [vmem:[#allocation4 + $0x1d0] sm:$0xff]
    %v1932 = vld [vmem:[#allocation4 + $0x1d8] sm:$0xff]
    %v1933 = vld [vmem:[#allocation4 + $0x1e0] sm:$0xff]
    %v1934 = vld [vmem:[#allocation4 + $0x1e8] sm:$0xff]
    %v1935 = vld [vmem:[#allocation4 + $0x1f0] sm:$0xff]
    %v1936 = vld [vmem:[#allocation4 + $0x1f8] sm:$0xff]
    %v1937 = vld [vmem:[#allocation4 + $0x200] sm:$0xff]
    %v1938 = vld [vmem:[#allocation4 + $0x208] sm:$0xff]
    %v1939 = vld [vmem:[#allocation4 + $0x210] sm:$0xff]
    %v1940 = vld [vmem:[#allocation4 + $0x218] sm:$0xff]
    %v1941 = vld [vmem:[#allocation4 + $0x220] sm:$0xff]
    %v1942 = vld [vmem:[#allocation4 + $0x228] sm:$0xff]
    %v1943 = vld [vmem:[#allocation4 + $0x230] sm:$0xff]
    %v1944 = vld [vmem:[#allocation4 + $0x238] sm:$0xff]
    %v1945 = vld [vmem:[#allocation4 + $0x240] sm:$0xff]
    %v1946 = vld [vmem:[#allocation4 + $0x248] sm:$0xff]
    %v1947 = vld [vmem:[#allocation4 + $0x250] sm:$0xff]
    %v1948 = vld [vmem:[#allocation4 + $0x258] sm:$0xff]
    %v1949 = vld [vmem:[#allocation4 + $0x260] sm:$0xff]
    %v1950 = vld [vmem:[#allocation4 + $0x268] sm:$0xff]
    %v1951 = vld [vmem:[#allocation4 + $0x270] sm:$0xff]
    %v1952 = vld [vmem:[#allocation4 + $0x278] sm:$0xff]
    %v1953 = vld [vmem:[#allocation4 + $0x280] sm:$0xff]
    %v1954 = vld [vmem:[#allocation4 + $0x288] sm:$0xff]
    %v1955 = vld [vmem:[#allocation4 + $0x290] sm:$0xff]
    %v1956 = vld [vmem:[#allocation4 + $0x298] sm:$0xff]
    %v1957 = vld [vmem:[#allocation4 + $0x2a0] sm:$0xff]
    %v1958 = vld [vmem:[#allocation4 + $0x2a8] sm:$0xff]
    %v1959 = vld [vmem:[#allocation4 + $0x2b0] sm:$0xff]
    %v1960 = vld [vmem:[#allocation4 + $0x2b8] sm:$0xff]
    %v1961 = vld [vmem:[#allocation4 + $0x2c0] sm:$0xff]
    %v1962 = vld [vmem:[#allocation4 + $0x2c8] sm:$0xff]
    %v1963 = vld [vmem:[#allocation4 + $0x2d0] sm:$0xff]
    %v1964 = vld [vmem:[#allocation4 + $0x2d8] sm:$0xff]
    %v1965 = vld [vmem:[#allocation4 + $0x2e0] sm:$0xff]
    %v1966 = vld [vmem:[#allocation4 + $0x2e8] sm:$0xff]
    %v1967 = vld [vmem:[#allocation4 + $0x2f0] sm:$0xff]
    %v1968 = vld [vmem:[#allocation4 + $0x2f8] sm:$0xff]
    %v1969 = vld [vmem:[#allocation4 + $0x300] sm:$0xff]
    %v1970 = vld [vmem:[#allocation4 + $0x308] sm:$0xff]
    %v1971 = vld [vmem:[#allocation4 + $0x310] sm:$0xff]
    %v1972 = vld [vmem:[#allocation4 + $0x318] sm:$0xff]
    %v1973 = vld [vmem:[#allocation4 + $0x320] sm:$0xff]
    %v1974 = vld [vmem:[#allocation4 + $0x328] sm:$0xff]
    %v1975 = vld [vmem:[#allocation4 + $0x330] sm:$0xff]
    %v1976 = vld [vmem:[#allocation4 + $0x338] sm:$0xff]
    %v1977 = vld [vmem:[#allocation4 + $0x340] sm:$0xff]
    %v1978 = vld [vmem:[#allocation4 + $0x348] sm:$0xff]
    %v1979 = vld [vmem:[#allocation4 + $0x350] sm:$0xff]
    %v1980 = vld [vmem:[#allocation4 + $0x358] sm:$0xff]
    %v1981 = vld [vmem:[#allocation4 + $0x360] sm:$0xff]
    %v1982 = vld [vmem:[#allocation4 + $0x368] sm:$0xff]
    %v1983 = vld [vmem:[#allocation4 + $0x370] sm:$0xff]
    %v1984 = vld [vmem:[#allocation4 + $0x378] sm:$0xff]
    %v1985 = vld [vmem:[#allocation4 + $0x380] sm:$0xff]
    %v1986 = vld [vmem:[#allocation4 + $0x388] sm:$0xff]
    %v1987 = vld [vmem:[#allocation4 + $0x390] sm:$0xff]
    %v1988 = vld [vmem:[#allocation4 + $0x398] sm:$0xff]
    %v1989 = vld [vmem:[#allocation4 + $0x3a0] sm:$0xff]
    %v1990 = vld [vmem:[#allocation4 + $0x3a8] sm:$0xff]
    %v1991 = vld [vmem:[#allocation4 + $0x3b0] sm:$0xff]
    %v1992 = vld [vmem:[#allocation4 + $0x3b8] sm:$0xff]
    %v1993 = vld [vmem:[#allocation4 + $0x3c0] sm:$0xff]
    %v1994 = vld [vmem:[#allocation4 + $0x3c8] sm:$0xff]
    %v1995 = vld [vmem:[#allocation4 + $0x3d0] sm:$0xff]
    %v1996 = vld [vmem:[#allocation4 + $0x3d8] sm:$0xff]
    %v1997 = vld [vmem:[#allocation4 + $0x3e0] sm:$0xff]
    %v1998 = vld [vmem:[#allocation4 + $0x3e8] sm:$0xff]
    %v1999 = vld [vmem:[#allocation4 + $0x3f0] sm:$0xff]
    %v2000 = vld [vmem:[#allocation4 + $0x3f8] sm:$0xff]
    %v2001 = vld [vmem:[%s4] sm:$0xf]
    %v2003 = vlaneseq
    %v2004 = vshrl.u32 %v2003, 7
    %v2005 = vsub.s32 0, %v2004
    %v2006 = vrot.slane %v2001, %v2005
    %v2007 = vlaneseq
    %v2008 = vshrl.u32 %v2007, 7
    %v2009 = vsub.s32 1, %v2008
    %v2010 = vrot.slane %v2001, %v2009
    %v2011 = vlaneseq
    %v2012 = vshrl.u32 %v2011, 7
    %v2013 = vsub.s32 2, %v2012
    %v2014 = vrot.slane %v2001, %v2013
    %v2015 = vlaneseq
    %v2016 = vshrl.u32 %v2015, 7
    %v2017 = vsub.s32 3, %v2016
    %v2018 = vrot.slane %v2001, %v2017
    %v2151 = vunpack.c.l.b16 %v1873
    %v2152 = vunpack.c.h.b16 %v1873
    %v2153 = vunpack.c.l.b16 %v1874
    %v2154 = vunpack.c.h.b16 %v1874
    %v2155 = vunpack.c.l.b16 %v1875
    %v2156 = vunpack.c.h.b16 %v1875
    %v2157 = vunpack.c.l.b16 %v1876
    %v2158 = vunpack.c.h.b16 %v1876
    %v2159 = vunpack.c.l.b16 %v1877
    %v2160 = vunpack.c.h.b16 %v1877
    %v2161 = vunpack.c.l.b16 %v1878
    %v2162 = vunpack.c.h.b16 %v1878
    %v2163 = vunpack.c.l.b16 %v1879
    %v2164 = vunpack.c.h.b16 %v1879
    %v2165 = vunpack.c.l.b16 %v1880
    %v2166 = vunpack.c.h.b16 %v1880
    %v2167 = vunpack.c.l.b16 %v1881
    %v2168 = vunpack.c.h.b16 %v1881
    %v2169 = vunpack.c.l.b16 %v1882
    %v2170 = vunpack.c.h.b16 %v1882
    %v2171 = vunpack.c.l.b16 %v1883
    %v2172 = vunpack.c.h.b16 %v1883
    %v2173 = vunpack.c.l.b16 %v1884
    %v2174 = vunpack.c.h.b16 %v1884
    %v2175 = vunpack.c.l.b16 %v1885
    %v2176 = vunpack.c.h.b16 %v1885
    %v2177 = vunpack.c.l.b16 %v1886
    %v2178 = vunpack.c.h.b16 %v1886
    %v2179 = vunpack.c.l.b16 %v1887
    %v2180 = vunpack.c.h.b16 %v1887
    %v2181 = vunpack.c.l.b16 %v1888
    %v2182 = vunpack.c.h.b16 %v1888
    %v2183 = vunpack.c.l.b16 %v1889
    %v2184 = vunpack.c.h.b16 %v1889
    %v2185 = vunpack.c.l.b16 %v1890
    %v2186 = vunpack.c.h.b16 %v1890
    %v2187 = vunpack.c.l.b16 %v1891
    %v2188 = vunpack.c.h.b16 %v1891
    %v2189 = vunpack.c.l.b16 %v1892
    %v2190 = vunpack.c.h.b16 %v1892
    %v2191 = vunpack.c.l.b16 %v1893
    %v2192 = vunpack.c.h.b16 %v1893
    %v2193 = vunpack.c.l.b16 %v1894
    %v2194 = vunpack.c.h.b16 %v1894
    %v2195 = vunpack.c.l.b16 %v1895
    %v2196 = vunpack.c.h.b16 %v1895
    %v2197 = vunpack.c.l.b16 %v1896
    %v2198 = vunpack.c.h.b16 %v1896
    %v2199 = vunpack.c.l.b16 %v1897
    %v2200 = vunpack.c.h.b16 %v1897
    %v2201 = vunpack.c.l.b16 %v1898
    %v2202 = vunpack.c.h.b16 %v1898
    %v2203 = vunpack.c.l.b16 %v1899
    %v2204 = vunpack.c.h.b16 %v1899
    %v2205 = vunpack.c.l.b16 %v1900
    %v2206 = vunpack.c.h.b16 %v1900
    %v2207 = vunpack.c.l.b16 %v1901
    %v2208 = vunpack.c.h.b16 %v1901
    %v2209 = vunpack.c.l.b16 %v1902
    %v2210 = vunpack.c.h.b16 %v1902
    %v2211 = vunpack.c.l.b16 %v1903
    %v2212 = vunpack.c.h.b16 %v1903
    %v2213 = vunpack.c.l.b16 %v1904
    %v2214 = vunpack.c.h.b16 %v1904
    %v2215 = vunpack.c.l.b16 %v1905
    %v2216 = vunpack.c.h.b16 %v1905
    %v2217 = vunpack.c.l.b16 %v1906
    %v2218 = vunpack.c.h.b16 %v1906
    %v2219 = vunpack.c.l.b16 %v1907
    %v2220 = vunpack.c.h.b16 %v1907
    %v2221 = vunpack.c.l.b16 %v1908
    %v2222 = vunpack.c.h.b16 %v1908
    %v2223 = vunpack.c.l.b16 %v1909
    %v2224 = vunpack.c.h.b16 %v1909
    %v2225 = vunpack.c.l.b16 %v1910
    %v2226 = vunpack.c.h.b16 %v1910
    %v2227 = vunpack.c.l.b16 %v1911
    %v2228 = vunpack.c.h.b16 %v1911
    %v2229 = vunpack.c.l.b16 %v1912
    %v2230 = vunpack.c.h.b16 %v1912
    %v2231 = vunpack.c.l.b16 %v1913
    %v2232 = vunpack.c.h.b16 %v1913
    %v2233 = vunpack.c.l.b16 %v1914
    %v2234 = vunpack.c.h.b16 %v1914
    %v2235 = vunpack.c.l.b16 %v1915
    %v2236 = vunpack.c.h.b16 %v1915
    %v2237 = vunpack.c.l.b16 %v1916
    %v2238 = vunpack.c.h.b16 %v1916
    %v2239 = vunpack.c.l.b16 %v1917
    %v2240 = vunpack.c.h.b16 %v1917
    %v2241 = vunpack.c.l.b16 %v1918
    %v2242 = vunpack.c.h.b16 %v1918
    %v2243 = vunpack.c.l.b16 %v1919
    %v2244 = vunpack.c.h.b16 %v1919
    %v2245 = vunpack.c.l.b16 %v1920
    %v2246 = vunpack.c.h.b16 %v1920
    %v2247 = vunpack.c.l.b16 %v1921
    %v2248 = vunpack.c.h.b16 %v1921
    %v2249 = vunpack.c.l.b16 %v1922
    %v2250 = vunpack.c.h.b16 %v1922
    %v2251 = vunpack.c.l.b16 %v1923
    %v2252 = vunpack.c.h.b16 %v1923
    %v2253 = vunpack.c.l.b16 %v1924
    %v2254 = vunpack.c.h.b16 %v1924
    %v2255 = vunpack.c.l.b16 %v1925
    %v2256 = vunpack.c.h.b16 %v1925
    %v2257 = vunpack.c.l.b16 %v1926
    %v2258 = vunpack.c.h.b16 %v1926
    %v2259 = vunpack.c.l.b16 %v1927
    %v2260 = vunpack.c.h.b16 %v1927
    %v2261 = vunpack.c.l.b16 %v1928
    %v2262 = vunpack.c.h.b16 %v1928
    %v2263 = vunpack.c.l.b16 %v1929
    %v2264 = vunpack.c.h.b16 %v1929
    %v2265 = vunpack.c.l.b16 %v1930
    %v2266 = vunpack.c.h.b16 %v1930
    %v2267 = vunpack.c.l.b16 %v1931
    %v2268 = vunpack.c.h.b16 %v1931
    %v2269 = vunpack.c.l.b16 %v1932
    %v2270 = vunpack.c.h.b16 %v1932
    %v2271 = vunpack.c.l.b16 %v1933
    %v2272 = vunpack.c.h.b16 %v1933
    %v2273 = vunpack.c.l.b16 %v1934
    %v2274 = vunpack.c.h.b16 %v1934
    %v2275 = vunpack.c.l.b16 %v1935
    %v2276 = vunpack.c.h.b16 %v1935
    %v2277 = vunpack.c.l.b16 %v1936
    %v2278 = vunpack.c.h.b16 %v1936
    %v2279 = vunpack.c.l.b16 %v1937
    %v2280 = vunpack.c.h.b16 %v1937
    %v2281 = vunpack.c.l.b16 %v1938
    %v2282 = vunpack.c.h.b16 %v1938
    %v2283 = vunpack.c.l.b16 %v1939
    %v2284 = vunpack.c.h.b16 %v1939
    %v2285 = vunpack.c.l.b16 %v1940
    %v2286 = vunpack.c.h.b16 %v1940
    %v2287 = vunpack.c.l.b16 %v1941
    %v2288 = vunpack.c.h.b16 %v1941
    %v2289 = vunpack.c.l.b16 %v1942
    %v2290 = vunpack.c.h.b16 %v1942
    %v2291 = vunpack.c.l.b16 %v1943
    %v2292 = vunpack.c.h.b16 %v1943
    %v2293 = vunpack.c.l.b16 %v1944
    %v2294 = vunpack.c.h.b16 %v1944
    %v2295 = vunpack.c.l.b16 %v1945
    %v2296 = vunpack.c.h.b16 %v1945
    %v2297 = vunpack.c.l.b16 %v1946
    %v2298 = vunpack.c.h.b16 %v1946
    %v2299 = vunpack.c.l.b16 %v1947
    %v2300 = vunpack.c.h.b16 %v1947
    %v2301 = vunpack.c.l.b16 %v1948
    %v2302 = vunpack.c.h.b16 %v1948
    %v2303 = vunpack.c.l.b16 %v1949
    %v2304 = vunpack.c.h.b16 %v1949
    %v2305 = vunpack.c.l.b16 %v1950
    %v2306 = vunpack.c.h.b16 %v1950
    %v2307 = vunpack.c.l.b16 %v1951
    %v2308 = vunpack.c.h.b16 %v1951
    %v2309 = vunpack.c.l.b16 %v1952
    %v2310 = vunpack.c.h.b16 %v1952
    %v2311 = vunpack.c.l.b16 %v1953
    %v2312 = vunpack.c.h.b16 %v1953
    %v2313 = vunpack.c.l.b16 %v1954
    %v2314 = vunpack.c.h.b16 %v1954
    %v2315 = vunpack.c.l.b16 %v1955
    %v2316 = vunpack.c.h.b16 %v1955
    %v2317 = vunpack.c.l.b16 %v1956
    %v2318 = vunpack.c.h.b16 %v1956
    %v2319 = vunpack.c.l.b16 %v1957
    %v2320 = vunpack.c.h.b16 %v1957
    %v2321 = vunpack.c.l.b16 %v1958
    %v2322 = vunpack.c.h.b16 %v1958
    %v2323 = vunpack.c.l.b16 %v1959
    %v2324 = vunpack.c.h.b16 %v1959
    %v2325 = vunpack.c.l.b16 %v1960
    %v2326 = vunpack.c.h.b16 %v1960
    %v2327 = vunpack.c.l.b16 %v1961
    %v2328 = vunpack.c.h.b16 %v1961
    %v2329 = vunpack.c.l.b16 %v1962
    %v2330 = vunpack.c.h.b16 %v1962
    %v2331 = vunpack.c.l.b16 %v1963
    %v2332 = vunpack.c.h.b16 %v1963
    %v2333 = vunpack.c.l.b16 %v1964
    %v2334 = vunpack.c.h.b16 %v1964
    %v2335 = vunpack.c.l.b16 %v1965
    %v2336 = vunpack.c.h.b16 %v1965
    %v2337 = vunpack.c.l.b16 %v1966
    %v2338 = vunpack.c.h.b16 %v1966
    %v2339 = vunpack.c.l.b16 %v1967
    %v2340 = vunpack.c.h.b16 %v1967
    %v2341 = vunpack.c.l.b16 %v1968
    %v2342 = vunpack.c.h.b16 %v1968
    %v2343 = vunpack.c.l.b16 %v1969
    %v2344 = vunpack.c.h.b16 %v1969
    %v2345 = vunpack.c.l.b16 %v1970
    %v2346 = vunpack.c.h.b16 %v1970
    %v2347 = vunpack.c.l.b16 %v1971
    %v2348 = vunpack.c.h.b16 %v1971
    %v2349 = vunpack.c.l.b16 %v1972
    %v2350 = vunpack.c.h.b16 %v1972
    %v2351 = vunpack.c.l.b16 %v1973
    %v2352 = vunpack.c.h.b16 %v1973
    %v2353 = vunpack.c.l.b16 %v1974
    %v2354 = vunpack.c.h.b16 %v1974
    %v2355 = vunpack.c.l.b16 %v1975
    %v2356 = vunpack.c.h.b16 %v1975
    %v2357 = vunpack.c.l.b16 %v1976
    %v2358 = vunpack.c.h.b16 %v1976
    %v2359 = vunpack.c.l.b16 %v1977
    %v2360 = vunpack.c.h.b16 %v1977
    %v2361 = vunpack.c.l.b16 %v1978
    %v2362 = vunpack.c.h.b16 %v1978
    %v2363 = vunpack.c.l.b16 %v1979
    %v2364 = vunpack.c.h.b16 %v1979
    %v2365 = vunpack.c.l.b16 %v1980
    %v2366 = vunpack.c.h.b16 %v1980
    %v2367 = vunpack.c.l.b16 %v1981
    %v2368 = vunpack.c.h.b16 %v1981
    %v2369 = vunpack.c.l.b16 %v1982
    %v2370 = vunpack.c.h.b16 %v1982
    %v2371 = vunpack.c.l.b16 %v1983
    %v2372 = vunpack.c.h.b16 %v1983
    %v2373 = vunpack.c.l.b16 %v1984
    %v2374 = vunpack.c.h.b16 %v1984
    %v2375 = vunpack.c.l.b16 %v1985
    %v2376 = vunpack.c.h.b16 %v1985
    %v2377 = vunpack.c.l.b16 %v1986
    %v2378 = vunpack.c.h.b16 %v1986
    %v2379 = vunpack.c.l.b16 %v1987
    %v2380 = vunpack.c.h.b16 %v1987
    %v2381 = vunpack.c.l.b16 %v1988
    %v2382 = vunpack.c.h.b16 %v1988
    %v2383 = vunpack.c.l.b16 %v1989
    %v2384 = vunpack.c.h.b16 %v1989
    %v2385 = vunpack.c.l.b16 %v1990
    %v2386 = vunpack.c.h.b16 %v1990
    %v2387 = vunpack.c.l.b16 %v1991
    %v2388 = vunpack.c.h.b16 %v1991
    %v2389 = vunpack.c.l.b16 %v1992
    %v2390 = vunpack.c.h.b16 %v1992
    %v2391 = vunpack.c.l.b16 %v1993
    %v2392 = vunpack.c.h.b16 %v1993
    %v2393 = vunpack.c.l.b16 %v1994
    %v2394 = vunpack.c.h.b16 %v1994
    %v2395 = vunpack.c.l.b16 %v1995
    %v2396 = vunpack.c.h.b16 %v1995
    %v2397 = vunpack.c.l.b16 %v1996
    %v2398 = vunpack.c.h.b16 %v1996
    %v2399 = vunpack.c.l.b16 %v1997
    %v2400 = vunpack.c.h.b16 %v1997
    %v2401 = vunpack.c.l.b16 %v1998
    %v2402 = vunpack.c.h.b16 %v1998
    %v2403 = vunpack.c.l.b16 %v1999
    %v2404 = vunpack.c.h.b16 %v1999
    %v2405 = vunpack.c.l.b16 %v2000
    %v2406 = vunpack.c.h.b16 %v2000
    %v2407 = vpack.c.b16 %v2155, %v2151
    %v2408 = vpack.c.b16 %v2156, %v2152
    %v2409 = vpack.c.b16 %v2157, %v2153
    %v2410 = vpack.c.b16 %v2158, %v2154
    %v2411 = vpack.c.b16 %v2163, %v2159
    %v2412 = vpack.c.b16 %v2164, %v2160
    %v2413 = vpack.c.b16 %v2165, %v2161
    %v2414 = vpack.c.b16 %v2166, %v2162
    %v2415 = vpack.c.b16 %v2171, %v2167
    %v2416 = vpack.c.b16 %v2172, %v2168
    %v2417 = vpack.c.b16 %v2173, %v2169
    %v2418 = vpack.c.b16 %v2174, %v2170
    %v2419 = vpack.c.b16 %v2179, %v2175
    %v2420 = vpack.c.b16 %v2180, %v2176
    %v2421 = vpack.c.b16 %v2181, %v2177
    %v2422 = vpack.c.b16 %v2182, %v2178
    %v2423 = vpack.c.b16 %v2187, %v2183
    %v2424 = vpack.c.b16 %v2188, %v2184
    %v2425 = vpack.c.b16 %v2189, %v2185
    %v2426 = vpack.c.b16 %v2190, %v2186
    %v2427 = vpack.c.b16 %v2195, %v2191
    %v2428 = vpack.c.b16 %v2196, %v2192
    %v2429 = vpack.c.b16 %v2197, %v2193
    %v2430 = vpack.c.b16 %v2198, %v2194
    %v2431 = vpack.c.b16 %v2203, %v2199
    %v2432 = vpack.c.b16 %v2204, %v2200
    %v2433 = vpack.c.b16 %v2205, %v2201
    %v2434 = vpack.c.b16 %v2206, %v2202
    %v2435 = vpack.c.b16 %v2211, %v2207
    %v2436 = vpack.c.b16 %v2212, %v2208
    %v2437 = vpack.c.b16 %v2213, %v2209
    %v2438 = vpack.c.b16 %v2214, %v2210
    %v2439 = vpack.c.b16 %v2219, %v2215
    %v2440 = vpack.c.b16 %v2220, %v2216
    %v2441 = vpack.c.b16 %v2221, %v2217
    %v2442 = vpack.c.b16 %v2222, %v2218
    %v2443 = vpack.c.b16 %v2227, %v2223
    %v2444 = vpack.c.b16 %v2228, %v2224
    %v2445 = vpack.c.b16 %v2229, %v2225
    %v2446 = vpack.c.b16 %v2230, %v2226
    %v2447 = vpack.c.b16 %v2235, %v2231
    %v2448 = vpack.c.b16 %v2236, %v2232
    %v2449 = vpack.c.b16 %v2237, %v2233
    %v2450 = vpack.c.b16 %v2238, %v2234
    %v2451 = vpack.c.b16 %v2243, %v2239
    %v2452 = vpack.c.b16 %v2244, %v2240
    %v2453 = vpack.c.b16 %v2245, %v2241
    %v2454 = vpack.c.b16 %v2246, %v2242
    %v2455 = vpack.c.b16 %v2251, %v2247
    %v2456 = vpack.c.b16 %v2252, %v2248
    %v2457 = vpack.c.b16 %v2253, %v2249
    %v2458 = vpack.c.b16 %v2254, %v2250
    %v2459 = vpack.c.b16 %v2259, %v2255
    %v2460 = vpack.c.b16 %v2260, %v2256
    %v2461 = vpack.c.b16 %v2261, %v2257
    %v2462 = vpack.c.b16 %v2262, %v2258
    %v2463 = vpack.c.b16 %v2267, %v2263
    %v2464 = vpack.c.b16 %v2268, %v2264
    %v2465 = vpack.c.b16 %v2269, %v2265
    %v2466 = vpack.c.b16 %v2270, %v2266
    %v2467 = vpack.c.b16 %v2275, %v2271
    %v2468 = vpack.c.b16 %v2276, %v2272
    %v2469 = vpack.c.b16 %v2277, %v2273
    %v2470 = vpack.c.b16 %v2278, %v2274
    %v2471 = vpack.c.b16 %v2283, %v2279
    %v2472 = vpack.c.b16 %v2284, %v2280
    %v2473 = vpack.c.b16 %v2285, %v2281
    %v2474 = vpack.c.b16 %v2286, %v2282
    %v2475 = vpack.c.b16 %v2291, %v2287
    %v2476 = vpack.c.b16 %v2292, %v2288
    %v2477 = vpack.c.b16 %v2293, %v2289
    %v2478 = vpack.c.b16 %v2294, %v2290
    %v2479 = vpack.c.b16 %v2299, %v2295
    %v2480 = vpack.c.b16 %v2300, %v2296
    %v2481 = vpack.c.b16 %v2301, %v2297
    %v2482 = vpack.c.b16 %v2302, %v2298
    %v2483 = vpack.c.b16 %v2307, %v2303
    %v2484 = vpack.c.b16 %v2308, %v2304
    %v2485 = vpack.c.b16 %v2309, %v2305
    %v2486 = vpack.c.b16 %v2310, %v2306
    %v2487 = vpack.c.b16 %v2315, %v2311
    %v2488 = vpack.c.b16 %v2316, %v2312
    %v2489 = vpack.c.b16 %v2317, %v2313
    %v2490 = vpack.c.b16 %v2318, %v2314
    %v2491 = vpack.c.b16 %v2323, %v2319
    %v2492 = vpack.c.b16 %v2324, %v2320
    %v2493 = vpack.c.b16 %v2325, %v2321
    %v2494 = vpack.c.b16 %v2326, %v2322
    %v2495 = vpack.c.b16 %v2331, %v2327
    %v2496 = vpack.c.b16 %v2332, %v2328
    %v2497 = vpack.c.b16 %v2333, %v2329
    %v2498 = vpack.c.b16 %v2334, %v2330
    %v2499 = vpack.c.b16 %v2339, %v2335
    %v2500 = vpack.c.b16 %v2340, %v2336
    %v2501 = vpack.c.b16 %v2341, %v2337
    %v2502 = vpack.c.b16 %v2342, %v2338
    %v2503 = vpack.c.b16 %v2347, %v2343
    %v2504 = vpack.c.b16 %v2348, %v2344
    %v2505 = vpack.c.b16 %v2349, %v2345
    %v2506 = vpack.c.b16 %v2350, %v2346
    %v2507 = vpack.c.b16 %v2355, %v2351
    %v2508 = vpack.c.b16 %v2356, %v2352
    %v2509 = vpack.c.b16 %v2357, %v2353
    %v2510 = vpack.c.b16 %v2358, %v2354
    %v2511 = vpack.c.b16 %v2363, %v2359
    %v2512 = vpack.c.b16 %v2364, %v2360
    %v2513 = vpack.c.b16 %v2365, %v2361
    %v2514 = vpack.c.b16 %v2366, %v2362
    %v2515 = vpack.c.b16 %v2371, %v2367
    %v2516 = vpack.c.b16 %v2372, %v2368
    %v2517 = vpack.c.b16 %v2373, %v2369
    %v2518 = vpack.c.b16 %v2374, %v2370
    %v2519 = vpack.c.b16 %v2379, %v2375
    %v2520 = vpack.c.b16 %v2380, %v2376
    %v2521 = vpack.c.b16 %v2381, %v2377
    %v2522 = vpack.c.b16 %v2382, %v2378
    %v2523 = vpack.c.b16 %v2387, %v2383
    %v2524 = vpack.c.b16 %v2388, %v2384
    %v2525 = vpack.c.b16 %v2389, %v2385
    %v2526 = vpack.c.b16 %v2390, %v2386
    %v2527 = vpack.c.b16 %v2395, %v2391
    %v2528 = vpack.c.b16 %v2396, %v2392
    %v2529 = vpack.c.b16 %v2397, %v2393
    %v2530 = vpack.c.b16 %v2398, %v2394
    %v2531 = vpack.c.b16 %v2403, %v2399
    %v2532 = vpack.c.b16 %v2404, %v2400
    %v2533 = vpack.c.b16 %v2405, %v2401
    %v2534 = vpack.c.b16 %v2406, %v2402
    %2663 = vmatprep.subr.bf16.mxu0 %v2408
    %2664 = vmatpush1.bf16.msra.mxu0 %v2407
    %2665 = vmatprep.subr.bf16.mxu0 %v2412
    %2666 = vmatpush1.bf16.msra.mxu0 %v2411
    %2667 = vmatprep.subr.bf16.mxu0 %v2416
    %2668 = vmatpush1.bf16.msra.mxu0 %v2415
    %2669 = vmatprep.subr.bf16.mxu0 %v2420
    %2670 = vmatpush1.bf16.msra.mxu0 %v2419
    %2671 = vmatprep.subr.bf16.mxu0 %v2424
    %2672 = vmatpush1.bf16.msra.mxu0 %v2423
    %2673 = vmatprep.subr.bf16.mxu0 %v2428
    %2674 = vmatpush1.bf16.msra.mxu0 %v2427
    %2675 = vmatprep.subr.bf16.mxu0 %v2432
    %2676 = vmatpush1.bf16.msra.mxu0 %v2431
    %2677 = vmatprep.subr.bf16.mxu0 %v2436
    %2678 = vmatpush1.bf16.msra.mxu0 %v2435
    %2679 = vmatprep.subr.bf16.mxu0 %v2440
    %2680 = vmatpush1.bf16.msra.mxu0 %v2439
    %2681 = vmatprep.subr.bf16.mxu0 %v2444
    %2682 = vmatpush1.bf16.msra.mxu0 %v2443
    %2683 = vmatprep.subr.bf16.mxu0 %v2448
    %2684 = vmatpush1.bf16.msra.mxu0 %v2447
    %2685 = vmatprep.subr.bf16.mxu0 %v2452
    %2686 = vmatpush1.bf16.msra.mxu0 %v2451
    %2687 = vmatprep.subr.bf16.mxu0 %v2456
    %2688 = vmatpush1.bf16.msra.mxu0 %v2455
    %2689 = vmatprep.subr.bf16.mxu0 %v2460
    %2690 = vmatpush1.bf16.msra.mxu0 %v2459
    %2691 = vmatprep.subr.bf16.mxu0 %v2464
    %2692 = vmatpush1.bf16.msra.mxu0 %v2463
    %2693 = vmatprep.subr.bf16.mxu0 %v2468
    %2694 = vmatpush1.bf16.msra.mxu0 %v2467
    %2695 = vmatprep.mubr.bf16.mxu0 %v1870
    %2696 = vmatmul.mubr.bf16.gmra.mrb[0].mxu0 %v1869
    %v2697 = vpop.f32.mrb[0].mxu0
    %v2698 = vadd.f32 %v2006, %v2697
    %v2699 = vpop.f32.mrb[0].mxu0
    %v2700 = vadd.f32 %v2010, %v2699
    %v2701 = vpop.f32.mrb[0].mxu0
    %v2702 = vadd.f32 %v2006, %v2701
    %v2703 = vpop.f32.mrb[0].mxu0
    %v2704 = vadd.f32 %v2010, %v2703
    %2705 = vdwg.mxu0
    %2706 = vmatprep.subr.bf16.mxu0 %v2472
    %2707 = vmatpush1.bf16.msra.mxu0 %v2471
    %2708 = vmatprep.subr.bf16.mxu0 %v2476
    %2709 = vmatpush1.bf16.msra.mxu0 %v2475
    %2710 = vmatprep.subr.bf16.mxu0 %v2480
    %2711 = vmatpush1.bf16.msra.mxu0 %v2479
    %2712 = vmatprep.subr.bf16.mxu0 %v2484
    %2713 = vmatpush1.bf16.msra.mxu0 %v2483
    %2714 = vmatprep.subr.bf16.mxu0 %v2488
    %2715 = vmatpush1.bf16.msra.mxu0 %v2487
    %2716 = vmatprep.subr.bf16.mxu0 %v2492
    %2717 = vmatpush1.bf16.msra.mxu0 %v2491
    %2718 = vmatprep.subr.bf16.mxu0 %v2496
    %2719 = vmatpush1.bf16.msra.mxu0 %v2495
    %2720 = vmatprep.subr.bf16.mxu0 %v2500
    %2721 = vmatpush1.bf16.msra.mxu0 %v2499
    %2722 = vmatprep.subr.bf16.mxu0 %v2504
    %2723 = vmatpush1.bf16.msra.mxu0 %v2503
    %2724 = vmatprep.subr.bf16.mxu0 %v2508
    %2725 = vmatpush1.bf16.msra.mxu0 %v2507
    %2726 = vmatprep.subr.bf16.mxu0 %v2512
    %2727 = vmatpush1.bf16.msra.mxu0 %v2511
    %2728 = vmatprep.subr.bf16.mxu0 %v2516
    %2729 = vmatpush1.bf16.msra.mxu0 %v2515
    %2730 = vmatprep.subr.bf16.mxu0 %v2520
    %2731 = vmatpush1.bf16.msra.mxu0 %v2519
    %2732 = vmatprep.subr.bf16.mxu0 %v2524
    %2733 = vmatpush1.bf16.msra.mxu0 %v2523
    %2734 = vmatprep.subr.bf16.mxu0 %v2528
    %2735 = vmatpush1.bf16.msra.mxu0 %v2527
    %2736 = vmatprep.subr.bf16.mxu0 %v2532
    %2737 = vmatpush1.bf16.msra.mxu0 %v2531
    %2738 = vmatprep.mubr.bf16.mxu0 %v1872
    %2739 = vmatmul.mubr.bf16.gmra.mrb[0].mxu0 %v1871
    %v2740 = vpop.f32.mrb[0].mxu0
    %v2741 = vadd.f32 %v2698, %v2740
    %v2742 = vpop.f32.mrb[0].mxu0
    %v2743 = vadd.f32 %v2700, %v2742
    %v2744 = vpop.f32.mrb[0].mxu0
    %v2745 = vadd.f32 %v2702, %v2744
    %v2746 = vpop.f32.mrb[0].mxu0
    %v2747 = vadd.f32 %v2704, %v2746
    %2748 = vdwg.mxu0
    %2749 = vmatprep.subr.bf16.mxu0 %v2410
    %2750 = vmatpush1.bf16.msra.mxu0 %v2409
    %2751 = vmatprep.subr.bf16.mxu0 %v2414
    %2752 = vmatpush1.bf16.msra.mxu0 %v2413
    %2753 = vmatprep.subr.bf16.mxu0 %v2418
    %2754 = vmatpush1.bf16.msra.mxu0 %v2417
    %2755 = vmatprep.subr.bf16.mxu0 %v2422
    %2756 = vmatpush1.bf16.msra.mxu0 %v2421
    %2757 = vmatprep.subr.bf16.mxu0 %v2426
    %2758 = vmatpush1.bf16.msra.mxu0 %v2425
    %2759 = vmatprep.subr.bf16.mxu0 %v2430
    %2760 = vmatpush1.bf16.msra.mxu0 %v2429
    %2761 = vmatprep.subr.bf16.mxu0 %v2434
    %2762 = vmatpush1.bf16.msra.mxu0 %v2433
    %2763 = vmatprep.subr.bf16.mxu0 %v2438
    %2764 = vmatpush1.bf16.msra.mxu0 %v2437
    %2765 = vmatprep.subr.bf16.mxu0 %v2442
    %2766 = vmatpush1.bf16.msra.mxu0 %v2441
    %2767 = vmatprep.subr.bf16.mxu0 %v2446
    %2768 = vmatpush1.bf16.msra.mxu0 %v2445
    %2769 = vmatprep.subr.bf16.mxu0 %v2450
    %2770 = vmatpush1.bf16.msra.mxu0 %v2449
    %2771 = vmatprep.subr.bf16.mxu0 %v2454
    %2772 = vmatpush1.bf16.msra.mxu0 %v2453
    %2773 = vmatprep.subr.bf16.mxu0 %v2458
    %2774 = vmatpush1.bf16.msra.mxu0 %v2457
    %2775 = vmatprep.subr.bf16.mxu0 %v2462
    %2776 = vmatpush1.bf16.msra.mxu0 %v2461
    %2777 = vmatprep.subr.bf16.mxu0 %v2466
    %2778 = vmatpush1.bf16.msra.mxu0 %v2465
    %2779 = vmatprep.subr.bf16.mxu0 %v2470
    %2780 = vmatpush1.bf16.msra.mxu0 %v2469
    %2781 = vmatprep.mubr.bf16.mxu0 %v1870
    %2782 = vmatmul.mubr.bf16.gmra.mrb[0].mxu0 %v1869
    %v2783 = vpop.f32.mrb[0].mxu0
    %v2784 = vadd.f32 %v2014, %v2783
    %v2785 = vpop.f32.mrb[0].mxu0
    %v2786 = vadd.f32 %v2018, %v2785
    %v2787 = vpop.f32.mrb[0].mxu0
    %v2788 = vadd.f32 %v2014, %v2787
    %v2789 = vpop.f32.mrb[0].mxu0
    %v2790 = vadd.f32 %v2018, %v2789
    %2791 = vdwg.mxu0
    %2792 = vmatprep.subr.bf16.mxu0 %v2474
    %2793 = vmatpush1.bf16.msra.mxu0 %v2473
    %2794 = vmatprep.subr.bf16.mxu0 %v2478
    %2795 = vmatpush1.bf16.msra.mxu0 %v2477
    %2796 = vmatprep.subr.bf16.mxu0 %v2482
    %2797 = vmatpush1.bf16.msra.mxu0 %v2481
    %2798 = vmatprep.subr.bf16.mxu0 %v2486
    %2799 = vmatpush1.bf16.msra.mxu0 %v2485
    %2800 = vmatprep.subr.bf16.mxu0 %v2490
    %2801 = vmatpush1.bf16.msra.mxu0 %v2489
    %2802 = vmatprep.subr.bf16.mxu0 %v2494
    %2803 = vmatpush1.bf16.msra.mxu0 %v2493
    %2804 = vmatprep.subr.bf16.mxu0 %v2498
    %2805 = vmatpush1.bf16.msra.mxu0 %v2497
    %2806 = vmatprep.subr.bf16.mxu0 %v2502
    %2807 = vmatpush1.bf16.msra.mxu0 %v2501
    %2808 = vmatprep.subr.bf16.mxu0 %v2506
    %2809 = vmatpush1.bf16.msra.mxu0 %v2505
    %2810 = vmatprep.subr.bf16.mxu0 %v2510
    %2811 = vmatpush1.bf16.msra.mxu0 %v2509
    %2812 = vmatprep.subr.bf16.mxu0 %v2514
    %2813 = vmatpush1.bf16.msra.mxu0 %v2513
    %2814 = vmatprep.subr.bf16.mxu0 %v2518
    %2815 = vmatpush1.bf16.msra.mxu0 %v2517
    %2816 = vmatprep.subr.bf16.mxu0 %v2522
    %2817 = vmatpush1.bf16.msra.mxu0 %v2521
    %2818 = vmatprep.subr.bf16.mxu0 %v2526
    %2819 = vmatpush1.bf16.msra.mxu0 %v2525
    %2820 = vmatprep.subr.bf16.mxu0 %v2530
    %2821 = vmatpush1.bf16.msra.mxu0 %v2529
    %2822 = vmatprep.subr.bf16.mxu0 %v2534
    %2823 = vmatpush1.bf16.msra.mxu0 %v2533
    %2824 = vmatprep.mubr.bf16.mxu0 %v1872
    %2825 = vmatmul.mubr.bf16.gmra.mrb[0].mxu0 %v1871
    %v2826 = vpop.f32.mrb[0].mxu0
    %v2827 = vadd.f32 %v2784, %v2826
    %v2828 = vpop.f32.mrb[0].mxu0
    %v2829 = vadd.f32 %v2786, %v2828
    %v2830 = vpop.f32.mrb[0].mxu0
    %v2831 = vadd.f32 %v2788, %v2830
    %v2832 = vpop.f32.mrb[0].mxu0
    %v2833 = vadd.f32 %v2790, %v2832
    %2834 = vdwg.mxu0
    %v2835 = vmax.f32 %v2741, 0.0
    %v2836 = vmax.f32 %v2743, 0.0
    %v2837 = vmax.f32 %v2827, 0.0
    %v2838 = vmax.f32 %v2829, 0.0
    %v2839 = vmax.f32 %v2745, 0.0
    %v2840 = vmax.f32 %v2747, 0.0
    %v2841 = vmax.f32 %v2831, 0.0
    %v2842 = vmax.f32 %v2833, 0.0
    %v2843 = vpack.c.bf16 %v2839, %v2835
    %v2844 = vpack.c.bf16 %v2840, %v2836
    %v2845 = vpack.c.bf16 %v2841, %v2837
    %v2846 = vpack.c.bf16 %v2842, %v2838
    %v2851 = vunpack.c.l.b16 %v2843
    %v2852 = vunpack.c.l.b16 %v2844
    %v2853 = vunpack.c.l.b16 %v2845
    %v2854 = vunpack.c.l.b16 %v2846
    %v2855 = vunpack.c.h.b16 %v2843
    %v2856 = vunpack.c.h.b16 %v2844
    %v2857 = vunpack.c.h.b16 %v2845
    %v2858 = vunpack.c.h.b16 %v2846
    %v2859 = vpack.c.b16 %v2852, %v2851
    %v2860 = vpack.c.b16 %v2854, %v2853
    %v2861 = vpack.c.b16 %v2856, %v2855
    %v2862 = vpack.c.b16 %v2858, %v2857
    %2867 = vst [vmem:[%s11] sm:$0xff] %v2859
    %2868 = vst [vmem:[%s11 + $0x8] sm:$0xff] %v2860
    %2869 = vst [vmem:[%s11 + $0x30] sm:$0xff] %v2861
    %2870 = vst [vmem:[%s11 + $0x38] sm:$0xff] %v2862
    %v2871 = vld [vmem:[#allocation6] sm:$0xff]
    %v2872 = vld [vmem:[#allocation6 + $0x8] sm:$0xff]
    %v2873 = vld [vmem:[#allocation6 + $0x10] sm:$0xff]
    %v2874 = vld [vmem:[#allocation6 + $0x18] sm:$0xff]
    %v2875 = vld [vmem:[#allocation6 + $0x20] sm:$0xff]
    %v2876 = vld [vmem:[#allocation6 + $0x28] sm:$0xff]
    %v2877 = vld [vmem:[#allocation6 + $0x30] sm:$0xff]
    %v2878 = vld [vmem:[#allocation6 + $0x38] sm:$0xff]
    %v2879 = vld [vmem:[#allocation6 + $0x40] sm:$0xff]
    %v2880 = vld [vmem:[#allocation6 + $0x48] sm:$0xff]
    %v2881 = vld [vmem:[#allocation6 + $0x50] sm:$0xff]
    %v2882 = vld [vmem:[#allocation6 + $0x58] sm:$0xff]
    %v2883 = vld [vmem:[#allocation6 + $0x60] sm:$0xff]
    %v2884 = vld [vmem:[#allocation6 + $0x68] sm:$0xff]
    %v2885 = vld [vmem:[#allocation6 + $0x70] sm:$0xff]
    %v2886 = vld [vmem:[#allocation6 + $0x78] sm:$0xff]
    %v2887 = vld [vmem:[#allocation6 + $0x80] sm:$0xff]
    %v2888 = vld [vmem:[#allocation6 + $0x88] sm:$0xff]
    %v2889 = vld [vmem:[#allocation6 + $0x90] sm:$0xff]
    %v2890 = vld [vmem:[#allocation6 + $0x98] sm:$0xff]
    %v2891 = vld [vmem:[#allocation6 + $0xa0] sm:$0xff]
    %v2892 = vld [vmem:[#allocation6 + $0xa8] sm:$0xff]
    %v2893 = vld [vmem:[#allocation6 + $0xb0] sm:$0xff]
    %v2894 = vld [vmem:[#allocation6 + $0xb8] sm:$0xff]
    %v2895 = vld [vmem:[#allocation6 + $0xc0] sm:$0xff]
    %v2896 = vld [vmem:[#allocation6 + $0xc8] sm:$0xff]
    %v2897 = vld [vmem:[#allocation6 + $0xd0] sm:$0xff]
    %v2898 = vld [vmem:[#allocation6 + $0xd8] sm:$0xff]
    %v2899 = vld [vmem:[#allocation6 + $0xe0] sm:$0xff]
    %v2900 = vld [vmem:[#allocation6 + $0xe8] sm:$0xff]
    %v2901 = vld [vmem:[#allocation6 + $0xf0] sm:$0xff]
    %v2902 = vld [vmem:[#allocation6 + $0xf8] sm:$0xff]
    %v2903 = vld [vmem:[#allocation6 + $0x100] sm:$0xff]
    %v2904 = vld [vmem:[#allocation6 + $0x108] sm:$0xff]
    %v2905 = vld [vmem:[#allocation6 + $0x110] sm:$0xff]
    %v2906 = vld [vmem:[#allocation6 + $0x118] sm:$0xff]
    %v2907 = vld [vmem:[#allocation6 + $0x120] sm:$0xff]
    %v2908 = vld [vmem:[#allocation6 + $0x128] sm:$0xff]
    %v2909 = vld [vmem:[#allocation6 + $0x130] sm:$0xff]
    %v2910 = vld [vmem:[#allocation6 + $0x138] sm:$0xff]
    %v2911 = vld [vmem:[#allocation6 + $0x140] sm:$0xff]
    %v2912 = vld [vmem:[#allocation6 + $0x148] sm:$0xff]
    %v2913 = vld [vmem:[#allocation6 + $0x150] sm:$0xff]
    %v2914 = vld [vmem:[#allocation6 + $0x158] sm:$0xff]
    %v2915 = vld [vmem:[#allocation6 + $0x160] sm:$0xff]
    %v2916 = vld [vmem:[#allocation6 + $0x168] sm:$0xff]
    %v2917 = vld [vmem:[#allocation6 + $0x170] sm:$0xff]
    %v2918 = vld [vmem:[#allocation6 + $0x178] sm:$0xff]
    %v2919 = vld [vmem:[#allocation6 + $0x180] sm:$0xff]
    %v2920 = vld [vmem:[#allocation6 + $0x188] sm:$0xff]
    %v2921 = vld [vmem:[#allocation6 + $0x190] sm:$0xff]
    %v2922 = vld [vmem:[#allocation6 + $0x198] sm:$0xff]
    %v2923 = vld [vmem:[#allocation6 + $0x1a0] sm:$0xff]
    %v2924 = vld [vmem:[#allocation6 + $0x1a8] sm:$0xff]
    %v2925 = vld [vmem:[#allocation6 + $0x1b0] sm:$0xff]
    %v2926 = vld [vmem:[#allocation6 + $0x1b8] sm:$0xff]
    %v2927 = vld [vmem:[#allocation6 + $0x1c0] sm:$0xff]
    %v2928 = vld [vmem:[#allocation6 + $0x1c8] sm:$0xff]
    %v2929 = vld [vmem:[#allocation6 + $0x1d0] sm:$0xff]
    %v2930 = vld [vmem:[#allocation6 + $0x1d8] sm:$0xff]
    %v2931 = vld [vmem:[#allocation6 + $0x1e0] sm:$0xff]
    %v2932 = vld [vmem:[#allocation6 + $0x1e8] sm:$0xff]
    %v2933 = vld [vmem:[#allocation6 + $0x1f0] sm:$0xff]
    %v2934 = vld [vmem:[#allocation6 + $0x1f8] sm:$0xff]
    %v2935 = vld [vmem:[%s6] sm:$0xff]
    %v2937 = vlaneseq
    %v2938 = vshrl.u32 %v2937, 7
    %v2939 = vsub.s32 0, %v2938
    %v2940 = vrot.slane %v2935, %v2939
    %v2941 = vlaneseq
    %v2942 = vshrl.u32 %v2941, 7
    %v2943 = vsub.s32 1, %v2942
    %v2944 = vrot.slane %v2935, %v2943
    %v2945 = vlaneseq
    %v2946 = vshrl.u32 %v2945, 7
    %v2947 = vsub.s32 2, %v2946
    %v2948 = vrot.slane %v2935, %v2947
    %v2949 = vlaneseq
    %v2950 = vshrl.u32 %v2949, 7
    %v2951 = vsub.s32 3, %v2950
    %v2952 = vrot.slane %v2935, %v2951
    %v2953 = vlaneseq
    %v2954 = vshrl.u32 %v2953, 7
    %v2955 = vsub.s32 4, %v2954
    %v2956 = vrot.slane %v2935, %v2955
    %v2957 = vlaneseq
    %v2958 = vshrl.u32 %v2957, 7
    %v2959 = vsub.s32 5, %v2958
    %v2960 = vrot.slane %v2935, %v2959
    %v2961 = vlaneseq
    %v2962 = vshrl.u32 %v2961, 7
    %v2963 = vsub.s32 6, %v2962
    %v2964 = vrot.slane %v2935, %v2963
    %v2965 = vlaneseq
    %v2966 = vshrl.u32 %v2965, 7
    %v2967 = vsub.s32 7, %v2966
    %v2968 = vrot.slane %v2935, %v2967
    %v3041 = vunpack.c.l.b16 %v2871
    %v3042 = vunpack.c.h.b16 %v2871
    %v3043 = vunpack.c.l.b16 %v2872
    %v3044 = vunpack.c.h.b16 %v2872
    %v3045 = vunpack.c.l.b16 %v2873
    %v3046 = vunpack.c.h.b16 %v2873
    %v3047 = vunpack.c.l.b16 %v2874
    %v3048 = vunpack.c.h.b16 %v2874
    %v3049 = vunpack.c.l.b16 %v2875
    %v3050 = vunpack.c.h.b16 %v2875
    %v3051 = vunpack.c.l.b16 %v2876
    %v3052 = vunpack.c.h.b16 %v2876
    %v3053 = vunpack.c.l.b16 %v2877
    %v3054 = vunpack.c.h.b16 %v2877
    %v3055 = vunpack.c.l.b16 %v2878
    %v3056 = vunpack.c.h.b16 %v2878
    %v3057 = vunpack.c.l.b16 %v2879
    %v3058 = vunpack.c.h.b16 %v2879
    %v3059 = vunpack.c.l.b16 %v2880
    %v3060 = vunpack.c.h.b16 %v2880
    %v3061 = vunpack.c.l.b16 %v2881
    %v3062 = vunpack.c.h.b16 %v2881
    %v3063 = vunpack.c.l.b16 %v2882
    %v3064 = vunpack.c.h.b16 %v2882
    %v3065 = vunpack.c.l.b16 %v2883
    %v3066 = vunpack.c.h.b16 %v2883
    %v3067 = vunpack.c.l.b16 %v2884
    %v3068 = vunpack.c.h.b16 %v2884
    %v3069 = vunpack.c.l.b16 %v2885
    %v3070 = vunpack.c.h.b16 %v2885
    %v3071 = vunpack.c.l.b16 %v2886
    %v3072 = vunpack.c.h.b16 %v2886
    %v3073 = vunpack.c.l.b16 %v2887
    %v3074 = vunpack.c.h.b16 %v2887
    %v3075 = vunpack.c.l.b16 %v2888
    %v3076 = vunpack.c.h.b16 %v2888
    %v3077 = vunpack.c.l.b16 %v2889
    %v3078 = vunpack.c.h.b16 %v2889
    %v3079 = vunpack.c.l.b16 %v2890
    %v3080 = vunpack.c.h.b16 %v2890
    %v3081 = vunpack.c.l.b16 %v2891
    %v3082 = vunpack.c.h.b16 %v2891
    %v3083 = vunpack.c.l.b16 %v2892
    %v3084 = vunpack.c.h.b16 %v2892
    %v3085 = vunpack.c.l.b16 %v2893
    %v3086 = vunpack.c.h.b16 %v2893
    %v3087 = vunpack.c.l.b16 %v2894
    %v3088 = vunpack.c.h.b16 %v2894
    %v3089 = vunpack.c.l.b16 %v2895
    %v3090 = vunpack.c.h.b16 %v2895
    %v3091 = vunpack.c.l.b16 %v2896
    %v3092 = vunpack.c.h.b16 %v2896
    %v3093 = vunpack.c.l.b16 %v2897
    %v3094 = vunpack.c.h.b16 %v2897
    %v3095 = vunpack.c.l.b16 %v2898
    %v3096 = vunpack.c.h.b16 %v2898
    %v3097 = vunpack.c.l.b16 %v2899
    %v3098 = vunpack.c.h.b16 %v2899
    %v3099 = vunpack.c.l.b16 %v2900
    %v3100 = vunpack.c.h.b16 %v2900
    %v3101 = vunpack.c.l.b16 %v2901
    %v3102 = vunpack.c.h.b16 %v2901
    %v3103 = vunpack.c.l.b16 %v2902
    %v3104 = vunpack.c.h.b16 %v2902
    %v3105 = vunpack.c.l.b16 %v2903
    %v3106 = vunpack.c.h.b16 %v2903
    %v3107 = vunpack.c.l.b16 %v2904
    %v3108 = vunpack.c.h.b16 %v2904
    %v3109 = vunpack.c.l.b16 %v2905
    %v3110 = vunpack.c.h.b16 %v2905
    %v3111 = vunpack.c.l.b16 %v2906
    %v3112 = vunpack.c.h.b16 %v2906
    %v3113 = vunpack.c.l.b16 %v2907
    %v3114 = vunpack.c.h.b16 %v2907
    %v3115 = vunpack.c.l.b16 %v2908
    %v3116 = vunpack.c.h.b16 %v2908
    %v3117 = vunpack.c.l.b16 %v2909
    %v3118 = vunpack.c.h.b16 %v2909
    %v3119 = vunpack.c.l.b16 %v2910
    %v3120 = vunpack.c.h.b16 %v2910
    %v3121 = vunpack.c.l.b16 %v2911
    %v3122 = vunpack.c.h.b16 %v2911
    %v3123 = vunpack.c.l.b16 %v2912
    %v3124 = vunpack.c.h.b16 %v2912
    %v3125 = vunpack.c.l.b16 %v2913
    %v3126 = vunpack.c.h.b16 %v2913
    %v3127 = vunpack.c.l.b16 %v2914
    %v3128 = vunpack.c.h.b16 %v2914
    %v3129 = vunpack.c.l.b16 %v2915
    %v3130 = vunpack.c.h.b16 %v2915
    %v3131 = vunpack.c.l.b16 %v2916
    %v3132 = vunpack.c.h.b16 %v2916
    %v3133 = vunpack.c.l.b16 %v2917
    %v3134 = vunpack.c.h.b16 %v2917
    %v3135 = vunpack.c.l.b16 %v2918
    %v3136 = vunpack.c.h.b16 %v2918
    %v3137 = vunpack.c.l.b16 %v2919
    %v3138 = vunpack.c.h.b16 %v2919
    %v3139 = vunpack.c.l.b16 %v2920
    %v3140 = vunpack.c.h.b16 %v2920
    %v3141 = vunpack.c.l.b16 %v2921
    %v3142 = vunpack.c.h.b16 %v2921
    %v3143 = vunpack.c.l.b16 %v2922
    %v3144 = vunpack.c.h.b16 %v2922
    %v3145 = vunpack.c.l.b16 %v2923
    %v3146 = vunpack.c.h.b16 %v2923
    %v3147 = vunpack.c.l.b16 %v2924
    %v3148 = vunpack.c.h.b16 %v2924
    %v3149 = vunpack.c.l.b16 %v2925
    %v3150 = vunpack.c.h.b16 %v2925
    %v3151 = vunpack.c.l.b16 %v2926
    %v3152 = vunpack.c.h.b16 %v2926
    %v3153 = vunpack.c.l.b16 %v2927
    %v3154 = vunpack.c.h.b16 %v2927
    %v3155 = vunpack.c.l.b16 %v2928
    %v3156 = vunpack.c.h.b16 %v2928
    %v3157 = vunpack.c.l.b16 %v2929
    %v3158 = vunpack.c.h.b16 %v2929
    %v3159 = vunpack.c.l.b16 %v2930
    %v3160 = vunpack.c.h.b16 %v2930
    %v3161 = vunpack.c.l.b16 %v2931
    %v3162 = vunpack.c.h.b16 %v2931
    %v3163 = vunpack.c.l.b16 %v2932
    %v3164 = vunpack.c.h.b16 %v2932
    %v3165 = vunpack.c.l.b16 %v2933
    %v3166 = vunpack.c.h.b16 %v2933
    %v3167 = vunpack.c.l.b16 %v2934
    %v3168 = vunpack.c.h.b16 %v2934
    %v3169 = vpack.c.b16 %v3049, %v3041
    %v3170 = vpack.c.b16 %v3050, %v3042
    %v3171 = vpack.c.b16 %v3051, %v3043
    %v3172 = vpack.c.b16 %v3052, %v3044
    %v3173 = vpack.c.b16 %v3053, %v3045
    %v3174 = vpack.c.b16 %v3054, %v3046
    %v3175 = vpack.c.b16 %v3055, %v3047
    %v3176 = vpack.c.b16 %v3056, %v3048
    %v3177 = vpack.c.b16 %v3065, %v3057
    %v3178 = vpack.c.b16 %v3066, %v3058
    %v3179 = vpack.c.b16 %v3067, %v3059
    %v3180 = vpack.c.b16 %v3068, %v3060
    %v3181 = vpack.c.b16 %v3069, %v3061
    %v3182 = vpack.c.b16 %v3070, %v3062
    %v3183 = vpack.c.b16 %v3071, %v3063
    %v3184 = vpack.c.b16 %v3072, %v3064
    %v3185 = vpack.c.b16 %v3081, %v3073
    %v3186 = vpack.c.b16 %v3082, %v3074
    %v3187 = vpack.c.b16 %v3083, %v3075
    %v3188 = vpack.c.b16 %v3084, %v3076
    %v3189 = vpack.c.b16 %v3085, %v3077
    %v3190 = vpack.c.b16 %v3086, %v3078
    %v3191 = vpack.c.b16 %v3087, %v3079
    %v3192 = vpack.c.b16 %v3088, %v3080
    %v3193 = vpack.c.b16 %v3097, %v3089
    %v3194 = vpack.c.b16 %v3098, %v3090
    %v3195 = vpack.c.b16 %v3099, %v3091
    %v3196 = vpack.c.b16 %v3100, %v3092
    %v3197 = vpack.c.b16 %v3101, %v3093
    %v3198 = vpack.c.b16 %v3102, %v3094
    %v3199 = vpack.c.b16 %v3103, %v3095
    %v3200 = vpack.c.b16 %v3104, %v3096
    %v3201 = vpack.c.b16 %v3113, %v3105
    %v3202 = vpack.c.b16 %v3114, %v3106
    %v3203 = vpack.c.b16 %v3115, %v3107
    %v3204 = vpack.c.b16 %v3116, %v3108
    %v3205 = vpack.c.b16 %v3117, %v3109
    %v3206 = vpack.c.b16 %v3118, %v3110
    %v3207 = vpack.c.b16 %v3119, %v3111
    %v3208 = vpack.c.b16 %v3120, %v3112
    %v3209 = vpack.c.b16 %v3129, %v3121
    %v3210 = vpack.c.b16 %v3130, %v3122
    %v3211 = vpack.c.b16 %v3131, %v3123
    %v3212 = vpack.c.b16 %v3132, %v3124
    %v3213 = vpack.c.b16 %v3133, %v3125
    %v3214 = vpack.c.b16 %v3134, %v3126
    %v3215 = vpack.c.b16 %v3135, %v3127
    %v3216 = vpack.c.b16 %v3136, %v3128
    %v3217 = vpack.c.b16 %v3145, %v3137
    %v3218 = vpack.c.b16 %v3146, %v3138
    %v3219 = vpack.c.b16 %v3147, %v3139
    %v3220 = vpack.c.b16 %v3148, %v3140
    %v3221 = vpack.c.b16 %v3149, %v3141
    %v3222 = vpack.c.b16 %v3150, %v3142
    %v3223 = vpack.c.b16 %v3151, %v3143
    %v3224 = vpack.c.b16 %v3152, %v3144
    %v3225 = vpack.c.b16 %v3161, %v3153
    %v3226 = vpack.c.b16 %v3162, %v3154
    %v3227 = vpack.c.b16 %v3163, %v3155
    %v3228 = vpack.c.b16 %v3164, %v3156
    %v3229 = vpack.c.b16 %v3165, %v3157
    %v3230 = vpack.c.b16 %v3166, %v3158
    %v3231 = vpack.c.b16 %v3167, %v3159
    %v3232 = vpack.c.b16 %v3168, %v3160
    %3297 = vmatprep.subr.bf16.mxu0 %v3170
    %3298 = vmatpush1.bf16.msra.mxu0 %v3169
    %3299 = vmatprep.subr.bf16.mxu0 %v3178
    %3300 = vmatpush1.bf16.msra.mxu0 %v3177
    %3301 = vmatprep.subr.bf16.mxu0 %v3186
    %3302 = vmatpush1.bf16.msra.mxu0 %v3185
    %3303 = vmatprep.subr.bf16.mxu0 %v3194
    %3304 = vmatpush1.bf16.msra.mxu0 %v3193
    %3305 = vmatprep.subr.bf16.mxu0 %v3202
    %3306 = vmatpush1.bf16.msra.mxu0 %v3201
    %3307 = vmatprep.subr.bf16.mxu0 %v3210
    %3308 = vmatpush1.bf16.msra.mxu0 %v3209
    %3309 = vmatprep.subr.bf16.mxu0 %v3218
    %3310 = vmatpush1.bf16.msra.mxu0 %v3217
    %3311 = vmatprep.subr.bf16.mxu0 %v3226
    %3312 = vmatpush1.bf16.msra.mxu0 %v3225
    %3313 = vmatprep.subr.bf16.mxu0 0
    %3314 = vmatpush1.bf16.msra.mxu0 0
    %3315 = vmatprep.subr.bf16.mxu0 0
    %3316 = vmatpush1.bf16.msra.mxu0 0
    %3317 = vmatprep.subr.bf16.mxu0 0
    %3318 = vmatpush1.bf16.msra.mxu0 0
    %3319 = vmatprep.subr.bf16.mxu0 0
    %3320 = vmatpush1.bf16.msra.mxu0 0
    %3321 = vmatprep.subr.bf16.mxu0 0
    %3322 = vmatpush1.bf16.msra.mxu0 0
    %3323 = vmatprep.subr.bf16.mxu0 0
    %3324 = vmatpush1.bf16.msra.mxu0 0
    %3325 = vmatprep.subr.bf16.mxu0 0
    %3326 = vmatpush1.bf16.msra.mxu0 0
    %3327 = vmatprep.subr.bf16.mxu0 0
    %3328 = vmatpush1.bf16.msra.mxu0 0
    %3329 = vmatprep.mubr.bf16.mxu0 0
    %3330 = vmatmul.mubr.bf16.gmra.mrb[0].mxu0 %v389
    %v3331 = vpop.f32.mrb[0].mxu0
    %v3332 = vadd.f32 %v2940, %v3331
    %v3333 = vpop.f32.mrb[0].mxu0
    %v3334 = vadd.f32 %v2944, %v3333
    %v3335 = vpop.f32.mrb[0].mxu0
    %v3336 = vadd.f32 %v2940, %v3335
    %v3337 = vpop.f32.mrb[0].mxu0
    %v3338 = vadd.f32 %v2944, %v3337
    %3339 = vdwg.mxu0
    %3340 = vmatprep.subr.bf16.mxu0 %v3172
    %3341 = vmatpush1.bf16.msra.mxu0 %v3171
    %3342 = vmatprep.subr.bf16.mxu0 %v3180
    %3343 = vmatpush1.bf16.msra.mxu0 %v3179
    %3344 = vmatprep.subr.bf16.mxu0 %v3188
    %3345 = vmatpush1.bf16.msra.mxu0 %v3187
    %3346 = vmatprep.subr.bf16.mxu0 %v3196
    %3347 = vmatpush1.bf16.msra.mxu0 %v3195
    %3348 = vmatprep.subr.bf16.mxu0 %v3204
    %3349 = vmatpush1.bf16.msra.mxu0 %v3203
    %3350 = vmatprep.subr.bf16.mxu0 %v3212
    %3351 = vmatpush1.bf16.msra.mxu0 %v3211
    %3352 = vmatprep.subr.bf16.mxu0 %v3220
    %3353 = vmatpush1.bf16.msra.mxu0 %v3219
    %3354 = vmatprep.subr.bf16.mxu0 %v3228
    %3355 = vmatpush1.bf16.msra.mxu0 %v3227
    %3356 = vmatprep.subr.bf16.mxu0 0
    %3357 = vmatpush1.bf16.msra.mxu0 0
    %3358 = vmatprep.subr.bf16.mxu0 0
    %3359 = vmatpush1.bf16.msra.mxu0 0
    %3360 = vmatprep.subr.bf16.mxu0 0
    %3361 = vmatpush1.bf16.msra.mxu0 0
    %3362 = vmatprep.subr.bf16.mxu0 0
    %3363 = vmatpush1.bf16.msra.mxu0 0
    %3364 = vmatprep.subr.bf16.mxu0 0
    %3365 = vmatpush1.bf16.msra.mxu0 0
    %3366 = vmatprep.subr.bf16.mxu0 0
    %3367 = vmatpush1.bf16.msra.mxu0 0
    %3368 = vmatprep.subr.bf16.mxu0 0
    %3369 = vmatpush1.bf16.msra.mxu0 0
    %3370 = vmatprep.subr.bf16.mxu0 0
    %3371 = vmatpush1.bf16.msra.mxu0 0
    %3372 = vmatprep.mubr.bf16.mxu0 0
    %3373 = vmatmul.mubr.bf16.gmra.mrb[0].mxu0 %v389
    %v3374 = vpop.f32.mrb[0].mxu0
    %v3375 = vadd.f32 %v2948, %v3374
    %v3376 = vpop.f32.mrb[0].mxu0
    %v3377 = vadd.f32 %v2952, %v3376
    %v3378 = vpop.f32.mrb[0].mxu0
    %v3379 = vadd.f32 %v2948, %v3378
    %v3380 = vpop.f32.mrb[0].mxu0
    %v3381 = vadd.f32 %v2952, %v3380
    %3382 = vdwg.mxu0
    %3383 = vmatprep.subr.bf16.mxu0 %v3174
    %3384 = vmatpush1.bf16.msra.mxu0 %v3173
    %3385 = vmatprep.subr.bf16.mxu0 %v3182
    %3386 = vmatpush1.bf16.msra.mxu0 %v3181
    %3387 = vmatprep.subr.bf16.mxu0 %v3190
    %3388 = vmatpush1.bf16.msra.mxu0 %v3189
    %3389 = vmatprep.subr.bf16.mxu0 %v3198
    %3390 = vmatpush1.bf16.msra.mxu0 %v3197
    %3391 = vmatprep.subr.bf16.mxu0 %v3206
    %3392 = vmatpush1.bf16.msra.mxu0 %v3205
    %3393 = vmatprep.subr.bf16.mxu0 %v3214
    %3394 = vmatpush1.bf16.msra.mxu0 %v3213
    %3395 = vmatprep.subr.bf16.mxu0 %v3222
    %3396 = vmatpush1.bf16.msra.mxu0 %v3221
    %3397 = vmatprep.subr.bf16.mxu0 %v3230
    %3398 = vmatpush1.bf16.msra.mxu0 %v3229
    %3399 = vmatprep.subr.bf16.mxu0 0
    %3400 = vmatpush1.bf16.msra.mxu0 0
    %3401 = vmatprep.subr.bf16.mxu0 0
    %3402 = vmatpush1.bf16.msra.mxu0 0
    %3403 = vmatprep.subr.bf16.mxu0 0
    %3404 = vmatpush1.bf16.msra.mxu0 0
    %3405 = vmatprep.subr.bf16.mxu0 0
    %3406 = vmatpush1.bf16.msra.mxu0 0
    %3407 = vmatprep.subr.bf16.mxu0 0
    %3408 = vmatpush1.bf16.msra.mxu0 0
    %3409 = vmatprep.subr.bf16.mxu0 0
    %3410 = vmatpush1.bf16.msra.mxu0 0
    %3411 = vmatprep.subr.bf16.mxu0 0
    %3412 = vmatpush1.bf16.msra.mxu0 0
    %3413 = vmatprep.subr.bf16.mxu0 0
    %3414 = vmatpush1.bf16.msra.mxu0 0
    %3415 = vmatprep.mubr.bf16.mxu0 0
    %3416 = vmatmul.mubr.bf16.gmra.mrb[0].mxu0 %v389
    %v3417 = vpop.f32.mrb[0].mxu0
    %v3418 = vadd.f32 %v2956, %v3417
    %v3419 = vpop.f32.mrb[0].mxu0
    %v3420 = vadd.f32 %v2960, %v3419
    %v3421 = vpop.f32.mrb[0].mxu0
    %v3422 = vadd.f32 %v2956, %v3421
    %v3423 = vpop.f32.mrb[0].mxu0
    %v3424 = vadd.f32 %v2960, %v3423
    %3425 = vdwg.mxu0
    %3426 = vmatprep.subr.bf16.mxu0 %v3176
    %3427 = vmatpush1.bf16.msra.mxu0 %v3175
    %3428 = vmatprep.subr.bf16.mxu0 %v3184
    %3429 = vmatpush1.bf16.msra.mxu0 %v3183
    %3430 = vmatprep.subr.bf16.mxu0 %v3192
    %3431 = vmatpush1.bf16.msra.mxu0 %v3191
    %3432 = vmatprep.subr.bf16.mxu0 %v3200
    %3433 = vmatpush1.bf16.msra.mxu0 %v3199
    %3434 = vmatprep.subr.bf16.mxu0 %v3208
    %3435 = vmatpush1.bf16.msra.mxu0 %v3207
    %3436 = vmatprep.subr.bf16.mxu0 %v3216
    %3437 = vmatpush1.bf16.msra.mxu0 %v3215
    %3438 = vmatprep.subr.bf16.mxu0 %v3224
    %3439 = vmatpush1.bf16.msra.mxu0 %v3223
    %3440 = vmatprep.subr.bf16.mxu0 %v3232
    %3441 = vmatpush1.bf16.msra.mxu0 %v3231
    %3442 = vmatprep.subr.bf16.mxu0 0
    %3443 = vmatpush1.bf16.msra.mxu0 0
    %3444 = vmatprep.subr.bf16.mxu0 0
    %3445 = vmatpush1.bf16.msra.mxu0 0
    %3446 = vmatprep.subr.bf16.mxu0 0
    %3447 = vmatpush1.bf16.msra.mxu0 0
    %3448 = vmatprep.subr.bf16.mxu0 0
    %3449 = vmatpush1.bf16.msra.mxu0 0
    %3450 = vmatprep.subr.bf16.mxu0 0
    %3451 = vmatpush1.bf16.msra.mxu0 0
    %3452 = vmatprep.subr.bf16.mxu0 0
    %3453 = vmatpush1.bf16.msra.mxu0 0
    %3454 = vmatprep.subr.bf16.mxu0 0
    %3455 = vmatpush1.bf16.msra.mxu0 0
    %3456 = vmatprep.subr.bf16.mxu0 0
    %3457 = vmatpush1.bf16.msra.mxu0 0
    %3458 = vmatprep.mubr.bf16.mxu0 0
    %3459 = vmatmul.mubr.bf16.gmra.mrb[0].mxu0 %v389
    %v3460 = vpop.f32.mrb[0].mxu0
    %v3461 = vadd.f32 %v2964, %v3460
    %v3462 = vpop.f32.mrb[0].mxu0
    %v3463 = vadd.f32 %v2968, %v3462
    %v3464 = vpop.f32.mrb[0].mxu0
    %v3465 = vadd.f32 %v2964, %v3464
    %v3466 = vpop.f32.mrb[0].mxu0
    %v3467 = vadd.f32 %v2968, %v3466
    %3468 = vdwg.mxu0
    %v3469 = vmax.f32 %v3332, 0.0
    %v3470 = vmax.f32 %v3334, 0.0
    %v3471 = vmax.f32 %v3375, 0.0
    %v3472 = vmax.f32 %v3377, 0.0
    %v3473 = vmax.f32 %v3418, 0.0
    %v3474 = vmax.f32 %v3420, 0.0
    %v3475 = vmax.f32 %v3461, 0.0
    %v3476 = vmax.f32 %v3463, 0.0
    %v3477 = vmax.f32 %v3336, 0.0
    %v3478 = vmax.f32 %v3338, 0.0
    %v3479 = vmax.f32 %v3379, 0.0
    %v3480 = vmax.f32 %v3381, 0.0
    %v3481 = vmax.f32 %v3422, 0.0
    %v3482 = vmax.f32 %v3424, 0.0
    %v3483 = vmax.f32 %v3465, 0.0
    %v3484 = vmax.f32 %v3467, 0.0
    %v3485 = vpack.c.bf16 %v3477, %v3469
    %v3486 = vpack.c.bf16 %v3478, %v3470
    %v3487 = vpack.c.bf16 %v3479, %v3471
    %v3488 = vpack.c.bf16 %v3480, %v3472
    %v3489 = vpack.c.bf16 %v3481, %v3473
    %v3490 = vpack.c.bf16 %v3482, %v3474
    %v3491 = vpack.c.bf16 %v3483, %v3475
    %v3492 = vpack.c.bf16 %v3484, %v3476
    %v3493 = vld [vmem:[#allocation7] sm:$0xff]
    %v3494 = vld [vmem:[#allocation7 + $0x8] sm:$0xff]
    %v3495 = vld [vmem:[#allocation7 + $0x10] sm:$0xff]
    %v3496 = vld [vmem:[#allocation7 + $0x18] sm:$0xff]
    %v3497 = vld [vmem:[#allocation7 + $0x20] sm:$0xff]
    %v3498 = vld [vmem:[#allocation7 + $0x28] sm:$0xff]
    %v3499 = vld [vmem:[#allocation7 + $0x30] sm:$0xff]
    %v3500 = vld [vmem:[#allocation7 + $0x38] sm:$0xff]
    %v3501 = vld [vmem:[#allocation7 + $0x40] sm:$0xff]
    %v3502 = vld [vmem:[#allocation7 + $0x48] sm:$0xff]
    %v3503 = vld [vmem:[#allocation7 + $0x50] sm:$0xff]
    %v3504 = vld [vmem:[#allocation7 + $0x58] sm:$0xff]
    %v3505 = vld [vmem:[#allocation7 + $0x60] sm:$0xff]
    %v3506 = vld [vmem:[#allocation7 + $0x68] sm:$0xff]
    %v3507 = vld [vmem:[#allocation7 + $0x70] sm:$0xff]
    %v3508 = vld [vmem:[#allocation7 + $0x78] sm:$0xff]
    %v3509 = vld [vmem:[#allocation7 + $0x80] sm:$0xff]
    %v3510 = vld [vmem:[#allocation7 + $0x88] sm:$0xff]
    %v3511 = vld [vmem:[#allocation7 + $0x90] sm:$0xff]
    %v3512 = vld [vmem:[#allocation7 + $0x98] sm:$0xff]
    %v3513 = vld [vmem:[#allocation7 + $0xa0] sm:$0xff]
    %v3514 = vld [vmem:[#allocation7 + $0xa8] sm:$0xff]
    %v3515 = vld [vmem:[#allocation7 + $0xb0] sm:$0xff]
    %v3516 = vld [vmem:[#allocation7 + $0xb8] sm:$0xff]
    %v3517 = vld [vmem:[#allocation7 + $0xc0] sm:$0xff]
    %v3518 = vld [vmem:[#allocation7 + $0xc8] sm:$0xff]
    %v3519 = vld [vmem:[#allocation7 + $0xd0] sm:$0xff]
    %v3520 = vld [vmem:[#allocation7 + $0xd8] sm:$0xff]
    %v3521 = vld [vmem:[#allocation7 + $0xe0] sm:$0xff]
    %v3522 = vld [vmem:[#allocation7 + $0xe8] sm:$0xff]
    %v3523 = vld [vmem:[#allocation7 + $0xf0] sm:$0xff]
    %v3524 = vld [vmem:[#allocation7 + $0xf8] sm:$0xff]
    %v3525 = vld [vmem:[#allocation7 + $0x100] sm:$0xff]
    %v3526 = vld [vmem:[#allocation7 + $0x108] sm:$0xff]
    %v3527 = vld [vmem:[#allocation7 + $0x110] sm:$0xff]
    %v3528 = vld [vmem:[#allocation7 + $0x118] sm:$0xff]
    %v3529 = vld [vmem:[#allocation7 + $0x120] sm:$0xff]
    %v3530 = vld [vmem:[#allocation7 + $0x128] sm:$0xff]
    %v3531 = vld [vmem:[#allocation7 + $0x130] sm:$0xff]
    %v3532 = vld [vmem:[#allocation7 + $0x138] sm:$0xff]
    %v3533 = vld [vmem:[#allocation7 + $0x140] sm:$0xff]
    %v3534 = vld [vmem:[#allocation7 + $0x148] sm:$0xff]
    %v3535 = vld [vmem:[#allocation7 + $0x150] sm:$0xff]
    %v3536 = vld [vmem:[#allocation7 + $0x158] sm:$0xff]
    %v3537 = vld [vmem:[#allocation7 + $0x160] sm:$0xff]
    %v3538 = vld [vmem:[#allocation7 + $0x168] sm:$0xff]
    %v3539 = vld [vmem:[#allocation7 + $0x170] sm:$0xff]
    %v3540 = vld [vmem:[#allocation7 + $0x178] sm:$0xff]
    %v3541 = vld [vmem:[#allocation7 + $0x180] sm:$0xff]
    %v3542 = vld [vmem:[#allocation7 + $0x188] sm:$0xff]
    %v3543 = vld [vmem:[#allocation7 + $0x190] sm:$0xff]
    %v3544 = vld [vmem:[#allocation7 + $0x198] sm:$0xff]
    %v3545 = vld [vmem:[#allocation7 + $0x1a0] sm:$0xff]
    %v3546 = vld [vmem:[#allocation7 + $0x1a8] sm:$0xff]
    %v3547 = vld [vmem:[#allocation7 + $0x1b0] sm:$0xff]
    %v3548 = vld [vmem:[#allocation7 + $0x1b8] sm:$0xff]
    %v3549 = vld [vmem:[#allocation7 + $0x1c0] sm:$0xff]
    %v3550 = vld [vmem:[#allocation7 + $0x1c8] sm:$0xff]
    %v3551 = vld [vmem:[#allocation7 + $0x1d0] sm:$0xff]
    %v3552 = vld [vmem:[#allocation7 + $0x1d8] sm:$0xff]
    %v3553 = vld [vmem:[#allocation7 + $0x1e0] sm:$0xff]
    %v3554 = vld [vmem:[#allocation7 + $0x1e8] sm:$0xff]
    %v3555 = vld [vmem:[#allocation7 + $0x1f0] sm:$0xff]
    %v3556 = vld [vmem:[#allocation7 + $0x1f8] sm:$0xff]
    %v3557 = vld [vmem:[#allocation7 + $0x200] sm:$0xff]
    %v3558 = vld [vmem:[#allocation7 + $0x208] sm:$0xff]
    %v3559 = vld [vmem:[#allocation7 + $0x210] sm:$0xff]
    %v3560 = vld [vmem:[#allocation7 + $0x218] sm:$0xff]
    %v3561 = vld [vmem:[#allocation7 + $0x220] sm:$0xff]
    %v3562 = vld [vmem:[#allocation7 + $0x228] sm:$0xff]
    %v3563 = vld [vmem:[#allocation7 + $0x230] sm:$0xff]
    %v3564 = vld [vmem:[#allocation7 + $0x238] sm:$0xff]
    %v3565 = vld [vmem:[#allocation7 + $0x240] sm:$0xff]
    %v3566 = vld [vmem:[#allocation7 + $0x248] sm:$0xff]
    %v3567 = vld [vmem:[#allocation7 + $0x250] sm:$0xff]
    %v3568 = vld [vmem:[#allocation7 + $0x258] sm:$0xff]
    %v3569 = vld [vmem:[#allocation7 + $0x260] sm:$0xff]
    %v3570 = vld [vmem:[#allocation7 + $0x268] sm:$0xff]
    %v3571 = vld [vmem:[#allocation7 + $0x270] sm:$0xff]
    %v3572 = vld [vmem:[#allocation7 + $0x278] sm:$0xff]
    %v3573 = vld [vmem:[#allocation7 + $0x280] sm:$0xff]
    %v3574 = vld [vmem:[#allocation7 + $0x288] sm:$0xff]
    %v3575 = vld [vmem:[#allocation7 + $0x290] sm:$0xff]
    %v3576 = vld [vmem:[#allocation7 + $0x298] sm:$0xff]
    %v3577 = vld [vmem:[#allocation7 + $0x2a0] sm:$0xff]
    %v3578 = vld [vmem:[#allocation7 + $0x2a8] sm:$0xff]
    %v3579 = vld [vmem:[#allocation7 + $0x2b0] sm:$0xff]
    %v3580 = vld [vmem:[#allocation7 + $0x2b8] sm:$0xff]
    %v3581 = vld [vmem:[#allocation7 + $0x2c0] sm:$0xff]
    %v3582 = vld [vmem:[#allocation7 + $0x2c8] sm:$0xff]
    %v3583 = vld [vmem:[#allocation7 + $0x2d0] sm:$0xff]
    %v3584 = vld [vmem:[#allocation7 + $0x2d8] sm:$0xff]
    %v3585 = vld [vmem:[#allocation7 + $0x2e0] sm:$0xff]
    %v3586 = vld [vmem:[#allocation7 + $0x2e8] sm:$0xff]
    %v3587 = vld [vmem:[#allocation7 + $0x2f0] sm:$0xff]
    %v3588 = vld [vmem:[#allocation7 + $0x2f8] sm:$0xff]
    %v3589 = vld [vmem:[#allocation7 + $0x300] sm:$0xff]
    %v3590 = vld [vmem:[#allocation7 + $0x308] sm:$0xff]
    %v3591 = vld [vmem:[#allocation7 + $0x310] sm:$0xff]
    %v3592 = vld [vmem:[#allocation7 + $0x318] sm:$0xff]
    %v3593 = vld [vmem:[#allocation7 + $0x320] sm:$0xff]
    %v3594 = vld [vmem:[#allocation7 + $0x328] sm:$0xff]
    %v3595 = vld [vmem:[#allocation7 + $0x330] sm:$0xff]
    %v3596 = vld [vmem:[#allocation7 + $0x338] sm:$0xff]
    %v3597 = vld [vmem:[#allocation7 + $0x340] sm:$0xff]
    %v3598 = vld [vmem:[#allocation7 + $0x348] sm:$0xff]
    %v3599 = vld [vmem:[#allocation7 + $0x350] sm:$0xff]
    %v3600 = vld [vmem:[#allocation7 + $0x358] sm:$0xff]
    %v3601 = vld [vmem:[#allocation7 + $0x360] sm:$0xff]
    %v3602 = vld [vmem:[#allocation7 + $0x368] sm:$0xff]
    %v3603 = vld [vmem:[#allocation7 + $0x370] sm:$0xff]
    %v3604 = vld [vmem:[#allocation7 + $0x378] sm:$0xff]
    %v3605 = vld [vmem:[#allocation7 + $0x380] sm:$0xff]
    %v3606 = vld [vmem:[#allocation7 + $0x388] sm:$0xff]
    %v3607 = vld [vmem:[#allocation7 + $0x390] sm:$0xff]
    %v3608 = vld [vmem:[#allocation7 + $0x398] sm:$0xff]
    %v3609 = vld [vmem:[#allocation7 + $0x3a0] sm:$0xff]
    %v3610 = vld [vmem:[#allocation7 + $0x3a8] sm:$0xff]
    %v3611 = vld [vmem:[#allocation7 + $0x3b0] sm:$0xff]
    %v3612 = vld [vmem:[#allocation7 + $0x3b8] sm:$0xff]
    %v3613 = vld [vmem:[#allocation7 + $0x3c0] sm:$0xff]
    %v3614 = vld [vmem:[#allocation7 + $0x3c8] sm:$0xff]
    %v3615 = vld [vmem:[#allocation7 + $0x3d0] sm:$0xff]
    %v3616 = vld [vmem:[#allocation7 + $0x3d8] sm:$0xff]
    %v3617 = vld [vmem:[#allocation7 + $0x3e0] sm:$0xff]
    %v3618 = vld [vmem:[#allocation7 + $0x3e8] sm:$0xff]
    %v3619 = vld [vmem:[#allocation7 + $0x3f0] sm:$0xff]
    %v3620 = vld [vmem:[#allocation7 + $0x3f8] sm:$0xff]
    %v3621 = vld [vmem:[%s8] sm:$0xf]
    %v3623 = vlaneseq
    %v3624 = vshrl.u32 %v3623, 7
    %v3625 = vsub.s32 0, %v3624
    %v3626 = vrot.slane %v3621, %v3625
    %v3627 = vlaneseq
    %v3628 = vshrl.u32 %v3627, 7
    %v3629 = vsub.s32 1, %v3628
    %v3630 = vrot.slane %v3621, %v3629
    %v3631 = vlaneseq
    %v3632 = vshrl.u32 %v3631, 7
    %v3633 = vsub.s32 2, %v3632
    %v3634 = vrot.slane %v3621, %v3633
    %v3635 = vlaneseq
    %v3636 = vshrl.u32 %v3635, 7
    %v3637 = vsub.s32 3, %v3636
    %v3638 = vrot.slane %v3621, %v3637
    %v3771 = vunpack.c.l.b16 %v3493
    %v3772 = vunpack.c.h.b16 %v3493
    %v3773 = vunpack.c.l.b16 %v3494
    %v3774 = vunpack.c.h.b16 %v3494
    %v3775 = vunpack.c.l.b16 %v3495
    %v3776 = vunpack.c.h.b16 %v3495
    %v3777 = vunpack.c.l.b16 %v3496
    %v3778 = vunpack.c.h.b16 %v3496
    %v3779 = vunpack.c.l.b16 %v3497
    %v3780 = vunpack.c.h.b16 %v3497
    %v3781 = vunpack.c.l.b16 %v3498
    %v3782 = vunpack.c.h.b16 %v3498
    %v3783 = vunpack.c.l.b16 %v3499
    %v3784 = vunpack.c.h.b16 %v3499
    %v3785 = vunpack.c.l.b16 %v3500
    %v3786 = vunpack.c.h.b16 %v3500
    %v3787 = vunpack.c.l.b16 %v3501
    %v3788 = vunpack.c.h.b16 %v3501
    %v3789 = vunpack.c.l.b16 %v3502
    %v3790 = vunpack.c.h.b16 %v3502
    %v3791 = vunpack.c.l.b16 %v3503
    %v3792 = vunpack.c.h.b16 %v3503
    %v3793 = vunpack.c.l.b16 %v3504
    %v3794 = vunpack.c.h.b16 %v3504
    %v3795 = vunpack.c.l.b16 %v3505
    %v3796 = vunpack.c.h.b16 %v3505
    %v3797 = vunpack.c.l.b16 %v3506
    %v3798 = vunpack.c.h.b16 %v3506
    %v3799 = vunpack.c.l.b16 %v3507
    %v3800 = vunpack.c.h.b16 %v3507
    %v3801 = vunpack.c.l.b16 %v3508
    %v3802 = vunpack.c.h.b16 %v3508
    %v3803 = vunpack.c.l.b16 %v3509
    %v3804 = vunpack.c.h.b16 %v3509
    %v3805 = vunpack.c.l.b16 %v3510
    %v3806 = vunpack.c.h.b16 %v3510
    %v3807 = vunpack.c.l.b16 %v3511
    %v3808 = vunpack.c.h.b16 %v3511
    %v3809 = vunpack.c.l.b16 %v3512
    %v3810 = vunpack.c.h.b16 %v3512
    %v3811 = vunpack.c.l.b16 %v3513
    %v3812 = vunpack.c.h.b16 %v3513
    %v3813 = vunpack.c.l.b16 %v3514
    %v3814 = vunpack.c.h.b16 %v3514
    %v3815 = vunpack.c.l.b16 %v3515
    %v3816 = vunpack.c.h.b16 %v3515
    %v3817 = vunpack.c.l.b16 %v3516
    %v3818 = vunpack.c.h.b16 %v3516
    %v3819 = vunpack.c.l.b16 %v3517
    %v3820 = vunpack.c.h.b16 %v3517
    %v3821 = vunpack.c.l.b16 %v3518
    %v3822 = vunpack.c.h.b16 %v3518
    %v3823 = vunpack.c.l.b16 %v3519
    %v3824 = vunpack.c.h.b16 %v3519
    %v3825 = vunpack.c.l.b16 %v3520
    %v3826 = vunpack.c.h.b16 %v3520
    %v3827 = vunpack.c.l.b16 %v3521
    %v3828 = vunpack.c.h.b16 %v3521
    %v3829 = vunpack.c.l.b16 %v3522
    %v3830 = vunpack.c.h.b16 %v3522
    %v3831 = vunpack.c.l.b16 %v3523
    %v3832 = vunpack.c.h.b16 %v3523
    %v3833 = vunpack.c.l.b16 %v3524
    %v3834 = vunpack.c.h.b16 %v3524
    %v3835 = vunpack.c.l.b16 %v3525
    %v3836 = vunpack.c.h.b16 %v3525
    %v3837 = vunpack.c.l.b16 %v3526
    %v3838 = vunpack.c.h.b16 %v3526
    %v3839 = vunpack.c.l.b16 %v3527
    %v3840 = vunpack.c.h.b16 %v3527
    %v3841 = vunpack.c.l.b16 %v3528
    %v3842 = vunpack.c.h.b16 %v3528
    %v3843 = vunpack.c.l.b16 %v3529
    %v3844 = vunpack.c.h.b16 %v3529
    %v3845 = vunpack.c.l.b16 %v3530
    %v3846 = vunpack.c.h.b16 %v3530
    %v3847 = vunpack.c.l.b16 %v3531
    %v3848 = vunpack.c.h.b16 %v3531
    %v3849 = vunpack.c.l.b16 %v3532
    %v3850 = vunpack.c.h.b16 %v3532
    %v3851 = vunpack.c.l.b16 %v3533
    %v3852 = vunpack.c.h.b16 %v3533
    %v3853 = vunpack.c.l.b16 %v3534
    %v3854 = vunpack.c.h.b16 %v3534
    %v3855 = vunpack.c.l.b16 %v3535
    %v3856 = vunpack.c.h.b16 %v3535
    %v3857 = vunpack.c.l.b16 %v3536
    %v3858 = vunpack.c.h.b16 %v3536
    %v3859 = vunpack.c.l.b16 %v3537
    %v3860 = vunpack.c.h.b16 %v3537
    %v3861 = vunpack.c.l.b16 %v3538
    %v3862 = vunpack.c.h.b16 %v3538
    %v3863 = vunpack.c.l.b16 %v3539
    %v3864 = vunpack.c.h.b16 %v3539
    %v3865 = vunpack.c.l.b16 %v3540
    %v3866 = vunpack.c.h.b16 %v3540
    %v3867 = vunpack.c.l.b16 %v3541
    %v3868 = vunpack.c.h.b16 %v3541
    %v3869 = vunpack.c.l.b16 %v3542
    %v3870 = vunpack.c.h.b16 %v3542
    %v3871 = vunpack.c.l.b16 %v3543
    %v3872 = vunpack.c.h.b16 %v3543
    %v3873 = vunpack.c.l.b16 %v3544
    %v3874 = vunpack.c.h.b16 %v3544
    %v3875 = vunpack.c.l.b16 %v3545
    %v3876 = vunpack.c.h.b16 %v3545
    %v3877 = vunpack.c.l.b16 %v3546
    %v3878 = vunpack.c.h.b16 %v3546
    %v3879 = vunpack.c.l.b16 %v3547
    %v3880 = vunpack.c.h.b16 %v3547
    %v3881 = vunpack.c.l.b16 %v3548
    %v3882 = vunpack.c.h.b16 %v3548
    %v3883 = vunpack.c.l.b16 %v3549
    %v3884 = vunpack.c.h.b16 %v3549
    %v3885 = vunpack.c.l.b16 %v3550
    %v3886 = vunpack.c.h.b16 %v3550
    %v3887 = vunpack.c.l.b16 %v3551
    %v3888 = vunpack.c.h.b16 %v3551
    %v3889 = vunpack.c.l.b16 %v3552
    %v3890 = vunpack.c.h.b16 %v3552
    %v3891 = vunpack.c.l.b16 %v3553
    %v3892 = vunpack.c.h.b16 %v3553
    %v3893 = vunpack.c.l.b16 %v3554
    %v3894 = vunpack.c.h.b16 %v3554
    %v3895 = vunpack.c.l.b16 %v3555
    %v3896 = vunpack.c.h.b16 %v3555
    %v3897 = vunpack.c.l.b16 %v3556
    %v3898 = vunpack.c.h.b16 %v3556
    %v3899 = vunpack.c.l.b16 %v3557
    %v3900 = vunpack.c.h.b16 %v3557
    %v3901 = vunpack.c.l.b16 %v3558
    %v3902 = vunpack.c.h.b16 %v3558
    %v3903 = vunpack.c.l.b16 %v3559
    %v3904 = vunpack.c.h.b16 %v3559
    %v3905 = vunpack.c.l.b16 %v3560
    %v3906 = vunpack.c.h.b16 %v3560
    %v3907 = vunpack.c.l.b16 %v3561
    %v3908 = vunpack.c.h.b16 %v3561
    %v3909 = vunpack.c.l.b16 %v3562
    %v3910 = vunpack.c.h.b16 %v3562
    %v3911 = vunpack.c.l.b16 %v3563
    %v3912 = vunpack.c.h.b16 %v3563
    %v3913 = vunpack.c.l.b16 %v3564
    %v3914 = vunpack.c.h.b16 %v3564
    %v3915 = vunpack.c.l.b16 %v3565
    %v3916 = vunpack.c.h.b16 %v3565
    %v3917 = vunpack.c.l.b16 %v3566
    %v3918 = vunpack.c.h.b16 %v3566
    %v3919 = vunpack.c.l.b16 %v3567
    %v3920 = vunpack.c.h.b16 %v3567
    %v3921 = vunpack.c.l.b16 %v3568
    %v3922 = vunpack.c.h.b16 %v3568
    %v3923 = vunpack.c.l.b16 %v3569
    %v3924 = vunpack.c.h.b16 %v3569
    %v3925 = vunpack.c.l.b16 %v3570
    %v3926 = vunpack.c.h.b16 %v3570
    %v3927 = vunpack.c.l.b16 %v3571
    %v3928 = vunpack.c.h.b16 %v3571
    %v3929 = vunpack.c.l.b16 %v3572
    %v3930 = vunpack.c.h.b16 %v3572
    %v3931 = vunpack.c.l.b16 %v3573
    %v3932 = vunpack.c.h.b16 %v3573
    %v3933 = vunpack.c.l.b16 %v3574
    %v3934 = vunpack.c.h.b16 %v3574
    %v3935 = vunpack.c.l.b16 %v3575
    %v3936 = vunpack.c.h.b16 %v3575
    %v3937 = vunpack.c.l.b16 %v3576
    %v3938 = vunpack.c.h.b16 %v3576
    %v3939 = vunpack.c.l.b16 %v3577
    %v3940 = vunpack.c.h.b16 %v3577
    %v3941 = vunpack.c.l.b16 %v3578
    %v3942 = vunpack.c.h.b16 %v3578
    %v3943 = vunpack.c.l.b16 %v3579
    %v3944 = vunpack.c.h.b16 %v3579
    %v3945 = vunpack.c.l.b16 %v3580
    %v3946 = vunpack.c.h.b16 %v3580
    %v3947 = vunpack.c.l.b16 %v3581
    %v3948 = vunpack.c.h.b16 %v3581
    %v3949 = vunpack.c.l.b16 %v3582
    %v3950 = vunpack.c.h.b16 %v3582
    %v3951 = vunpack.c.l.b16 %v3583
    %v3952 = vunpack.c.h.b16 %v3583
    %v3953 = vunpack.c.l.b16 %v3584
    %v3954 = vunpack.c.h.b16 %v3584
    %v3955 = vunpack.c.l.b16 %v3585
    %v3956 = vunpack.c.h.b16 %v3585
    %v3957 = vunpack.c.l.b16 %v3586
    %v3958 = vunpack.c.h.b16 %v3586
    %v3959 = vunpack.c.l.b16 %v3587
    %v3960 = vunpack.c.h.b16 %v3587
    %v3961 = vunpack.c.l.b16 %v3588
    %v3962 = vunpack.c.h.b16 %v3588
    %v3963 = vunpack.c.l.b16 %v3589
    %v3964 = vunpack.c.h.b16 %v3589
    %v3965 = vunpack.c.l.b16 %v3590
    %v3966 = vunpack.c.h.b16 %v3590
    %v3967 = vunpack.c.l.b16 %v3591
    %v3968 = vunpack.c.h.b16 %v3591
    %v3969 = vunpack.c.l.b16 %v3592
    %v3970 = vunpack.c.h.b16 %v3592
    %v3971 = vunpack.c.l.b16 %v3593
    %v3972 = vunpack.c.h.b16 %v3593
    %v3973 = vunpack.c.l.b16 %v3594
    %v3974 = vunpack.c.h.b16 %v3594
    %v3975 = vunpack.c.l.b16 %v3595
    %v3976 = vunpack.c.h.b16 %v3595
    %v3977 = vunpack.c.l.b16 %v3596
    %v3978 = vunpack.c.h.b16 %v3596
    %v3979 = vunpack.c.l.b16 %v3597
    %v3980 = vunpack.c.h.b16 %v3597
    %v3981 = vunpack.c.l.b16 %v3598
    %v3982 = vunpack.c.h.b16 %v3598
    %v3983 = vunpack.c.l.b16 %v3599
    %v3984 = vunpack.c.h.b16 %v3599
    %v3985 = vunpack.c.l.b16 %v3600
    %v3986 = vunpack.c.h.b16 %v3600
    %v3987 = vunpack.c.l.b16 %v3601
    %v3988 = vunpack.c.h.b16 %v3601
    %v3989 = vunpack.c.l.b16 %v3602
    %v3990 = vunpack.c.h.b16 %v3602
    %v3991 = vunpack.c.l.b16 %v3603
    %v3992 = vunpack.c.h.b16 %v3603
    %v3993 = vunpack.c.l.b16 %v3604
    %v3994 = vunpack.c.h.b16 %v3604
    %v3995 = vunpack.c.l.b16 %v3605
    %v3996 = vunpack.c.h.b16 %v3605
    %v3997 = vunpack.c.l.b16 %v3606
    %v3998 = vunpack.c.h.b16 %v3606
    %v3999 = vunpack.c.l.b16 %v3607
    %v4000 = vunpack.c.h.b16 %v3607
    %v4001 = vunpack.c.l.b16 %v3608
    %v4002 = vunpack.c.h.b16 %v3608
    %v4003 = vunpack.c.l.b16 %v3609
    %v4004 = vunpack.c.h.b16 %v3609
    %v4005 = vunpack.c.l.b16 %v3610
    %v4006 = vunpack.c.h.b16 %v3610
    %v4007 = vunpack.c.l.b16 %v3611
    %v4008 = vunpack.c.h.b16 %v3611
    %v4009 = vunpack.c.l.b16 %v3612
    %v4010 = vunpack.c.h.b16 %v3612
    %v4011 = vunpack.c.l.b16 %v3613
    %v4012 = vunpack.c.h.b16 %v3613
    %v4013 = vunpack.c.l.b16 %v3614
    %v4014 = vunpack.c.h.b16 %v3614
    %v4015 = vunpack.c.l.b16 %v3615
    %v4016 = vunpack.c.h.b16 %v3615
    %v4017 = vunpack.c.l.b16 %v3616
    %v4018 = vunpack.c.h.b16 %v3616
    %v4019 = vunpack.c.l.b16 %v3617
    %v4020 = vunpack.c.h.b16 %v3617
    %v4021 = vunpack.c.l.b16 %v3618
    %v4022 = vunpack.c.h.b16 %v3618
    %v4023 = vunpack.c.l.b16 %v3619
    %v4024 = vunpack.c.h.b16 %v3619
    %v4025 = vunpack.c.l.b16 %v3620
    %v4026 = vunpack.c.h.b16 %v3620
    %v4027 = vpack.c.b16 %v3775, %v3771
    %v4028 = vpack.c.b16 %v3776, %v3772
    %v4029 = vpack.c.b16 %v3777, %v3773
    %v4030 = vpack.c.b16 %v3778, %v3774
    %v4031 = vpack.c.b16 %v3783, %v3779
    %v4032 = vpack.c.b16 %v3784, %v3780
    %v4033 = vpack.c.b16 %v3785, %v3781
    %v4034 = vpack.c.b16 %v3786, %v3782
    %v4035 = vpack.c.b16 %v3791, %v3787
    %v4036 = vpack.c.b16 %v3792, %v3788
    %v4037 = vpack.c.b16 %v3793, %v3789
    %v4038 = vpack.c.b16 %v3794, %v3790
    %v4039 = vpack.c.b16 %v3799, %v3795
    %v4040 = vpack.c.b16 %v3800, %v3796
    %v4041 = vpack.c.b16 %v3801, %v3797
    %v4042 = vpack.c.b16 %v3802, %v3798
    %v4043 = vpack.c.b16 %v3807, %v3803
    %v4044 = vpack.c.b16 %v3808, %v3804
    %v4045 = vpack.c.b16 %v3809, %v3805
    %v4046 = vpack.c.b16 %v3810, %v3806
    %v4047 = vpack.c.b16 %v3815, %v3811
    %v4048 = vpack.c.b16 %v3816, %v3812
    %v4049 = vpack.c.b16 %v3817, %v3813
    %v4050 = vpack.c.b16 %v3818, %v3814
    %v4051 = vpack.c.b16 %v3823, %v3819
    %v4052 = vpack.c.b16 %v3824, %v3820
    %v4053 = vpack.c.b16 %v3825, %v3821
    %v4054 = vpack.c.b16 %v3826, %v3822
    %v4055 = vpack.c.b16 %v3831, %v3827
    %v4056 = vpack.c.b16 %v3832, %v3828
    %v4057 = vpack.c.b16 %v3833, %v3829
    %v4058 = vpack.c.b16 %v3834, %v3830
    %v4059 = vpack.c.b16 %v3839, %v3835
    %v4060 = vpack.c.b16 %v3840, %v3836
    %v4061 = vpack.c.b16 %v3841, %v3837
    %v4062 = vpack.c.b16 %v3842, %v3838
    %v4063 = vpack.c.b16 %v3847, %v3843
    %v4064 = vpack.c.b16 %v3848, %v3844
    %v4065 = vpack.c.b16 %v3849, %v3845
    %v4066 = vpack.c.b16 %v3850, %v3846
    %v4067 = vpack.c.b16 %v3855, %v3851
    %v4068 = vpack.c.b16 %v3856, %v3852
    %v4069 = vpack.c.b16 %v3857, %v3853
    %v4070 = vpack.c.b16 %v3858, %v3854
    %v4071 = vpack.c.b16 %v3863, %v3859
    %v4072 = vpack.c.b16 %v3864, %v3860
    %v4073 = vpack.c.b16 %v3865, %v3861
    %v4074 = vpack.c.b16 %v3866, %v3862
    %v4075 = vpack.c.b16 %v3871, %v3867
    %v4076 = vpack.c.b16 %v3872, %v3868
    %v4077 = vpack.c.b16 %v3873, %v3869
    %v4078 = vpack.c.b16 %v3874, %v3870
    %v4079 = vpack.c.b16 %v3879, %v3875
    %v4080 = vpack.c.b16 %v3880, %v3876
    %v4081 = vpack.c.b16 %v3881, %v3877
    %v4082 = vpack.c.b16 %v3882, %v3878
    %v4083 = vpack.c.b16 %v3887, %v3883
    %v4084 = vpack.c.b16 %v3888, %v3884
    %v4085 = vpack.c.b16 %v3889, %v3885
    %v4086 = vpack.c.b16 %v3890, %v3886
    %v4087 = vpack.c.b16 %v3895, %v3891
    %v4088 = vpack.c.b16 %v3896, %v3892
    %v4089 = vpack.c.b16 %v3897, %v3893
    %v4090 = vpack.c.b16 %v3898, %v3894
    %v4091 = vpack.c.b16 %v3903, %v3899
    %v4092 = vpack.c.b16 %v3904, %v3900
    %v4093 = vpack.c.b16 %v3905, %v3901
    %v4094 = vpack.c.b16 %v3906, %v3902
    %v4095 = vpack.c.b16 %v3911, %v3907
    %v4096 = vpack.c.b16 %v3912, %v3908
    %v4097 = vpack.c.b16 %v3913, %v3909
    %v4098 = vpack.c.b16 %v3914, %v3910
    %v4099 = vpack.c.b16 %v3919, %v3915
    %v4100 = vpack.c.b16 %v3920, %v3916
    %v4101 = vpack.c.b16 %v3921, %v3917
    %v4102 = vpack.c.b16 %v3922, %v3918
    %v4103 = vpack.c.b16 %v3927, %v3923
    %v4104 = vpack.c.b16 %v3928, %v3924
    %v4105 = vpack.c.b16 %v3929, %v3925
    %v4106 = vpack.c.b16 %v3930, %v3926
    %v4107 = vpack.c.b16 %v3935, %v3931
    %v4108 = vpack.c.b16 %v3936, %v3932
    %v4109 = vpack.c.b16 %v3937, %v3933
    %v4110 = vpack.c.b16 %v3938, %v3934
    %v4111 = vpack.c.b16 %v3943, %v3939
    %v4112 = vpack.c.b16 %v3944, %v3940
    %v4113 = vpack.c.b16 %v3945, %v3941
    %v4114 = vpack.c.b16 %v3946, %v3942
    %v4115 = vpack.c.b16 %v3951, %v3947
    %v4116 = vpack.c.b16 %v3952, %v3948
    %v4117 = vpack.c.b16 %v3953, %v3949
    %v4118 = vpack.c.b16 %v3954, %v3950
    %v4119 = vpack.c.b16 %v3959, %v3955
    %v4120 = vpack.c.b16 %v3960, %v3956
    %v4121 = vpack.c.b16 %v3961, %v3957
    %v4122 = vpack.c.b16 %v3962, %v3958
    %v4123 = vpack.c.b16 %v3967, %v3963
    %v4124 = vpack.c.b16 %v3968, %v3964
    %v4125 = vpack.c.b16 %v3969, %v3965
    %v4126 = vpack.c.b16 %v3970, %v3966
    %v4127 = vpack.c.b16 %v3975, %v3971
    %v4128 = vpack.c.b16 %v3976, %v3972
    %v4129 = vpack.c.b16 %v3977, %v3973
    %v4130 = vpack.c.b16 %v3978, %v3974
    %v4131 = vpack.c.b16 %v3983, %v3979
    %v4132 = vpack.c.b16 %v3984, %v3980
    %v4133 = vpack.c.b16 %v3985, %v3981
    %v4134 = vpack.c.b16 %v3986, %v3982
    %v4135 = vpack.c.b16 %v3991, %v3987
    %v4136 = vpack.c.b16 %v3992, %v3988
    %v4137 = vpack.c.b16 %v3993, %v3989
    %v4138 = vpack.c.b16 %v3994, %v3990
    %v4139 = vpack.c.b16 %v3999, %v3995
    %v4140 = vpack.c.b16 %v4000, %v3996
    %v4141 = vpack.c.b16 %v4001, %v3997
    %v4142 = vpack.c.b16 %v4002, %v3998
    %v4143 = vpack.c.b16 %v4007, %v4003
    %v4144 = vpack.c.b16 %v4008, %v4004
    %v4145 = vpack.c.b16 %v4009, %v4005
    %v4146 = vpack.c.b16 %v4010, %v4006
    %v4147 = vpack.c.b16 %v4015, %v4011
    %v4148 = vpack.c.b16 %v4016, %v4012
    %v4149 = vpack.c.b16 %v4017, %v4013
    %v4150 = vpack.c.b16 %v4018, %v4014
    %v4151 = vpack.c.b16 %v4023, %v4019
    %v4152 = vpack.c.b16 %v4024, %v4020
    %v4153 = vpack.c.b16 %v4025, %v4021
    %v4154 = vpack.c.b16 %v4026, %v4022
    %4283 = vmatprep.subr.bf16.mxu0 %v4028
    %4284 = vmatpush1.bf16.msra.mxu0 %v4027
    %4285 = vmatprep.subr.bf16.mxu0 %v4032
    %4286 = vmatpush1.bf16.msra.mxu0 %v4031
    %4287 = vmatprep.subr.bf16.mxu0 %v4036
    %4288 = vmatpush1.bf16.msra.mxu0 %v4035
    %4289 = vmatprep.subr.bf16.mxu0 %v4040
    %4290 = vmatpush1.bf16.msra.mxu0 %v4039
    %4291 = vmatprep.subr.bf16.mxu0 %v4044
    %4292 = vmatpush1.bf16.msra.mxu0 %v4043
    %4293 = vmatprep.subr.bf16.mxu0 %v4048
    %4294 = vmatpush1.bf16.msra.mxu0 %v4047
    %4295 = vmatprep.subr.bf16.mxu0 %v4052
    %4296 = vmatpush1.bf16.msra.mxu0 %v4051
    %4297 = vmatprep.subr.bf16.mxu0 %v4056
    %4298 = vmatpush1.bf16.msra.mxu0 %v4055
    %4299 = vmatprep.subr.bf16.mxu0 %v4060
    %4300 = vmatpush1.bf16.msra.mxu0 %v4059
    %4301 = vmatprep.subr.bf16.mxu0 %v4064
    %4302 = vmatpush1.bf16.msra.mxu0 %v4063
    %4303 = vmatprep.subr.bf16.mxu0 %v4068
    %4304 = vmatpush1.bf16.msra.mxu0 %v4067
    %4305 = vmatprep.subr.bf16.mxu0 %v4072
    %4306 = vmatpush1.bf16.msra.mxu0 %v4071
    %4307 = vmatprep.subr.bf16.mxu0 %v4076
    %4308 = vmatpush1.bf16.msra.mxu0 %v4075
    %4309 = vmatprep.subr.bf16.mxu0 %v4080
    %4310 = vmatpush1.bf16.msra.mxu0 %v4079
    %4311 = vmatprep.subr.bf16.mxu0 %v4084
    %4312 = vmatpush1.bf16.msra.mxu0 %v4083
    %4313 = vmatprep.subr.bf16.mxu0 %v4088
    %4314 = vmatpush1.bf16.msra.mxu0 %v4087
    %4315 = vmatprep.mubr.bf16.mxu0 %v3486
    %4316 = vmatmul.mubr.bf16.gmra.mrb[0].mxu0 %v3485
    %v4317 = vpop.f32.mrb[0].mxu0
    %v4318 = vadd.f32 %v3626, %v4317
    %v4319 = vpop.f32.mrb[0].mxu0
    %v4320 = vadd.f32 %v3630, %v4319
    %v4321 = vpop.f32.mrb[0].mxu0
    %v4322 = vadd.f32 %v3626, %v4321
    %v4323 = vpop.f32.mrb[0].mxu0
    %v4324 = vadd.f32 %v3630, %v4323
    %4325 = vdwg.mxu0
    %4326 = vmatprep.subr.bf16.mxu0 %v4092
    %4327 = vmatpush1.bf16.msra.mxu0 %v4091
    %4328 = vmatprep.subr.bf16.mxu0 %v4096
    %4329 = vmatpush1.bf16.msra.mxu0 %v4095
    %4330 = vmatprep.subr.bf16.mxu0 %v4100
    %4331 = vmatpush1.bf16.msra.mxu0 %v4099
    %4332 = vmatprep.subr.bf16.mxu0 %v4104
    %4333 = vmatpush1.bf16.msra.mxu0 %v4103
    %4334 = vmatprep.subr.bf16.mxu0 %v4108
    %4335 = vmatpush1.bf16.msra.mxu0 %v4107
    %4336 = vmatprep.subr.bf16.mxu0 %v4112
    %4337 = vmatpush1.bf16.msra.mxu0 %v4111
    %4338 = vmatprep.subr.bf16.mxu0 %v4116
    %4339 = vmatpush1.bf16.msra.mxu0 %v4115
    %4340 = vmatprep.subr.bf16.mxu0 %v4120
    %4341 = vmatpush1.bf16.msra.mxu0 %v4119
    %4342 = vmatprep.subr.bf16.mxu0 %v4124
    %4343 = vmatpush1.bf16.msra.mxu0 %v4123
    %4344 = vmatprep.subr.bf16.mxu0 %v4128
    %4345 = vmatpush1.bf16.msra.mxu0 %v4127
    %4346 = vmatprep.subr.bf16.mxu0 %v4132
    %4347 = vmatpush1.bf16.msra.mxu0 %v4131
    %4348 = vmatprep.subr.bf16.mxu0 %v4136
    %4349 = vmatpush1.bf16.msra.mxu0 %v4135
    %4350 = vmatprep.subr.bf16.mxu0 %v4140
    %4351 = vmatpush1.bf16.msra.mxu0 %v4139
    %4352 = vmatprep.subr.bf16.mxu0 %v4144
    %4353 = vmatpush1.bf16.msra.mxu0 %v4143
    %4354 = vmatprep.subr.bf16.mxu0 %v4148
    %4355 = vmatpush1.bf16.msra.mxu0 %v4147
    %4356 = vmatprep.subr.bf16.mxu0 %v4152
    %4357 = vmatpush1.bf16.msra.mxu0 %v4151
    %4358 = vmatprep.mubr.bf16.mxu0 %v3488
    %4359 = vmatmul.mubr.bf16.gmra.mrb[0].mxu0 %v3487
    %v4360 = vpop.f32.mrb[0].mxu0
    %v4361 = vadd.f32 %v4318, %v4360
    %v4362 = vpop.f32.mrb[0].mxu0
    %v4363 = vadd.f32 %v4320, %v4362
    %v4364 = vpop.f32.mrb[0].mxu0
    %v4365 = vadd.f32 %v4322, %v4364
    %v4366 = vpop.f32.mrb[0].mxu0
    %v4367 = vadd.f32 %v4324, %v4366
    %4368 = vdwg.mxu0
    %4369 = vmatprep.subr.bf16.mxu0 %v4030
    %4370 = vmatpush1.bf16.msra.mxu0 %v4029
    %4371 = vmatprep.subr.bf16.mxu0 %v4034
    %4372 = vmatpush1.bf16.msra.mxu0 %v4033
    %4373 = vmatprep.subr.bf16.mxu0 %v4038
    %4374 = vmatpush1.bf16.msra.mxu0 %v4037
    %4375 = vmatprep.subr.bf16.mxu0 %v4042
    %4376 = vmatpush1.bf16.msra.mxu0 %v4041
    %4377 = vmatprep.subr.bf16.mxu0 %v4046
    %4378 = vmatpush1.bf16.msra.mxu0 %v4045
    %4379 = vmatprep.subr.bf16.mxu0 %v4050
    %4380 = vmatpush1.bf16.msra.mxu0 %v4049
    %4381 = vmatprep.subr.bf16.mxu0 %v4054
    %4382 = vmatpush1.bf16.msra.mxu0 %v4053
    %4383 = vmatprep.subr.bf16.mxu0 %v4058
    %4384 = vmatpush1.bf16.msra.mxu0 %v4057
    %4385 = vmatprep.subr.bf16.mxu0 %v4062
    %4386 = vmatpush1.bf16.msra.mxu0 %v4061
    %4387 = vmatprep.subr.bf16.mxu0 %v4066
    %4388 = vmatpush1.bf16.msra.mxu0 %v4065
    %4389 = vmatprep.subr.bf16.mxu0 %v4070
    %4390 = vmatpush1.bf16.msra.mxu0 %v4069
    %4391 = vmatprep.subr.bf16.mxu0 %v4074
    %4392 = vmatpush1.bf16.msra.mxu0 %v4073
    %4393 = vmatprep.subr.bf16.mxu0 %v4078
    %4394 = vmatpush1.bf16.msra.mxu0 %v4077
    %4395 = vmatprep.subr.bf16.mxu0 %v4082
    %4396 = vmatpush1.bf16.msra.mxu0 %v4081
    %4397 = vmatprep.subr.bf16.mxu0 %v4086
    %4398 = vmatpush1.bf16.msra.mxu0 %v4085
    %4399 = vmatprep.subr.bf16.mxu0 %v4090
    %4400 = vmatpush1.bf16.msra.mxu0 %v4089
    %4401 = vmatprep.mubr.bf16.mxu0 %v3486
    %4402 = vmatmul.mubr.bf16.gmra.mrb[0].mxu0 %v3485
    %v4403 = vpop.f32.mrb[0].mxu0
    %v4404 = vadd.f32 %v3634, %v4403
    %v4405 = vpop.f32.mrb[0].mxu0
    %v4406 = vadd.f32 %v3638, %v4405
    %v4407 = vpop.f32.mrb[0].mxu0
    %v4408 = vadd.f32 %v3634, %v4407
    %v4409 = vpop.f32.mrb[0].mxu0
    %v4410 = vadd.f32 %v3638, %v4409
    %4411 = vdwg.mxu0
    %4412 = vmatprep.subr.bf16.mxu0 %v4094
    %4413 = vmatpush1.bf16.msra.mxu0 %v4093
    %4414 = vmatprep.subr.bf16.mxu0 %v4098
    %4415 = vmatpush1.bf16.msra.mxu0 %v4097
    %4416 = vmatprep.subr.bf16.mxu0 %v4102
    %4417 = vmatpush1.bf16.msra.mxu0 %v4101
    %4418 = vmatprep.subr.bf16.mxu0 %v4106
    %4419 = vmatpush1.bf16.msra.mxu0 %v4105
    %4420 = vmatprep.subr.bf16.mxu0 %v4110
    %4421 = vmatpush1.bf16.msra.mxu0 %v4109
    %4422 = vmatprep.subr.bf16.mxu0 %v4114
    %4423 = vmatpush1.bf16.msra.mxu0 %v4113
    %4424 = vmatprep.subr.bf16.mxu0 %v4118
    %4425 = vmatpush1.bf16.msra.mxu0 %v4117
    %4426 = vmatprep.subr.bf16.mxu0 %v4122
    %4427 = vmatpush1.bf16.msra.mxu0 %v4121
    %4428 = vmatprep.subr.bf16.mxu0 %v4126
    %4429 = vmatpush1.bf16.msra.mxu0 %v4125
    %4430 = vmatprep.subr.bf16.mxu0 %v4130
    %4431 = vmatpush1.bf16.msra.mxu0 %v4129
    %4432 = vmatprep.subr.bf16.mxu0 %v4134
    %4433 = vmatpush1.bf16.msra.mxu0 %v4133
    %4434 = vmatprep.subr.bf16.mxu0 %v4138
    %4435 = vmatpush1.bf16.msra.mxu0 %v4137
    %4436 = vmatprep.subr.bf16.mxu0 %v4142
    %4437 = vmatpush1.bf16.msra.mxu0 %v4141
    %4438 = vmatprep.subr.bf16.mxu0 %v4146
    %4439 = vmatpush1.bf16.msra.mxu0 %v4145
    %4440 = vmatprep.subr.bf16.mxu0 %v4150
    %4441 = vmatpush1.bf16.msra.mxu0 %v4149
    %4442 = vmatprep.subr.bf16.mxu0 %v4154
    %4443 = vmatpush1.bf16.msra.mxu0 %v4153
    %4444 = vmatprep.mubr.bf16.mxu0 %v3488
    %4445 = vmatmul.mubr.bf16.gmra.mrb[0].mxu0 %v3487
    %v4446 = vpop.f32.mrb[0].mxu0
    %v4447 = vadd.f32 %v4404, %v4446
    %v4448 = vpop.f32.mrb[0].mxu0
    %v4449 = vadd.f32 %v4406, %v4448
    %v4450 = vpop.f32.mrb[0].mxu0
    %v4451 = vadd.f32 %v4408, %v4450
    %v4452 = vpop.f32.mrb[0].mxu0
    %v4453 = vadd.f32 %v4410, %v4452
    %4454 = vdwg.mxu0
    %v4455 = vmax.f32 %v4361, 0.0
    %v4456 = vmax.f32 %v4363, 0.0
    %v4457 = vmax.f32 %v4447, 0.0
    %v4458 = vmax.f32 %v4449, 0.0
    %v4459 = vmax.f32 %v4365, 0.0
    %v4460 = vmax.f32 %v4367, 0.0
    %v4461 = vmax.f32 %v4451, 0.0
    %v4462 = vmax.f32 %v4453, 0.0
    %v4463 = vpack.c.bf16 %v4459, %v4455
    %v4464 = vpack.c.bf16 %v4460, %v4456
    %v4465 = vpack.c.bf16 %v4461, %v4457
    %v4466 = vpack.c.bf16 %v4462, %v4458
    %v4471 = vunpack.c.l.b16 %v4463
    %v4472 = vunpack.c.l.b16 %v4464
    %v4473 = vunpack.c.l.b16 %v4465
    %v4474 = vunpack.c.l.b16 %v4466
    %v4475 = vunpack.c.h.b16 %v4463
    %v4476 = vunpack.c.h.b16 %v4464
    %v4477 = vunpack.c.h.b16 %v4465
    %v4478 = vunpack.c.h.b16 %v4466
    %v4479 = vpack.c.b16 %v4472, %v4471
    %v4480 = vpack.c.b16 %v4474, %v4473
    %v4481 = vpack.c.b16 %v4476, %v4475
    %v4482 = vpack.c.b16 %v4478, %v4477
    %4487 = vst [vmem:[%s11 + $0x10] sm:$0xff] %v4479
    %4488 = vst [vmem:[%s11 + $0x18] sm:$0xff] %v4480
    %4489 = vst [vmem:[%s11 + $0x40] sm:$0xff] %v4481
    %4490 = vst [vmem:[%s11 + $0x48] sm:$0xff] %v4482
    %v4491 = vld [vmem:[#allocation9] sm:$0xff]
    %v4492 = vld [vmem:[#allocation9 + $0x8] sm:$0xff]
    %v4493 = vld [vmem:[#allocation9 + $0x10] sm:$0xff]
    %v4494 = vld [vmem:[#allocation9 + $0x18] sm:$0xff]
    %v4495 = vld [vmem:[#allocation9 + $0x20] sm:$0xff]
    %v4496 = vld [vmem:[#allocation9 + $0x28] sm:$0xff]
    %v4497 = vld [vmem:[#allocation9 + $0x30] sm:$0xff]
    %v4498 = vld [vmem:[#allocation9 + $0x38] sm:$0xff]
    %v4499 = vld [vmem:[#allocation9 + $0x40] sm:$0xff]
    %v4500 = vld [vmem:[#allocation9 + $0x48] sm:$0xff]
    %v4501 = vld [vmem:[#allocation9 + $0x50] sm:$0xff]
    %v4502 = vld [vmem:[#allocation9 + $0x58] sm:$0xff]
    %v4503 = vld [vmem:[#allocation9 + $0x60] sm:$0xff]
    %v4504 = vld [vmem:[#allocation9 + $0x68] sm:$0xff]
    %v4505 = vld [vmem:[#allocation9 + $0x70] sm:$0xff]
    %v4506 = vld [vmem:[#allocation9 + $0x78] sm:$0xff]
    %v4507 = vld [vmem:[#allocation9 + $0x80] sm:$0xff]
    %v4508 = vld [vmem:[#allocation9 + $0x88] sm:$0xff]
    %v4509 = vld [vmem:[#allocation9 + $0x90] sm:$0xff]
    %v4510 = vld [vmem:[#allocation9 + $0x98] sm:$0xff]
    %v4511 = vld [vmem:[#allocation9 + $0xa0] sm:$0xff]
    %v4512 = vld [vmem:[#allocation9 + $0xa8] sm:$0xff]
    %v4513 = vld [vmem:[#allocation9 + $0xb0] sm:$0xff]
    %v4514 = vld [vmem:[#allocation9 + $0xb8] sm:$0xff]
    %v4515 = vld [vmem:[#allocation9 + $0xc0] sm:$0xff]
    %v4516 = vld [vmem:[#allocation9 + $0xc8] sm:$0xff]
    %v4517 = vld [vmem:[#allocation9 + $0xd0] sm:$0xff]
    %v4518 = vld [vmem:[#allocation9 + $0xd8] sm:$0xff]
    %v4519 = vld [vmem:[#allocation9 + $0xe0] sm:$0xff]
    %v4520 = vld [vmem:[#allocation9 + $0xe8] sm:$0xff]
    %v4521 = vld [vmem:[#allocation9 + $0xf0] sm:$0xff]
    %v4522 = vld [vmem:[#allocation9 + $0xf8] sm:$0xff]
    %v4523 = vld [vmem:[#allocation9 + $0x100] sm:$0xff]
    %v4524 = vld [vmem:[#allocation9 + $0x108] sm:$0xff]
    %v4525 = vld [vmem:[#allocation9 + $0x110] sm:$0xff]
    %v4526 = vld [vmem:[#allocation9 + $0x118] sm:$0xff]
    %v4527 = vld [vmem:[#allocation9 + $0x120] sm:$0xff]
    %v4528 = vld [vmem:[#allocation9 + $0x128] sm:$0xff]
    %v4529 = vld [vmem:[#allocation9 + $0x130] sm:$0xff]
    %v4530 = vld [vmem:[#allocation9 + $0x138] sm:$0xff]
    %v4531 = vld [vmem:[#allocation9 + $0x140] sm:$0xff]
    %v4532 = vld [vmem:[#allocation9 + $0x148] sm:$0xff]
    %v4533 = vld [vmem:[#allocation9 + $0x150] sm:$0xff]
    %v4534 = vld [vmem:[#allocation9 + $0x158] sm:$0xff]
    %v4535 = vld [vmem:[#allocation9 + $0x160] sm:$0xff]
    %v4536 = vld [vmem:[#allocation9 + $0x168] sm:$0xff]
    %v4537 = vld [vmem:[#allocation9 + $0x170] sm:$0xff]
    %v4538 = vld [vmem:[#allocation9 + $0x178] sm:$0xff]
    %v4539 = vld [vmem:[#allocation9 + $0x180] sm:$0xff]
    %v4540 = vld [vmem:[#allocation9 + $0x188] sm:$0xff]
    %v4541 = vld [vmem:[#allocation9 + $0x190] sm:$0xff]
    %v4542 = vld [vmem:[#allocation9 + $0x198] sm:$0xff]
    %v4543 = vld [vmem:[#allocation9 + $0x1a0] sm:$0xff]
    %v4544 = vld [vmem:[#allocation9 + $0x1a8] sm:$0xff]
    %v4545 = vld [vmem:[#allocation9 + $0x1b0] sm:$0xff]
    %v4546 = vld [vmem:[#allocation9 + $0x1b8] sm:$0xff]
    %v4547 = vld [vmem:[#allocation9 + $0x1c0] sm:$0xff]
    %v4548 = vld [vmem:[#allocation9 + $0x1c8] sm:$0xff]
    %v4549 = vld [vmem:[#allocation9 + $0x1d0] sm:$0xff]
    %v4550 = vld [vmem:[#allocation9 + $0x1d8] sm:$0xff]
    %v4551 = vld [vmem:[#allocation9 + $0x1e0] sm:$0xff]
    %v4552 = vld [vmem:[#allocation9 + $0x1e8] sm:$0xff]
    %v4553 = vld [vmem:[#allocation9 + $0x1f0] sm:$0xff]
    %v4554 = vld [vmem:[#allocation9 + $0x1f8] sm:$0xff]
    %v4555 = vld [vmem:[#allocation9 + $0x200] sm:$0xff]
    %v4556 = vld [vmem:[#allocation9 + $0x208] sm:$0xff]
    %v4557 = vld [vmem:[#allocation9 + $0x210] sm:$0xff]
    %v4558 = vld [vmem:[#allocation9 + $0x218] sm:$0xff]
    %v4559 = vld [vmem:[#allocation9 + $0x220] sm:$0xff]
    %v4560 = vld [vmem:[#allocation9 + $0x228] sm:$0xff]
    %v4561 = vld [vmem:[#allocation9 + $0x230] sm:$0xff]
    %v4562 = vld [vmem:[#allocation9 + $0x238] sm:$0xff]
    %v4563 = vld [vmem:[#allocation9 + $0x240] sm:$0xff]
    %v4564 = vld [vmem:[#allocation9 + $0x248] sm:$0xff]
    %v4565 = vld [vmem:[#allocation9 + $0x250] sm:$0xff]
    %v4566 = vld [vmem:[#allocation9 + $0x258] sm:$0xff]
    %v4567 = vld [vmem:[#allocation9 + $0x260] sm:$0xff]
    %v4568 = vld [vmem:[#allocation9 + $0x268] sm:$0xff]
    %v4569 = vld [vmem:[#allocation9 + $0x270] sm:$0xff]
    %v4570 = vld [vmem:[#allocation9 + $0x278] sm:$0xff]
    %v4571 = vld [vmem:[#allocation9 + $0x280] sm:$0xff]
    %v4572 = vld [vmem:[#allocation9 + $0x288] sm:$0xff]
    %v4573 = vld [vmem:[#allocation9 + $0x290] sm:$0xff]
    %v4574 = vld [vmem:[#allocation9 + $0x298] sm:$0xff]
    %v4575 = vld [vmem:[#allocation9 + $0x2a0] sm:$0xff]
    %v4576 = vld [vmem:[#allocation9 + $0x2a8] sm:$0xff]
    %v4577 = vld [vmem:[#allocation9 + $0x2b0] sm:$0xff]
    %v4578 = vld [vmem:[#allocation9 + $0x2b8] sm:$0xff]
    %v4579 = vld [vmem:[#allocation9 + $0x2c0] sm:$0xff]
    %v4580 = vld [vmem:[#allocation9 + $0x2c8] sm:$0xff]
    %v4581 = vld [vmem:[#allocation9 + $0x2d0] sm:$0xff]
    %v4582 = vld [vmem:[#allocation9 + $0x2d8] sm:$0xff]
    %v4583 = vld [vmem:[#allocation9 + $0x2e0] sm:$0xff]
    %v4584 = vld [vmem:[#allocation9 + $0x2e8] sm:$0xff]
    %v4585 = vld [vmem:[#allocation9 + $0x2f0] sm:$0xff]
    %v4586 = vld [vmem:[#allocation9 + $0x2f8] sm:$0xff]
    %v4587 = vld [vmem:[#allocation9 + $0x300] sm:$0xff]
    %v4588 = vld [vmem:[#allocation9 + $0x308] sm:$0xff]
    %v4589 = vld [vmem:[#allocation9 + $0x310] sm:$0xff]
    %v4590 = vld [vmem:[#allocation9 + $0x318] sm:$0xff]
    %v4591 = vld [vmem:[#allocation9 + $0x320] sm:$0xff]
    %v4592 = vld [vmem:[#allocation9 + $0x328] sm:$0xff]
    %v4593 = vld [vmem:[#allocation9 + $0x330] sm:$0xff]
    %v4594 = vld [vmem:[#allocation9 + $0x338] sm:$0xff]
    %v4595 = vld [vmem:[#allocation9 + $0x340] sm:$0xff]
    %v4596 = vld [vmem:[#allocation9 + $0x348] sm:$0xff]
    %v4597 = vld [vmem:[#allocation9 + $0x350] sm:$0xff]
    %v4598 = vld [vmem:[#allocation9 + $0x358] sm:$0xff]
    %v4599 = vld [vmem:[#allocation9 + $0x360] sm:$0xff]
    %v4600 = vld [vmem:[#allocation9 + $0x368] sm:$0xff]
    %v4601 = vld [vmem:[#allocation9 + $0x370] sm:$0xff]
    %v4602 = vld [vmem:[#allocation9 + $0x378] sm:$0xff]
    %v4603 = vld [vmem:[#allocation9 + $0x380] sm:$0xff]
    %v4604 = vld [vmem:[#allocation9 + $0x388] sm:$0xff]
    %v4605 = vld [vmem:[#allocation9 + $0x390] sm:$0xff]
    %v4606 = vld [vmem:[#allocation9 + $0x398] sm:$0xff]
    %v4607 = vld [vmem:[#allocation9 + $0x3a0] sm:$0xff]
    %v4608 = vld [vmem:[#allocation9 + $0x3a8] sm:$0xff]
    %v4609 = vld [vmem:[#allocation9 + $0x3b0] sm:$0xff]
    %v4610 = vld [vmem:[#allocation9 + $0x3b8] sm:$0xff]
    %v4611 = vld [vmem:[#allocation9 + $0x3c0] sm:$0xff]
    %v4612 = vld [vmem:[#allocation9 + $0x3c8] sm:$0xff]
    %v4613 = vld [vmem:[#allocation9 + $0x3d0] sm:$0xff]
    %v4614 = vld [vmem:[#allocation9 + $0x3d8] sm:$0xff]
    %v4615 = vld [vmem:[#allocation9 + $0x3e0] sm:$0xff]
    %v4616 = vld [vmem:[#allocation9 + $0x3e8] sm:$0xff]
    %v4617 = vld [vmem:[#allocation9 + $0x3f0] sm:$0xff]
    %v4618 = vld [vmem:[#allocation9 + $0x3f8] sm:$0xff]
    %v4619 = vld [vmem:[%s10] sm:$0xf]
    %v4621 = vlaneseq
    %v4622 = vshrl.u32 %v4621, 7
    %v4623 = vsub.s32 0, %v4622
    %v4624 = vrot.slane %v4619, %v4623
    %v4625 = vlaneseq
    %v4626 = vshrl.u32 %v4625, 7
    %v4627 = vsub.s32 1, %v4626
    %v4628 = vrot.slane %v4619, %v4627
    %v4629 = vlaneseq
    %v4630 = vshrl.u32 %v4629, 7
    %v4631 = vsub.s32 2, %v4630
    %v4632 = vrot.slane %v4619, %v4631
    %v4633 = vlaneseq
    %v4634 = vshrl.u32 %v4633, 7
    %v4635 = vsub.s32 3, %v4634
    %v4636 = vrot.slane %v4619, %v4635
    %v4769 = vunpack.c.l.b16 %v4491
    %v4770 = vunpack.c.h.b16 %v4491
    %v4771 = vunpack.c.l.b16 %v4492
    %v4772 = vunpack.c.h.b16 %v4492
    %v4773 = vunpack.c.l.b16 %v4493
    %v4774 = vunpack.c.h.b16 %v4493
    %v4775 = vunpack.c.l.b16 %v4494
    %v4776 = vunpack.c.h.b16 %v4494
    %v4777 = vunpack.c.l.b16 %v4495
    %v4778 = vunpack.c.h.b16 %v4495
    %v4779 = vunpack.c.l.b16 %v4496
    %v4780 = vunpack.c.h.b16 %v4496
    %v4781 = vunpack.c.l.b16 %v4497
    %v4782 = vunpack.c.h.b16 %v4497
    %v4783 = vunpack.c.l.b16 %v4498
    %v4784 = vunpack.c.h.b16 %v4498
    %v4785 = vunpack.c.l.b16 %v4499
    %v4786 = vunpack.c.h.b16 %v4499
    %v4787 = vunpack.c.l.b16 %v4500
    %v4788 = vunpack.c.h.b16 %v4500
    %v4789 = vunpack.c.l.b16 %v4501
    %v4790 = vunpack.c.h.b16 %v4501
    %v4791 = vunpack.c.l.b16 %v4502
    %v4792 = vunpack.c.h.b16 %v4502
    %v4793 = vunpack.c.l.b16 %v4503
    %v4794 = vunpack.c.h.b16 %v4503
    %v4795 = vunpack.c.l.b16 %v4504
    %v4796 = vunpack.c.h.b16 %v4504
    %v4797 = vunpack.c.l.b16 %v4505
    %v4798 = vunpack.c.h.b16 %v4505
    %v4799 = vunpack.c.l.b16 %v4506
    %v4800 = vunpack.c.h.b16 %v4506
    %v4801 = vunpack.c.l.b16 %v4507
    %v4802 = vunpack.c.h.b16 %v4507
    %v4803 = vunpack.c.l.b16 %v4508
    %v4804 = vunpack.c.h.b16 %v4508
    %v4805 = vunpack.c.l.b16 %v4509
    %v4806 = vunpack.c.h.b16 %v4509
    %v4807 = vunpack.c.l.b16 %v4510
    %v4808 = vunpack.c.h.b16 %v4510
    %v4809 = vunpack.c.l.b16 %v4511
    %v4810 = vunpack.c.h.b16 %v4511
    %v4811 = vunpack.c.l.b16 %v4512
    %v4812 = vunpack.c.h.b16 %v4512
    %v4813 = vunpack.c.l.b16 %v4513
    %v4814 = vunpack.c.h.b16 %v4513
    %v4815 = vunpack.c.l.b16 %v4514
    %v4816 = vunpack.c.h.b16 %v4514
    %v4817 = vunpack.c.l.b16 %v4515
    %v4818 = vunpack.c.h.b16 %v4515
    %v4819 = vunpack.c.l.b16 %v4516
    %v4820 = vunpack.c.h.b16 %v4516
    %v4821 = vunpack.c.l.b16 %v4517
    %v4822 = vunpack.c.h.b16 %v4517
    %v4823 = vunpack.c.l.b16 %v4518
    %v4824 = vunpack.c.h.b16 %v4518
    %v4825 = vunpack.c.l.b16 %v4519
    %v4826 = vunpack.c.h.b16 %v4519
    %v4827 = vunpack.c.l.b16 %v4520
    %v4828 = vunpack.c.h.b16 %v4520
    %v4829 = vunpack.c.l.b16 %v4521
    %v4830 = vunpack.c.h.b16 %v4521
    %v4831 = vunpack.c.l.b16 %v4522
    %v4832 = vunpack.c.h.b16 %v4522
    %v4833 = vunpack.c.l.b16 %v4523
    %v4834 = vunpack.c.h.b16 %v4523
    %v4835 = vunpack.c.l.b16 %v4524
    %v4836 = vunpack.c.h.b16 %v4524
    %v4837 = vunpack.c.l.b16 %v4525
    %v4838 = vunpack.c.h.b16 %v4525
    %v4839 = vunpack.c.l.b16 %v4526
    %v4840 = vunpack.c.h.b16 %v4526
    %v4841 = vunpack.c.l.b16 %v4527
    %v4842 = vunpack.c.h.b16 %v4527
    %v4843 = vunpack.c.l.b16 %v4528
    %v4844 = vunpack.c.h.b16 %v4528
    %v4845 = vunpack.c.l.b16 %v4529
    %v4846 = vunpack.c.h.b16 %v4529
    %v4847 = vunpack.c.l.b16 %v4530
    %v4848 = vunpack.c.h.b16 %v4530
    %v4849 = vunpack.c.l.b16 %v4531
    %v4850 = vunpack.c.h.b16 %v4531
    %v4851 = vunpack.c.l.b16 %v4532
    %v4852 = vunpack.c.h.b16 %v4532
    %v4853 = vunpack.c.l.b16 %v4533
    %v4854 = vunpack.c.h.b16 %v4533
    %v4855 = vunpack.c.l.b16 %v4534
    %v4856 = vunpack.c.h.b16 %v4534
    %v4857 = vunpack.c.l.b16 %v4535
    %v4858 = vunpack.c.h.b16 %v4535
    %v4859 = vunpack.c.l.b16 %v4536
    %v4860 = vunpack.c.h.b16 %v4536
    %v4861 = vunpack.c.l.b16 %v4537
    %v4862 = vunpack.c.h.b16 %v4537
    %v4863 = vunpack.c.l.b16 %v4538
    %v4864 = vunpack.c.h.b16 %v4538
    %v4865 = vunpack.c.l.b16 %v4539
    %v4866 = vunpack.c.h.b16 %v4539
    %v4867 = vunpack.c.l.b16 %v4540
    %v4868 = vunpack.c.h.b16 %v4540
    %v4869 = vunpack.c.l.b16 %v4541
    %v4870 = vunpack.c.h.b16 %v4541
    %v4871 = vunpack.c.l.b16 %v4542
    %v4872 = vunpack.c.h.b16 %v4542
    %v4873 = vunpack.c.l.b16 %v4543
    %v4874 = vunpack.c.h.b16 %v4543
    %v4875 = vunpack.c.l.b16 %v4544
    %v4876 = vunpack.c.h.b16 %v4544
    %v4877 = vunpack.c.l.b16 %v4545
    %v4878 = vunpack.c.h.b16 %v4545
    %v4879 = vunpack.c.l.b16 %v4546
    %v4880 = vunpack.c.h.b16 %v4546
    %v4881 = vunpack.c.l.b16 %v4547
    %v4882 = vunpack.c.h.b16 %v4547
    %v4883 = vunpack.c.l.b16 %v4548
    %v4884 = vunpack.c.h.b16 %v4548
    %v4885 = vunpack.c.l.b16 %v4549
    %v4886 = vunpack.c.h.b16 %v4549
    %v4887 = vunpack.c.l.b16 %v4550
    %v4888 = vunpack.c.h.b16 %v4550
    %v4889 = vunpack.c.l.b16 %v4551
    %v4890 = vunpack.c.h.b16 %v4551
    %v4891 = vunpack.c.l.b16 %v4552
    %v4892 = vunpack.c.h.b16 %v4552
    %v4893 = vunpack.c.l.b16 %v4553
    %v4894 = vunpack.c.h.b16 %v4553
    %v4895 = vunpack.c.l.b16 %v4554
    %v4896 = vunpack.c.h.b16 %v4554
    %v4897 = vunpack.c.l.b16 %v4555
    %v4898 = vunpack.c.h.b16 %v4555
    %v4899 = vunpack.c.l.b16 %v4556
    %v4900 = vunpack.c.h.b16 %v4556
    %v4901 = vunpack.c.l.b16 %v4557
    %v4902 = vunpack.c.h.b16 %v4557
    %v4903 = vunpack.c.l.b16 %v4558
    %v4904 = vunpack.c.h.b16 %v4558
    %v4905 = vunpack.c.l.b16 %v4559
    %v4906 = vunpack.c.h.b16 %v4559
    %v4907 = vunpack.c.l.b16 %v4560
    %v4908 = vunpack.c.h.b16 %v4560
    %v4909 = vunpack.c.l.b16 %v4561
    %v4910 = vunpack.c.h.b16 %v4561
    %v4911 = vunpack.c.l.b16 %v4562
    %v4912 = vunpack.c.h.b16 %v4562
    %v4913 = vunpack.c.l.b16 %v4563
    %v4914 = vunpack.c.h.b16 %v4563
    %v4915 = vunpack.c.l.b16 %v4564
    %v4916 = vunpack.c.h.b16 %v4564
    %v4917 = vunpack.c.l.b16 %v4565
    %v4918 = vunpack.c.h.b16 %v4565
    %v4919 = vunpack.c.l.b16 %v4566
    %v4920 = vunpack.c.h.b16 %v4566
    %v4921 = vunpack.c.l.b16 %v4567
    %v4922 = vunpack.c.h.b16 %v4567
    %v4923 = vunpack.c.l.b16 %v4568
    %v4924 = vunpack.c.h.b16 %v4568
    %v4925 = vunpack.c.l.b16 %v4569
    %v4926 = vunpack.c.h.b16 %v4569
    %v4927 = vunpack.c.l.b16 %v4570
    %v4928 = vunpack.c.h.b16 %v4570
    %v4929 = vunpack.c.l.b16 %v4571
    %v4930 = vunpack.c.h.b16 %v4571
    %v4931 = vunpack.c.l.b16 %v4572
    %v4932 = vunpack.c.h.b16 %v4572
    %v4933 = vunpack.c.l.b16 %v4573
    %v4934 = vunpack.c.h.b16 %v4573
    %v4935 = vunpack.c.l.b16 %v4574
    %v4936 = vunpack.c.h.b16 %v4574
    %v4937 = vunpack.c.l.b16 %v4575
    %v4938 = vunpack.c.h.b16 %v4575
    %v4939 = vunpack.c.l.b16 %v4576
    %v4940 = vunpack.c.h.b16 %v4576
    %v4941 = vunpack.c.l.b16 %v4577
    %v4942 = vunpack.c.h.b16 %v4577
    %v4943 = vunpack.c.l.b16 %v4578
    %v4944 = vunpack.c.h.b16 %v4578
    %v4945 = vunpack.c.l.b16 %v4579
    %v4946 = vunpack.c.h.b16 %v4579
    %v4947 = vunpack.c.l.b16 %v4580
    %v4948 = vunpack.c.h.b16 %v4580
    %v4949 = vunpack.c.l.b16 %v4581
    %v4950 = vunpack.c.h.b16 %v4581
    %v4951 = vunpack.c.l.b16 %v4582
    %v4952 = vunpack.c.h.b16 %v4582
    %v4953 = vunpack.c.l.b16 %v4583
    %v4954 = vunpack.c.h.b16 %v4583
    %v4955 = vunpack.c.l.b16 %v4584
    %v4956 = vunpack.c.h.b16 %v4584
    %v4957 = vunpack.c.l.b16 %v4585
    %v4958 = vunpack.c.h.b16 %v4585
    %v4959 = vunpack.c.l.b16 %v4586
    %v4960 = vunpack.c.h.b16 %v4586
    %v4961 = vunpack.c.l.b16 %v4587
    %v4962 = vunpack.c.h.b16 %v4587
    %v4963 = vunpack.c.l.b16 %v4588
    %v4964 = vunpack.c.h.b16 %v4588
    %v4965 = vunpack.c.l.b16 %v4589
    %v4966 = vunpack.c.h.b16 %v4589
    %v4967 = vunpack.c.l.b16 %v4590
    %v4968 = vunpack.c.h.b16 %v4590
    %v4969 = vunpack.c.l.b16 %v4591
    %v4970 = vunpack.c.h.b16 %v4591
    %v4971 = vunpack.c.l.b16 %v4592
    %v4972 = vunpack.c.h.b16 %v4592
    %v4973 = vunpack.c.l.b16 %v4593
    %v4974 = vunpack.c.h.b16 %v4593
    %v4975 = vunpack.c.l.b16 %v4594
    %v4976 = vunpack.c.h.b16 %v4594
    %v4977 = vunpack.c.l.b16 %v4595
    %v4978 = vunpack.c.h.b16 %v4595
    %v4979 = vunpack.c.l.b16 %v4596
    %v4980 = vunpack.c.h.b16 %v4596
    %v4981 = vunpack.c.l.b16 %v4597
    %v4982 = vunpack.c.h.b16 %v4597
    %v4983 = vunpack.c.l.b16 %v4598
    %v4984 = vunpack.c.h.b16 %v4598
    %v4985 = vunpack.c.l.b16 %v4599
    %v4986 = vunpack.c.h.b16 %v4599
    %v4987 = vunpack.c.l.b16 %v4600
    %v4988 = vunpack.c.h.b16 %v4600
    %v4989 = vunpack.c.l.b16 %v4601
    %v4990 = vunpack.c.h.b16 %v4601
    %v4991 = vunpack.c.l.b16 %v4602
    %v4992 = vunpack.c.h.b16 %v4602
    %v4993 = vunpack.c.l.b16 %v4603
    %v4994 = vunpack.c.h.b16 %v4603
    %v4995 = vunpack.c.l.b16 %v4604
    %v4996 = vunpack.c.h.b16 %v4604
    %v4997 = vunpack.c.l.b16 %v4605
    %v4998 = vunpack.c.h.b16 %v4605
    %v4999 = vunpack.c.l.b16 %v4606
    %v5000 = vunpack.c.h.b16 %v4606
    %v5001 = vunpack.c.l.b16 %v4607
    %v5002 = vunpack.c.h.b16 %v4607
    %v5003 = vunpack.c.l.b16 %v4608
    %v5004 = vunpack.c.h.b16 %v4608
    %v5005 = vunpack.c.l.b16 %v4609
    %v5006 = vunpack.c.h.b16 %v4609
    %v5007 = vunpack.c.l.b16 %v4610
    %v5008 = vunpack.c.h.b16 %v4610
    %v5009 = vunpack.c.l.b16 %v4611
    %v5010 = vunpack.c.h.b16 %v4611
    %v5011 = vunpack.c.l.b16 %v4612
    %v5012 = vunpack.c.h.b16 %v4612
    %v5013 = vunpack.c.l.b16 %v4613
    %v5014 = vunpack.c.h.b16 %v4613
    %v5015 = vunpack.c.l.b16 %v4614
    %v5016 = vunpack.c.h.b16 %v4614
    %v5017 = vunpack.c.l.b16 %v4615
    %v5018 = vunpack.c.h.b16 %v4615
    %v5019 = vunpack.c.l.b16 %v4616
    %v5020 = vunpack.c.h.b16 %v4616
    %v5021 = vunpack.c.l.b16 %v4617
    %v5022 = vunpack.c.h.b16 %v4617
    %v5023 = vunpack.c.l.b16 %v4618
    %v5024 = vunpack.c.h.b16 %v4618
    %v5025 = vpack.c.b16 %v4773, %v4769
    %v5026 = vpack.c.b16 %v4774, %v4770
    %v5027 = vpack.c.b16 %v4775, %v4771
    %v5028 = vpack.c.b16 %v4776, %v4772
    %v5029 = vpack.c.b16 %v4781, %v4777
    %v5030 = vpack.c.b16 %v4782, %v4778
    %v5031 = vpack.c.b16 %v4783, %v4779
    %v5032 = vpack.c.b16 %v4784, %v4780
    %v5033 = vpack.c.b16 %v4789, %v4785
    %v5034 = vpack.c.b16 %v4790, %v4786
    %v5035 = vpack.c.b16 %v4791, %v4787
    %v5036 = vpack.c.b16 %v4792, %v4788
    %v5037 = vpack.c.b16 %v4797, %v4793
    %v5038 = vpack.c.b16 %v4798, %v4794
    %v5039 = vpack.c.b16 %v4799, %v4795
    %v5040 = vpack.c.b16 %v4800, %v4796
    %v5041 = vpack.c.b16 %v4805, %v4801
    %v5042 = vpack.c.b16 %v4806, %v4802
    %v5043 = vpack.c.b16 %v4807, %v4803
    %v5044 = vpack.c.b16 %v4808, %v4804
    %v5045 = vpack.c.b16 %v4813, %v4809
    %v5046 = vpack.c.b16 %v4814, %v4810
    %v5047 = vpack.c.b16 %v4815, %v4811
    %v5048 = vpack.c.b16 %v4816, %v4812
    %v5049 = vpack.c.b16 %v4821, %v4817
    %v5050 = vpack.c.b16 %v4822, %v4818
    %v5051 = vpack.c.b16 %v4823, %v4819
    %v5052 = vpack.c.b16 %v4824, %v4820
    %v5053 = vpack.c.b16 %v4829, %v4825
    %v5054 = vpack.c.b16 %v4830, %v4826
    %v5055 = vpack.c.b16 %v4831, %v4827
    %v5056 = vpack.c.b16 %v4832, %v4828
    %v5057 = vpack.c.b16 %v4837, %v4833
    %v5058 = vpack.c.b16 %v4838, %v4834
    %v5059 = vpack.c.b16 %v4839, %v4835
    %v5060 = vpack.c.b16 %v4840, %v4836
    %v5061 = vpack.c.b16 %v4845, %v4841
    %v5062 = vpack.c.b16 %v4846, %v4842
    %v5063 = vpack.c.b16 %v4847, %v4843
    %v5064 = vpack.c.b16 %v4848, %v4844
    %v5065 = vpack.c.b16 %v4853, %v4849
    %v5066 = vpack.c.b16 %v4854, %v4850
    %v5067 = vpack.c.b16 %v4855, %v4851
    %v5068 = vpack.c.b16 %v4856, %v4852
    %v5069 = vpack.c.b16 %v4861, %v4857
    %v5070 = vpack.c.b16 %v4862, %v4858
    %v5071 = vpack.c.b16 %v4863, %v4859
    %v5072 = vpack.c.b16 %v4864, %v4860
    %v5073 = vpack.c.b16 %v4869, %v4865
    %v5074 = vpack.c.b16 %v4870, %v4866
    %v5075 = vpack.c.b16 %v4871, %v4867
    %v5076 = vpack.c.b16 %v4872, %v4868
    %v5077 = vpack.c.b16 %v4877, %v4873
    %v5078 = vpack.c.b16 %v4878, %v4874
    %v5079 = vpack.c.b16 %v4879, %v4875
    %v5080 = vpack.c.b16 %v4880, %v4876
    %v5081 = vpack.c.b16 %v4885, %v4881
    %v5082 = vpack.c.b16 %v4886, %v4882
    %v5083 = vpack.c.b16 %v4887, %v4883
    %v5084 = vpack.c.b16 %v4888, %v4884
    %v5085 = vpack.c.b16 %v4893, %v4889
    %v5086 = vpack.c.b16 %v4894, %v4890
    %v5087 = vpack.c.b16 %v4895, %v4891
    %v5088 = vpack.c.b16 %v4896, %v4892
    %v5089 = vpack.c.b16 %v4901, %v4897
    %v5090 = vpack.c.b16 %v4902, %v4898
    %v5091 = vpack.c.b16 %v4903, %v4899
    %v5092 = vpack.c.b16 %v4904, %v4900
    %v5093 = vpack.c.b16 %v4909, %v4905
    %v5094 = vpack.c.b16 %v4910, %v4906
    %v5095 = vpack.c.b16 %v4911, %v4907
    %v5096 = vpack.c.b16 %v4912, %v4908
    %v5097 = vpack.c.b16 %v4917, %v4913
    %v5098 = vpack.c.b16 %v4918, %v4914
    %v5099 = vpack.c.b16 %v4919, %v4915
    %v5100 = vpack.c.b16 %v4920, %v4916
    %v5101 = vpack.c.b16 %v4925, %v4921
    %v5102 = vpack.c.b16 %v4926, %v4922
    %v5103 = vpack.c.b16 %v4927, %v4923
    %v5104 = vpack.c.b16 %v4928, %v4924
    %v5105 = vpack.c.b16 %v4933, %v4929
    %v5106 = vpack.c.b16 %v4934, %v4930
    %v5107 = vpack.c.b16 %v4935, %v4931
    %v5108 = vpack.c.b16 %v4936, %v4932
    %v5109 = vpack.c.b16 %v4941, %v4937
    %v5110 = vpack.c.b16 %v4942, %v4938
    %v5111 = vpack.c.b16 %v4943, %v4939
    %v5112 = vpack.c.b16 %v4944, %v4940
    %v5113 = vpack.c.b16 %v4949, %v4945
    %v5114 = vpack.c.b16 %v4950, %v4946
    %v5115 = vpack.c.b16 %v4951, %v4947
    %v5116 = vpack.c.b16 %v4952, %v4948
    %v5117 = vpack.c.b16 %v4957, %v4953
    %v5118 = vpack.c.b16 %v4958, %v4954
    %v5119 = vpack.c.b16 %v4959, %v4955
    %v5120 = vpack.c.b16 %v4960, %v4956
    %v5121 = vpack.c.b16 %v4965, %v4961
    %v5122 = vpack.c.b16 %v4966, %v4962
    %v5123 = vpack.c.b16 %v4967, %v4963
    %v5124 = vpack.c.b16 %v4968, %v4964
    %v5125 = vpack.c.b16 %v4973, %v4969
    %v5126 = vpack.c.b16 %v4974, %v4970
    %v5127 = vpack.c.b16 %v4975, %v4971
    %v5128 = vpack.c.b16 %v4976, %v4972
    %v5129 = vpack.c.b16 %v4981, %v4977
    %v5130 = vpack.c.b16 %v4982, %v4978
    %v5131 = vpack.c.b16 %v4983, %v4979
    %v5132 = vpack.c.b16 %v4984, %v4980
    %v5133 = vpack.c.b16 %v4989, %v4985
    %v5134 = vpack.c.b16 %v4990, %v4986
    %v5135 = vpack.c.b16 %v4991, %v4987
    %v5136 = vpack.c.b16 %v4992, %v4988
    %v5137 = vpack.c.b16 %v4997, %v4993
    %v5138 = vpack.c.b16 %v4998, %v4994
    %v5139 = vpack.c.b16 %v4999, %v4995
    %v5140 = vpack.c.b16 %v5000, %v4996
    %v5141 = vpack.c.b16 %v5005, %v5001
    %v5142 = vpack.c.b16 %v5006, %v5002
    %v5143 = vpack.c.b16 %v5007, %v5003
    %v5144 = vpack.c.b16 %v5008, %v5004
    %v5145 = vpack.c.b16 %v5013, %v5009
    %v5146 = vpack.c.b16 %v5014, %v5010
    %v5147 = vpack.c.b16 %v5015, %v5011
    %v5148 = vpack.c.b16 %v5016, %v5012
    %v5149 = vpack.c.b16 %v5021, %v5017
    %v5150 = vpack.c.b16 %v5022, %v5018
    %v5151 = vpack.c.b16 %v5023, %v5019
    %v5152 = vpack.c.b16 %v5024, %v5020
    %5281 = vmatprep.subr.bf16.mxu0 %v5026
    %5282 = vmatpush1.bf16.msra.mxu0 %v5025
    %5283 = vmatprep.subr.bf16.mxu0 %v5030
    %5284 = vmatpush1.bf16.msra.mxu0 %v5029
    %5285 = vmatprep.subr.bf16.mxu0 %v5034
    %5286 = vmatpush1.bf16.msra.mxu0 %v5033
    %5287 = vmatprep.subr.bf16.mxu0 %v5038
    %5288 = vmatpush1.bf16.msra.mxu0 %v5037
    %5289 = vmatprep.subr.bf16.mxu0 %v5042
    %5290 = vmatpush1.bf16.msra.mxu0 %v5041
    %5291 = vmatprep.subr.bf16.mxu0 %v5046
    %5292 = vmatpush1.bf16.msra.mxu0 %v5045
    %5293 = vmatprep.subr.bf16.mxu0 %v5050
    %5294 = vmatpush1.bf16.msra.mxu0 %v5049
    %5295 = vmatprep.subr.bf16.mxu0 %v5054
    %5296 = vmatpush1.bf16.msra.mxu0 %v5053
    %5297 = vmatprep.subr.bf16.mxu0 %v5058
    %5298 = vmatpush1.bf16.msra.mxu0 %v5057
    %5299 = vmatprep.subr.bf16.mxu0 %v5062
    %5300 = vmatpush1.bf16.msra.mxu0 %v5061
    %5301 = vmatprep.subr.bf16.mxu0 %v5066
    %5302 = vmatpush1.bf16.msra.mxu0 %v5065
    %5303 = vmatprep.subr.bf16.mxu0 %v5070
    %5304 = vmatpush1.bf16.msra.mxu0 %v5069
    %5305 = vmatprep.subr.bf16.mxu0 %v5074
    %5306 = vmatpush1.bf16.msra.mxu0 %v5073
    %5307 = vmatprep.subr.bf16.mxu0 %v5078
    %5308 = vmatpush1.bf16.msra.mxu0 %v5077
    %5309 = vmatprep.subr.bf16.mxu0 %v5082
    %5310 = vmatpush1.bf16.msra.mxu0 %v5081
    %5311 = vmatprep.subr.bf16.mxu0 %v5086
    %5312 = vmatpush1.bf16.msra.mxu0 %v5085
    %5313 = vmatprep.mubr.bf16.mxu0 %v3490
    %5314 = vmatmul.mubr.bf16.gmra.mrb[0].mxu0 %v3489
    %v5315 = vpop.f32.mrb[0].mxu0
    %v5316 = vadd.f32 %v4624, %v5315
    %v5317 = vpop.f32.mrb[0].mxu0
    %v5318 = vadd.f32 %v4628, %v5317
    %v5319 = vpop.f32.mrb[0].mxu0
    %v5320 = vadd.f32 %v4624, %v5319
    %v5321 = vpop.f32.mrb[0].mxu0
    %v5322 = vadd.f32 %v4628, %v5321
    %5323 = vdwg.mxu0
    %5324 = vmatprep.subr.bf16.mxu0 %v5090
    %5325 = vmatpush1.bf16.msra.mxu0 %v5089
    %5326 = vmatprep.subr.bf16.mxu0 %v5094
    %5327 = vmatpush1.bf16.msra.mxu0 %v5093
    %5328 = vmatprep.subr.bf16.mxu0 %v5098
    %5329 = vmatpush1.bf16.msra.mxu0 %v5097
    %5330 = vmatprep.subr.bf16.mxu0 %v5102
    %5331 = vmatpush1.bf16.msra.mxu0 %v5101
    %5332 = vmatprep.subr.bf16.mxu0 %v5106
    %5333 = vmatpush1.bf16.msra.mxu0 %v5105
    %5334 = vmatprep.subr.bf16.mxu0 %v5110
    %5335 = vmatpush1.bf16.msra.mxu0 %v5109
    %5336 = vmatprep.subr.bf16.mxu0 %v5114
    %5337 = vmatpush1.bf16.msra.mxu0 %v5113
    %5338 = vmatprep.subr.bf16.mxu0 %v5118
    %5339 = vmatpush1.bf16.msra.mxu0 %v5117
    %5340 = vmatprep.subr.bf16.mxu0 %v5122
    %5341 = vmatpush1.bf16.msra.mxu0 %v5121
    %5342 = vmatprep.subr.bf16.mxu0 %v5126
    %5343 = vmatpush1.bf16.msra.mxu0 %v5125
    %5344 = vmatprep.subr.bf16.mxu0 %v5130
    %5345 = vmatpush1.bf16.msra.mxu0 %v5129
    %5346 = vmatprep.subr.bf16.mxu0 %v5134
    %5347 = vmatpush1.bf16.msra.mxu0 %v5133
    %5348 = vmatprep.subr.bf16.mxu0 %v5138
    %5349 = vmatpush1.bf16.msra.mxu0 %v5137
    %5350 = vmatprep.subr.bf16.mxu0 %v5142
    %5351 = vmatpush1.bf16.msra.mxu0 %v5141
    %5352 = vmatprep.subr.bf16.mxu0 %v5146
    %5353 = vmatpush1.bf16.msra.mxu0 %v5145
    %5354 = vmatprep.subr.bf16.mxu0 %v5150
    %5355 = vmatpush1.bf16.msra.mxu0 %v5149
    %5356 = vmatprep.mubr.bf16.mxu0 %v3492
    %5357 = vmatmul.mubr.bf16.gmra.mrb[0].mxu0 %v3491
    %v5358 = vpop.f32.mrb[0].mxu0
    %v5359 = vadd.f32 %v5316, %v5358
    %v5360 = vpop.f32.mrb[0].mxu0
    %v5361 = vadd.f32 %v5318, %v5360
    %v5362 = vpop.f32.mrb[0].mxu0
    %v5363 = vadd.f32 %v5320, %v5362
    %v5364 = vpop.f32.mrb[0].mxu0
    %v5365 = vadd.f32 %v5322, %v5364
    %5366 = vdwg.mxu0
    %5367 = vmatprep.subr.bf16.mxu0 %v5028
    %5368 = vmatpush1.bf16.msra.mxu0 %v5027
    %5369 = vmatprep.subr.bf16.mxu0 %v5032
    %5370 = vmatpush1.bf16.msra.mxu0 %v5031
    %5371 = vmatprep.subr.bf16.mxu0 %v5036
    %5372 = vmatpush1.bf16.msra.mxu0 %v5035
    %5373 = vmatprep.subr.bf16.mxu0 %v5040
    %5374 = vmatpush1.bf16.msra.mxu0 %v5039
    %5375 = vmatprep.subr.bf16.mxu0 %v5044
    %5376 = vmatpush1.bf16.msra.mxu0 %v5043
    %5377 = vmatprep.subr.bf16.mxu0 %v5048
    %5378 = vmatpush1.bf16.msra.mxu0 %v5047
    %5379 = vmatprep.subr.bf16.mxu0 %v5052
    %5380 = vmatpush1.bf16.msra.mxu0 %v5051
    %5381 = vmatprep.subr.bf16.mxu0 %v5056
    %5382 = vmatpush1.bf16.msra.mxu0 %v5055
    %5383 = vmatprep.subr.bf16.mxu0 %v5060
    %5384 = vmatpush1.bf16.msra.mxu0 %v5059
    %5385 = vmatprep.subr.bf16.mxu0 %v5064
    %5386 = vmatpush1.bf16.msra.mxu0 %v5063
    %5387 = vmatprep.subr.bf16.mxu0 %v5068
    %5388 = vmatpush1.bf16.msra.mxu0 %v5067
    %5389 = vmatprep.subr.bf16.mxu0 %v5072
    %5390 = vmatpush1.bf16.msra.mxu0 %v5071
    %5391 = vmatprep.subr.bf16.mxu0 %v5076
    %5392 = vmatpush1.bf16.msra.mxu0 %v5075
    %5393 = vmatprep.subr.bf16.mxu0 %v5080
    %5394 = vmatpush1.bf16.msra.mxu0 %v5079
    %5395 = vmatprep.subr.bf16.mxu0 %v5084
    %5396 = vmatpush1.bf16.msra.mxu0 %v5083
    %5397 = vmatprep.subr.bf16.mxu0 %v5088
    %5398 = vmatpush1.bf16.msra.mxu0 %v5087
    %5399 = vmatprep.mubr.bf16.mxu0 %v3490
    %5400 = vmatmul.mubr.bf16.gmra.mrb[0].mxu0 %v3489
    %v5401 = vpop.f32.mrb[0].mxu0
    %v5402 = vadd.f32 %v4632, %v5401
    %v5403 = vpop.f32.mrb[0].mxu0
    %v5404 = vadd.f32 %v4636, %v5403
    %v5405 = vpop.f32.mrb[0].mxu0
    %v5406 = vadd.f32 %v4632, %v5405
    %v5407 = vpop.f32.mrb[0].mxu0
    %v5408 = vadd.f32 %v4636, %v5407
    %5409 = vdwg.mxu0
    %5410 = vmatprep.subr.bf16.mxu0 %v5092
    %5411 = vmatpush1.bf16.msra.mxu0 %v5091
    %5412 = vmatprep.subr.bf16.mxu0 %v5096
    %5413 = vmatpush1.bf16.msra.mxu0 %v5095
    %5414 = vmatprep.subr.bf16.mxu0 %v5100
    %5415 = vmatpush1.bf16.msra.mxu0 %v5099
    %5416 = vmatprep.subr.bf16.mxu0 %v5104
    %5417 = vmatpush1.bf16.msra.mxu0 %v5103
    %5418 = vmatprep.subr.bf16.mxu0 %v5108
    %5419 = vmatpush1.bf16.msra.mxu0 %v5107
    %5420 = vmatprep.subr.bf16.mxu0 %v5112
    %5421 = vmatpush1.bf16.msra.mxu0 %v5111
    %5422 = vmatprep.subr.bf16.mxu0 %v5116
    %5423 = vmatpush1.bf16.msra.mxu0 %v5115
    %5424 = vmatprep.subr.bf16.mxu0 %v5120
    %5425 = vmatpush1.bf16.msra.mxu0 %v5119
    %5426 = vmatprep.subr.bf16.mxu0 %v5124
    %5427 = vmatpush1.bf16.msra.mxu0 %v5123
    %5428 = vmatprep.subr.bf16.mxu0 %v5128
    %5429 = vmatpush1.bf16.msra.mxu0 %v5127
    %5430 = vmatprep.subr.bf16.mxu0 %v5132
    %5431 = vmatpush1.bf16.msra.mxu0 %v5131
    %5432 = vmatprep.subr.bf16.mxu0 %v5136
    %5433 = vmatpush1.bf16.msra.mxu0 %v5135
    %5434 = vmatprep.subr.bf16.mxu0 %v5140
    %5435 = vmatpush1.bf16.msra.mxu0 %v5139
    %5436 = vmatprep.subr.bf16.mxu0 %v5144
    %5437 = vmatpush1.bf16.msra.mxu0 %v5143
    %5438 = vmatprep.subr.bf16.mxu0 %v5148
    %5439 = vmatpush1.bf16.msra.mxu0 %v5147
    %5440 = vmatprep.subr.bf16.mxu0 %v5152
    %5441 = vmatpush1.bf16.msra.mxu0 %v5151
    %5442 = vmatprep.mubr.bf16.mxu0 %v3492
    %5443 = vmatmul.mubr.bf16.gmra.mrb[0].mxu0 %v3491
    %v5444 = vpop.f32.mrb[0].mxu0
    %v5445 = vadd.f32 %v5402, %v5444
    %v5446 = vpop.f32.mrb[0].mxu0
    %v5447 = vadd.f32 %v5404, %v5446
    %v5448 = vpop.f32.mrb[0].mxu0
    %v5449 = vadd.f32 %v5406, %v5448
    %v5450 = vpop.f32.mrb[0].mxu0
    %v5451 = vadd.f32 %v5408, %v5450
    %5452 = vdwg.mxu0
    %v5453 = vmax.f32 %v5359, 0.0
    %v5454 = vmax.f32 %v5361, 0.0
    %v5455 = vmax.f32 %v5445, 0.0
    %v5456 = vmax.f32 %v5447, 0.0
    %v5457 = vmax.f32 %v5363, 0.0
    %v5458 = vmax.f32 %v5365, 0.0
    %v5459 = vmax.f32 %v5449, 0.0
    %v5460 = vmax.f32 %v5451, 0.0
    %v5461 = vpack.c.bf16 %v5457, %v5453
    %v5462 = vpack.c.bf16 %v5458, %v5454
    %v5463 = vpack.c.bf16 %v5459, %v5455
    %v5464 = vpack.c.bf16 %v5460, %v5456
    %v5469 = vunpack.c.l.b16 %v5461
    %v5470 = vunpack.c.l.b16 %v5462
    %v5471 = vunpack.c.l.b16 %v5463
    %v5472 = vunpack.c.l.b16 %v5464
    %v5473 = vunpack.c.h.b16 %v5461
    %v5474 = vunpack.c.h.b16 %v5462
    %v5475 = vunpack.c.h.b16 %v5463
    %v5476 = vunpack.c.h.b16 %v5464
    %v5477 = vpack.c.b16 %v5470, %v5469
    %v5478 = vpack.c.b16 %v5472, %v5471
    %v5479 = vpack.c.b16 %v5474, %v5473
    %v5480 = vpack.c.b16 %v5476, %v5475
    %5485 = vst [vmem:[%s11 + $0x20] sm:$0xff] %v5477
    %5486 = vst [vmem:[%s11 + $0x28] sm:$0xff] %v5478
    %5487 = vst [vmem:[%s11 + $0x50] sm:$0xff] %v5479
    %5488 = vst [vmem:[%s11 + $0x58] sm:$0xff] %v5480
    // Predicated region
    $region66: #{first_block_forward.1} parent=1 // pred_check
      _
    $region67: #{first_block_forward.1} parent=1 // pred_check_branch
      %5490 = sbr.rel (0) target = $region69
    $region68: #{first_block_forward.1} parent=1 // pred_region
      _
    $region69: #{first_block_forward.1} parent=1 // pred_fallthru
      _
    // Predicated region
    $region70: #{first_block_forward.1} parent=1 // pred_check
      _
    $region71: #{first_block_forward.1} parent=1 // pred_check_branch
      %5492 = sbr.rel (0) target = $region73
    $region72: #{first_block_forward.1} parent=1 // pred_region
      _
    $region73: #{first_block_forward.1} parent=1 // pred_fallthru
      _
    %5493 = vsyncpa [#allocation3], 1
    %5494 = vsyncpa [#allocation5], 1
    %5495 = vsyncpa [#allocation8], 1

</llo_original>
